<compile_context>
chip_gen: v7x
topology: tpu7x:2x2x1
jax: 0.10.0
libtpu: 0.0.40
codegen_flags: <defaults>
</compile_context>

<pallas_src>
import math

import numpy as np
import jax
import jax.numpy as jnp
from jax.experimental import pallas as pl
from jax.experimental.pallas import tpu as pltpu

# ---------------- model hyper-parameters (small synthetic backbone) ----------------
B = 2            # batch
C = 3            # channels
H = W = 16       # spatial
PATCH = 4        # patch size
P = (H // PATCH) * (W // PATCH)        # 16 patches
PD = C * PATCH * PATCH                 # 48 patch dim
D = 32           # hidden size ("input_size" of the head in the synthetic backbone)
NUM_LAYERS = 2
NUM_HEADS = 4
HEAD_DIM = D // NUM_HEADS
MLP = 4 * D
S = P + 1        # real tokens = patches + CLS = 17
S_PAD = 24       # tokens padded to a multiple of 8 sublanes
N_OUT = 3        # head output size
EPS = 1e-6

SLAB_W = 128     # lane width of the packed parameter slab


# ---------------- parameter slab layout (static, shared by packer & kernel) --------
def _build_slab_layout():
    layout = {}
    r = 0

    def reg(name, nrows, ncols):
        nonlocal r
        r = ((r + 7) // 8) * 8           # 8-align every entry's start row
        layout[name] = (r, nrows, ncols)
        r += nrows

    reg("wp", PD, D)                     # patch-embedding weight
    reg("add", B * S_PAD, D)             # fused (cls + pos / bp + pos) additive term
    reg("kmask", S_PAD, S_PAD)           # additive key-padding mask (0 / -1e30)
    for l in range(NUM_LAYERS):
        reg(f"ln1g_{l}", 1, D)
        reg(f"ln1b_{l}", 1, D)
        for hd in range(NUM_HEADS):
            reg(f"wq_{l}_{hd}", D, HEAD_DIM)     # pre-scaled by 1/sqrt(HEAD_DIM)
            reg(f"wk_{l}_{hd}", D, HEAD_DIM)
            reg(f"wv_{l}_{hd}", D, HEAD_DIM)
            reg(f"wo_{l}_{hd}", HEAD_DIM, D)
            reg(f"bq_{l}_{hd}", 1, HEAD_DIM)     # pre-scaled by 1/sqrt(HEAD_DIM)
            reg(f"bk_{l}_{hd}", 1, HEAD_DIM)
            reg(f"bv_{l}_{hd}", 1, HEAD_DIM)
        reg(f"bo_{l}", 1, D)
        reg(f"ln2g_{l}", 1, D)
        reg(f"ln2b_{l}", 1, D)
        reg(f"w1_{l}", D, MLP)
        reg(f"b1_{l}", 1, MLP)
        reg(f"w2_{l}", MLP, D)
        reg(f"b2_{l}", 1, D)
    reg("lnfg", 1, D)
    reg("lnfb", 1, D)
    reg("wh", D, N_OUT)
    reg("bh", 1, N_OUT)
    total = ((r + 7) // 8) * 8
    return layout, total


_SLAB, SLAB_ROWS = _build_slab_layout()


def _layer_norm(x, g, b):
    mean = jnp.mean(x, axis=-1, keepdims=True)
    var = jnp.mean(jnp.square(x - mean), axis=-1, keepdims=True)
    return (x - mean) * jax.lax.rsqrt(var + EPS) * g + b


# ---------------- the fused Pallas kernel ----------------
def _tf_kernel(patches_ref, slab_ref, out_ref):
    def get(name):
        r0, nr, nc = _SLAB[name]
        return slab_ref[r0:r0 + nr, 0:nc]

    # Patch embedding + fused (CLS / pos-emb / patch-bias) additive term.
    # All tokens of all batches live in one 8-aligned [B*S_PAD, D] matrix.
    h = jnp.dot(patches_ref[...], get("wp"),
                preferred_element_type=jnp.float32) + get("add")        # [B*S_PAD, D]

    # Additive key-padding mask, hoisted & pre-broadcast once.
    kmask = jnp.broadcast_to(get("kmask"), (B, S_PAD, S_PAD))

    for l in range(NUM_LAYERS):
        # ---- multi-head self-attention (pre-LN) ----
        hn = _layer_norm(h, get(f"ln1g_{l}"), get(f"ln1b_{l}"))          # [B*S_PAD, D]
        attn = jnp.zeros((B * S_PAD, D), jnp.float32)
        for hd in range(NUM_HEADS):
            # Per-head projections from per-head weight blocks: no lane slicing of
            # activations, no transposes, no concatenation of head outputs.
            qh = jnp.dot(hn, get(f"wq_{l}_{hd}"),
                         preferred_element_type=jnp.float32) + get(f"bq_{l}_{hd}")
            kh = jnp.dot(hn, get(f"wk_{l}_{hd}"),
                         preferred_element_type=jnp.float32) + get(f"bk_{l}_{hd}")
            vh = jnp.dot(hn, get(f"wv_{l}_{hd}"),
                         preferred_element_type=jnp.float32) + get(f"bv_{l}_{hd}")
            q3 = qh.reshape(B, S_PAD, HEAD_DIM)
            k3 = kh.reshape(B, S_PAD, HEAD_DIM)
            v3 = vh.reshape(B, S_PAD, HEAD_DIM)

            # scores (1/sqrt(head_dim) already folded into wq/bq) + key-pad mask
            s = jnp.einsum("bqd,bkd->bqk", q3, k3,
                           preferred_element_type=jnp.float32) + kmask   # [B,Sp,Sp]
            mx = jnp.max(s, axis=-1, keepdims=True)
            e = jnp.exp(s - mx)
            a = e * pl.reciprocal(jnp.sum(e, axis=-1, keepdims=True), approx=True)

            o3 = jnp.einsum("bqk,bkd->bqd", a, v3,
                            preferred_element_type=jnp.float32)          # [B,Sp,HD]
            # Accumulate this head's slice of the output projection.
            attn = attn + jnp.dot(o3.reshape(B * S_PAD, HEAD_DIM),
                                  get(f"wo_{l}_{hd}"),
                                  preferred_element_type=jnp.float32)
        h = h + attn + get(f"bo_{l}")

        # ---- MLP (pre-LN) ----
        hn = _layer_norm(h, get(f"ln2g_{l}"), get(f"ln2b_{l}"))
        m1 = jnp.dot(hn, get(f"w1_{l}"),
                     preferred_element_type=jnp.float32) + get(f"b1_{l}")
        m1 = jax.nn.gelu(m1)
        h = h + jnp.dot(m1, get(f"w2_{l}"),
                        preferred_element_type=jnp.float32) + get(f"b2_{l}")

    # ---- final LN on the CLS rows only (last_hidden_state[:, 0, :]) + head ----
    cls = jnp.concatenate([h[b * S_PAD:b * S_PAD + 1, :] for b in range(B)], axis=0)
    cls = _layer_norm(cls, get("lnfg"), get("lnfb"))
    out_ref[...] = jnp.dot(cls, get("wh"),
                           preferred_element_type=jnp.float32) + get("bh")


# ---------------- parameter init & packing ----------------
def init_params(key):
    ks = jax.random.split(key, 8)
    s = 0.02
    return dict(
        wp=s * jax.random.normal(ks[0], (PD, D), jnp.float32),
        bp=jnp.zeros((1, D), jnp.float32),
        cls=s * jax.random.normal(ks[1], (1, D), jnp.float32),
        pos=s * jax.random.normal(ks[2], (S, D), jnp.float32),
        wqkv=s * jax.random.normal(ks[3], (NUM_LAYERS, D, 3 * D), jnp.float32),
        bqkv=jnp.zeros((NUM_LAYERS, 3 * D), jnp.float32),
        wo=s * jax.random.normal(ks[4], (NUM_LAYERS, D, D), jnp.float32),
        bo=jnp.zeros((NUM_LAYERS, D), jnp.float32),
        ln1g=jnp.ones((NUM_LAYERS, D), jnp.float32),
        ln1b=jnp.zeros((NUM_LAYERS, D), jnp.float32),
        w1=s * jax.random.normal(ks[5], (NUM_LAYERS, D, MLP), jnp.float32),
        b1=jnp.zeros((NUM_LAYERS, MLP), jnp.float32),
        w2=s * jax.random.normal(ks[6], (NUM_LAYERS, MLP, D), jnp.float32),
        b2=jnp.zeros((NUM_LAYERS, D), jnp.float32),
        ln2g=jnp.ones((NUM_LAYERS, D), jnp.float32),
        ln2b=jnp.zeros((NUM_LAYERS, D), jnp.float32),
        lnfg=jnp.ones((1, D), jnp.float32),
        lnfb=jnp.zeros((1, D), jnp.float32),
        wh=s * jax.random.normal(ks[7], (D, N_OUT), jnp.float32),
        bh=jnp.zeros((1, N_OUT), jnp.float32),
    )


def pack_params(p):
    """Pack all parameters into one f32 slab [SLAB_ROWS, 128] (done once at init)."""
    slab = np.zeros((SLAB_ROWS, SLAB_W), np.float32)

    def put(name, arr):
        r0, nr, nc = _SLAB[name]
        slab[r0:r0 + nr, 0:nc] = np.asarray(arr, np.float32).reshape(nr, nc)

    put("wp", p["wp"])

    # Fused additive term: row 0 = cls + pos[0]; rows 1..P = bp + pos[s]; rest 0.
    pos = np.asarray(p["pos"], np.float32)
    add = np.zeros((S_PAD, D), np.float32)
    add[0] = np.asarray(p["cls"], np.float32).reshape(D) + pos[0]
    add[1:P + 1] = np.asarray(p["bp"], np.float32).reshape(1, D) + pos[1:P + 1]
    put("add", np.tile(add, (B, 1)))

    # Additive key-padding mask: 0 for real keys (< S), -1e30 for padded keys.
    kmask_row = np.where(np.arange(S_PAD) < S, 0.0, -1e30).astype(np.float32)
    put("kmask", np.broadcast_to(kmask_row[None, :], (S_PAD, S_PAD)))

    scale = 1.0 / math.sqrt(HEAD_DIM)
    for l in range(NUM_LAYERS):
        put(f"ln1g_{l}", np.asarray(p["ln1g"][l]).reshape(1, D))
        put(f"ln1b_{l}", np.asarray(p["ln1b"][l]).reshape(1, D))
        wqkv = np.asarray(p["wqkv"][l], np.float32)            # [D, 3D]
        bqkv = np.asarray(p["bqkv"][l], np.float32)            # [3D]
        wo = np.asarray(p["wo"][l], np.float32)                # [D, D]
        for hd in range(NUM_HEADS):
            sl = slice(hd * HEAD_DIM, (hd + 1) * HEAD_DIM)
            put(f"wq_{l}_{hd}", wqkv[:, 0 * D:1 * D][:, sl] * scale)
            put(f"wk_{l}_{hd}", wqkv[:, 1 * D:2 * D][:, sl])
            put(f"wv_{l}_{hd}", wqkv[:, 2 * D:3 * D][:, sl])
            put(f"wo_{l}_{hd}", wo[sl, :])
            put(f"bq_{l}_{hd}", bqkv[0 * D:1 * D][sl].reshape(1, HEAD_DIM) * scale)
            put(f"bk_{l}_{hd}", bqkv[1 * D:2 * D][sl].reshape(1, HEAD_DIM))
            put(f"bv_{l}_{hd}", bqkv[2 * D:3 * D][sl].reshape(1, HEAD_DIM))
        put(f"bo_{l}", np.asarray(p["bo"][l]).reshape(1, D))
        put(f"ln2g_{l}", np.asarray(p["ln2g"][l]).reshape(1, D))
        put(f"ln2b_{l}", np.asarray(p["ln2b"][l]).reshape(1, D))
        put(f"w1_{l}", p["w1"][l])
        put(f"b1_{l}", np.asarray(p["b1"][l]).reshape(1, MLP))
        put(f"w2_{l}", p["w2"][l])
        put(f"b2_{l}", np.asarray(p["b2"][l]).reshape(1, D))
    put("lnfg", p["lnfg"])
    put("lnfb", p["lnfb"])
    put("wh", p["wh"])
    put("bh", p["bh"])
    return jnp.asarray(slab)


# ---------------- glue: patch extraction + pallas_call ----------------
def _patchify(x):
    # x: [B, C, H, W]  ->  [B, P, C*PATCH*PATCH]
    b, c, h, w = x.shape
    x = x.reshape(b, c, h // PATCH, PATCH, w // PATCH, PATCH)
    x = x.transpose(0, 2, 4, 1, 3, 5)
    return x.reshape(b, (h // PATCH) * (w // PATCH), c * PATCH * PATCH)


@jax.jit
def tf_model_forward(x, slab):
    # torch.squeeze(x) on a [B,1,C,H,W] input -> [B,C,H,W]; squeeze only the known
    # singleton axis so batch=1 would not break (review correctness concern).
    x = jnp.squeeze(x, axis=1)
    patches = _patchify(x.astype(jnp.float32))                        # [B, P, PD]
    # Row 0 reserved for CLS (zero patch), rows P+1..S_PAD-1 are padding.
    patches_padded = jnp.pad(patches, ((0, 0), (1, S_PAD - 1 - P), (0, 0)))
    patches2d = patches_padded.reshape(B * S_PAD, PD)                 # [48, 48]

    out = pl.pallas_call(
        _tf_kernel,
        grid=(1,),
        in_specs=[
            pl.BlockSpec((B * S_PAD, PD), lambda i: (0, 0)),
            pl.BlockSpec((SLAB_ROWS, SLAB_W), lambda i: (0, 0)),
        ],
        out_specs=pl.BlockSpec((B, N_OUT), lambda i: (0, 0)),
        out_shape=jax.ShapeDtypeStruct((B, N_OUT), jnp.float32),
        compiler_params=pltpu.CompilerParams(
            dimension_semantics=("arbitrary",)),
    )(patches2d, slab)
    return out


# ---------------- pure-JAX reference (same ops, no Pallas) ----------------
def _ref_forward(x, p):
    x = jnp.squeeze(x, axis=1)
    patches = _patchify(x.astype(jnp.float32))
    tok = patches @ p["wp"] + p["bp"]
    h = jnp.concatenate([jnp.broadcast_to(p["cls"], (B, 1, D)), tok], axis=1) + p["pos"]
    for l in range(NUM_LAYERS):
        hn = _layer_norm(h, p["ln1g"][l], p["ln1b"][l])
        qkv = hn @ p["wqkv"][l] + p["bqkv"][l]
        q, k, v = qkv[..., :D], qkv[..., D:2 * D], qkv[..., 2 * D:]
        outs = []
        for hd in range(NUM_HEADS):
            sl = slice(hd * HEAD_DIM, (hd + 1) * HEAD_DIM)
            s = jnp.einsum("bqd,bkd->bqk", q[..., sl], k[..., sl]) / math.sqrt(HEAD_DIM)
            a = jax.nn.softmax(s, axis=-1)
            outs.append(jnp.einsum("bqk,bkd->bqd", a, v[..., sl]))
        attn = jnp.concatenate(outs, axis=-1) @ p["wo"][l] + p["bo"][l]
        h = h + attn
        hn = _layer_norm(h, p["ln2g"][l], p["ln2b"][l])
        m = jax.nn.gelu(hn @ p["w1"][l] + p["b1"][l]) @ p["w2"][l] + p["b2"][l]
        h = h + m
    hn = _layer_norm(h, p["lnfg"], p["lnfb"])
    cls = hn[:, 0, :]
    return cls @ p["wh"] + p["bh"]


if __name__ == "__main__":
    key = jax.random.PRNGKey(0)
    kx, kp = jax.random.split(key)
    x = jax.random.normal(kx, (B, 1, C, H, W), jnp.float32)   # [2, 1, 3, 16, 16]
    params = init_params(kp)
    slab = pack_params(params)                                # packed once at init

    out = tf_model_forward(x, slab)
    out = jax.block_until_ready(out)
    assert out.shape == (B, N_OUT)

    ref = _ref_forward(x, params)
    assert jnp.allclose(out, ref, rtol=2e-2, atol=2e-2), (out, ref)

    print("KERNEL_OK")
</pallas_src>

<mosaic_0001>
module attributes {stable_mosaic.version = 11 : i64} {
  func.func @_tf_kernel(%arg0: i32, %arg1: memref<48x48xf32, #tpu.memory_space<vmem>>, %arg2: memref<1632x128xf32, #tpu.memory_space<vmem>>, %arg3: memref<2x3xf32, #tpu.memory_space<vmem>>) attributes {dimension_semantics = [#tpu.dimension_semantics<arbitrary>], iteration_bounds = array<i64: 1>, scalar_prefetch = 0 : i64, scratch_operands = 0 : i64, tpu.core_type = #tpu.core_type<tc>, window_params = [{pipeline_mode = #tpu.pipeline_mode<synchronous>, transform_indices = @transform_0, window_bounds = array<i64: 48, 48>}, {pipeline_mode = #tpu.pipeline_mode<synchronous>, transform_indices = @transform_1, window_bounds = array<i64: 1632, 128>}, {pipeline_mode = #tpu.pipeline_mode<synchronous>, transform_indices = @transform_2, window_bounds = array<i64: 2, 3>}]} {
    %c0 = arith.constant 0 : index
    %c0_0 = arith.constant 0 : index
    %0 = vector.load %arg1[%c0, %c0_0] : memref<48x48xf32, #tpu.memory_space<vmem>>, vector<48x48xf32>
    %c0_1 = arith.constant 0 : index
    %c0_2 = arith.constant 0 : index
    %1 = vector.load %arg2[%c0_1, %c0_2] : memref<1632x128xf32, #tpu.memory_space<vmem>>, vector<48x32xf32>
    %cst = arith.constant dense<0.000000e+00> : vector<48x32xf32>
    %2 = tpu.matmul %0, %1, %cst {dimension_numbers = #tpu.dot_dimension_numbers<[1], [0], [0], [1], [0, 0, 1, 1], [], []>} : vector<48x48xf32>, vector<48x32xf32>, vector<48x32xf32> -> vector<48x32xf32>
    %c48 = arith.constant 48 : index
    %c0_3 = arith.constant 0 : index
    %3 = vector.load %arg2[%c48, %c0_3] : memref<1632x128xf32, #tpu.memory_space<vmem>>, vector<48x32xf32>
    %4 = arith.addf %2, %3 : vector<48x32xf32>
    %c96 = arith.constant 96 : index
    %c0_4 = arith.constant 0 : index
    %5 = vector.load %arg2[%c96, %c0_4] : memref<1632x128xf32, #tpu.memory_space<vmem>>, vector<24x24xf32>
    %6 = vector.shape_cast %5 : vector<24x24xf32> to vector<1x24x24xf32>
    %7 = vector.broadcast %6 : vector<1x24x24xf32> to vector<2x24x24xf32>
    %c120 = arith.constant 120 : index
    %c0_5 = arith.constant 0 : index
    %8 = vector.load %arg2[%c120, %c0_5] : memref<1632x128xf32, #tpu.memory_space<vmem>>, vector<1x32xf32>
    %c128 = arith.constant 128 : index
    %c0_6 = arith.constant 0 : index
    %9 = vector.load %arg2[%c128, %c0_6] : memref<1632x128xf32, #tpu.memory_space<vmem>>, vector<1x32xf32>
    %cst_7 = arith.constant dense<0.000000e+00> : vector<48xf32>
    %10 = vector.multi_reduction <add>, %4, %cst_7 [1] : vector<48x32xf32> to vector<48xf32>
    %11 = vector.shape_cast %10 : vector<48xf32> to vector<48x1xf32>
    %cst_8 = arith.constant 3.200000e+01 : f32
    %12 = vector.broadcast %cst_8 : f32 to vector<48x1xf32>
    %13 = arith.divf %11, %12 : vector<48x1xf32>
    %14 = vector.broadcast %13 : vector<48x1xf32> to vector<48x32xf32>
    %15 = arith.subf %4, %14 : vector<48x32xf32>
    %16 = arith.mulf %15, %15 : vector<48x32xf32>
    %cst_9 = arith.constant dense<0.000000e+00> : vector<48xf32>
    %17 = vector.multi_reduction <add>, %16, %cst_9 [1] : vector<48x32xf32> to vector<48xf32>
    %18 = vector.shape_cast %17 : vector<48xf32> to vector<48x1xf32>
    %cst_10 = arith.constant 3.200000e+01 : f32
    %19 = vector.broadcast %cst_10 : f32 to vector<48x1xf32>
    %20 = arith.divf %18, %19 : vector<48x1xf32>
    %21 = vector.broadcast %13 : vector<48x1xf32> to vector<48x32xf32>
    %22 = arith.subf %4, %21 : vector<48x32xf32>
    %cst_11 = arith.constant 9.99999997E-7 : f32
    %23 = vector.broadcast %cst_11 : f32 to vector<48x1xf32>
    %24 = arith.addf %20, %23 : vector<48x1xf32>
    %25 = math.rsqrt %24 : vector<48x1xf32>
    %26 = vector.broadcast %25 : vector<48x1xf32> to vector<48x32xf32>
    %27 = arith.mulf %22, %26 : vector<48x32xf32>
    %28 = vector.broadcast %8 : vector<1x32xf32> to vector<48x32xf32>
    %29 = arith.mulf %27, %28 : vector<48x32xf32>
    %30 = vector.broadcast %9 : vector<1x32xf32> to vector<48x32xf32>
    %31 = arith.addf %29, %30 : vector<48x32xf32>
    %cst_12 = arith.constant 0.000000e+00 : f32
    %32 = vector.broadcast %cst_12 : f32 to vector<48x32xf32>
    %c136 = arith.constant 136 : index
    %c0_13 = arith.constant 0 : index
    %33 = vector.load %arg2[%c136, %c0_13] : memref<1632x128xf32, #tpu.memory_space<vmem>>, vector<32x8xf32>
    %cst_14 = arith.constant dense<0.000000e+00> : vector<48x8xf32>
    %34 = tpu.matmul %31, %33, %cst_14 {dimension_numbers = #tpu.dot_dimension_numbers<[1], [0], [0], [1], [0, 0, 1, 1], [], []>} : vector<48x32xf32>, vector<32x8xf32>, vector<48x8xf32> -> vector<48x8xf32>
    %c240 = arith.constant 240 : index
    %c0_15 = arith.constant 0 : index
    %35 = vector.load %arg2[%c240, %c0_15] : memref<1632x128xf32, #tpu.memory_space<vmem>>, vector<1x8xf32>
    %36 = vector.broadcast %35 : vector<1x8xf32> to vector<48x8xf32>
    %37 = arith.addf %34, %36 : vector<48x8xf32>
    %c168 = arith.constant 168 : index
    %c0_16 = arith.constant 0 : index
    %38 = vector.load %arg2[%c168, %c0_16] : memref<1632x128xf32, #tpu.memory_space<vmem>>, vector<32x8xf32>
    %cst_17 = arith.constant dense<0.000000e+00> : vector<48x8xf32>
    %39 = tpu.matmul %31, %38, %cst_17 {dimension_numbers = #tpu.dot_dimension_numbers<[1], [0], [0], [1], [0, 0, 1, 1], [], []>} : vector<48x32xf32>, vector<32x8xf32>, vector<48x8xf32> -> vector<48x8xf32>
    %c248 = arith.constant 248 : index
    %c0_18 = arith.constant 0 : index
    %40 = vector.load %arg2[%c248, %c0_18] : memref<1632x128xf32, #tpu.memory_space<vmem>>, vector<1x8xf32>
    %41 = vector.broadcast %40 : vector<1x8xf32> to vector<48x8xf32>
    %42 = arith.addf %39, %41 : vector<48x8xf32>
    %c200 = arith.constant 200 : index
    %c0_19 = arith.constant 0 : index
    %43 = vector.load %arg2[%c200, %c0_19] : memref<1632x128xf32, #tpu.memory_space<vmem>>, vector<32x8xf32>
    %cst_20 = arith.constant dense<0.000000e+00> : vector<48x8xf32>
    %44 = tpu.matmul %31, %43, %cst_20 {dimension_numbers = #tpu.dot_dimension_numbers<[1], [0], [0], [1], [0, 0, 1, 1], [], []>} : vector<48x32xf32>, vector<32x8xf32>, vector<48x8xf32> -> vector<48x8xf32>
    %c256 = arith.constant 256 : index
    %c0_21 = arith.constant 0 : index
    %45 = vector.load %arg2[%c256, %c0_21] : memref<1632x128xf32, #tpu.memory_space<vmem>>, vector<1x8xf32>
    %46 = vector.broadcast %45 : vector<1x8xf32> to vector<48x8xf32>
    %47 = arith.addf %44, %46 : vector<48x8xf32>
    %48 = vector.shape_cast %37 : vector<48x8xf32> to vector<2x24x8xf32>
    %49 = vector.shape_cast %42 : vector<48x8xf32> to vector<2x24x8xf32>
    %50 = vector.shape_cast %47 : vector<48x8xf32> to vector<2x24x8xf32>
    "tpu.trace_start"() <{level = 10 : i32, message = "bqd,bkd->bqk"}> : () -> ()
    %cst_22 = arith.constant dense<0.000000e+00> : vector<2x24x24xf32>
    %51 = tpu.matmul %48, %49, %cst_22 {dimension_numbers = #tpu.dot_dimension_numbers<[2], [2], [1], [1], [0, 0, 0, 1, 1, 1], [0], [0]>} : vector<2x24x8xf32>, vector<2x24x8xf32>, vector<2x24x24xf32> -> vector<2x24x24xf32>
    "tpu.trace_stop"() : () -> ()
    %52 = arith.addf %51, %7 : vector<2x24x24xf32>
    %cst_23 = arith.constant dense<0xFF800000> : vector<2x24xf32>
    %53 = vector.multi_reduction <maximumf>, %52, %cst_23 [2] : vector<2x24x24xf32> to vector<2x24xf32>
    %54 = vector.shape_cast %53 : vector<2x24xf32> to vector<2x24x1xf32>
    %55 = vector.broadcast %54 : vector<2x24x1xf32> to vector<2x24x24xf32>
    %56 = arith.subf %52, %55 : vector<2x24x24xf32>
    %57 = math.exp %56 : vector<2x24x24xf32>
    %cst_24 = arith.constant dense<0.000000e+00> : vector<2x24xf32>
    %58 = vector.multi_reduction <add>, %57, %cst_24 [2] : vector<2x24x24xf32> to vector<2x24xf32>
    %59 = vector.shape_cast %58 : vector<2x24xf32> to vector<2x24x1xf32>
    %60 = tpu.reciprocal %59 {approx = true} : vector<2x24x1xf32> -> vector<2x24x1xf32>
    %61 = vector.broadcast %60 : vector<2x24x1xf32> to vector<2x24x24xf32>
    %62 = arith.mulf %57, %61 : vector<2x24x24xf32>
    "tpu.trace_start"() <{level = 10 : i32, message = "bqk,bkd->bqd"}> : () -> ()
    %cst_25 = arith.constant dense<0.000000e+00> : vector<2x24x8xf32>
    %63 = tpu.matmul %62, %50, %cst_25 {dimension_numbers = #tpu.dot_dimension_numbers<[2], [1], [1], [2], [0, 0, 0, 1, 1, 2], [0], [0]>} : vector<2x24x24xf32>, vector<2x24x8xf32>, vector<2x24x8xf32> -> vector<2x24x8xf32>
    "tpu.trace_stop"() : () -> ()
    %64 = vector.shape_cast %63 : vector<2x24x8xf32> to vector<48x8xf32>
    %c232 = arith.constant 232 : index
    %c0_26 = arith.constant 0 : index
    %65 = vector.load %arg2[%c232, %c0_26] : memref<1632x128xf32, #tpu.memory_space<vmem>>, vector<8x32xf32>
    %cst_27 = arith.constant dense<0.000000e+00> : vector<48x32xf32>
    %66 = tpu.matmul %64, %65, %cst_27 {dimension_numbers = #tpu.dot_dimension_numbers<[1], [0], [0], [1], [0, 0, 1, 1], [], []>} : vector<48x8xf32>, vector<8x32xf32>, vector<48x32xf32> -> vector<48x32xf32>
    %67 = arith.addf %32, %66 : vector<48x32xf32>
    %c264 = arith.constant 264 : index
    %c0_28 = arith.constant 0 : index
    %68 = vector.load %arg2[%c264, %c0_28] : memref<1632x128xf32, #tpu.memory_space<vmem>>, vector<32x8xf32>
    %cst_29 = arith.constant dense<0.000000e+00> : vector<48x8xf32>
    %69 = tpu.matmul %31, %68, %cst_29 {dimension_numbers = #tpu.dot_dimension_numbers<[1], [0], [0], [1], [0, 0, 1, 1], [], []>} : vector<48x32xf32>, vector<32x8xf32>, vector<48x8xf32> -> vector<48x8xf32>
    %c368 = arith.constant 368 : index
    %c0_30 = arith.constant 0 : index
    %70 = vector.load %arg2[%c368, %c0_30] : memref<1632x128xf32, #tpu.memory_space<vmem>>, vector<1x8xf32>
    %71 = vector.broadcast %70 : vector<1x8xf32> to vector<48x8xf32>
    %72 = arith.addf %69, %71 : vector<48x8xf32>
    %c296 = arith.constant 296 : index
    %c0_31 = arith.constant 0 : index
    %73 = vector.load %arg2[%c296, %c0_31] : memref<1632x128xf32, #tpu.memory_space<vmem>>, vector<32x8xf32>
    %cst_32 = arith.constant dense<0.000000e+00> : vector<48x8xf32>
    %74 = tpu.matmul %31, %73, %cst_32 {dimension_numbers = #tpu.dot_dimension_numbers<[1], [0], [0], [1], [0, 0, 1, 1], [], []>} : vector<48x32xf32>, vector<32x8xf32>, vector<48x8xf32> -> vector<48x8xf32>
    %c376 = arith.constant 376 : index
    %c0_33 = arith.constant 0 : index
    %75 = vector.load %arg2[%c376, %c0_33] : memref<1632x128xf32, #tpu.memory_space<vmem>>, vector<1x8xf32>
    %76 = vector.broadcast %75 : vector<1x8xf32> to vector<48x8xf32>
    %77 = arith.addf %74, %76 : vector<48x8xf32>
    %c328 = arith.constant 328 : index
    %c0_34 = arith.constant 0 : index
    %78 = vector.load %arg2[%c328, %c0_34] : memref<1632x128xf32, #tpu.memory_space<vmem>>, vector<32x8xf32>
    %cst_35 = arith.constant dense<0.000000e+00> : vector<48x8xf32>
    %79 = tpu.matmul %31, %78, %cst_35 {dimension_numbers = #tpu.dot_dimension_numbers<[1], [0], [0], [1], [0, 0, 1, 1], [], []>} : vector<48x32xf32>, vector<32x8xf32>, vector<48x8xf32> -> vector<48x8xf32>
    %c384 = arith.constant 384 : index
    %c0_36 = arith.constant 0 : index
    %80 = vector.load %arg2[%c384, %c0_36] : memref<1632x128xf32, #tpu.memory_space<vmem>>, vector<1x8xf32>
    %81 = vector.broadcast %80 : vector<1x8xf32> to vector<48x8xf32>
    %82 = arith.addf %79, %81 : vector<48x8xf32>
    %83 = vector.shape_cast %72 : vector<48x8xf32> to vector<2x24x8xf32>
    %84 = vector.shape_cast %77 : vector<48x8xf32> to vector<2x24x8xf32>
    %85 = vector.shape_cast %82 : vector<48x8xf32> to vector<2x24x8xf32>
    "tpu.trace_start"() <{level = 10 : i32, message = "bqd,bkd->bqk"}> : () -> ()
    %cst_37 = arith.constant dense<0.000000e+00> : vector<2x24x24xf32>
    %86 = tpu.matmul %83, %84, %cst_37 {dimension_numbers = #tpu.dot_dimension_numbers<[2], [2], [1], [1], [0, 0, 0, 1, 1, 1], [0], [0]>} : vector<2x24x8xf32>, vector<2x24x8xf32>, vector<2x24x24xf32> -> vector<2x24x24xf32>
    "tpu.trace_stop"() : () -> ()
    %87 = arith.addf %86, %7 : vector<2x24x24xf32>
    %cst_38 = arith.constant dense<0xFF800000> : vector<2x24xf32>
    %88 = vector.multi_reduction <maximumf>, %87, %cst_38 [2] : vector<2x24x24xf32> to vector<2x24xf32>
    %89 = vector.shape_cast %88 : vector<2x24xf32> to vector<2x24x1xf32>
    %90 = vector.broadcast %89 : vector<2x24x1xf32> to vector<2x24x24xf32>
    %91 = arith.subf %87, %90 : vector<2x24x24xf32>
    %92 = math.exp %91 : vector<2x24x24xf32>
    %cst_39 = arith.constant dense<0.000000e+00> : vector<2x24xf32>
    %93 = vector.multi_reduction <add>, %92, %cst_39 [2] : vector<2x24x24xf32> to vector<2x24xf32>
    %94 = vector.shape_cast %93 : vector<2x24xf32> to vector<2x24x1xf32>
    %95 = tpu.reciprocal %94 {approx = true} : vector<2x24x1xf32> -> vector<2x24x1xf32>
    %96 = vector.broadcast %95 : vector<2x24x1xf32> to vector<2x24x24xf32>
    %97 = arith.mulf %92, %96 : vector<2x24x24xf32>
    "tpu.trace_start"() <{level = 10 : i32, message = "bqk,bkd->bqd"}> : () -> ()
    %cst_40 = arith.constant dense<0.000000e+00> : vector<2x24x8xf32>
    %98 = tpu.matmul %97, %85, %cst_40 {dimension_numbers = #tpu.dot_dimension_numbers<[2], [1], [1], [2], [0, 0, 0, 1, 1, 2], [0], [0]>} : vector<2x24x24xf32>, vector<2x24x8xf32>, vector<2x24x8xf32> -> vector<2x24x8xf32>
    "tpu.trace_stop"() : () -> ()
    %99 = vector.shape_cast %98 : vector<2x24x8xf32> to vector<48x8xf32>
    %c360 = arith.constant 360 : index
    %c0_41 = arith.constant 0 : index
    %100 = vector.load %arg2[%c360, %c0_41] : memref<1632x128xf32, #tpu.memory_space<vmem>>, vector<8x32xf32>
    %cst_42 = arith.constant dense<0.000000e+00> : vector<48x32xf32>
    %101 = tpu.matmul %99, %100, %cst_42 {dimension_numbers = #tpu.dot_dimension_numbers<[1], [0], [0], [1], [0, 0, 1, 1], [], []>} : vector<48x8xf32>, vector<8x32xf32>, vector<48x32xf32> -> vector<48x32xf32>
    %102 = arith.addf %67, %101 : vector<48x32xf32>
    %c392 = arith.constant 392 : index
    %c0_43 = arith.constant 0 : index
    %103 = vector.load %arg2[%c392, %c0_43] : memref<1632x128xf32, #tpu.memory_space<vmem>>, vector<32x8xf32>
    %cst_44 = arith.constant dense<0.000000e+00> : vector<48x8xf32>
    %104 = tpu.matmul %31, %103, %cst_44 {dimension_numbers = #tpu.dot_dimension_numbers<[1], [0], [0], [1], [0, 0, 1, 1], [], []>} : vector<48x32xf32>, vector<32x8xf32>, vector<48x8xf32> -> vector<48x8xf32>
    %c496 = arith.constant 496 : index
    %c0_45 = arith.constant 0 : index
    %105 = vector.load %arg2[%c496, %c0_45] : memref<1632x128xf32, #tpu.memory_space<vmem>>, vector<1x8xf32>
    %106 = vector.broadcast %105 : vector<1x8xf32> to vector<48x8xf32>
    %107 = arith.addf %104, %106 : vector<48x8xf32>
    %c424 = arith.constant 424 : index
    %c0_46 = arith.constant 0 : index
    %108 = vector.load %arg2[%c424, %c0_46] : memref<1632x128xf32, #tpu.memory_space<vmem>>, vector<32x8xf32>
    %cst_47 = arith.constant dense<0.000000e+00> : vector<48x8xf32>
    %109 = tpu.matmul %31, %108, %cst_47 {dimension_numbers = #tpu.dot_dimension_numbers<[1], [0], [0], [1], [0, 0, 1, 1], [], []>} : vector<48x32xf32>, vector<32x8xf32>, vector<48x8xf32> -> vector<48x8xf32>
    %c504 = arith.constant 504 : index
    %c0_48 = arith.constant 0 : index
    %110 = vector.load %arg2[%c504, %c0_48] : memref<1632x128xf32, #tpu.memory_space<vmem>>, vector<1x8xf32>
    %111 = vector.broadcast %110 : vector<1x8xf32> to vector<48x8xf32>
    %112 = arith.addf %109, %111 : vector<48x8xf32>
    %c456 = arith.constant 456 : index
    %c0_49 = arith.constant 0 : index
    %113 = vector.load %arg2[%c456, %c0_49] : memref<1632x128xf32, #tpu.memory_space<vmem>>, vector<32x8xf32>
    %cst_50 = arith.constant dense<0.000000e+00> : vector<48x8xf32>
    %114 = tpu.matmul %31, %113, %cst_50 {dimension_numbers = #tpu.dot_dimension_numbers<[1], [0], [0], [1], [0, 0, 1, 1], [], []>} : vector<48x32xf32>, vector<32x8xf32>, vector<48x8xf32> -> vector<48x8xf32>
    %c512 = arith.constant 512 : index
    %c0_51 = arith.constant 0 : index
    %115 = vector.load %arg2[%c512, %c0_51] : memref<1632x128xf32, #tpu.memory_space<vmem>>, vector<1x8xf32>
    %116 = vector.broadcast %115 : vector<1x8xf32> to vector<48x8xf32>
    %117 = arith.addf %114, %116 : vector<48x8xf32>
    %118 = vector.shape_cast %107 : vector<48x8xf32> to vector<2x24x8xf32>
    %119 = vector.shape_cast %112 : vector<48x8xf32> to vector<2x24x8xf32>
    %120 = vector.shape_cast %117 : vector<48x8xf32> to vector<2x24x8xf32>
    "tpu.trace_start"() <{level = 10 : i32, message = "bqd,bkd->bqk"}> : () -> ()
    %cst_52 = arith.constant dense<0.000000e+00> : vector<2x24x24xf32>
    %121 = tpu.matmul %118, %119, %cst_52 {dimension_numbers = #tpu.dot_dimension_numbers<[2], [2], [1], [1], [0, 0, 0, 1, 1, 1], [0], [0]>} : vector<2x24x8xf32>, vector<2x24x8xf32>, vector<2x24x24xf32> -> vector<2x24x24xf32>
    "tpu.trace_stop"() : () -> ()
    %122 = arith.addf %121, %7 : vector<2x24x24xf32>
    %cst_53 = arith.constant dense<0xFF800000> : vector<2x24xf32>
    %123 = vector.multi_reduction <maximumf>, %122, %cst_53 [2] : vector<2x24x24xf32> to vector<2x24xf32>
    %124 = vector.shape_cast %123 : vector<2x24xf32> to vector<2x24x1xf32>
    %125 = vector.broadcast %124 : vector<2x24x1xf32> to vector<2x24x24xf32>
    %126 = arith.subf %122, %125 : vector<2x24x24xf32>
    %127 = math.exp %126 : vector<2x24x24xf32>
    %cst_54 = arith.constant dense<0.000000e+00> : vector<2x24xf32>
    %128 = vector.multi_reduction <add>, %127, %cst_54 [2] : vector<2x24x24xf32> to vector<2x24xf32>
    %129 = vector.shape_cast %128 : vector<2x24xf32> to vector<2x24x1xf32>
    %130 = tpu.reciprocal %129 {approx = true} : vector<2x24x1xf32> -> vector<2x24x1xf32>
    %131 = vector.broadcast %130 : vector<2x24x1xf32> to vector<2x24x24xf32>
    %132 = arith.mulf %127, %131 : vector<2x24x24xf32>
    "tpu.trace_start"() <{level = 10 : i32, message = "bqk,bkd->bqd"}> : () -> ()
    %cst_55 = arith.constant dense<0.000000e+00> : vector<2x24x8xf32>
    %133 = tpu.matmul %132, %120, %cst_55 {dimension_numbers = #tpu.dot_dimension_numbers<[2], [1], [1], [2], [0, 0, 0, 1, 1, 2], [0], [0]>} : vector<2x24x24xf32>, vector<2x24x8xf32>, vector<2x24x8xf32> -> vector<2x24x8xf32>
    "tpu.trace_stop"() : () -> ()
    %134 = vector.shape_cast %133 : vector<2x24x8xf32> to vector<48x8xf32>
    %c488 = arith.constant 488 : index
    %c0_56 = arith.constant 0 : index
    %135 = vector.load %arg2[%c488, %c0_56] : memref<1632x128xf32, #tpu.memory_space<vmem>>, vector<8x32xf32>
    %cst_57 = arith.constant dense<0.000000e+00> : vector<48x32xf32>
    %136 = tpu.matmul %134, %135, %cst_57 {dimension_numbers = #tpu.dot_dimension_numbers<[1], [0], [0], [1], [0, 0, 1, 1], [], []>} : vector<48x8xf32>, vector<8x32xf32>, vector<48x32xf32> -> vector<48x32xf32>
    %137 = arith.addf %102, %136 : vector<48x32xf32>
    %c520 = arith.constant 520 : index
    %c0_58 = arith.constant 0 : index
    %138 = vector.load %arg2[%c520, %c0_58] : memref<1632x128xf32, #tpu.memory_space<vmem>>, vector<32x8xf32>
    %cst_59 = arith.constant dense<0.000000e+00> : vector<48x8xf32>
    %139 = tpu.matmul %31, %138, %cst_59 {dimension_numbers = #tpu.dot_dimension_numbers<[1], [0], [0], [1], [0, 0, 1, 1], [], []>} : vector<48x32xf32>, vector<32x8xf32>, vector<48x8xf32> -> vector<48x8xf32>
    %c624 = arith.constant 624 : index
    %c0_60 = arith.constant 0 : index
    %140 = vector.load %arg2[%c624, %c0_60] : memref<1632x128xf32, #tpu.memory_space<vmem>>, vector<1x8xf32>
    %141 = vector.broadcast %140 : vector<1x8xf32> to vector<48x8xf32>
    %142 = arith.addf %139, %141 : vector<48x8xf32>
    %c552 = arith.constant 552 : index
    %c0_61 = arith.constant 0 : index
    %143 = vector.load %arg2[%c552, %c0_61] : memref<1632x128xf32, #tpu.memory_space<vmem>>, vector<32x8xf32>
    %cst_62 = arith.constant dense<0.000000e+00> : vector<48x8xf32>
    %144 = tpu.matmul %31, %143, %cst_62 {dimension_numbers = #tpu.dot_dimension_numbers<[1], [0], [0], [1], [0, 0, 1, 1], [], []>} : vector<48x32xf32>, vector<32x8xf32>, vector<48x8xf32> -> vector<48x8xf32>
    %c632 = arith.constant 632 : index
    %c0_63 = arith.constant 0 : index
    %145 = vector.load %arg2[%c632, %c0_63] : memref<1632x128xf32, #tpu.memory_space<vmem>>, vector<1x8xf32>
    %146 = vector.broadcast %145 : vector<1x8xf32> to vector<48x8xf32>
    %147 = arith.addf %144, %146 : vector<48x8xf32>
    %c584 = arith.constant 584 : index
    %c0_64 = arith.constant 0 : index
    %148 = vector.load %arg2[%c584, %c0_64] : memref<1632x128xf32, #tpu.memory_space<vmem>>, vector<32x8xf32>
    %cst_65 = arith.constant dense<0.000000e+00> : vector<48x8xf32>
    %149 = tpu.matmul %31, %148, %cst_65 {dimension_numbers = #tpu.dot_dimension_numbers<[1], [0], [0], [1], [0, 0, 1, 1], [], []>} : vector<48x32xf32>, vector<32x8xf32>, vector<48x8xf32> -> vector<48x8xf32>
    %c640 = arith.constant 640 : index
    %c0_66 = arith.constant 0 : index
    %150 = vector.load %arg2[%c640, %c0_66] : memref<1632x128xf32, #tpu.memory_space<vmem>>, vector<1x8xf32>
    %151 = vector.broadcast %150 : vector<1x8xf32> to vector<48x8xf32>
    %152 = arith.addf %149, %151 : vector<48x8xf32>
    %153 = vector.shape_cast %142 : vector<48x8xf32> to vector<2x24x8xf32>
    %154 = vector.shape_cast %147 : vector<48x8xf32> to vector<2x24x8xf32>
    %155 = vector.shape_cast %152 : vector<48x8xf32> to vector<2x24x8xf32>
    "tpu.trace_start"() <{level = 10 : i32, message = "bqd,bkd->bqk"}> : () -> ()
    %cst_67 = arith.constant dense<0.000000e+00> : vector<2x24x24xf32>
    %156 = tpu.matmul %153, %154, %cst_67 {dimension_numbers = #tpu.dot_dimension_numbers<[2], [2], [1], [1], [0, 0, 0, 1, 1, 1], [0], [0]>} : vector<2x24x8xf32>, vector<2x24x8xf32>, vector<2x24x24xf32> -> vector<2x24x24xf32>
    "tpu.trace_stop"() : () -> ()
    %157 = arith.addf %156, %7 : vector<2x24x24xf32>
    %cst_68 = arith.constant dense<0xFF800000> : vector<2x24xf32>
    %158 = vector.multi_reduction <maximumf>, %157, %cst_68 [2] : vector<2x24x24xf32> to vector<2x24xf32>
    %159 = vector.shape_cast %158 : vector<2x24xf32> to vector<2x24x1xf32>
    %160 = vector.broadcast %159 : vector<2x24x1xf32> to vector<2x24x24xf32>
    %161 = arith.subf %157, %160 : vector<2x24x24xf32>
    %162 = math.exp %161 : vector<2x24x24xf32>
    %cst_69 = arith.constant dense<0.000000e+00> : vector<2x24xf32>
    %163 = vector.multi_reduction <add>, %162, %cst_69 [2] : vector<2x24x24xf32> to vector<2x24xf32>
    %164 = vector.shape_cast %163 : vector<2x24xf32> to vector<2x24x1xf32>
    %165 = tpu.reciprocal %164 {approx = true} : vector<2x24x1xf32> -> vector<2x24x1xf32>
    %166 = vector.broadcast %165 : vector<2x24x1xf32> to vector<2x24x24xf32>
    %167 = arith.mulf %162, %166 : vector<2x24x24xf32>
    "tpu.trace_start"() <{level = 10 : i32, message = "bqk,bkd->bqd"}> : () -> ()
    %cst_70 = arith.constant dense<0.000000e+00> : vector<2x24x8xf32>
    %168 = tpu.matmul %167, %155, %cst_70 {dimension_numbers = #tpu.dot_dimension_numbers<[2], [1], [1], [2], [0, 0, 0, 1, 1, 2], [0], [0]>} : vector<2x24x24xf32>, vector<2x24x8xf32>, vector<2x24x8xf32> -> vector<2x24x8xf32>
    "tpu.trace_stop"() : () -> ()
    %169 = vector.shape_cast %168 : vector<2x24x8xf32> to vector<48x8xf32>
    %c616 = arith.constant 616 : index
    %c0_71 = arith.constant 0 : index
    %170 = vector.load %arg2[%c616, %c0_71] : memref<1632x128xf32, #tpu.memory_space<vmem>>, vector<8x32xf32>
    %cst_72 = arith.constant dense<0.000000e+00> : vector<48x32xf32>
    %171 = tpu.matmul %169, %170, %cst_72 {dimension_numbers = #tpu.dot_dimension_numbers<[1], [0], [0], [1], [0, 0, 1, 1], [], []>} : vector<48x8xf32>, vector<8x32xf32>, vector<48x32xf32> -> vector<48x32xf32>
    %172 = arith.addf %137, %171 : vector<48x32xf32>
    %173 = arith.addf %4, %172 : vector<48x32xf32>
    %c648 = arith.constant 648 : index
    %c0_73 = arith.constant 0 : index
    %174 = vector.load %arg2[%c648, %c0_73] : memref<1632x128xf32, #tpu.memory_space<vmem>>, vector<1x32xf32>
    %175 = vector.broadcast %174 : vector<1x32xf32> to vector<48x32xf32>
    %176 = arith.addf %173, %175 : vector<48x32xf32>
    %c656 = arith.constant 656 : index
    %c0_74 = arith.constant 0 : index
    %177 = vector.load %arg2[%c656, %c0_74] : memref<1632x128xf32, #tpu.memory_space<vmem>>, vector<1x32xf32>
    %c664 = arith.constant 664 : index
    %c0_75 = arith.constant 0 : index
    %178 = vector.load %arg2[%c664, %c0_75] : memref<1632x128xf32, #tpu.memory_space<vmem>>, vector<1x32xf32>
    %cst_76 = arith.constant dense<0.000000e+00> : vector<48xf32>
    %179 = vector.multi_reduction <add>, %176, %cst_76 [1] : vector<48x32xf32> to vector<48xf32>
    %180 = vector.shape_cast %179 : vector<48xf32> to vector<48x1xf32>
    %cst_77 = arith.constant 3.200000e+01 : f32
    %181 = vector.broadcast %cst_77 : f32 to vector<48x1xf32>
    %182 = arith.divf %180, %181 : vector<48x1xf32>
    %183 = vector.broadcast %182 : vector<48x1xf32> to vector<48x32xf32>
    %184 = arith.subf %176, %183 : vector<48x32xf32>
    %185 = arith.mulf %184, %184 : vector<48x32xf32>
    %cst_78 = arith.constant dense<0.000000e+00> : vector<48xf32>
    %186 = vector.multi_reduction <add>, %185, %cst_78 [1] : vector<48x32xf32> to vector<48xf32>
    %187 = vector.shape_cast %186 : vector<48xf32> to vector<48x1xf32>
    %cst_79 = arith.constant 3.200000e+01 : f32
    %188 = vector.broadcast %cst_79 : f32 to vector<48x1xf32>
    %189 = arith.divf %187, %188 : vector<48x1xf32>
    %190 = vector.broadcast %182 : vector<48x1xf32> to vector<48x32xf32>
    %191 = arith.subf %176, %190 : vector<48x32xf32>
    %cst_80 = arith.constant 9.99999997E-7 : f32
    %192 = vector.broadcast %cst_80 : f32 to vector<48x1xf32>
    %193 = arith.addf %189, %192 : vector<48x1xf32>
    %194 = math.rsqrt %193 : vector<48x1xf32>
    %195 = vector.broadcast %194 : vector<48x1xf32> to vector<48x32xf32>
    %196 = arith.mulf %191, %195 : vector<48x32xf32>
    %197 = vector.broadcast %177 : vector<1x32xf32> to vector<48x32xf32>
    %198 = arith.mulf %196, %197 : vector<48x32xf32>
    %199 = vector.broadcast %178 : vector<1x32xf32> to vector<48x32xf32>
    %200 = arith.addf %198, %199 : vector<48x32xf32>
    %c672 = arith.constant 672 : index
    %c0_81 = arith.constant 0 : index
    %201 = vector.load %arg2[%c672, %c0_81] : memref<1632x128xf32, #tpu.memory_space<vmem>>, vector<32x128xf32>
    %cst_82 = arith.constant dense<0.000000e+00> : vector<48x128xf32>
    %202 = tpu.matmul %200, %201, %cst_82 {dimension_numbers = #tpu.dot_dimension_numbers<[1], [0], [0], [1], [0, 0, 1, 1], [], []>} : vector<48x32xf32>, vector<32x128xf32>, vector<48x128xf32> -> vector<48x128xf32>
    %c704 = arith.constant 704 : index
    %c0_83 = arith.constant 0 : index
    %203 = vector.load %arg2[%c704, %c0_83] : memref<1632x128xf32, #tpu.memory_space<vmem>>, vector<1x128xf32>
    %204 = vector.broadcast %203 : vector<1x128xf32> to vector<48x128xf32>
    %205 = arith.addf %202, %204 : vector<48x128xf32>
    %206 = arith.mulf %205, %205 : vector<48x128xf32>
    %207 = arith.mulf %205, %206 : vector<48x128xf32>
    %cst_84 = arith.constant 4.471500e-02 : f32
    %208 = vector.broadcast %cst_84 : f32 to vector<48x128xf32>
    %209 = arith.mulf %208, %207 : vector<48x128xf32>
    %210 = arith.addf %205, %209 : vector<48x128xf32>
    %cst_85 = arith.constant 0.797884583 : f32
    %211 = vector.broadcast %cst_85 : f32 to vector<48x128xf32>
    %212 = arith.mulf %211, %210 : vector<48x128xf32>
    %213 = math.tanh %212 : vector<48x128xf32>
    %cst_86 = arith.constant 1.000000e+00 : f32
    %214 = vector.broadcast %cst_86 : f32 to vector<48x128xf32>
    %215 = arith.addf %214, %213 : vector<48x128xf32>
    %cst_87 = arith.constant 5.000000e-01 : f32
    %216 = vector.broadcast %cst_87 : f32 to vector<48x128xf32>
    %217 = arith.mulf %216, %215 : vector<48x128xf32>
    %218 = arith.mulf %205, %217 : vector<48x128xf32>
    %c712 = arith.constant 712 : index
    %c0_88 = arith.constant 0 : index
    %219 = vector.load %arg2[%c712, %c0_88] : memref<1632x128xf32, #tpu.memory_space<vmem>>, vector<128x32xf32>
    %cst_89 = arith.constant dense<0.000000e+00> : vector<48x32xf32>
    %220 = tpu.matmul %218, %219, %cst_89 {dimension_numbers = #tpu.dot_dimension_numbers<[1], [0], [0], [1], [0, 0, 1, 1], [], []>} : vector<48x128xf32>, vector<128x32xf32>, vector<48x32xf32> -> vector<48x32xf32>
    %221 = arith.addf %176, %220 : vector<48x32xf32>
    %c840 = arith.constant 840 : index
    %c0_90 = arith.constant 0 : index
    %222 = vector.load %arg2[%c840, %c0_90] : memref<1632x128xf32, #tpu.memory_space<vmem>>, vector<1x32xf32>
    %223 = vector.broadcast %222 : vector<1x32xf32> to vector<48x32xf32>
    %224 = arith.addf %221, %223 : vector<48x32xf32>
    %c848 = arith.constant 848 : index
    %c0_91 = arith.constant 0 : index
    %225 = vector.load %arg2[%c848, %c0_91] : memref<1632x128xf32, #tpu.memory_space<vmem>>, vector<1x32xf32>
    %c856 = arith.constant 856 : index
    %c0_92 = arith.constant 0 : index
    %226 = vector.load %arg2[%c856, %c0_92] : memref<1632x128xf32, #tpu.memory_space<vmem>>, vector<1x32xf32>
    %cst_93 = arith.constant dense<0.000000e+00> : vector<48xf32>
    %227 = vector.multi_reduction <add>, %224, %cst_93 [1] : vector<48x32xf32> to vector<48xf32>
    %228 = vector.shape_cast %227 : vector<48xf32> to vector<48x1xf32>
    %cst_94 = arith.constant 3.200000e+01 : f32
    %229 = vector.broadcast %cst_94 : f32 to vector<48x1xf32>
    %230 = arith.divf %228, %229 : vector<48x1xf32>
    %231 = vector.broadcast %230 : vector<48x1xf32> to vector<48x32xf32>
    %232 = arith.subf %224, %231 : vector<48x32xf32>
    %233 = arith.mulf %232, %232 : vector<48x32xf32>
    %cst_95 = arith.constant dense<0.000000e+00> : vector<48xf32>
    %234 = vector.multi_reduction <add>, %233, %cst_95 [1] : vector<48x32xf32> to vector<48xf32>
    %235 = vector.shape_cast %234 : vector<48xf32> to vector<48x1xf32>
    %cst_96 = arith.constant 3.200000e+01 : f32
    %236 = vector.broadcast %cst_96 : f32 to vector<48x1xf32>
    %237 = arith.divf %235, %236 : vector<48x1xf32>
    %238 = vector.broadcast %230 : vector<48x1xf32> to vector<48x32xf32>
    %239 = arith.subf %224, %238 : vector<48x32xf32>
    %cst_97 = arith.constant 9.99999997E-7 : f32
    %240 = vector.broadcast %cst_97 : f32 to vector<48x1xf32>
    %241 = arith.addf %237, %240 : vector<48x1xf32>
    %242 = math.rsqrt %241 : vector<48x1xf32>
    %243 = vector.broadcast %242 : vector<48x1xf32> to vector<48x32xf32>
    %244 = arith.mulf %239, %243 : vector<48x32xf32>
    %245 = vector.broadcast %225 : vector<1x32xf32> to vector<48x32xf32>
    %246 = arith.mulf %244, %245 : vector<48x32xf32>
    %247 = vector.broadcast %226 : vector<1x32xf32> to vector<48x32xf32>
    %248 = arith.addf %246, %247 : vector<48x32xf32>
    %cst_98 = arith.constant 0.000000e+00 : f32
    %249 = vector.broadcast %cst_98 : f32 to vector<48x32xf32>
    %c864 = arith.constant 864 : index
    %c0_99 = arith.constant 0 : index
    %250 = vector.load %arg2[%c864, %c0_99] : memref<1632x128xf32, #tpu.memory_space<vmem>>, vector<32x8xf32>
    %cst_100 = arith.constant dense<0.000000e+00> : vector<48x8xf32>
    %251 = tpu.matmul %248, %250, %cst_100 {dimension_numbers = #tpu.dot_dimension_numbers<[1], [0], [0], [1], [0, 0, 1, 1], [], []>} : vector<48x32xf32>, vector<32x8xf32>, vector<48x8xf32> -> vector<48x8xf32>
    %c968 = arith.constant 968 : index
    %c0_101 = arith.constant 0 : index
    %252 = vector.load %arg2[%c968, %c0_101] : memref<1632x128xf32, #tpu.memory_space<vmem>>, vector<1x8xf32>
    %253 = vector.broadcast %252 : vector<1x8xf32> to vector<48x8xf32>
    %254 = arith.addf %251, %253 : vector<48x8xf32>
    %c896 = arith.constant 896 : index
    %c0_102 = arith.constant 0 : index
    %255 = vector.load %arg2[%c896, %c0_102] : memref<1632x128xf32, #tpu.memory_space<vmem>>, vector<32x8xf32>
    %cst_103 = arith.constant dense<0.000000e+00> : vector<48x8xf32>
    %256 = tpu.matmul %248, %255, %cst_103 {dimension_numbers = #tpu.dot_dimension_numbers<[1], [0], [0], [1], [0, 0, 1, 1], [], []>} : vector<48x32xf32>, vector<32x8xf32>, vector<48x8xf32> -> vector<48x8xf32>
    %c976 = arith.constant 976 : index
    %c0_104 = arith.constant 0 : index
    %257 = vector.load %arg2[%c976, %c0_104] : memref<1632x128xf32, #tpu.memory_space<vmem>>, vector<1x8xf32>
    %258 = vector.broadcast %257 : vector<1x8xf32> to vector<48x8xf32>
    %259 = arith.addf %256, %258 : vector<48x8xf32>
    %c928 = arith.constant 928 : index
    %c0_105 = arith.constant 0 : index
    %260 = vector.load %arg2[%c928, %c0_105] : memref<1632x128xf32, #tpu.memory_space<vmem>>, vector<32x8xf32>
    %cst_106 = arith.constant dense<0.000000e+00> : vector<48x8xf32>
    %261 = tpu.matmul %248, %260, %cst_106 {dimension_numbers = #tpu.dot_dimension_numbers<[1], [0], [0], [1], [0, 0, 1, 1], [], []>} : vector<48x32xf32>, vector<32x8xf32>, vector<48x8xf32> -> vector<48x8xf32>
    %c984 = arith.constant 984 : index
    %c0_107 = arith.constant 0 : index
    %262 = vector.load %arg2[%c984, %c0_107] : memref<1632x128xf32, #tpu.memory_space<vmem>>, vector<1x8xf32>
    %263 = vector.broadcast %262 : vector<1x8xf32> to vector<48x8xf32>
    %264 = arith.addf %261, %263 : vector<48x8xf32>
    %265 = vector.shape_cast %254 : vector<48x8xf32> to vector<2x24x8xf32>
    %266 = vector.shape_cast %259 : vector<48x8xf32> to vector<2x24x8xf32>
    %267 = vector.shape_cast %264 : vector<48x8xf32> to vector<2x24x8xf32>
    "tpu.trace_start"() <{level = 10 : i32, message = "bqd,bkd->bqk"}> : () -> ()
    %cst_108 = arith.constant dense<0.000000e+00> : vector<2x24x24xf32>
    %268 = tpu.matmul %265, %266, %cst_108 {dimension_numbers = #tpu.dot_dimension_numbers<[2], [2], [1], [1], [0, 0, 0, 1, 1, 1], [0], [0]>} : vector<2x24x8xf32>, vector<2x24x8xf32>, vector<2x24x24xf32> -> vector<2x24x24xf32>
    "tpu.trace_stop"() : () -> ()
    %269 = arith.addf %268, %7 : vector<2x24x24xf32>
    %cst_109 = arith.constant dense<0xFF800000> : vector<2x24xf32>
    %270 = vector.multi_reduction <maximumf>, %269, %cst_109 [2] : vector<2x24x24xf32> to vector<2x24xf32>
    %271 = vector.shape_cast %270 : vector<2x24xf32> to vector<2x24x1xf32>
    %272 = vector.broadcast %271 : vector<2x24x1xf32> to vector<2x24x24xf32>
    %273 = arith.subf %269, %272 : vector<2x24x24xf32>
    %274 = math.exp %273 : vector<2x24x24xf32>
    %cst_110 = arith.constant dense<0.000000e+00> : vector<2x24xf32>
    %275 = vector.multi_reduction <add>, %274, %cst_110 [2] : vector<2x24x24xf32> to vector<2x24xf32>
    %276 = vector.shape_cast %275 : vector<2x24xf32> to vector<2x24x1xf32>
    %277 = tpu.reciprocal %276 {approx = true} : vector<2x24x1xf32> -> vector<2x24x1xf32>
    %278 = vector.broadcast %277 : vector<2x24x1xf32> to vector<2x24x24xf32>
    %279 = arith.mulf %274, %278 : vector<2x24x24xf32>
    "tpu.trace_start"() <{level = 10 : i32, message = "bqk,bkd->bqd"}> : () -> ()
    %cst_111 = arith.constant dense<0.000000e+00> : vector<2x24x8xf32>
    %280 = tpu.matmul %279, %267, %cst_111 {dimension_numbers = #tpu.dot_dimension_numbers<[2], [1], [1], [2], [0, 0, 0, 1, 1, 2], [0], [0]>} : vector<2x24x24xf32>, vector<2x24x8xf32>, vector<2x24x8xf32> -> vector<2x24x8xf32>
    "tpu.trace_stop"() : () -> ()
    %281 = vector.shape_cast %280 : vector<2x24x8xf32> to vector<48x8xf32>
    %c960 = arith.constant 960 : index
    %c0_112 = arith.constant 0 : index
    %282 = vector.load %arg2[%c960, %c0_112] : memref<1632x128xf32, #tpu.memory_space<vmem>>, vector<8x32xf32>
    %cst_113 = arith.constant dense<0.000000e+00> : vector<48x32xf32>
    %283 = tpu.matmul %281, %282, %cst_113 {dimension_numbers = #tpu.dot_dimension_numbers<[1], [0], [0], [1], [0, 0, 1, 1], [], []>} : vector<48x8xf32>, vector<8x32xf32>, vector<48x32xf32> -> vector<48x32xf32>
    %284 = arith.addf %249, %283 : vector<48x32xf32>
    %c992 = arith.constant 992 : index
    %c0_114 = arith.constant 0 : index
    %285 = vector.load %arg2[%c992, %c0_114] : memref<1632x128xf32, #tpu.memory_space<vmem>>, vector<32x8xf32>
    %cst_115 = arith.constant dense<0.000000e+00> : vector<48x8xf32>
    %286 = tpu.matmul %248, %285, %cst_115 {dimension_numbers = #tpu.dot_dimension_numbers<[1], [0], [0], [1], [0, 0, 1, 1], [], []>} : vector<48x32xf32>, vector<32x8xf32>, vector<48x8xf32> -> vector<48x8xf32>
    %c1096 = arith.constant 1096 : index
    %c0_116 = arith.constant 0 : index
    %287 = vector.load %arg2[%c1096, %c0_116] : memref<1632x128xf32, #tpu.memory_space<vmem>>, vector<1x8xf32>
    %288 = vector.broadcast %287 : vector<1x8xf32> to vector<48x8xf32>
    %289 = arith.addf %286, %288 : vector<48x8xf32>
    %c1024 = arith.constant 1024 : index
    %c0_117 = arith.constant 0 : index
    %290 = vector.load %arg2[%c1024, %c0_117] : memref<1632x128xf32, #tpu.memory_space<vmem>>, vector<32x8xf32>
    %cst_118 = arith.constant dense<0.000000e+00> : vector<48x8xf32>
    %291 = tpu.matmul %248, %290, %cst_118 {dimension_numbers = #tpu.dot_dimension_numbers<[1], [0], [0], [1], [0, 0, 1, 1], [], []>} : vector<48x32xf32>, vector<32x8xf32>, vector<48x8xf32> -> vector<48x8xf32>
    %c1104 = arith.constant 1104 : index
    %c0_119 = arith.constant 0 : index
    %292 = vector.load %arg2[%c1104, %c0_119] : memref<1632x128xf32, #tpu.memory_space<vmem>>, vector<1x8xf32>
    %293 = vector.broadcast %292 : vector<1x8xf32> to vector<48x8xf32>
    %294 = arith.addf %291, %293 : vector<48x8xf32>
    %c1056 = arith.constant 1056 : index
    %c0_120 = arith.constant 0 : index
    %295 = vector.load %arg2[%c1056, %c0_120] : memref<1632x128xf32, #tpu.memory_space<vmem>>, vector<32x8xf32>
    %cst_121 = arith.constant dense<0.000000e+00> : vector<48x8xf32>
    %296 = tpu.matmul %248, %295, %cst_121 {dimension_numbers = #tpu.dot_dimension_numbers<[1], [0], [0], [1], [0, 0, 1, 1], [], []>} : vector<48x32xf32>, vector<32x8xf32>, vector<48x8xf32> -> vector<48x8xf32>
    %c1112 = arith.constant 1112 : index
    %c0_122 = arith.constant 0 : index
    %297 = vector.load %arg2[%c1112, %c0_122] : memref<1632x128xf32, #tpu.memory_space<vmem>>, vector<1x8xf32>
    %298 = vector.broadcast %297 : vector<1x8xf32> to vector<48x8xf32>
    %299 = arith.addf %296, %298 : vector<48x8xf32>
    %300 = vector.shape_cast %289 : vector<48x8xf32> to vector<2x24x8xf32>
    %301 = vector.shape_cast %294 : vector<48x8xf32> to vector<2x24x8xf32>
    %302 = vector.shape_cast %299 : vector<48x8xf32> to vector<2x24x8xf32>
    "tpu.trace_start"() <{level = 10 : i32, message = "bqd,bkd->bqk"}> : () -> ()
    %cst_123 = arith.constant dense<0.000000e+00> : vector<2x24x24xf32>
    %303 = tpu.matmul %300, %301, %cst_123 {dimension_numbers = #tpu.dot_dimension_numbers<[2], [2], [1], [1], [0, 0, 0, 1, 1, 1], [0], [0]>} : vector<2x24x8xf32>, vector<2x24x8xf32>, vector<2x24x24xf32> -> vector<2x24x24xf32>
    "tpu.trace_stop"() : () -> ()
    %304 = arith.addf %303, %7 : vector<2x24x24xf32>
    %cst_124 = arith.constant dense<0xFF800000> : vector<2x24xf32>
    %305 = vector.multi_reduction <maximumf>, %304, %cst_124 [2] : vector<2x24x24xf32> to vector<2x24xf32>
    %306 = vector.shape_cast %305 : vector<2x24xf32> to vector<2x24x1xf32>
    %307 = vector.broadcast %306 : vector<2x24x1xf32> to vector<2x24x24xf32>
    %308 = arith.subf %304, %307 : vector<2x24x24xf32>
    %309 = math.exp %308 : vector<2x24x24xf32>
    %cst_125 = arith.constant dense<0.000000e+00> : vector<2x24xf32>
    %310 = vector.multi_reduction <add>, %309, %cst_125 [2] : vector<2x24x24xf32> to vector<2x24xf32>
    %311 = vector.shape_cast %310 : vector<2x24xf32> to vector<2x24x1xf32>
    %312 = tpu.reciprocal %311 {approx = true} : vector<2x24x1xf32> -> vector<2x24x1xf32>
    %313 = vector.broadcast %312 : vector<2x24x1xf32> to vector<2x24x24xf32>
    %314 = arith.mulf %309, %313 : vector<2x24x24xf32>
    "tpu.trace_start"() <{level = 10 : i32, message = "bqk,bkd->bqd"}> : () -> ()
    %cst_126 = arith.constant dense<0.000000e+00> : vector<2x24x8xf32>
    %315 = tpu.matmul %314, %302, %cst_126 {dimension_numbers = #tpu.dot_dimension_numbers<[2], [1], [1], [2], [0, 0, 0, 1, 1, 2], [0], [0]>} : vector<2x24x24xf32>, vector<2x24x8xf32>, vector<2x24x8xf32> -> vector<2x24x8xf32>
    "tpu.trace_stop"() : () -> ()
    %316 = vector.shape_cast %315 : vector<2x24x8xf32> to vector<48x8xf32>
    %c1088 = arith.constant 1088 : index
    %c0_127 = arith.constant 0 : index
    %317 = vector.load %arg2[%c1088, %c0_127] : memref<1632x128xf32, #tpu.memory_space<vmem>>, vector<8x32xf32>
    %cst_128 = arith.constant dense<0.000000e+00> : vector<48x32xf32>
    %318 = tpu.matmul %316, %317, %cst_128 {dimension_numbers = #tpu.dot_dimension_numbers<[1], [0], [0], [1], [0, 0, 1, 1], [], []>} : vector<48x8xf32>, vector<8x32xf32>, vector<48x32xf32> -> vector<48x32xf32>
    %319 = arith.addf %284, %318 : vector<48x32xf32>
    %c1120 = arith.constant 1120 : index
    %c0_129 = arith.constant 0 : index
    %320 = vector.load %arg2[%c1120, %c0_129] : memref<1632x128xf32, #tpu.memory_space<vmem>>, vector<32x8xf32>
    %cst_130 = arith.constant dense<0.000000e+00> : vector<48x8xf32>
    %321 = tpu.matmul %248, %320, %cst_130 {dimension_numbers = #tpu.dot_dimension_numbers<[1], [0], [0], [1], [0, 0, 1, 1], [], []>} : vector<48x32xf32>, vector<32x8xf32>, vector<48x8xf32> -> vector<48x8xf32>
    %c1224 = arith.constant 1224 : index
    %c0_131 = arith.constant 0 : index
    %322 = vector.load %arg2[%c1224, %c0_131] : memref<1632x128xf32, #tpu.memory_space<vmem>>, vector<1x8xf32>
    %323 = vector.broadcast %322 : vector<1x8xf32> to vector<48x8xf32>
    %324 = arith.addf %321, %323 : vector<48x8xf32>
    %c1152 = arith.constant 1152 : index
    %c0_132 = arith.constant 0 : index
    %325 = vector.load %arg2[%c1152, %c0_132] : memref<1632x128xf32, #tpu.memory_space<vmem>>, vector<32x8xf32>
    %cst_133 = arith.constant dense<0.000000e+00> : vector<48x8xf32>
    %326 = tpu.matmul %248, %325, %cst_133 {dimension_numbers = #tpu.dot_dimension_numbers<[1], [0], [0], [1], [0, 0, 1, 1], [], []>} : vector<48x32xf32>, vector<32x8xf32>, vector<48x8xf32> -> vector<48x8xf32>
    %c1232 = arith.constant 1232 : index
    %c0_134 = arith.constant 0 : index
    %327 = vector.load %arg2[%c1232, %c0_134] : memref<1632x128xf32, #tpu.memory_space<vmem>>, vector<1x8xf32>
    %328 = vector.broadcast %327 : vector<1x8xf32> to vector<48x8xf32>
    %329 = arith.addf %326, %328 : vector<48x8xf32>
    %c1184 = arith.constant 1184 : index
    %c0_135 = arith.constant 0 : index
    %330 = vector.load %arg2[%c1184, %c0_135] : memref<1632x128xf32, #tpu.memory_space<vmem>>, vector<32x8xf32>
    %cst_136 = arith.constant dense<0.000000e+00> : vector<48x8xf32>
    %331 = tpu.matmul %248, %330, %cst_136 {dimension_numbers = #tpu.dot_dimension_numbers<[1], [0], [0], [1], [0, 0, 1, 1], [], []>} : vector<48x32xf32>, vector<32x8xf32>, vector<48x8xf32> -> vector<48x8xf32>
    %c1240 = arith.constant 1240 : index
    %c0_137 = arith.constant 0 : index
    %332 = vector.load %arg2[%c1240, %c0_137] : memref<1632x128xf32, #tpu.memory_space<vmem>>, vector<1x8xf32>
    %333 = vector.broadcast %332 : vector<1x8xf32> to vector<48x8xf32>
    %334 = arith.addf %331, %333 : vector<48x8xf32>
    %335 = vector.shape_cast %324 : vector<48x8xf32> to vector<2x24x8xf32>
    %336 = vector.shape_cast %329 : vector<48x8xf32> to vector<2x24x8xf32>
    %337 = vector.shape_cast %334 : vector<48x8xf32> to vector<2x24x8xf32>
    "tpu.trace_start"() <{level = 10 : i32, message = "bqd,bkd->bqk"}> : () -> ()
    %cst_138 = arith.constant dense<0.000000e+00> : vector<2x24x24xf32>
    %338 = tpu.matmul %335, %336, %cst_138 {dimension_numbers = #tpu.dot_dimension_numbers<[2], [2], [1], [1], [0, 0, 0, 1, 1, 1], [0], [0]>} : vector<2x24x8xf32>, vector<2x24x8xf32>, vector<2x24x24xf32> -> vector<2x24x24xf32>
    "tpu.trace_stop"() : () -> ()
    %339 = arith.addf %338, %7 : vector<2x24x24xf32>
    %cst_139 = arith.constant dense<0xFF800000> : vector<2x24xf32>
    %340 = vector.multi_reduction <maximumf>, %339, %cst_139 [2] : vector<2x24x24xf32> to vector<2x24xf32>
    %341 = vector.shape_cast %340 : vector<2x24xf32> to vector<2x24x1xf32>
    %342 = vector.broadcast %341 : vector<2x24x1xf32> to vector<2x24x24xf32>
    %343 = arith.subf %339, %342 : vector<2x24x24xf32>
    %344 = math.exp %343 : vector<2x24x24xf32>
    %cst_140 = arith.constant dense<0.000000e+00> : vector<2x24xf32>
    %345 = vector.multi_reduction <add>, %344, %cst_140 [2] : vector<2x24x24xf32> to vector<2x24xf32>
    %346 = vector.shape_cast %345 : vector<2x24xf32> to vector<2x24x1xf32>
    %347 = tpu.reciprocal %346 {approx = true} : vector<2x24x1xf32> -> vector<2x24x1xf32>
    %348 = vector.broadcast %347 : vector<2x24x1xf32> to vector<2x24x24xf32>
    %349 = arith.mulf %344, %348 : vector<2x24x24xf32>
    "tpu.trace_start"() <{level = 10 : i32, message = "bqk,bkd->bqd"}> : () -> ()
    %cst_141 = arith.constant dense<0.000000e+00> : vector<2x24x8xf32>
    %350 = tpu.matmul %349, %337, %cst_141 {dimension_numbers = #tpu.dot_dimension_numbers<[2], [1], [1], [2], [0, 0, 0, 1, 1, 2], [0], [0]>} : vector<2x24x24xf32>, vector<2x24x8xf32>, vector<2x24x8xf32> -> vector<2x24x8xf32>
    "tpu.trace_stop"() : () -> ()
    %351 = vector.shape_cast %350 : vector<2x24x8xf32> to vector<48x8xf32>
    %c1216 = arith.constant 1216 : index
    %c0_142 = arith.constant 0 : index
    %352 = vector.load %arg2[%c1216, %c0_142] : memref<1632x128xf32, #tpu.memory_space<vmem>>, vector<8x32xf32>
    %cst_143 = arith.constant dense<0.000000e+00> : vector<48x32xf32>
    %353 = tpu.matmul %351, %352, %cst_143 {dimension_numbers = #tpu.dot_dimension_numbers<[1], [0], [0], [1], [0, 0, 1, 1], [], []>} : vector<48x8xf32>, vector<8x32xf32>, vector<48x32xf32> -> vector<48x32xf32>
    %354 = arith.addf %319, %353 : vector<48x32xf32>
    %c1248 = arith.constant 1248 : index
    %c0_144 = arith.constant 0 : index
    %355 = vector.load %arg2[%c1248, %c0_144] : memref<1632x128xf32, #tpu.memory_space<vmem>>, vector<32x8xf32>
    %cst_145 = arith.constant dense<0.000000e+00> : vector<48x8xf32>
    %356 = tpu.matmul %248, %355, %cst_145 {dimension_numbers = #tpu.dot_dimension_numbers<[1], [0], [0], [1], [0, 0, 1, 1], [], []>} : vector<48x32xf32>, vector<32x8xf32>, vector<48x8xf32> -> vector<48x8xf32>
    %c1352 = arith.constant 1352 : index
    %c0_146 = arith.constant 0 : index
    %357 = vector.load %arg2[%c1352, %c0_146] : memref<1632x128xf32, #tpu.memory_space<vmem>>, vector<1x8xf32>
    %358 = vector.broadcast %357 : vector<1x8xf32> to vector<48x8xf32>
    %359 = arith.addf %356, %358 : vector<48x8xf32>
    %c1280 = arith.constant 1280 : index
    %c0_147 = arith.constant 0 : index
    %360 = vector.load %arg2[%c1280, %c0_147] : memref<1632x128xf32, #tpu.memory_space<vmem>>, vector<32x8xf32>
    %cst_148 = arith.constant dense<0.000000e+00> : vector<48x8xf32>
    %361 = tpu.matmul %248, %360, %cst_148 {dimension_numbers = #tpu.dot_dimension_numbers<[1], [0], [0], [1], [0, 0, 1, 1], [], []>} : vector<48x32xf32>, vector<32x8xf32>, vector<48x8xf32> -> vector<48x8xf32>
    %c1360 = arith.constant 1360 : index
    %c0_149 = arith.constant 0 : index
    %362 = vector.load %arg2[%c1360, %c0_149] : memref<1632x128xf32, #tpu.memory_space<vmem>>, vector<1x8xf32>
    %363 = vector.broadcast %362 : vector<1x8xf32> to vector<48x8xf32>
    %364 = arith.addf %361, %363 : vector<48x8xf32>
    %c1312 = arith.constant 1312 : index
    %c0_150 = arith.constant 0 : index
    %365 = vector.load %arg2[%c1312, %c0_150] : memref<1632x128xf32, #tpu.memory_space<vmem>>, vector<32x8xf32>
    %cst_151 = arith.constant dense<0.000000e+00> : vector<48x8xf32>
    %366 = tpu.matmul %248, %365, %cst_151 {dimension_numbers = #tpu.dot_dimension_numbers<[1], [0], [0], [1], [0, 0, 1, 1], [], []>} : vector<48x32xf32>, vector<32x8xf32>, vector<48x8xf32> -> vector<48x8xf32>
    %c1368 = arith.constant 1368 : index
    %c0_152 = arith.constant 0 : index
    %367 = vector.load %arg2[%c1368, %c0_152] : memref<1632x128xf32, #tpu.memory_space<vmem>>, vector<1x8xf32>
    %368 = vector.broadcast %367 : vector<1x8xf32> to vector<48x8xf32>
    %369 = arith.addf %366, %368 : vector<48x8xf32>
    %370 = vector.shape_cast %359 : vector<48x8xf32> to vector<2x24x8xf32>
    %371 = vector.shape_cast %364 : vector<48x8xf32> to vector<2x24x8xf32>
    %372 = vector.shape_cast %369 : vector<48x8xf32> to vector<2x24x8xf32>
    "tpu.trace_start"() <{level = 10 : i32, message = "bqd,bkd->bqk"}> : () -> ()
    %cst_153 = arith.constant dense<0.000000e+00> : vector<2x24x24xf32>
    %373 = tpu.matmul %370, %371, %cst_153 {dimension_numbers = #tpu.dot_dimension_numbers<[2], [2], [1], [1], [0, 0, 0, 1, 1, 1], [0], [0]>} : vector<2x24x8xf32>, vector<2x24x8xf32>, vector<2x24x24xf32> -> vector<2x24x24xf32>
    "tpu.trace_stop"() : () -> ()
    %374 = arith.addf %373, %7 : vector<2x24x24xf32>
    %cst_154 = arith.constant dense<0xFF800000> : vector<2x24xf32>
    %375 = vector.multi_reduction <maximumf>, %374, %cst_154 [2] : vector<2x24x24xf32> to vector<2x24xf32>
    %376 = vector.shape_cast %375 : vector<2x24xf32> to vector<2x24x1xf32>
    %377 = vector.broadcast %376 : vector<2x24x1xf32> to vector<2x24x24xf32>
    %378 = arith.subf %374, %377 : vector<2x24x24xf32>
    %379 = math.exp %378 : vector<2x24x24xf32>
    %cst_155 = arith.constant dense<0.000000e+00> : vector<2x24xf32>
    %380 = vector.multi_reduction <add>, %379, %cst_155 [2] : vector<2x24x24xf32> to vector<2x24xf32>
    %381 = vector.shape_cast %380 : vector<2x24xf32> to vector<2x24x1xf32>
    %382 = tpu.reciprocal %381 {approx = true} : vector<2x24x1xf32> -> vector<2x24x1xf32>
    %383 = vector.broadcast %382 : vector<2x24x1xf32> to vector<2x24x24xf32>
    %384 = arith.mulf %379, %383 : vector<2x24x24xf32>
    "tpu.trace_start"() <{level = 10 : i32, message = "bqk,bkd->bqd"}> : () -> ()
    %cst_156 = arith.constant dense<0.000000e+00> : vector<2x24x8xf32>
    %385 = tpu.matmul %384, %372, %cst_156 {dimension_numbers = #tpu.dot_dimension_numbers<[2], [1], [1], [2], [0, 0, 0, 1, 1, 2], [0], [0]>} : vector<2x24x24xf32>, vector<2x24x8xf32>, vector<2x24x8xf32> -> vector<2x24x8xf32>
    "tpu.trace_stop"() : () -> ()
    %386 = vector.shape_cast %385 : vector<2x24x8xf32> to vector<48x8xf32>
    %c1344 = arith.constant 1344 : index
    %c0_157 = arith.constant 0 : index
    %387 = vector.load %arg2[%c1344, %c0_157] : memref<1632x128xf32, #tpu.memory_space<vmem>>, vector<8x32xf32>
    %cst_158 = arith.constant dense<0.000000e+00> : vector<48x32xf32>
    %388 = tpu.matmul %386, %387, %cst_158 {dimension_numbers = #tpu.dot_dimension_numbers<[1], [0], [0], [1], [0, 0, 1, 1], [], []>} : vector<48x8xf32>, vector<8x32xf32>, vector<48x32xf32> -> vector<48x32xf32>
    %389 = arith.addf %354, %388 : vector<48x32xf32>
    %390 = arith.addf %224, %389 : vector<48x32xf32>
    %c1376 = arith.constant 1376 : index
    %c0_159 = arith.constant 0 : index
    %391 = vector.load %arg2[%c1376, %c0_159] : memref<1632x128xf32, #tpu.memory_space<vmem>>, vector<1x32xf32>
    %392 = vector.broadcast %391 : vector<1x32xf32> to vector<48x32xf32>
    %393 = arith.addf %390, %392 : vector<48x32xf32>
    %c1384 = arith.constant 1384 : index
    %c0_160 = arith.constant 0 : index
    %394 = vector.load %arg2[%c1384, %c0_160] : memref<1632x128xf32, #tpu.memory_space<vmem>>, vector<1x32xf32>
    %c1392 = arith.constant 1392 : index
    %c0_161 = arith.constant 0 : index
    %395 = vector.load %arg2[%c1392, %c0_161] : memref<1632x128xf32, #tpu.memory_space<vmem>>, vector<1x32xf32>
    %cst_162 = arith.constant dense<0.000000e+00> : vector<48xf32>
    %396 = vector.multi_reduction <add>, %393, %cst_162 [1] : vector<48x32xf32> to vector<48xf32>
    %397 = vector.shape_cast %396 : vector<48xf32> to vector<48x1xf32>
    %cst_163 = arith.constant 3.200000e+01 : f32
    %398 = vector.broadcast %cst_163 : f32 to vector<48x1xf32>
    %399 = arith.divf %397, %398 : vector<48x1xf32>
    %400 = vector.broadcast %399 : vector<48x1xf32> to vector<48x32xf32>
    %401 = arith.subf %393, %400 : vector<48x32xf32>
    %402 = arith.mulf %401, %401 : vector<48x32xf32>
    %cst_164 = arith.constant dense<0.000000e+00> : vector<48xf32>
    %403 = vector.multi_reduction <add>, %402, %cst_164 [1] : vector<48x32xf32> to vector<48xf32>
    %404 = vector.shape_cast %403 : vector<48xf32> to vector<48x1xf32>
    %cst_165 = arith.constant 3.200000e+01 : f32
    %405 = vector.broadcast %cst_165 : f32 to vector<48x1xf32>
    %406 = arith.divf %404, %405 : vector<48x1xf32>
    %407 = vector.broadcast %399 : vector<48x1xf32> to vector<48x32xf32>
    %408 = arith.subf %393, %407 : vector<48x32xf32>
    %cst_166 = arith.constant 9.99999997E-7 : f32
    %409 = vector.broadcast %cst_166 : f32 to vector<48x1xf32>
    %410 = arith.addf %406, %409 : vector<48x1xf32>
    %411 = math.rsqrt %410 : vector<48x1xf32>
    %412 = vector.broadcast %411 : vector<48x1xf32> to vector<48x32xf32>
    %413 = arith.mulf %408, %412 : vector<48x32xf32>
    %414 = vector.broadcast %394 : vector<1x32xf32> to vector<48x32xf32>
    %415 = arith.mulf %413, %414 : vector<48x32xf32>
    %416 = vector.broadcast %395 : vector<1x32xf32> to vector<48x32xf32>
    %417 = arith.addf %415, %416 : vector<48x32xf32>
    %c1400 = arith.constant 1400 : index
    %c0_167 = arith.constant 0 : index
    %418 = vector.load %arg2[%c1400, %c0_167] : memref<1632x128xf32, #tpu.memory_space<vmem>>, vector<32x128xf32>
    %cst_168 = arith.constant dense<0.000000e+00> : vector<48x128xf32>
    %419 = tpu.matmul %417, %418, %cst_168 {dimension_numbers = #tpu.dot_dimension_numbers<[1], [0], [0], [1], [0, 0, 1, 1], [], []>} : vector<48x32xf32>, vector<32x128xf32>, vector<48x128xf32> -> vector<48x128xf32>
    %c1432 = arith.constant 1432 : index
    %c0_169 = arith.constant 0 : index
    %420 = vector.load %arg2[%c1432, %c0_169] : memref<1632x128xf32, #tpu.memory_space<vmem>>, vector<1x128xf32>
    %421 = vector.broadcast %420 : vector<1x128xf32> to vector<48x128xf32>
    %422 = arith.addf %419, %421 : vector<48x128xf32>
    %423 = arith.mulf %422, %422 : vector<48x128xf32>
    %424 = arith.mulf %422, %423 : vector<48x128xf32>
    %cst_170 = arith.constant 4.471500e-02 : f32
    %425 = vector.broadcast %cst_170 : f32 to vector<48x128xf32>
    %426 = arith.mulf %425, %424 : vector<48x128xf32>
    %427 = arith.addf %422, %426 : vector<48x128xf32>
    %cst_171 = arith.constant 0.797884583 : f32
    %428 = vector.broadcast %cst_171 : f32 to vector<48x128xf32>
    %429 = arith.mulf %428, %427 : vector<48x128xf32>
    %430 = math.tanh %429 : vector<48x128xf32>
    %cst_172 = arith.constant 1.000000e+00 : f32
    %431 = vector.broadcast %cst_172 : f32 to vector<48x128xf32>
    %432 = arith.addf %431, %430 : vector<48x128xf32>
    %cst_173 = arith.constant 5.000000e-01 : f32
    %433 = vector.broadcast %cst_173 : f32 to vector<48x128xf32>
    %434 = arith.mulf %433, %432 : vector<48x128xf32>
    %435 = arith.mulf %422, %434 : vector<48x128xf32>
    %c1440 = arith.constant 1440 : index
    %c0_174 = arith.constant 0 : index
    %436 = vector.load %arg2[%c1440, %c0_174] : memref<1632x128xf32, #tpu.memory_space<vmem>>, vector<128x32xf32>
    %cst_175 = arith.constant dense<0.000000e+00> : vector<48x32xf32>
    %437 = tpu.matmul %435, %436, %cst_175 {dimension_numbers = #tpu.dot_dimension_numbers<[1], [0], [0], [1], [0, 0, 1, 1], [], []>} : vector<48x128xf32>, vector<128x32xf32>, vector<48x32xf32> -> vector<48x32xf32>
    %438 = arith.addf %393, %437 : vector<48x32xf32>
    %c1568 = arith.constant 1568 : index
    %c0_176 = arith.constant 0 : index
    %439 = vector.load %arg2[%c1568, %c0_176] : memref<1632x128xf32, #tpu.memory_space<vmem>>, vector<1x32xf32>
    %440 = vector.broadcast %439 : vector<1x32xf32> to vector<48x32xf32>
    %441 = arith.addf %438, %440 : vector<48x32xf32>
    %442 = vector.extract_strided_slice %441 {offsets = [0, 0], sizes = [1, 32], strides = [1, 1]} : vector<48x32xf32> to vector<1x32xf32>
    %443 = vector.extract_strided_slice %441 {offsets = [24, 0], sizes = [1, 32], strides = [1, 1]} : vector<48x32xf32> to vector<1x32xf32>
    %444 = tpu.concatenate %442, %443 in 0 : vector<1x32xf32>, vector<1x32xf32> -> vector<2x32xf32>
    %c1576 = arith.constant 1576 : index
    %c0_177 = arith.constant 0 : index
    %445 = vector.load %arg2[%c1576, %c0_177] : memref<1632x128xf32, #tpu.memory_space<vmem>>, vector<1x32xf32>
    %c1584 = arith.constant 1584 : index
    %c0_178 = arith.constant 0 : index
    %446 = vector.load %arg2[%c1584, %c0_178] : memref<1632x128xf32, #tpu.memory_space<vmem>>, vector<1x32xf32>
    %cst_179 = arith.constant dense<0.000000e+00> : vector<2xf32>
    %447 = vector.multi_reduction <add>, %444, %cst_179 [1] : vector<2x32xf32> to vector<2xf32>
    %448 = vector.shape_cast %447 : vector<2xf32> to vector<2x1xf32>
    %cst_180 = arith.constant 3.200000e+01 : f32
    %449 = vector.broadcast %cst_180 : f32 to vector<2x1xf32>
    %450 = arith.divf %448, %449 : vector<2x1xf32>
    %451 = vector.broadcast %450 : vector<2x1xf32> to vector<2x32xf32>
    %452 = arith.subf %444, %451 : vector<2x32xf32>
    %453 = arith.mulf %452, %452 : vector<2x32xf32>
    %cst_181 = arith.constant dense<0.000000e+00> : vector<2xf32>
    %454 = vector.multi_reduction <add>, %453, %cst_181 [1] : vector<2x32xf32> to vector<2xf32>
    %455 = vector.shape_cast %454 : vector<2xf32> to vector<2x1xf32>
    %cst_182 = arith.constant 3.200000e+01 : f32
    %456 = vector.broadcast %cst_182 : f32 to vector<2x1xf32>
    %457 = arith.divf %455, %456 : vector<2x1xf32>
    %458 = vector.broadcast %450 : vector<2x1xf32> to vector<2x32xf32>
    %459 = arith.subf %444, %458 : vector<2x32xf32>
    %cst_183 = arith.constant 9.99999997E-7 : f32
    %460 = vector.broadcast %cst_183 : f32 to vector<2x1xf32>
    %461 = arith.addf %457, %460 : vector<2x1xf32>
    %462 = math.rsqrt %461 : vector<2x1xf32>
    %463 = vector.broadcast %462 : vector<2x1xf32> to vector<2x32xf32>
    %464 = arith.mulf %459, %463 : vector<2x32xf32>
    %465 = vector.broadcast %445 : vector<1x32xf32> to vector<2x32xf32>
    %466 = arith.mulf %464, %465 : vector<2x32xf32>
    %467 = vector.broadcast %446 : vector<1x32xf32> to vector<2x32xf32>
    %468 = arith.addf %466, %467 : vector<2x32xf32>
    %c1592 = arith.constant 1592 : index
    %c0_184 = arith.constant 0 : index
    %469 = vector.load %arg2[%c1592, %c0_184] : memref<1632x128xf32, #tpu.memory_space<vmem>>, vector<32x3xf32>
    %cst_185 = arith.constant dense<0.000000e+00> : vector<2x3xf32>
    %470 = tpu.matmul %468, %469, %cst_185 {dimension_numbers = #tpu.dot_dimension_numbers<[1], [0], [0], [1], [0, 0, 1, 1], [], []>} : vector<2x32xf32>, vector<32x3xf32>, vector<2x3xf32> -> vector<2x3xf32>
    %c1624 = arith.constant 1624 : index
    %c0_186 = arith.constant 0 : index
    %471 = vector.load %arg2[%c1624, %c0_186] : memref<1632x128xf32, #tpu.memory_space<vmem>>, vector<1x3xf32>
    %472 = vector.broadcast %471 : vector<1x3xf32> to vector<2x3xf32>
    %473 = arith.addf %470, %472 : vector<2x3xf32>
    %c0_187 = arith.constant 0 : index
    %c0_188 = arith.constant 0 : index
    %474 = vector.load %arg3[%c0_187, %c0_188] : memref<2x3xf32, #tpu.memory_space<vmem>>, vector<2x3xf32>
    tpu.vector_store %arg3[%c0_187, %c0_188], %473 {strides = array<i32>} : memref<2x3xf32, #tpu.memory_space<vmem>>, vector<2x3xf32>,
    return
  }
  func.func @transform_0(%arg0: i32) -> (i32, i32) {
    %c0_i32 = arith.constant 0 : i32
    %c0_i32_0 = arith.constant 0 : i32
    %c0_i32_1 = arith.constant 0 : i32
    return %c0_i32, %c0_i32_0 : i32, i32
  }
  func.func @transform_1(%arg0: i32) -> (i32, i32) {
    %c0_i32 = arith.constant 0 : i32
    %c0_i32_0 = arith.constant 0 : i32
    %c0_i32_1 = arith.constant 0 : i32
    return %c0_i32, %c0_i32_0 : i32, i32
  }
  func.func @transform_2(%arg0: i32) -> (i32, i32) {
    %c0_i32 = arith.constant 0 : i32
    %c0_i32_0 = arith.constant 0 : i32
    %c0_i32_1 = arith.constant 0 : i32
    return %c0_i32, %c0_i32_0 : i32, i32
  }
}

</mosaic_0001>

<llo_original>
// kernel: squeeze.1
$region0: #{squeeze.1}
  %s0 = inlined_call_operand.hbm [shape: f32[2,1,3,16,16], index: 0, kind: input, shape index: {}]
  %s1 = inlined_call_operand.vmem [shape: f32[2,3,4,4,4,4], index: 1, kind: output, shape index: {}]
  $region1: #{squeeze.1} parent=0
    #allocation0 [shape = 'u8[49152]{0}', space=vmem, size = 0xc000, scoped, tag = 'operand span for operand 0']
    #allocation1 [shape = 's32[1]{0}', space=sflag, size = 0x4, scoped, tag = 'scoped memory for squeeze.1']
    #allocation2 [shape = 'u8[393216]{0}', space=vmem, size = 0x60000, scoped, tag = 'scoped mem for output reshape']
    %2 = vsyncpa [#allocation1], 0
    %s4 = ssub.s32 1536, 1536
    %5 = vsyncadd [#allocation1], %s4
    %s7 = sshll.u32 [#allocation0], 4
    %s8 = int_to_ptr.vmem [resolvable:$true] %s7
    %10 = dma.hbm_to_vmem [thread:$0]  %s0, 1536, %s8, [#allocation1]
    %11 = dma.done [#allocation1], 1536
    %v12 = vld [vmem:[#allocation0] sm:$0xff]
    %vm13 = vcmask 31744
    %14 = vst.msk [vmem:[#allocation2] ss:$8 sm:$0xf] %vm13, %v12
    %15 = vst.msk [vmem:[#allocation2] ss:$8 sm:$0xf0] %vm13, %v12
    %s16 = scalar_lea.vmem [#allocation0], 8
    %v17 = vld [vmem:[%s16] sm:$0xff]
    %vm18 = vcmask 31744
    %s19 = scalar_lea.vmem [#allocation2], 64
    %20 = vst.msk [vmem:[%s19] ss:$8 sm:$0xf] %vm18, %v17
    %s21 = scalar_lea.vmem [#allocation2], 64
    %22 = vst.msk [vmem:[%s21] ss:$8 sm:$0xf0] %vm18, %v17
    %s23 = scalar_lea.vmem [#allocation0], 16
    %v24 = vld [vmem:[%s23] sm:$0xff]
    %vm25 = vcmask 31744
    %s26 = scalar_lea.vmem [#allocation2], 128
    %27 = vst.msk [vmem:[%s26] ss:$8 sm:$0xf] %vm25, %v24
    %s28 = scalar_lea.vmem [#allocation2], 128
    %29 = vst.msk [vmem:[%s28] ss:$8 sm:$0xf0] %vm25, %v24
    %s30 = scalar_lea.vmem [#allocation0], 24
    %v31 = vld [vmem:[%s30] sm:$0xff]
    %vm32 = vcmask 31744
    %s33 = scalar_lea.vmem [#allocation2], 192
    %34 = vst.msk [vmem:[%s33] ss:$8 sm:$0xf] %vm32, %v31
    %s35 = scalar_lea.vmem [#allocation2], 192
    %36 = vst.msk [vmem:[%s35] ss:$8 sm:$0xf0] %vm32, %v31
    %s37 = scalar_lea.vmem [#allocation0], 32
    %v38 = vld [vmem:[%s37] sm:$0xff]
    %vm39 = vcmask 31744
    %s40 = scalar_lea.vmem [#allocation2], 256
    %41 = vst.msk [vmem:[%s40] ss:$8 sm:$0xf] %vm39, %v38
    %s42 = scalar_lea.vmem [#allocation2], 256
    %43 = vst.msk [vmem:[%s42] ss:$8 sm:$0xf0] %vm39, %v38
    %s44 = scalar_lea.vmem [#allocation0], 40
    %v45 = vld [vmem:[%s44] sm:$0xff]
    %vm46 = vcmask 31744
    %s47 = scalar_lea.vmem [#allocation2], 320
    %48 = vst.msk [vmem:[%s47] ss:$8 sm:$0xf] %vm46, %v45
    %s49 = scalar_lea.vmem [#allocation2], 320
    %50 = vst.msk [vmem:[%s49] ss:$8 sm:$0xf0] %vm46, %v45
    %s51 = scalar_lea.vmem [#allocation0], 48
    %v52 = vld [vmem:[%s51] sm:$0xff]
    %vm53 = vcmask 31744
    %s54 = scalar_lea.vmem [#allocation2], 384
    %55 = vst.msk [vmem:[%s54] ss:$8 sm:$0xf] %vm53, %v52
    %s56 = scalar_lea.vmem [#allocation2], 384
    %57 = vst.msk [vmem:[%s56] ss:$8 sm:$0xf0] %vm53, %v52
    %s58 = scalar_lea.vmem [#allocation0], 56
    %v59 = vld [vmem:[%s58] sm:$0xff]
    %vm60 = vcmask 31744
    %s61 = scalar_lea.vmem [#allocation2], 448
    %62 = vst.msk [vmem:[%s61] ss:$8 sm:$0xf] %vm60, %v59
    %s63 = scalar_lea.vmem [#allocation2], 448
    %64 = vst.msk [vmem:[%s63] ss:$8 sm:$0xf0] %vm60, %v59
    %s65 = scalar_lea.vmem [#allocation0], 64
    %v66 = vld [vmem:[%s65] sm:$0xff]
    %vm67 = vcmask 31744
    %s68 = scalar_lea.vmem [#allocation2], 512
    %69 = vst.msk [vmem:[%s68] ss:$8 sm:$0xf] %vm67, %v66
    %s70 = scalar_lea.vmem [#allocation2], 512
    %71 = vst.msk [vmem:[%s70] ss:$8 sm:$0xf0] %vm67, %v66
    %s72 = scalar_lea.vmem [#allocation0], 72
    %v73 = vld [vmem:[%s72] sm:$0xff]
    %vm74 = vcmask 31744
    %s75 = scalar_lea.vmem [#allocation2], 576
    %76 = vst.msk [vmem:[%s75] ss:$8 sm:$0xf] %vm74, %v73
    %s77 = scalar_lea.vmem [#allocation2], 576
    %78 = vst.msk [vmem:[%s77] ss:$8 sm:$0xf0] %vm74, %v73
    %s79 = scalar_lea.vmem [#allocation0], 80
    %v80 = vld [vmem:[%s79] sm:$0xff]
    %vm81 = vcmask 31744
    %s82 = scalar_lea.vmem [#allocation2], 640
    %83 = vst.msk [vmem:[%s82] ss:$8 sm:$0xf] %vm81, %v80
    %s84 = scalar_lea.vmem [#allocation2], 640
    %85 = vst.msk [vmem:[%s84] ss:$8 sm:$0xf0] %vm81, %v80
    %s86 = scalar_lea.vmem [#allocation0], 88
    %v87 = vld [vmem:[%s86] sm:$0xff]
    %vm88 = vcmask 31744
    %s89 = scalar_lea.vmem [#allocation2], 704
    %90 = vst.msk [vmem:[%s89] ss:$8 sm:$0xf] %vm88, %v87
    %s91 = scalar_lea.vmem [#allocation2], 704
    %92 = vst.msk [vmem:[%s91] ss:$8 sm:$0xf0] %vm88, %v87
    %v93 = vld [vmem:[#allocation0] sm:$0xff]
    %94 = vrot.lane.b32.xlu0 %v93, 124
    %v95 = vpop.permute.xlu0 %94
    %vm96 = vcmask 31744
    %s97 = scalar_lea.vmem [#allocation2], 1
    %98 = vst.msk [vmem:[%s97] ss:$8 sm:$0xf] %vm96, %v95
    %s99 = scalar_lea.vmem [#allocation2], 1
    %100 = vst.msk [vmem:[%s99] ss:$8 sm:$0xf0] %vm96, %v95
    %s101 = scalar_lea.vmem [#allocation0], 8
    %v102 = vld [vmem:[%s101] sm:$0xff]
    %103 = vrot.lane.b32.xlu0 %v102, 124
    %v104 = vpop.permute.xlu0 %103
    %vm105 = vcmask 31744
    %s106 = scalar_lea.vmem [#allocation2], 65
    %107 = vst.msk [vmem:[%s106] ss:$8 sm:$0xf] %vm105, %v104
    %s108 = scalar_lea.vmem [#allocation2], 65
    %109 = vst.msk [vmem:[%s108] ss:$8 sm:$0xf0] %vm105, %v104
    %s110 = scalar_lea.vmem [#allocation0], 16
    %v111 = vld [vmem:[%s110] sm:$0xff]
    %112 = vrot.lane.b32.xlu0 %v111, 124
    %v113 = vpop.permute.xlu0 %112
    %vm114 = vcmask 31744
    %s115 = scalar_lea.vmem [#allocation2], 129
    %116 = vst.msk [vmem:[%s115] ss:$8 sm:$0xf] %vm114, %v113
    %s117 = scalar_lea.vmem [#allocation2], 129
    %118 = vst.msk [vmem:[%s117] ss:$8 sm:$0xf0] %vm114, %v113
    %s119 = scalar_lea.vmem [#allocation0], 24
    %v120 = vld [vmem:[%s119] sm:$0xff]
    %121 = vrot.lane.b32.xlu0 %v120, 124
    %v122 = vpop.permute.xlu0 %121
    %vm123 = vcmask 31744
    %s124 = scalar_lea.vmem [#allocation2], 193
    %125 = vst.msk [vmem:[%s124] ss:$8 sm:$0xf] %vm123, %v122
    %s126 = scalar_lea.vmem [#allocation2], 193
    %127 = vst.msk [vmem:[%s126] ss:$8 sm:$0xf0] %vm123, %v122
    %s128 = scalar_lea.vmem [#allocation0], 32
    %v129 = vld [vmem:[%s128] sm:$0xff]
    %130 = vrot.lane.b32.xlu0 %v129, 124
    %v131 = vpop.permute.xlu0 %130
    %vm132 = vcmask 31744
    %s133 = scalar_lea.vmem [#allocation2], 257
    %134 = vst.msk [vmem:[%s133] ss:$8 sm:$0xf] %vm132, %v131
    %s135 = scalar_lea.vmem [#allocation2], 257
    %136 = vst.msk [vmem:[%s135] ss:$8 sm:$0xf0] %vm132, %v131
    %s137 = scalar_lea.vmem [#allocation0], 40
    %v138 = vld [vmem:[%s137] sm:$0xff]
    %139 = vrot.lane.b32.xlu0 %v138, 124
    %v140 = vpop.permute.xlu0 %139
    %vm141 = vcmask 31744
    %s142 = scalar_lea.vmem [#allocation2], 321
    %143 = vst.msk [vmem:[%s142] ss:$8 sm:$0xf] %vm141, %v140
    %s144 = scalar_lea.vmem [#allocation2], 321
    %145 = vst.msk [vmem:[%s144] ss:$8 sm:$0xf0] %vm141, %v140
    %s146 = scalar_lea.vmem [#allocation0], 48
    %v147 = vld [vmem:[%s146] sm:$0xff]
    %148 = vrot.lane.b32.xlu0 %v147, 124
    %v149 = vpop.permute.xlu0 %148
    %vm150 = vcmask 31744
    %s151 = scalar_lea.vmem [#allocation2], 385
    %152 = vst.msk [vmem:[%s151] ss:$8 sm:$0xf] %vm150, %v149
    %s153 = scalar_lea.vmem [#allocation2], 385
    %154 = vst.msk [vmem:[%s153] ss:$8 sm:$0xf0] %vm150, %v149
    %s155 = scalar_lea.vmem [#allocation0], 56
    %v156 = vld [vmem:[%s155] sm:$0xff]
    %157 = vrot.lane.b32.xlu0 %v156, 124
    %v158 = vpop.permute.xlu0 %157
    %vm159 = vcmask 31744
    %s160 = scalar_lea.vmem [#allocation2], 449
    %161 = vst.msk [vmem:[%s160] ss:$8 sm:$0xf] %vm159, %v158
    %s162 = scalar_lea.vmem [#allocation2], 449
    %163 = vst.msk [vmem:[%s162] ss:$8 sm:$0xf0] %vm159, %v158
    %s164 = scalar_lea.vmem [#allocation0], 64
    %v165 = vld [vmem:[%s164] sm:$0xff]
    %166 = vrot.lane.b32.xlu0 %v165, 124
    %v167 = vpop.permute.xlu0 %166
    %vm168 = vcmask 31744
    %s169 = scalar_lea.vmem [#allocation2], 513
    %170 = vst.msk [vmem:[%s169] ss:$8 sm:$0xf] %vm168, %v167
    %s171 = scalar_lea.vmem [#allocation2], 513
    %172 = vst.msk [vmem:[%s171] ss:$8 sm:$0xf0] %vm168, %v167
    %s173 = scalar_lea.vmem [#allocation0], 72
    %v174 = vld [vmem:[%s173] sm:$0xff]
    %175 = vrot.lane.b32.xlu0 %v174, 124
    %v176 = vpop.permute.xlu0 %175
    %vm177 = vcmask 31744
    %s178 = scalar_lea.vmem [#allocation2], 577
    %179 = vst.msk [vmem:[%s178] ss:$8 sm:$0xf] %vm177, %v176
    %s180 = scalar_lea.vmem [#allocation2], 577
    %181 = vst.msk [vmem:[%s180] ss:$8 sm:$0xf0] %vm177, %v176
    %s182 = scalar_lea.vmem [#allocation0], 80
    %v183 = vld [vmem:[%s182] sm:$0xff]
    %184 = vrot.lane.b32.xlu0 %v183, 124
    %v185 = vpop.permute.xlu0 %184
    %vm186 = vcmask 31744
    %s187 = scalar_lea.vmem [#allocation2], 641
    %188 = vst.msk [vmem:[%s187] ss:$8 sm:$0xf] %vm186, %v185
    %s189 = scalar_lea.vmem [#allocation2], 641
    %190 = vst.msk [vmem:[%s189] ss:$8 sm:$0xf0] %vm186, %v185
    %s191 = scalar_lea.vmem [#allocation0], 88
    %v192 = vld [vmem:[%s191] sm:$0xff]
    %193 = vrot.lane.b32.xlu0 %v192, 124
    %v194 = vpop.permute.xlu0 %193
    %vm195 = vcmask 31744
    %s196 = scalar_lea.vmem [#allocation2], 705
    %197 = vst.msk [vmem:[%s196] ss:$8 sm:$0xf] %vm195, %v194
    %s198 = scalar_lea.vmem [#allocation2], 705
    %199 = vst.msk [vmem:[%s198] ss:$8 sm:$0xf0] %vm195, %v194
    %v200 = vld [vmem:[#allocation0] sm:$0xff]
    %201 = vrot.lane.b32.xlu0 %v200, 120
    %v202 = vpop.permute.xlu0 %201
    %vm203 = vcmask 31744
    %s204 = scalar_lea.vmem [#allocation2], 2
    %205 = vst.msk [vmem:[%s204] ss:$8 sm:$0xf] %vm203, %v202
    %s206 = scalar_lea.vmem [#allocation2], 2
    %207 = vst.msk [vmem:[%s206] ss:$8 sm:$0xf0] %vm203, %v202
    %s208 = scalar_lea.vmem [#allocation0], 8
    %v209 = vld [vmem:[%s208] sm:$0xff]
    %210 = vrot.lane.b32.xlu0 %v209, 120
    %v211 = vpop.permute.xlu0 %210
    %vm212 = vcmask 31744
    %s213 = scalar_lea.vmem [#allocation2], 66
    %214 = vst.msk [vmem:[%s213] ss:$8 sm:$0xf] %vm212, %v211
    %s215 = scalar_lea.vmem [#allocation2], 66
    %216 = vst.msk [vmem:[%s215] ss:$8 sm:$0xf0] %vm212, %v211
    %s217 = scalar_lea.vmem [#allocation0], 16
    %v218 = vld [vmem:[%s217] sm:$0xff]
    %219 = vrot.lane.b32.xlu0 %v218, 120
    %v220 = vpop.permute.xlu0 %219
    %vm221 = vcmask 31744
    %s222 = scalar_lea.vmem [#allocation2], 130
    %223 = vst.msk [vmem:[%s222] ss:$8 sm:$0xf] %vm221, %v220
    %s224 = scalar_lea.vmem [#allocation2], 130
    %225 = vst.msk [vmem:[%s224] ss:$8 sm:$0xf0] %vm221, %v220
    %s226 = scalar_lea.vmem [#allocation0], 24
    %v227 = vld [vmem:[%s226] sm:$0xff]
    %228 = vrot.lane.b32.xlu0 %v227, 120
    %v229 = vpop.permute.xlu0 %228
    %vm230 = vcmask 31744
    %s231 = scalar_lea.vmem [#allocation2], 194
    %232 = vst.msk [vmem:[%s231] ss:$8 sm:$0xf] %vm230, %v229
    %s233 = scalar_lea.vmem [#allocation2], 194
    %234 = vst.msk [vmem:[%s233] ss:$8 sm:$0xf0] %vm230, %v229
    %s235 = scalar_lea.vmem [#allocation0], 32
    %v236 = vld [vmem:[%s235] sm:$0xff]
    %237 = vrot.lane.b32.xlu0 %v236, 120
    %v238 = vpop.permute.xlu0 %237
    %vm239 = vcmask 31744
    %s240 = scalar_lea.vmem [#allocation2], 258
    %241 = vst.msk [vmem:[%s240] ss:$8 sm:$0xf] %vm239, %v238
    %s242 = scalar_lea.vmem [#allocation2], 258
    %243 = vst.msk [vmem:[%s242] ss:$8 sm:$0xf0] %vm239, %v238
    %s244 = scalar_lea.vmem [#allocation0], 40
    %v245 = vld [vmem:[%s244] sm:$0xff]
    %246 = vrot.lane.b32.xlu0 %v245, 120
    %v247 = vpop.permute.xlu0 %246
    %vm248 = vcmask 31744
    %s249 = scalar_lea.vmem [#allocation2], 322
    %250 = vst.msk [vmem:[%s249] ss:$8 sm:$0xf] %vm248, %v247
    %s251 = scalar_lea.vmem [#allocation2], 322
    %252 = vst.msk [vmem:[%s251] ss:$8 sm:$0xf0] %vm248, %v247
    %s253 = scalar_lea.vmem [#allocation0], 48
    %v254 = vld [vmem:[%s253] sm:$0xff]
    %255 = vrot.lane.b32.xlu0 %v254, 120
    %v256 = vpop.permute.xlu0 %255
    %vm257 = vcmask 31744
    %s258 = scalar_lea.vmem [#allocation2], 386
    %259 = vst.msk [vmem:[%s258] ss:$8 sm:$0xf] %vm257, %v256
    %s260 = scalar_lea.vmem [#allocation2], 386
    %261 = vst.msk [vmem:[%s260] ss:$8 sm:$0xf0] %vm257, %v256
    %s262 = scalar_lea.vmem [#allocation0], 56
    %v263 = vld [vmem:[%s262] sm:$0xff]
    %264 = vrot.lane.b32.xlu0 %v263, 120
    %v265 = vpop.permute.xlu0 %264
    %vm266 = vcmask 31744
    %s267 = scalar_lea.vmem [#allocation2], 450
    %268 = vst.msk [vmem:[%s267] ss:$8 sm:$0xf] %vm266, %v265
    %s269 = scalar_lea.vmem [#allocation2], 450
    %270 = vst.msk [vmem:[%s269] ss:$8 sm:$0xf0] %vm266, %v265
    %s271 = scalar_lea.vmem [#allocation0], 64
    %v272 = vld [vmem:[%s271] sm:$0xff]
    %273 = vrot.lane.b32.xlu0 %v272, 120
    %v274 = vpop.permute.xlu0 %273
    %vm275 = vcmask 31744
    %s276 = scalar_lea.vmem [#allocation2], 514
    %277 = vst.msk [vmem:[%s276] ss:$8 sm:$0xf] %vm275, %v274
    %s278 = scalar_lea.vmem [#allocation2], 514
    %279 = vst.msk [vmem:[%s278] ss:$8 sm:$0xf0] %vm275, %v274
    %s280 = scalar_lea.vmem [#allocation0], 72
    %v281 = vld [vmem:[%s280] sm:$0xff]
    %282 = vrot.lane.b32.xlu0 %v281, 120
    %v283 = vpop.permute.xlu0 %282
    %vm284 = vcmask 31744
    %s285 = scalar_lea.vmem [#allocation2], 578
    %286 = vst.msk [vmem:[%s285] ss:$8 sm:$0xf] %vm284, %v283
    %s287 = scalar_lea.vmem [#allocation2], 578
    %288 = vst.msk [vmem:[%s287] ss:$8 sm:$0xf0] %vm284, %v283
    %s289 = scalar_lea.vmem [#allocation0], 80
    %v290 = vld [vmem:[%s289] sm:$0xff]
    %291 = vrot.lane.b32.xlu0 %v290, 120
    %v292 = vpop.permute.xlu0 %291
    %vm293 = vcmask 31744
    %s294 = scalar_lea.vmem [#allocation2], 642
    %295 = vst.msk [vmem:[%s294] ss:$8 sm:$0xf] %vm293, %v292
    %s296 = scalar_lea.vmem [#allocation2], 642
    %297 = vst.msk [vmem:[%s296] ss:$8 sm:$0xf0] %vm293, %v292
    %s298 = scalar_lea.vmem [#allocation0], 88
    %v299 = vld [vmem:[%s298] sm:$0xff]
    %300 = vrot.lane.b32.xlu0 %v299, 120
    %v301 = vpop.permute.xlu0 %300
    %vm302 = vcmask 31744
    %s303 = scalar_lea.vmem [#allocation2], 706
    %304 = vst.msk [vmem:[%s303] ss:$8 sm:$0xf] %vm302, %v301
    %s305 = scalar_lea.vmem [#allocation2], 706
    %306 = vst.msk [vmem:[%s305] ss:$8 sm:$0xf0] %vm302, %v301
    %v307 = vld [vmem:[#allocation0] sm:$0xff]
    %308 = vrot.lane.b32.xlu0 %v307, 116
    %v309 = vpop.permute.xlu0 %308
    %vm310 = vcmask 31744
    %s311 = scalar_lea.vmem [#allocation2], 3
    %312 = vst.msk [vmem:[%s311] ss:$8 sm:$0xf] %vm310, %v309
    %s313 = scalar_lea.vmem [#allocation2], 3
    %314 = vst.msk [vmem:[%s313] ss:$8 sm:$0xf0] %vm310, %v309
    %s315 = scalar_lea.vmem [#allocation0], 8
    %v316 = vld [vmem:[%s315] sm:$0xff]
    %317 = vrot.lane.b32.xlu0 %v316, 116
    %v318 = vpop.permute.xlu0 %317
    %vm319 = vcmask 31744
    %s320 = scalar_lea.vmem [#allocation2], 67
    %321 = vst.msk [vmem:[%s320] ss:$8 sm:$0xf] %vm319, %v318
    %s322 = scalar_lea.vmem [#allocation2], 67
    %323 = vst.msk [vmem:[%s322] ss:$8 sm:$0xf0] %vm319, %v318
    %s324 = scalar_lea.vmem [#allocation0], 16
    %v325 = vld [vmem:[%s324] sm:$0xff]
    %326 = vrot.lane.b32.xlu0 %v325, 116
    %v327 = vpop.permute.xlu0 %326
    %vm328 = vcmask 31744
    %s329 = scalar_lea.vmem [#allocation2], 131
    %330 = vst.msk [vmem:[%s329] ss:$8 sm:$0xf] %vm328, %v327
    %s331 = scalar_lea.vmem [#allocation2], 131
    %332 = vst.msk [vmem:[%s331] ss:$8 sm:$0xf0] %vm328, %v327
    %s333 = scalar_lea.vmem [#allocation0], 24
    %v334 = vld [vmem:[%s333] sm:$0xff]
    %335 = vrot.lane.b32.xlu0 %v334, 116
    %v336 = vpop.permute.xlu0 %335
    %vm337 = vcmask 31744
    %s338 = scalar_lea.vmem [#allocation2], 195
    %339 = vst.msk [vmem:[%s338] ss:$8 sm:$0xf] %vm337, %v336
    %s340 = scalar_lea.vmem [#allocation2], 195
    %341 = vst.msk [vmem:[%s340] ss:$8 sm:$0xf0] %vm337, %v336
    %s342 = scalar_lea.vmem [#allocation0], 32
    %v343 = vld [vmem:[%s342] sm:$0xff]
    %344 = vrot.lane.b32.xlu0 %v343, 116
    %v345 = vpop.permute.xlu0 %344
    %vm346 = vcmask 31744
    %s347 = scalar_lea.vmem [#allocation2], 259
    %348 = vst.msk [vmem:[%s347] ss:$8 sm:$0xf] %vm346, %v345
    %s349 = scalar_lea.vmem [#allocation2], 259
    %350 = vst.msk [vmem:[%s349] ss:$8 sm:$0xf0] %vm346, %v345
    %s351 = scalar_lea.vmem [#allocation0], 40
    %v352 = vld [vmem:[%s351] sm:$0xff]
    %353 = vrot.lane.b32.xlu0 %v352, 116
    %v354 = vpop.permute.xlu0 %353
    %vm355 = vcmask 31744
    %s356 = scalar_lea.vmem [#allocation2], 323
    %357 = vst.msk [vmem:[%s356] ss:$8 sm:$0xf] %vm355, %v354
    %s358 = scalar_lea.vmem [#allocation2], 323
    %359 = vst.msk [vmem:[%s358] ss:$8 sm:$0xf0] %vm355, %v354
    %s360 = scalar_lea.vmem [#allocation0], 48
    %v361 = vld [vmem:[%s360] sm:$0xff]
    %362 = vrot.lane.b32.xlu0 %v361, 116
    %v363 = vpop.permute.xlu0 %362
    %vm364 = vcmask 31744
    %s365 = scalar_lea.vmem [#allocation2], 387
    %366 = vst.msk [vmem:[%s365] ss:$8 sm:$0xf] %vm364, %v363
    %s367 = scalar_lea.vmem [#allocation2], 387
    %368 = vst.msk [vmem:[%s367] ss:$8 sm:$0xf0] %vm364, %v363
    %s369 = scalar_lea.vmem [#allocation0], 56
    %v370 = vld [vmem:[%s369] sm:$0xff]
    %371 = vrot.lane.b32.xlu0 %v370, 116
    %v372 = vpop.permute.xlu0 %371
    %vm373 = vcmask 31744
    %s374 = scalar_lea.vmem [#allocation2], 451
    %375 = vst.msk [vmem:[%s374] ss:$8 sm:$0xf] %vm373, %v372
    %s376 = scalar_lea.vmem [#allocation2], 451
    %377 = vst.msk [vmem:[%s376] ss:$8 sm:$0xf0] %vm373, %v372
    %s378 = scalar_lea.vmem [#allocation0], 64
    %v379 = vld [vmem:[%s378] sm:$0xff]
    %380 = vrot.lane.b32.xlu0 %v379, 116
    %v381 = vpop.permute.xlu0 %380
    %vm382 = vcmask 31744
    %s383 = scalar_lea.vmem [#allocation2], 515
    %384 = vst.msk [vmem:[%s383] ss:$8 sm:$0xf] %vm382, %v381
    %s385 = scalar_lea.vmem [#allocation2], 515
    %386 = vst.msk [vmem:[%s385] ss:$8 sm:$0xf0] %vm382, %v381
    %s387 = scalar_lea.vmem [#allocation0], 72
    %v388 = vld [vmem:[%s387] sm:$0xff]
    %389 = vrot.lane.b32.xlu0 %v388, 116
    %v390 = vpop.permute.xlu0 %389
    %vm391 = vcmask 31744
    %s392 = scalar_lea.vmem [#allocation2], 579
    %393 = vst.msk [vmem:[%s392] ss:$8 sm:$0xf] %vm391, %v390
    %s394 = scalar_lea.vmem [#allocation2], 579
    %395 = vst.msk [vmem:[%s394] ss:$8 sm:$0xf0] %vm391, %v390
    %s396 = scalar_lea.vmem [#allocation0], 80
    %v397 = vld [vmem:[%s396] sm:$0xff]
    %398 = vrot.lane.b32.xlu0 %v397, 116
    %v399 = vpop.permute.xlu0 %398
    %vm400 = vcmask 31744
    %s401 = scalar_lea.vmem [#allocation2], 643
    %402 = vst.msk [vmem:[%s401] ss:$8 sm:$0xf] %vm400, %v399
    %s403 = scalar_lea.vmem [#allocation2], 643
    %404 = vst.msk [vmem:[%s403] ss:$8 sm:$0xf0] %vm400, %v399
    %s405 = scalar_lea.vmem [#allocation0], 88
    %v406 = vld [vmem:[%s405] sm:$0xff]
    %407 = vrot.lane.b32.xlu0 %v406, 116
    %v408 = vpop.permute.xlu0 %407
    %vm409 = vcmask 31744
    %s410 = scalar_lea.vmem [#allocation2], 707
    %411 = vst.msk [vmem:[%s410] ss:$8 sm:$0xf] %vm409, %v408
    %s412 = scalar_lea.vmem [#allocation2], 707
    %413 = vst.msk [vmem:[%s412] ss:$8 sm:$0xf0] %vm409, %v408
    %s415 = sshllo.u32 0, 4
    %v417 = vld [vmem:[#allocation2] sm:%s415]
    %s418 = sshllo.u32 0, 4
    %419 = vst [vmem:[%s1] sm:%s418] %v417
    %s420 = scalar_lea.vmem [#allocation2], 8
    %v421 = vld [vmem:[%s420] sm:%s415]
    %s422 = sshllo.u32 0, 4
    %s423 = scalar_lea.vmem %s1, 4
    %424 = vst [vmem:[%s423] sm:%s422] %v421
    %s425 = scalar_lea.vmem [#allocation2], 16
    %v426 = vld [vmem:[%s425] sm:%s415]
    %s427 = sshllo.u32 0, 4
    %s428 = smul.addr 4, 2
    %s429 = scalar_lea.vmem %s1, %s428
    %430 = vst [vmem:[%s429] sm:%s427] %v426
    %s431 = scalar_lea.vmem [#allocation2], 24
    %v432 = vld [vmem:[%s431] sm:%s415]
    %s433 = sshllo.u32 0, 4
    %s434 = smul.addr 4, 3
    %s435 = scalar_lea.vmem %s1, %s434
    %436 = vst [vmem:[%s435] sm:%s433] %v432
    %s437 = scalar_lea.vmem [#allocation2], 32
    %v438 = vld [vmem:[%s437] sm:%s415]
    %s439 = sshllo.u32 0, 4
    %s440 = smul.addr 4, 4
    %s441 = scalar_lea.vmem %s1, %s440
    %442 = vst [vmem:[%s441] sm:%s439] %v438
    %s443 = scalar_lea.vmem [#allocation2], 40
    %v444 = vld [vmem:[%s443] sm:%s415]
    %s445 = sshllo.u32 0, 4
    %s446 = smul.addr 4, 5
    %s447 = scalar_lea.vmem %s1, %s446
    %448 = vst [vmem:[%s447] sm:%s445] %v444
    %s449 = scalar_lea.vmem [#allocation2], 48
    %v450 = vld [vmem:[%s449] sm:%s415]
    %s451 = sshllo.u32 0, 4
    %s452 = smul.addr 4, 6
    %s453 = scalar_lea.vmem %s1, %s452
    %454 = vst [vmem:[%s453] sm:%s451] %v450
    %s455 = scalar_lea.vmem [#allocation2], 56
    %v456 = vld [vmem:[%s455] sm:%s415]
    %s457 = sshllo.u32 0, 4
    %s458 = smul.addr 4, 7
    %s459 = scalar_lea.vmem %s1, %s458
    %460 = vst [vmem:[%s459] sm:%s457] %v456
    %s461 = scalar_lea.vmem [#allocation2], 64
    %v462 = vld [vmem:[%s461] sm:%s415]
    %s463 = sshllo.u32 0, 4
    %s464 = smul.addr 4, 8
    %s465 = scalar_lea.vmem %s1, %s464
    %466 = vst [vmem:[%s465] sm:%s463] %v462
    %s467 = scalar_lea.vmem [#allocation2], 72
    %v468 = vld [vmem:[%s467] sm:%s415]
    %s469 = sshllo.u32 0, 4
    %s470 = smul.addr 4, 9
    %s471 = scalar_lea.vmem %s1, %s470
    %472 = vst [vmem:[%s471] sm:%s469] %v468
    %s473 = scalar_lea.vmem [#allocation2], 80
    %v474 = vld [vmem:[%s473] sm:%s415]
    %s475 = sshllo.u32 0, 4
    %s476 = smul.addr 4, 10
    %s477 = scalar_lea.vmem %s1, %s476
    %478 = vst [vmem:[%s477] sm:%s475] %v474
    %s479 = scalar_lea.vmem [#allocation2], 88
    %v480 = vld [vmem:[%s479] sm:%s415]
    %s481 = sshllo.u32 0, 4
    %s482 = smul.addr 4, 11
    %s483 = scalar_lea.vmem %s1, %s482
    %484 = vst [vmem:[%s483] sm:%s481] %v480
    %s485 = scalar_lea.vmem [#allocation2], 96
    %v486 = vld [vmem:[%s485] sm:%s415]
    %s487 = sshllo.u32 0, 4
    %s488 = smul.addr 4, 12
    %s489 = scalar_lea.vmem %s1, %s488
    %490 = vst [vmem:[%s489] sm:%s487] %v486
    %s491 = scalar_lea.vmem [#allocation2], 104
    %v492 = vld [vmem:[%s491] sm:%s415]
    %s493 = sshllo.u32 0, 4
    %s494 = smul.addr 4, 13
    %s495 = scalar_lea.vmem %s1, %s494
    %496 = vst [vmem:[%s495] sm:%s493] %v492
    %s497 = scalar_lea.vmem [#allocation2], 112
    %v498 = vld [vmem:[%s497] sm:%s415]
    %s499 = sshllo.u32 0, 4
    %s500 = smul.addr 4, 14
    %s501 = scalar_lea.vmem %s1, %s500
    %502 = vst [vmem:[%s501] sm:%s499] %v498
    %s503 = scalar_lea.vmem [#allocation2], 120
    %v504 = vld [vmem:[%s503] sm:%s415]
    %s505 = sshllo.u32 0, 4
    %s506 = smul.addr 4, 15
    %s507 = scalar_lea.vmem %s1, %s506
    %508 = vst [vmem:[%s507] sm:%s505] %v504
    %s509 = scalar_lea.vmem [#allocation2], 128
    %v510 = vld [vmem:[%s509] sm:%s415]
    %s511 = sshllo.u32 0, 4
    %s512 = smul.addr 4, 16
    %s513 = scalar_lea.vmem %s1, %s512
    %514 = vst [vmem:[%s513] sm:%s511] %v510
    %s515 = scalar_lea.vmem [#allocation2], 136
    %v516 = vld [vmem:[%s515] sm:%s415]
    %s517 = sshllo.u32 0, 4
    %s518 = smul.addr 4, 17
    %s519 = scalar_lea.vmem %s1, %s518
    %520 = vst [vmem:[%s519] sm:%s517] %v516
    %s521 = scalar_lea.vmem [#allocation2], 144
    %v522 = vld [vmem:[%s521] sm:%s415]
    %s523 = sshllo.u32 0, 4
    %s524 = smul.addr 4, 18
    %s525 = scalar_lea.vmem %s1, %s524
    %526 = vst [vmem:[%s525] sm:%s523] %v522
    %s527 = scalar_lea.vmem [#allocation2], 152
    %v528 = vld [vmem:[%s527] sm:%s415]
    %s529 = sshllo.u32 0, 4
    %s530 = smul.addr 4, 19
    %s531 = scalar_lea.vmem %s1, %s530
    %532 = vst [vmem:[%s531] sm:%s529] %v528
    %s533 = scalar_lea.vmem [#allocation2], 160
    %v534 = vld [vmem:[%s533] sm:%s415]
    %s535 = sshllo.u32 0, 4
    %s536 = smul.addr 4, 20
    %s537 = scalar_lea.vmem %s1, %s536
    %538 = vst [vmem:[%s537] sm:%s535] %v534
    %s539 = scalar_lea.vmem [#allocation2], 168
    %v540 = vld [vmem:[%s539] sm:%s415]
    %s541 = sshllo.u32 0, 4
    %s542 = smul.addr 4, 21
    %s543 = scalar_lea.vmem %s1, %s542
    %544 = vst [vmem:[%s543] sm:%s541] %v540
    %s545 = scalar_lea.vmem [#allocation2], 176
    %v546 = vld [vmem:[%s545] sm:%s415]
    %s547 = sshllo.u32 0, 4
    %s548 = smul.addr 4, 22
    %s549 = scalar_lea.vmem %s1, %s548
    %550 = vst [vmem:[%s549] sm:%s547] %v546
    %s551 = scalar_lea.vmem [#allocation2], 184
    %v552 = vld [vmem:[%s551] sm:%s415]
    %s553 = sshllo.u32 0, 4
    %s554 = smul.addr 4, 23
    %s555 = scalar_lea.vmem %s1, %s554
    %556 = vst [vmem:[%s555] sm:%s553] %v552
    %s557 = scalar_lea.vmem [#allocation2], 192
    %v558 = vld [vmem:[%s557] sm:%s415]
    %s559 = sshllo.u32 0, 4
    %s560 = smul.addr 4, 24
    %s561 = scalar_lea.vmem %s1, %s560
    %562 = vst [vmem:[%s561] sm:%s559] %v558
    %s563 = scalar_lea.vmem [#allocation2], 200
    %v564 = vld [vmem:[%s563] sm:%s415]
    %s565 = sshllo.u32 0, 4
    %s566 = smul.addr 4, 25
    %s567 = scalar_lea.vmem %s1, %s566
    %568 = vst [vmem:[%s567] sm:%s565] %v564
    %s569 = scalar_lea.vmem [#allocation2], 208
    %v570 = vld [vmem:[%s569] sm:%s415]
    %s571 = sshllo.u32 0, 4
    %s572 = smul.addr 4, 26
    %s573 = scalar_lea.vmem %s1, %s572
    %574 = vst [vmem:[%s573] sm:%s571] %v570
    %s575 = scalar_lea.vmem [#allocation2], 216
    %v576 = vld [vmem:[%s575] sm:%s415]
    %s577 = sshllo.u32 0, 4
    %s578 = smul.addr 4, 27
    %s579 = scalar_lea.vmem %s1, %s578
    %580 = vst [vmem:[%s579] sm:%s577] %v576
    %s581 = scalar_lea.vmem [#allocation2], 224
    %v582 = vld [vmem:[%s581] sm:%s415]
    %s583 = sshllo.u32 0, 4
    %s584 = smul.addr 4, 28
    %s585 = scalar_lea.vmem %s1, %s584
    %586 = vst [vmem:[%s585] sm:%s583] %v582
    %s587 = scalar_lea.vmem [#allocation2], 232
    %v588 = vld [vmem:[%s587] sm:%s415]
    %s589 = sshllo.u32 0, 4
    %s590 = smul.addr 4, 29
    %s591 = scalar_lea.vmem %s1, %s590
    %592 = vst [vmem:[%s591] sm:%s589] %v588
    %s593 = scalar_lea.vmem [#allocation2], 240
    %v594 = vld [vmem:[%s593] sm:%s415]
    %s595 = sshllo.u32 0, 4
    %s596 = smul.addr 4, 30
    %s597 = scalar_lea.vmem %s1, %s596
    %598 = vst [vmem:[%s597] sm:%s595] %v594
    %s599 = scalar_lea.vmem [#allocation2], 248
    %v600 = vld [vmem:[%s599] sm:%s415]
    %s601 = sshllo.u32 0, 4
    %s602 = smul.addr 4, 31
    %s603 = scalar_lea.vmem %s1, %s602
    %604 = vst [vmem:[%s603] sm:%s601] %v600
    %s605 = scalar_lea.vmem [#allocation2], 256
    %v606 = vld [vmem:[%s605] sm:%s415]
    %s607 = sshllo.u32 0, 4
    %s608 = smul.addr 4, 32
    %s609 = scalar_lea.vmem %s1, %s608
    %610 = vst [vmem:[%s609] sm:%s607] %v606
    %s611 = scalar_lea.vmem [#allocation2], 264
    %v612 = vld [vmem:[%s611] sm:%s415]
    %s613 = sshllo.u32 0, 4
    %s614 = smul.addr 4, 33
    %s615 = scalar_lea.vmem %s1, %s614
    %616 = vst [vmem:[%s615] sm:%s613] %v612
    %s617 = scalar_lea.vmem [#allocation2], 272
    %v618 = vld [vmem:[%s617] sm:%s415]
    %s619 = sshllo.u32 0, 4
    %s620 = smul.addr 4, 34
    %s621 = scalar_lea.vmem %s1, %s620
    %622 = vst [vmem:[%s621] sm:%s619] %v618
    %s623 = scalar_lea.vmem [#allocation2], 280
    %v624 = vld [vmem:[%s623] sm:%s415]
    %s625 = sshllo.u32 0, 4
    %s626 = smul.addr 4, 35
    %s627 = scalar_lea.vmem %s1, %s626
    %628 = vst [vmem:[%s627] sm:%s625] %v624
    %s629 = scalar_lea.vmem [#allocation2], 288
    %v630 = vld [vmem:[%s629] sm:%s415]
    %s631 = sshllo.u32 0, 4
    %s632 = smul.addr 4, 36
    %s633 = scalar_lea.vmem %s1, %s632
    %634 = vst [vmem:[%s633] sm:%s631] %v630
    %s635 = scalar_lea.vmem [#allocation2], 296
    %v636 = vld [vmem:[%s635] sm:%s415]
    %s637 = sshllo.u32 0, 4
    %s638 = smul.addr 4, 37
    %s639 = scalar_lea.vmem %s1, %s638
    %640 = vst [vmem:[%s639] sm:%s637] %v636
    %s641 = scalar_lea.vmem [#allocation2], 304
    %v642 = vld [vmem:[%s641] sm:%s415]
    %s643 = sshllo.u32 0, 4
    %s644 = smul.addr 4, 38
    %s645 = scalar_lea.vmem %s1, %s644
    %646 = vst [vmem:[%s645] sm:%s643] %v642
    %s647 = scalar_lea.vmem [#allocation2], 312
    %v648 = vld [vmem:[%s647] sm:%s415]
    %s649 = sshllo.u32 0, 4
    %s650 = smul.addr 4, 39
    %s651 = scalar_lea.vmem %s1, %s650
    %652 = vst [vmem:[%s651] sm:%s649] %v648
    %s653 = scalar_lea.vmem [#allocation2], 320
    %v654 = vld [vmem:[%s653] sm:%s415]
    %s655 = sshllo.u32 0, 4
    %s656 = smul.addr 4, 40
    %s657 = scalar_lea.vmem %s1, %s656
    %658 = vst [vmem:[%s657] sm:%s655] %v654
    %s659 = scalar_lea.vmem [#allocation2], 328
    %v660 = vld [vmem:[%s659] sm:%s415]
    %s661 = sshllo.u32 0, 4
    %s662 = smul.addr 4, 41
    %s663 = scalar_lea.vmem %s1, %s662
    %664 = vst [vmem:[%s663] sm:%s661] %v660
    %s665 = scalar_lea.vmem [#allocation2], 336
    %v666 = vld [vmem:[%s665] sm:%s415]
    %s667 = sshllo.u32 0, 4
    %s668 = smul.addr 4, 42
    %s669 = scalar_lea.vmem %s1, %s668
    %670 = vst [vmem:[%s669] sm:%s667] %v666
    %s671 = scalar_lea.vmem [#allocation2], 344
    %v672 = vld [vmem:[%s671] sm:%s415]
    %s673 = sshllo.u32 0, 4
    %s674 = smul.addr 4, 43
    %s675 = scalar_lea.vmem %s1, %s674
    %676 = vst [vmem:[%s675] sm:%s673] %v672
    %s677 = scalar_lea.vmem [#allocation2], 352
    %v678 = vld [vmem:[%s677] sm:%s415]
    %s679 = sshllo.u32 0, 4
    %s680 = smul.addr 4, 44
    %s681 = scalar_lea.vmem %s1, %s680
    %682 = vst [vmem:[%s681] sm:%s679] %v678
    %s683 = scalar_lea.vmem [#allocation2], 360
    %v684 = vld [vmem:[%s683] sm:%s415]
    %s685 = sshllo.u32 0, 4
    %s686 = smul.addr 4, 45
    %s687 = scalar_lea.vmem %s1, %s686
    %688 = vst [vmem:[%s687] sm:%s685] %v684
    %s689 = scalar_lea.vmem [#allocation2], 368
    %v690 = vld [vmem:[%s689] sm:%s415]
    %s691 = sshllo.u32 0, 4
    %s692 = smul.addr 4, 46
    %s693 = scalar_lea.vmem %s1, %s692
    %694 = vst [vmem:[%s693] sm:%s691] %v690
    %s695 = scalar_lea.vmem [#allocation2], 376
    %v696 = vld [vmem:[%s695] sm:%s415]
    %s697 = sshllo.u32 0, 4
    %s698 = smul.addr 4, 47
    %s699 = scalar_lea.vmem %s1, %s698
    %700 = vst [vmem:[%s699] sm:%s697] %v696
    %s701 = scalar_lea.vmem [#allocation2], 384
    %v702 = vld [vmem:[%s701] sm:%s415]
    %s703 = sshllo.u32 0, 4
    %s704 = smul.addr 4, 48
    %s705 = scalar_lea.vmem %s1, %s704
    %706 = vst [vmem:[%s705] sm:%s703] %v702
    %s707 = scalar_lea.vmem [#allocation2], 392
    %v708 = vld [vmem:[%s707] sm:%s415]
    %s709 = sshllo.u32 0, 4
    %s710 = smul.addr 4, 49
    %s711 = scalar_lea.vmem %s1, %s710
    %712 = vst [vmem:[%s711] sm:%s709] %v708
    %s713 = scalar_lea.vmem [#allocation2], 400
    %v714 = vld [vmem:[%s713] sm:%s415]
    %s715 = sshllo.u32 0, 4
    %s716 = smul.addr 4, 50
    %s717 = scalar_lea.vmem %s1, %s716
    %718 = vst [vmem:[%s717] sm:%s715] %v714
    %s719 = scalar_lea.vmem [#allocation2], 408
    %v720 = vld [vmem:[%s719] sm:%s415]
    %s721 = sshllo.u32 0, 4
    %s722 = smul.addr 4, 51
    %s723 = scalar_lea.vmem %s1, %s722
    %724 = vst [vmem:[%s723] sm:%s721] %v720
    %s725 = scalar_lea.vmem [#allocation2], 416
    %v726 = vld [vmem:[%s725] sm:%s415]
    %s727 = sshllo.u32 0, 4
    %s728 = smul.addr 4, 52
    %s729 = scalar_lea.vmem %s1, %s728
    %730 = vst [vmem:[%s729] sm:%s727] %v726
    %s731 = scalar_lea.vmem [#allocation2], 424
    %v732 = vld [vmem:[%s731] sm:%s415]
    %s733 = sshllo.u32 0, 4
    %s734 = smul.addr 4, 53
    %s735 = scalar_lea.vmem %s1, %s734
    %736 = vst [vmem:[%s735] sm:%s733] %v732
    %s737 = scalar_lea.vmem [#allocation2], 432
    %v738 = vld [vmem:[%s737] sm:%s415]
    %s739 = sshllo.u32 0, 4
    %s740 = smul.addr 4, 54
    %s741 = scalar_lea.vmem %s1, %s740
    %742 = vst [vmem:[%s741] sm:%s739] %v738
    %s743 = scalar_lea.vmem [#allocation2], 440
    %v744 = vld [vmem:[%s743] sm:%s415]
    %s745 = sshllo.u32 0, 4
    %s746 = smul.addr 4, 55
    %s747 = scalar_lea.vmem %s1, %s746
    %748 = vst [vmem:[%s747] sm:%s745] %v744
    %s749 = scalar_lea.vmem [#allocation2], 448
    %v750 = vld [vmem:[%s749] sm:%s415]
    %s751 = sshllo.u32 0, 4
    %s752 = smul.addr 4, 56
    %s753 = scalar_lea.vmem %s1, %s752
    %754 = vst [vmem:[%s753] sm:%s751] %v750
    %s755 = scalar_lea.vmem [#allocation2], 456
    %v756 = vld [vmem:[%s755] sm:%s415]
    %s757 = sshllo.u32 0, 4
    %s758 = smul.addr 4, 57
    %s759 = scalar_lea.vmem %s1, %s758
    %760 = vst [vmem:[%s759] sm:%s757] %v756
    %s761 = scalar_lea.vmem [#allocation2], 464
    %v762 = vld [vmem:[%s761] sm:%s415]
    %s763 = sshllo.u32 0, 4
    %s764 = smul.addr 4, 58
    %s765 = scalar_lea.vmem %s1, %s764
    %766 = vst [vmem:[%s765] sm:%s763] %v762
    %s767 = scalar_lea.vmem [#allocation2], 472
    %v768 = vld [vmem:[%s767] sm:%s415]
    %s769 = sshllo.u32 0, 4
    %s770 = smul.addr 4, 59
    %s771 = scalar_lea.vmem %s1, %s770
    %772 = vst [vmem:[%s771] sm:%s769] %v768
    %s773 = scalar_lea.vmem [#allocation2], 480
    %v774 = vld [vmem:[%s773] sm:%s415]
    %s775 = sshllo.u32 0, 4
    %s776 = smul.addr 4, 60
    %s777 = scalar_lea.vmem %s1, %s776
    %778 = vst [vmem:[%s777] sm:%s775] %v774
    %s779 = scalar_lea.vmem [#allocation2], 488
    %v780 = vld [vmem:[%s779] sm:%s415]
    %s781 = sshllo.u32 0, 4
    %s782 = smul.addr 4, 61
    %s783 = scalar_lea.vmem %s1, %s782
    %784 = vst [vmem:[%s783] sm:%s781] %v780
    %s785 = scalar_lea.vmem [#allocation2], 496
    %v786 = vld [vmem:[%s785] sm:%s415]
    %s787 = sshllo.u32 0, 4
    %s788 = smul.addr 4, 62
    %s789 = scalar_lea.vmem %s1, %s788
    %790 = vst [vmem:[%s789] sm:%s787] %v786
    %s791 = scalar_lea.vmem [#allocation2], 504
    %v792 = vld [vmem:[%s791] sm:%s415]
    %s793 = sshllo.u32 0, 4
    %s794 = smul.addr 4, 63
    %s795 = scalar_lea.vmem %s1, %s794
    %796 = vst [vmem:[%s795] sm:%s793] %v792
    %s797 = scalar_lea.vmem [#allocation2], 512
    %v798 = vld [vmem:[%s797] sm:%s415]
    %s799 = sshllo.u32 0, 4
    %s800 = smul.addr 4, 64
    %s801 = scalar_lea.vmem %s1, %s800
    %802 = vst [vmem:[%s801] sm:%s799] %v798
    %s803 = scalar_lea.vmem [#allocation2], 520
    %v804 = vld [vmem:[%s803] sm:%s415]
    %s805 = sshllo.u32 0, 4
    %s806 = smul.addr 4, 65
    %s807 = scalar_lea.vmem %s1, %s806
    %808 = vst [vmem:[%s807] sm:%s805] %v804
    %s809 = scalar_lea.vmem [#allocation2], 528
    %v810 = vld [vmem:[%s809] sm:%s415]
    %s811 = sshllo.u32 0, 4
    %s812 = smul.addr 4, 66
    %s813 = scalar_lea.vmem %s1, %s812
    %814 = vst [vmem:[%s813] sm:%s811] %v810
    %s815 = scalar_lea.vmem [#allocation2], 536
    %v816 = vld [vmem:[%s815] sm:%s415]
    %s817 = sshllo.u32 0, 4
    %s818 = smul.addr 4, 67
    %s819 = scalar_lea.vmem %s1, %s818
    %820 = vst [vmem:[%s819] sm:%s817] %v816
    %s821 = scalar_lea.vmem [#allocation2], 544
    %v822 = vld [vmem:[%s821] sm:%s415]
    %s823 = sshllo.u32 0, 4
    %s824 = smul.addr 4, 68
    %s825 = scalar_lea.vmem %s1, %s824
    %826 = vst [vmem:[%s825] sm:%s823] %v822
    %s827 = scalar_lea.vmem [#allocation2], 552
    %v828 = vld [vmem:[%s827] sm:%s415]
    %s829 = sshllo.u32 0, 4
    %s830 = smul.addr 4, 69
    %s831 = scalar_lea.vmem %s1, %s830
    %832 = vst [vmem:[%s831] sm:%s829] %v828
    %s833 = scalar_lea.vmem [#allocation2], 560
    %v834 = vld [vmem:[%s833] sm:%s415]
    %s835 = sshllo.u32 0, 4
    %s836 = smul.addr 4, 70
    %s837 = scalar_lea.vmem %s1, %s836
    %838 = vst [vmem:[%s837] sm:%s835] %v834
    %s839 = scalar_lea.vmem [#allocation2], 568
    %v840 = vld [vmem:[%s839] sm:%s415]
    %s841 = sshllo.u32 0, 4
    %s842 = smul.addr 4, 71
    %s843 = scalar_lea.vmem %s1, %s842
    %844 = vst [vmem:[%s843] sm:%s841] %v840
    %s845 = scalar_lea.vmem [#allocation2], 576
    %v846 = vld [vmem:[%s845] sm:%s415]
    %s847 = sshllo.u32 0, 4
    %s848 = smul.addr 4, 72
    %s849 = scalar_lea.vmem %s1, %s848
    %850 = vst [vmem:[%s849] sm:%s847] %v846
    %s851 = scalar_lea.vmem [#allocation2], 584
    %v852 = vld [vmem:[%s851] sm:%s415]
    %s853 = sshllo.u32 0, 4
    %s854 = smul.addr 4, 73
    %s855 = scalar_lea.vmem %s1, %s854
    %856 = vst [vmem:[%s855] sm:%s853] %v852
    %s857 = scalar_lea.vmem [#allocation2], 592
    %v858 = vld [vmem:[%s857] sm:%s415]
    %s859 = sshllo.u32 0, 4
    %s860 = smul.addr 4, 74
    %s861 = scalar_lea.vmem %s1, %s860
    %862 = vst [vmem:[%s861] sm:%s859] %v858
    %s863 = scalar_lea.vmem [#allocation2], 600
    %v864 = vld [vmem:[%s863] sm:%s415]
    %s865 = sshllo.u32 0, 4
    %s866 = smul.addr 4, 75
    %s867 = scalar_lea.vmem %s1, %s866
    %868 = vst [vmem:[%s867] sm:%s865] %v864
    %s869 = scalar_lea.vmem [#allocation2], 608
    %v870 = vld [vmem:[%s869] sm:%s415]
    %s871 = sshllo.u32 0, 4
    %s872 = smul.addr 4, 76
    %s873 = scalar_lea.vmem %s1, %s872
    %874 = vst [vmem:[%s873] sm:%s871] %v870
    %s875 = scalar_lea.vmem [#allocation2], 616
    %v876 = vld [vmem:[%s875] sm:%s415]
    %s877 = sshllo.u32 0, 4
    %s878 = smul.addr 4, 77
    %s879 = scalar_lea.vmem %s1, %s878
    %880 = vst [vmem:[%s879] sm:%s877] %v876
    %s881 = scalar_lea.vmem [#allocation2], 624
    %v882 = vld [vmem:[%s881] sm:%s415]
    %s883 = sshllo.u32 0, 4
    %s884 = smul.addr 4, 78
    %s885 = scalar_lea.vmem %s1, %s884
    %886 = vst [vmem:[%s885] sm:%s883] %v882
    %s887 = scalar_lea.vmem [#allocation2], 632
    %v888 = vld [vmem:[%s887] sm:%s415]
    %s889 = sshllo.u32 0, 4
    %s890 = smul.addr 4, 79
    %s891 = scalar_lea.vmem %s1, %s890
    %892 = vst [vmem:[%s891] sm:%s889] %v888
    %s893 = scalar_lea.vmem [#allocation2], 640
    %v894 = vld [vmem:[%s893] sm:%s415]
    %s895 = sshllo.u32 0, 4
    %s896 = smul.addr 4, 80
    %s897 = scalar_lea.vmem %s1, %s896
    %898 = vst [vmem:[%s897] sm:%s895] %v894
    %s899 = scalar_lea.vmem [#allocation2], 648
    %v900 = vld [vmem:[%s899] sm:%s415]
    %s901 = sshllo.u32 0, 4
    %s902 = smul.addr 4, 81
    %s903 = scalar_lea.vmem %s1, %s902
    %904 = vst [vmem:[%s903] sm:%s901] %v900
    %s905 = scalar_lea.vmem [#allocation2], 656
    %v906 = vld [vmem:[%s905] sm:%s415]
    %s907 = sshllo.u32 0, 4
    %s908 = smul.addr 4, 82
    %s909 = scalar_lea.vmem %s1, %s908
    %910 = vst [vmem:[%s909] sm:%s907] %v906
    %s911 = scalar_lea.vmem [#allocation2], 664
    %v912 = vld [vmem:[%s911] sm:%s415]
    %s913 = sshllo.u32 0, 4
    %s914 = smul.addr 4, 83
    %s915 = scalar_lea.vmem %s1, %s914
    %916 = vst [vmem:[%s915] sm:%s913] %v912
    %s917 = scalar_lea.vmem [#allocation2], 672
    %v918 = vld [vmem:[%s917] sm:%s415]
    %s919 = sshllo.u32 0, 4
    %s920 = smul.addr 4, 84
    %s921 = scalar_lea.vmem %s1, %s920
    %922 = vst [vmem:[%s921] sm:%s919] %v918
    %s923 = scalar_lea.vmem [#allocation2], 680
    %v924 = vld [vmem:[%s923] sm:%s415]
    %s925 = sshllo.u32 0, 4
    %s926 = smul.addr 4, 85
    %s927 = scalar_lea.vmem %s1, %s926
    %928 = vst [vmem:[%s927] sm:%s925] %v924
    %s929 = scalar_lea.vmem [#allocation2], 688
    %v930 = vld [vmem:[%s929] sm:%s415]
    %s931 = sshllo.u32 0, 4
    %s932 = smul.addr 4, 86
    %s933 = scalar_lea.vmem %s1, %s932
    %934 = vst [vmem:[%s933] sm:%s931] %v930
    %s935 = scalar_lea.vmem [#allocation2], 696
    %v936 = vld [vmem:[%s935] sm:%s415]
    %s937 = sshllo.u32 0, 4
    %s938 = smul.addr 4, 87
    %s939 = scalar_lea.vmem %s1, %s938
    %940 = vst [vmem:[%s939] sm:%s937] %v936
    %s941 = scalar_lea.vmem [#allocation2], 704
    %v942 = vld [vmem:[%s941] sm:%s415]
    %s943 = sshllo.u32 0, 4
    %s944 = smul.addr 4, 88
    %s945 = scalar_lea.vmem %s1, %s944
    %946 = vst [vmem:[%s945] sm:%s943] %v942
    %s947 = scalar_lea.vmem [#allocation2], 712
    %v948 = vld [vmem:[%s947] sm:%s415]
    %s949 = sshllo.u32 0, 4
    %s950 = smul.addr 4, 89
    %s951 = scalar_lea.vmem %s1, %s950
    %952 = vst [vmem:[%s951] sm:%s949] %v948
    %s953 = scalar_lea.vmem [#allocation2], 720
    %v954 = vld [vmem:[%s953] sm:%s415]
    %s955 = sshllo.u32 0, 4
    %s956 = smul.addr 4, 90
    %s957 = scalar_lea.vmem %s1, %s956
    %958 = vst [vmem:[%s957] sm:%s955] %v954
    %s959 = scalar_lea.vmem [#allocation2], 728
    %v960 = vld [vmem:[%s959] sm:%s415]
    %s961 = sshllo.u32 0, 4
    %s962 = smul.addr 4, 91
    %s963 = scalar_lea.vmem %s1, %s962
    %964 = vst [vmem:[%s963] sm:%s961] %v960
    %s965 = scalar_lea.vmem [#allocation2], 736
    %v966 = vld [vmem:[%s965] sm:%s415]
    %s967 = sshllo.u32 0, 4
    %s968 = smul.addr 4, 92
    %s969 = scalar_lea.vmem %s1, %s968
    %970 = vst [vmem:[%s969] sm:%s967] %v966
    %s971 = scalar_lea.vmem [#allocation2], 744
    %v972 = vld [vmem:[%s971] sm:%s415]
    %s973 = sshllo.u32 0, 4
    %s974 = smul.addr 4, 93
    %s975 = scalar_lea.vmem %s1, %s974
    %976 = vst [vmem:[%s975] sm:%s973] %v972
    %s977 = scalar_lea.vmem [#allocation2], 752
    %v978 = vld [vmem:[%s977] sm:%s415]
    %s979 = sshllo.u32 0, 4
    %s980 = smul.addr 4, 94
    %s981 = scalar_lea.vmem %s1, %s980
    %982 = vst [vmem:[%s981] sm:%s979] %v978
    %s983 = scalar_lea.vmem [#allocation2], 760
    %v984 = vld [vmem:[%s983] sm:%s415]
    %s985 = sshllo.u32 0, 4
    %s986 = smul.addr 4, 95
    %s987 = scalar_lea.vmem %s1, %s986
    %988 = vst [vmem:[%s987] sm:%s985] %v984
    %989 = vsyncpa [#allocation1], 1

// kernel: tf_model_forward.1
$region0: #{tf_model_forward.1}
  #allocation0 [shape = 'u32[]', space=smem, size = 0x4, offset = 0x4, fixed_abs, tag = 'smem constant byte address 0x4 - core index']
  #allocation1 [shape = 'u32[144,128]{1,0:T(1,128)}', space=vmem, size = 0x12000, scoped, tag = 'internal scratch']
  %s0 = inlined_call_operand.vmem [shape: f32[48,48], index: 0, kind: input, shape index: {}]
  %s1 = inlined_call_operand.vmem [shape: f32[1632,128], index: 1, kind: input, shape index: {}]
  %s2 = inlined_call_operand.hbm [shape: f32[2,3], index: 2, kind: output, shape index: {}]
  %s3 = sld [smem:[#allocation0]]
  $region18: #{tf_model_forward.1} parent=0
    _
  %s5 = ssub.s32 1, %s3
  %s6 = scalar_select 0, %s5, %s3
  $region1: #{tf_model_forward.1} parent=0
    #allocation2 [shape = 'u8[1024]{0}', space=vmem, size = 0x400, scoped, tag = 'output window, operand 0, single buffered']
    #allocation3 [shape = 's32[1]{0}', space=sflag, size = 0x4, scoped, tag = 'scoped memory for tf_model_forward.1']
    %7 = vsyncpa [#allocation3], 0
    // Predicated region
    $region2: #{tf_model_forward.1} parent=1 // pred_check
      _
    $region3: #{tf_model_forward.1} parent=1 // pred_check_branch
      %9 = sbr.rel (0) target = $region5
    $region4: #{tf_model_forward.1} parent=1 // pred_region
      _
    $region5: #{tf_model_forward.1} parent=1 // pred_fallthru
      _
    // Predicated region
    $region6: #{tf_model_forward.1} parent=1 // pred_check
      _
    $region7: #{tf_model_forward.1} parent=1 // pred_check_branch
      %11 = sbr.rel (0) target = $region9
    $region8: #{tf_model_forward.1} parent=1 // pred_region
      _
    $region9: #{tf_model_forward.1} parent=1 // pred_fallthru
      _
    %v12 = vld [vmem:[%s0] sm:$0xff]
    %v13 = vld [vmem:[%s0 + $0x8] sm:$0xff]
    %v14 = vld [vmem:[%s0 + $0x10] sm:$0xff]
    %v15 = vld [vmem:[%s0 + $0x18] sm:$0xff]
    %v16 = vld [vmem:[%s0 + $0x20] sm:$0xff]
    %v17 = vld [vmem:[%s0 + $0x28] sm:$0xff]
    %v18 = vld [vmem:[%s1] sm:$0xff]
    %v19 = vld [vmem:[%s1 + $0x8] sm:$0xff]
    %v20 = vld [vmem:[%s1 + $0x10] sm:$0xff]
    %v21 = vld [vmem:[%s1 + $0x18] sm:$0xff]
    %v22 = vld [vmem:[%s1 + $0x20] sm:$0xff]
    %v23 = vld [vmem:[%s1 + $0x28] sm:$0xff]
    %v24 = vld [vmem:[%s1 + $0x30] sm:$0xff]
    %v25 = vld [vmem:[%s1 + $0x38] sm:$0xff]
    %v26 = vld [vmem:[%s1 + $0x40] sm:$0xff]
    %v27 = vld [vmem:[%s1 + $0x48] sm:$0xff]
    %v28 = vld [vmem:[%s1 + $0x50] sm:$0xff]
    %v29 = vld [vmem:[%s1 + $0x58] sm:$0xff]
    %vm30 = vcmask 392192
    %v32 = vsel %vm30, %v12, 0
    %v35 = vsel %vm30, %v13, 0
    %v38 = vsel %vm30, %v14, 0
    %v41 = vsel %vm30, %v15, 0
    %v44 = vsel %vm30, %v16, 0
    %v47 = vsel %vm30, %v17, 0
    %49 = vmatprep.subr.mxu0 0.0
    %50 = vmatpush1.msra.mxu0 %v18
    %51 = vmatprep.subr.mxu0 0.0
    %52 = vmatpush1.msra.mxu0 %v19
    %53 = vmatprep.subr.mxu0 0.0
    %54 = vmatpush1.msra.mxu0 %v20
    %55 = vmatprep.subr.mxu0 0.0
    %56 = vmatpush1.msra.mxu0 %v21
    %57 = vmatprep.subr.mxu0 0.0
    %58 = vmatpush1.msra.mxu0 %v22
    %59 = vmatprep.subr.mxu0 0.0
    %60 = vmatpush1.msra.mxu0 %v23
    %61 = vmatprep.subr.mxu0 0.0
    %62 = vmatpush1.msra.mxu0 0.0
    %63 = vmatprep.subr.mxu0 0.0
    %64 = vmatpush1.msra.mxu0 0.0
    %65 = vmatprep.subr.mxu0 0.0
    %66 = vmatpush1.msra.mxu0 0.0
    %67 = vmatprep.subr.mxu0 0.0
    %68 = vmatpush1.msra.mxu0 0.0
    %69 = vmatprep.subr.mxu0 0.0
    %70 = vmatpush1.msra.mxu0 0.0
    %71 = vmatprep.subr.mxu0 0.0
    %72 = vmatpush1.msra.mxu0 0.0
    %73 = vmatprep.subr.mxu0 0.0
    %74 = vmatpush1.msra.mxu0 0.0
    %75 = vmatprep.subr.mxu0 0.0
    %76 = vmatpush1.msra.mxu0 0.0
    %77 = vmatprep.subr.mxu0 0.0
    %78 = vmatpush1.msra.mxu0 0.0
    %79 = vmatprep.subr.mxu0 0.0
    %80 = vmatpush1.msra.mxu0 0.0
    %81 = vmatprep.subr.mxu0 0.0
    %82 = vmatpush1.msra.mxu0 0.0
    %83 = vmatprep.subr.mxu0 0.0
    %84 = vmatpush1.msra.mxu0 0.0
    %85 = vmatprep.subr.mxu0 0.0
    %86 = vmatpush1.msra.mxu0 0.0
    %87 = vmatprep.subr.mxu0 0.0
    %88 = vmatpush1.msra.mxu0 0.0
    %89 = vmatprep.subr.mxu0 0.0
    %90 = vmatpush1.msra.mxu0 0.0
    %91 = vmatprep.subr.mxu0 0.0
    %92 = vmatpush1.msra.mxu0 0.0
    %93 = vmatprep.subr.mxu0 0.0
    %94 = vmatpush1.msra.mxu0 0.0
    %95 = vmatprep.subr.mxu0 0.0
    %96 = vmatpush1.msra.mxu0 0.0
    %97 = vmatprep.subr.mxu0 0.0
    %98 = vmatpush1.msra.mxu0 0.0
    %99 = vmatprep.subr.mxu0 0.0
    %100 = vmatpush1.msra.mxu0 0.0
    %101 = vmatprep.subr.mxu0 0.0
    %102 = vmatpush1.msra.mxu0 0.0
    %103 = vmatprep.subr.mxu0 0.0
    %104 = vmatpush1.msra.mxu0 0.0
    %105 = vmatprep.subr.mxu0 0.0
    %106 = vmatpush1.msra.mxu0 0.0
    %107 = vmatprep.subr.mxu0 0.0
    %108 = vmatpush1.msra.mxu0 0.0
    %109 = vmatprep.subr.mxu0 0.0
    %110 = vmatpush1.msra.mxu0 0.0
    %111 = vmatprep.subr.mxu0 0.0
    %112 = vmatpush1.msra.mxu0 0.0
    %113 = vmatprep.mubr.f32.mxu0 0.0
    %114 = vmatmul.mubr.f32.gmra.mrb[0].mxu0 %v32
    %v115 = vpop.f32.mrb[0].mxu0
    %v116 = vadd.f32 %v24, %v115
    %v117 = vpop.f32.mrb[0].mxu0
    %118 = vmatprep.mubr.f32.mxu0 0.0
    %119 = vmatmul.mubr.f32.gmra.mrb[0].mxu0 %v35
    %v120 = vpop.f32.mrb[0].mxu0
    %v121 = vadd.f32 %v25, %v120
    %v122 = vpop.f32.mrb[0].mxu0
    %123 = vmatprep.mubr.f32.mxu0 0.0
    %124 = vmatmul.mubr.f32.gmra.mrb[0].mxu0 %v38
    %v125 = vpop.f32.mrb[0].mxu0
    %v126 = vadd.f32 %v26, %v125
    %v127 = vpop.f32.mrb[0].mxu0
    %128 = vmatprep.mubr.f32.mxu0 0.0
    %129 = vmatmul.mubr.f32.gmra.mrb[0].mxu0 %v41
    %v130 = vpop.f32.mrb[0].mxu0
    %v131 = vadd.f32 %v27, %v130
    %v132 = vpop.f32.mrb[0].mxu0
    %133 = vmatprep.mubr.f32.mxu0 0.0
    %134 = vmatmul.mubr.f32.gmra.mrb[0].mxu0 %v44
    %v135 = vpop.f32.mrb[0].mxu0
    %v136 = vadd.f32 %v28, %v135
    %v137 = vpop.f32.mrb[0].mxu0
    %138 = vmatprep.mubr.f32.mxu0 0.0
    %139 = vmatmul.mubr.f32.gmra.mrb[0].mxu0 %v47
    %v140 = vpop.f32.mrb[0].mxu0
    %v141 = vadd.f32 %v29, %v140
    %v142 = vpop.f32.mrb[0].mxu0
    %143 = vdwg.mxu0
    %v144 = vld [vmem:[%s1 + $0x60] sm:$0xff]
    %v145 = vld [vmem:[%s1 + $0x68] sm:$0xff]
    %v146 = vld [vmem:[%s1 + $0x70] sm:$0xff]
    %v147 = vld [vmem:[%s1 + $0x78] sm:$0x1]
    %v148 = vld [vmem:[%s1 + $0x80] sm:$0x1]
    %vm149 = vcmask 261120
    %v150 = vsel %vm149, %v116, 0.0
    %151 = vadd.xlane.f32.xlu0 %v150
    %v152 = vpop.xlane.xlu0 %151
    %v153 = vsel %vm149, %v121, 0.0
    %154 = vadd.xlane.f32.xlu0 %v153
    %v155 = vpop.xlane.xlu0 %154
    %v156 = vsel %vm149, %v126, 0.0
    %157 = vadd.xlane.f32.xlu0 %v156
    %v158 = vpop.xlane.xlu0 %157
    %v159 = vsel %vm149, %v131, 0.0
    %160 = vadd.xlane.f32.xlu0 %v159
    %v161 = vpop.xlane.xlu0 %160
    %v162 = vsel %vm149, %v136, 0.0
    %163 = vadd.xlane.f32.xlu0 %v162
    %v164 = vpop.xlane.xlu0 %163
    %v165 = vsel %vm149, %v141, 0.0
    %166 = vadd.xlane.f32.xlu0 %v165
    %v167 = vpop.xlane.xlu0 %166
    %v168 = vrcp.pop 32.0
    %v169 = vmul.f32 %v152, %v168
    %v170 = vmul.f32 %v155, %v168
    %v171 = vmul.f32 %v158, %v168
    %v172 = vmul.f32 %v161, %v168
    %v173 = vmul.f32 %v164, %v168
    %v174 = vmul.f32 %v167, %v168
    %v175 = vsub.f32 %v116, %v169
    %v176 = vsub.f32 %v121, %v170
    %v177 = vsub.f32 %v126, %v171
    %v178 = vsub.f32 %v131, %v172
    %v179 = vsub.f32 %v136, %v173
    %v180 = vsub.f32 %v141, %v174
    %v181 = vmul.f32 %v175, %v175
    %v182 = vmul.f32 %v176, %v176
    %v183 = vmul.f32 %v177, %v177
    %v184 = vmul.f32 %v178, %v178
    %v185 = vmul.f32 %v179, %v179
    %v186 = vmul.f32 %v180, %v180
    %v187 = vsel %vm149, %v181, 0.0
    %188 = vadd.xlane.f32.xlu0 %v187
    %v189 = vpop.xlane.xlu0 %188
    %v190 = vsel %vm149, %v182, 0.0
    %191 = vadd.xlane.f32.xlu0 %v190
    %v192 = vpop.xlane.xlu0 %191
    %v193 = vsel %vm149, %v183, 0.0
    %194 = vadd.xlane.f32.xlu0 %v193
    %v195 = vpop.xlane.xlu0 %194
    %v196 = vsel %vm149, %v184, 0.0
    %197 = vadd.xlane.f32.xlu0 %v196
    %v198 = vpop.xlane.xlu0 %197
    %v199 = vsel %vm149, %v185, 0.0
    %200 = vadd.xlane.f32.xlu0 %v199
    %v201 = vpop.xlane.xlu0 %200
    %v202 = vsel %vm149, %v186, 0.0
    %203 = vadd.xlane.f32.xlu0 %v202
    %v204 = vpop.xlane.xlu0 %203
    %v205 = vmul.f32 %v189, %v168
    %v206 = vmul.f32 %v192, %v168
    %v207 = vmul.f32 %v195, %v168
    %v208 = vmul.f32 %v198, %v168
    %v209 = vmul.f32 %v201, %v168
    %v210 = vmul.f32 %v204, %v168
    %v211 = vadd.f32 %v205, 1e-06
    %v212 = vadd.f32 %v206, 1e-06
    %v213 = vadd.f32 %v207, 1e-06
    %v214 = vadd.f32 %v208, 1e-06
    %v215 = vadd.f32 %v209, 1e-06
    %v216 = vadd.f32 %v210, 1e-06
    %v217 = vrsqrt.pop %v211
    %v218 = vrsqrt.pop %v212
    %v219 = vrsqrt.pop %v213
    %v220 = vrsqrt.pop %v214
    %v221 = vrsqrt.pop %v215
    %v222 = vrsqrt.pop %v216
    %v223 = vmul.f32 %v175, %v217
    %v224 = vmul.f32 %v176, %v218
    %v225 = vmul.f32 %v177, %v219
    %v226 = vmul.f32 %v178, %v220
    %v227 = vmul.f32 %v179, %v221
    %v228 = vmul.f32 %v180, %v222
    %v229 = vlaneseq
    %v230 = vshrl.u32 %v229, 7
    %v231 = vsub.s32 0, %v230
    %v232 = vrot.slane %v147, %v231
    %v233 = vmul.f32 %v223, %v232
    %v234 = vmul.f32 %v224, %v232
    %v235 = vmul.f32 %v225, %v232
    %v236 = vmul.f32 %v226, %v232
    %v237 = vmul.f32 %v227, %v232
    %v238 = vmul.f32 %v228, %v232
    %v239 = vlaneseq
    %v240 = vshrl.u32 %v239, 7
    %v241 = vsub.s32 0, %v240
    %v242 = vrot.slane %v148, %v241
    %v243 = vadd.f32 %v233, %v242
    %v244 = vadd.f32 %v234, %v242
    %v245 = vadd.f32 %v235, %v242
    %v246 = vadd.f32 %v236, %v242
    %v247 = vadd.f32 %v237, %v242
    %v248 = vadd.f32 %v238, %v242
    %v249 = vld [vmem:[%s1 + $0x88] sm:$0xff]
    %v250 = vld [vmem:[%s1 + $0x90] sm:$0xff]
    %v251 = vld [vmem:[%s1 + $0x98] sm:$0xff]
    %v252 = vld [vmem:[%s1 + $0xa0] sm:$0xff]
    %v253 = vld [vmem:[%s1 + $0xf0] sm:$0x1]
    %v254 = vlaneseq
    %v255 = vshrl.u32 %v254, 7
    %v256 = vsub.s32 0, %v255
    %v257 = vrot.slane %v253, %v256
    %v259 = vsel %vm149, %v243, 0
    %v262 = vsel %vm149, %v244, 0
    %v265 = vsel %vm149, %v245, 0
    %v268 = vsel %vm149, %v246, 0
    %v271 = vsel %vm149, %v247, 0
    %v274 = vsel %vm149, %v248, 0
    %276 = vmatprep.subr.mxu0 0.0
    %277 = vmatpush1.msra.mxu0 %v249
    %278 = vmatprep.subr.mxu0 0.0
    %279 = vmatpush1.msra.mxu0 %v250
    %280 = vmatprep.subr.mxu0 0.0
    %281 = vmatpush1.msra.mxu0 %v251
    %282 = vmatprep.subr.mxu0 0.0
    %283 = vmatpush1.msra.mxu0 %v252
    %284 = vmatprep.subr.mxu0 0.0
    %285 = vmatpush1.msra.mxu0 0.0
    %286 = vmatprep.subr.mxu0 0.0
    %287 = vmatpush1.msra.mxu0 0.0
    %288 = vmatprep.subr.mxu0 0.0
    %289 = vmatpush1.msra.mxu0 0.0
    %290 = vmatprep.subr.mxu0 0.0
    %291 = vmatpush1.msra.mxu0 0.0
    %292 = vmatprep.subr.mxu0 0.0
    %293 = vmatpush1.msra.mxu0 0.0
    %294 = vmatprep.subr.mxu0 0.0
    %295 = vmatpush1.msra.mxu0 0.0
    %296 = vmatprep.subr.mxu0 0.0
    %297 = vmatpush1.msra.mxu0 0.0
    %298 = vmatprep.subr.mxu0 0.0
    %299 = vmatpush1.msra.mxu0 0.0
    %300 = vmatprep.subr.mxu0 0.0
    %301 = vmatpush1.msra.mxu0 0.0
    %302 = vmatprep.subr.mxu0 0.0
    %303 = vmatpush1.msra.mxu0 0.0
    %304 = vmatprep.subr.mxu0 0.0
    %305 = vmatpush1.msra.mxu0 0.0
    %306 = vmatprep.subr.mxu0 0.0
    %307 = vmatpush1.msra.mxu0 0.0
    %308 = vmatprep.subr.mxu0 0.0
    %309 = vmatpush1.msra.mxu0 0.0
    %310 = vmatprep.subr.mxu0 0.0
    %311 = vmatpush1.msra.mxu0 0.0
    %312 = vmatprep.subr.mxu0 0.0
    %313 = vmatpush1.msra.mxu0 0.0
    %314 = vmatprep.subr.mxu0 0.0
    %315 = vmatpush1.msra.mxu0 0.0
    %316 = vmatprep.subr.mxu0 0.0
    %317 = vmatpush1.msra.mxu0 0.0
    %318 = vmatprep.subr.mxu0 0.0
    %319 = vmatpush1.msra.mxu0 0.0
    %320 = vmatprep.subr.mxu0 0.0
    %321 = vmatpush1.msra.mxu0 0.0
    %322 = vmatprep.subr.mxu0 0.0
    %323 = vmatpush1.msra.mxu0 0.0
    %324 = vmatprep.subr.mxu0 0.0
    %325 = vmatpush1.msra.mxu0 0.0
    %326 = vmatprep.subr.mxu0 0.0
    %327 = vmatpush1.msra.mxu0 0.0
    %328 = vmatprep.subr.mxu0 0.0
    %329 = vmatpush1.msra.mxu0 0.0
    %330 = vmatprep.subr.mxu0 0.0
    %331 = vmatpush1.msra.mxu0 0.0
    %332 = vmatprep.subr.mxu0 0.0
    %333 = vmatpush1.msra.mxu0 0.0
    %334 = vmatprep.subr.mxu0 0.0
    %335 = vmatpush1.msra.mxu0 0.0
    %336 = vmatprep.subr.mxu0 0.0
    %337 = vmatpush1.msra.mxu0 0.0
    %338 = vmatprep.subr.mxu0 0.0
    %339 = vmatpush1.msra.mxu0 0.0
    %340 = vmatprep.mubr.f32.mxu0 0.0
    %341 = vmatmul.mubr.f32.gmra.mrb[0].mxu0 %v259
    %v342 = vpop.f32.mrb[0].mxu0
    %v343 = vadd.f32 %v257, %v342
    %v344 = vpop.f32.mrb[0].mxu0
    %345 = vmatprep.mubr.f32.mxu0 0.0
    %346 = vmatmul.mubr.f32.gmra.mrb[0].mxu0 %v262
    %v347 = vpop.f32.mrb[0].mxu0
    %v348 = vadd.f32 %v257, %v347
    %v349 = vpop.f32.mrb[0].mxu0
    %350 = vmatprep.mubr.f32.mxu0 0.0
    %351 = vmatmul.mubr.f32.gmra.mrb[0].mxu0 %v265
    %v352 = vpop.f32.mrb[0].mxu0
    %v353 = vadd.f32 %v257, %v352
    %v354 = vpop.f32.mrb[0].mxu0
    %355 = vmatprep.mubr.f32.mxu0 0.0
    %356 = vmatmul.mubr.f32.gmra.mrb[0].mxu0 %v268
    %v357 = vpop.f32.mrb[0].mxu0
    %v358 = vadd.f32 %v257, %v357
    %v359 = vpop.f32.mrb[0].mxu0
    %360 = vmatprep.mubr.f32.mxu0 0.0
    %361 = vmatmul.mubr.f32.gmra.mrb[0].mxu0 %v271
    %v362 = vpop.f32.mrb[0].mxu0
    %v363 = vadd.f32 %v257, %v362
    %v364 = vpop.f32.mrb[0].mxu0
    %365 = vmatprep.mubr.f32.mxu0 0.0
    %366 = vmatmul.mubr.f32.gmra.mrb[0].mxu0 %v274
    %v367 = vpop.f32.mrb[0].mxu0
    %v368 = vadd.f32 %v257, %v367
    %v369 = vpop.f32.mrb[0].mxu0
    %370 = vdwg.mxu0
    %v371 = vld [vmem:[%s1 + $0xa8] sm:$0xff]
    %v372 = vld [vmem:[%s1 + $0xb0] sm:$0xff]
    %v373 = vld [vmem:[%s1 + $0xb8] sm:$0xff]
    %v374 = vld [vmem:[%s1 + $0xc0] sm:$0xff]
    %v375 = vld [vmem:[%s1 + $0xf8] sm:$0x1]
    %v376 = vlaneseq
    %v377 = vshrl.u32 %v376, 7
    %v378 = vsub.s32 0, %v377
    %v379 = vrot.slane %v375, %v378
    %380 = vmatprep.subr.mxu0 0.0
    %381 = vmatpush1.msra.mxu0 %v371
    %382 = vmatprep.subr.mxu0 0.0
    %383 = vmatpush1.msra.mxu0 %v372
    %384 = vmatprep.subr.mxu0 0.0
    %385 = vmatpush1.msra.mxu0 %v373
    %386 = vmatprep.subr.mxu0 0.0
    %387 = vmatpush1.msra.mxu0 %v374
    %388 = vmatprep.subr.mxu0 0.0
    %389 = vmatpush1.msra.mxu0 0.0
    %390 = vmatprep.subr.mxu0 0.0
    %391 = vmatpush1.msra.mxu0 0.0
    %392 = vmatprep.subr.mxu0 0.0
    %393 = vmatpush1.msra.mxu0 0.0
    %394 = vmatprep.subr.mxu0 0.0
    %395 = vmatpush1.msra.mxu0 0.0
    %396 = vmatprep.subr.mxu0 0.0
    %397 = vmatpush1.msra.mxu0 0.0
    %398 = vmatprep.subr.mxu0 0.0
    %399 = vmatpush1.msra.mxu0 0.0
    %400 = vmatprep.subr.mxu0 0.0
    %401 = vmatpush1.msra.mxu0 0.0
    %402 = vmatprep.subr.mxu0 0.0
    %403 = vmatpush1.msra.mxu0 0.0
    %404 = vmatprep.subr.mxu0 0.0
    %405 = vmatpush1.msra.mxu0 0.0
    %406 = vmatprep.subr.mxu0 0.0
    %407 = vmatpush1.msra.mxu0 0.0
    %408 = vmatprep.subr.mxu0 0.0
    %409 = vmatpush1.msra.mxu0 0.0
    %410 = vmatprep.subr.mxu0 0.0
    %411 = vmatpush1.msra.mxu0 0.0
    %412 = vmatprep.subr.mxu0 0.0
    %413 = vmatpush1.msra.mxu0 0.0
    %414 = vmatprep.subr.mxu0 0.0
    %415 = vmatpush1.msra.mxu0 0.0
    %416 = vmatprep.subr.mxu0 0.0
    %417 = vmatpush1.msra.mxu0 0.0
    %418 = vmatprep.subr.mxu0 0.0
    %419 = vmatpush1.msra.mxu0 0.0
    %420 = vmatprep.subr.mxu0 0.0
    %421 = vmatpush1.msra.mxu0 0.0
    %422 = vmatprep.subr.mxu0 0.0
    %423 = vmatpush1.msra.mxu0 0.0
    %424 = vmatprep.subr.mxu0 0.0
    %425 = vmatpush1.msra.mxu0 0.0
    %426 = vmatprep.subr.mxu0 0.0
    %427 = vmatpush1.msra.mxu0 0.0
    %428 = vmatprep.subr.mxu0 0.0
    %429 = vmatpush1.msra.mxu0 0.0
    %430 = vmatprep.subr.mxu0 0.0
    %431 = vmatpush1.msra.mxu0 0.0
    %432 = vmatprep.subr.mxu0 0.0
    %433 = vmatpush1.msra.mxu0 0.0
    %434 = vmatprep.subr.mxu0 0.0
    %435 = vmatpush1.msra.mxu0 0.0
    %436 = vmatprep.subr.mxu0 0.0
    %437 = vmatpush1.msra.mxu0 0.0
    %438 = vmatprep.subr.mxu0 0.0
    %439 = vmatpush1.msra.mxu0 0.0
    %440 = vmatprep.subr.mxu0 0.0
    %441 = vmatpush1.msra.mxu0 0.0
    %442 = vmatprep.subr.mxu0 0.0
    %443 = vmatpush1.msra.mxu0 0.0
    %444 = vmatprep.mubr.f32.mxu0 0.0
    %445 = vmatmul.mubr.f32.gmra.mrb[0].mxu0 %v259
    %v446 = vpop.f32.mrb[0].mxu0
    %v447 = vadd.f32 %v379, %v446
    %v448 = vpop.f32.mrb[0].mxu0
    %449 = vmatprep.mubr.f32.mxu0 0.0
    %450 = vmatmul.mubr.f32.gmra.mrb[0].mxu0 %v262
    %v451 = vpop.f32.mrb[0].mxu0
    %v452 = vadd.f32 %v379, %v451
    %v453 = vpop.f32.mrb[0].mxu0
    %454 = vmatprep.mubr.f32.mxu0 0.0
    %455 = vmatmul.mubr.f32.gmra.mrb[0].mxu0 %v265
    %v456 = vpop.f32.mrb[0].mxu0
    %v457 = vadd.f32 %v379, %v456
    %v458 = vpop.f32.mrb[0].mxu0
    %459 = vmatprep.mubr.f32.mxu0 0.0
    %460 = vmatmul.mubr.f32.gmra.mrb[0].mxu0 %v268
    %v461 = vpop.f32.mrb[0].mxu0
    %v462 = vadd.f32 %v379, %v461
    %v463 = vpop.f32.mrb[0].mxu0
    %464 = vmatprep.mubr.f32.mxu0 0.0
    %465 = vmatmul.mubr.f32.gmra.mrb[0].mxu0 %v271
    %v466 = vpop.f32.mrb[0].mxu0
    %v467 = vadd.f32 %v379, %v466
    %v468 = vpop.f32.mrb[0].mxu0
    %469 = vmatprep.mubr.f32.mxu0 0.0
    %470 = vmatmul.mubr.f32.gmra.mrb[0].mxu0 %v274
    %v471 = vpop.f32.mrb[0].mxu0
    %v472 = vadd.f32 %v379, %v471
    %v473 = vpop.f32.mrb[0].mxu0
    %474 = vdwg.mxu0
    %v475 = vld [vmem:[%s1 + $0xc8] sm:$0xff]
    %v476 = vld [vmem:[%s1 + $0xd0] sm:$0xff]
    %v477 = vld [vmem:[%s1 + $0xd8] sm:$0xff]
    %v478 = vld [vmem:[%s1 + $0xe0] sm:$0xff]
    %v479 = vld [vmem:[%s1 + $0x100] sm:$0x1]
    %v480 = vlaneseq
    %v481 = vshrl.u32 %v480, 7
    %v482 = vsub.s32 0, %v481
    %v483 = vrot.slane %v479, %v482
    %484 = vmatprep.subr.mxu0 0.0
    %485 = vmatpush1.msra.mxu0 %v475
    %486 = vmatprep.subr.mxu0 0.0
    %487 = vmatpush1.msra.mxu0 %v476
    %488 = vmatprep.subr.mxu0 0.0
    %489 = vmatpush1.msra.mxu0 %v477
    %490 = vmatprep.subr.mxu0 0.0
    %491 = vmatpush1.msra.mxu0 %v478
    %492 = vmatprep.subr.mxu0 0.0
    %493 = vmatpush1.msra.mxu0 0.0
    %494 = vmatprep.subr.mxu0 0.0
    %495 = vmatpush1.msra.mxu0 0.0
    %496 = vmatprep.subr.mxu0 0.0
    %497 = vmatpush1.msra.mxu0 0.0
    %498 = vmatprep.subr.mxu0 0.0
    %499 = vmatpush1.msra.mxu0 0.0
    %500 = vmatprep.subr.mxu0 0.0
    %501 = vmatpush1.msra.mxu0 0.0
    %502 = vmatprep.subr.mxu0 0.0
    %503 = vmatpush1.msra.mxu0 0.0
    %504 = vmatprep.subr.mxu0 0.0
    %505 = vmatpush1.msra.mxu0 0.0
    %506 = vmatprep.subr.mxu0 0.0
    %507 = vmatpush1.msra.mxu0 0.0
    %508 = vmatprep.subr.mxu0 0.0
    %509 = vmatpush1.msra.mxu0 0.0
    %510 = vmatprep.subr.mxu0 0.0
    %511 = vmatpush1.msra.mxu0 0.0
    %512 = vmatprep.subr.mxu0 0.0
    %513 = vmatpush1.msra.mxu0 0.0
    %514 = vmatprep.subr.mxu0 0.0
    %515 = vmatpush1.msra.mxu0 0.0
    %516 = vmatprep.subr.mxu0 0.0
    %517 = vmatpush1.msra.mxu0 0.0
    %518 = vmatprep.subr.mxu0 0.0
    %519 = vmatpush1.msra.mxu0 0.0
    %520 = vmatprep.subr.mxu0 0.0
    %521 = vmatpush1.msra.mxu0 0.0
    %522 = vmatprep.subr.mxu0 0.0
    %523 = vmatpush1.msra.mxu0 0.0
    %524 = vmatprep.subr.mxu0 0.0
    %525 = vmatpush1.msra.mxu0 0.0
    %526 = vmatprep.subr.mxu0 0.0
    %527 = vmatpush1.msra.mxu0 0.0
    %528 = vmatprep.subr.mxu0 0.0
    %529 = vmatpush1.msra.mxu0 0.0
    %530 = vmatprep.subr.mxu0 0.0
    %531 = vmatpush1.msra.mxu0 0.0
    %532 = vmatprep.subr.mxu0 0.0
    %533 = vmatpush1.msra.mxu0 0.0
    %534 = vmatprep.subr.mxu0 0.0
    %535 = vmatpush1.msra.mxu0 0.0
    %536 = vmatprep.subr.mxu0 0.0
    %537 = vmatpush1.msra.mxu0 0.0
    %538 = vmatprep.subr.mxu0 0.0
    %539 = vmatpush1.msra.mxu0 0.0
    %540 = vmatprep.subr.mxu0 0.0
    %541 = vmatpush1.msra.mxu0 0.0
    %542 = vmatprep.subr.mxu0 0.0
    %543 = vmatpush1.msra.mxu0 0.0
    %544 = vmatprep.subr.mxu0 0.0
    %545 = vmatpush1.msra.mxu0 0.0
    %546 = vmatprep.subr.mxu0 0.0
    %547 = vmatpush1.msra.mxu0 0.0
    %548 = vmatprep.mubr.f32.mxu0 0.0
    %549 = vmatmul.mubr.f32.gmra.mrb[0].mxu0 %v259
    %v550 = vpop.f32.mrb[0].mxu0
    %v551 = vadd.f32 %v483, %v550
    %v552 = vpop.f32.mrb[0].mxu0
    %553 = vmatprep.mubr.f32.mxu0 0.0
    %554 = vmatmul.mubr.f32.gmra.mrb[0].mxu0 %v262
    %v555 = vpop.f32.mrb[0].mxu0
    %v556 = vadd.f32 %v483, %v555
    %v557 = vpop.f32.mrb[0].mxu0
    %558 = vmatprep.mubr.f32.mxu0 0.0
    %559 = vmatmul.mubr.f32.gmra.mrb[0].mxu0 %v265
    %v560 = vpop.f32.mrb[0].mxu0
    %v561 = vadd.f32 %v483, %v560
    %v562 = vpop.f32.mrb[0].mxu0
    %563 = vmatprep.mubr.f32.mxu0 0.0
    %564 = vmatmul.mubr.f32.gmra.mrb[0].mxu0 %v268
    %v565 = vpop.f32.mrb[0].mxu0
    %v566 = vadd.f32 %v483, %v565
    %v567 = vpop.f32.mrb[0].mxu0
    %568 = vmatprep.mubr.f32.mxu0 0.0
    %569 = vmatmul.mubr.f32.gmra.mrb[0].mxu0 %v271
    %v570 = vpop.f32.mrb[0].mxu0
    %v571 = vadd.f32 %v483, %v570
    %v572 = vpop.f32.mrb[0].mxu0
    %573 = vmatprep.mubr.f32.mxu0 0.0
    %574 = vmatmul.mubr.f32.gmra.mrb[0].mxu0 %v274
    %v575 = vpop.f32.mrb[0].mxu0
    %v576 = vadd.f32 %v483, %v575
    %v577 = vpop.f32.mrb[0].mxu0
    %578 = vdwg.mxu0
    %vm579 = vcmask 64512
    %v581 = vsel %vm579, %v343, 0
    %v584 = vsel %vm579, %v348, 0
    %v587 = vsel %vm579, %v353, 0
    %v590 = vsel %vm579, %v447, 0
    %v593 = vsel %vm579, %v452, 0
    %v596 = vsel %vm579, %v457, 0
    %598 = vmatprep.subr.mxu0 0.0
    %599 = vmatpush1.xpose.msra.mxu0 %v590
    %600 = vmatprep.subr.mxu0 0.0
    %601 = vmatpush1.xpose.msra.mxu0 %v593
    %602 = vmatprep.subr.mxu0 0.0
    %603 = vmatpush1.xpose.msra.mxu0 %v596
    %604 = vmatprep.subr.mxu0 0.0
    %605 = vmatpush1.xpose.msra.mxu0 0.0
    %606 = vmatprep.subr.mxu0 0.0
    %607 = vmatpush1.xpose.msra.mxu0 0.0
    %608 = vmatprep.subr.mxu0 0.0
    %609 = vmatpush1.xpose.msra.mxu0 0.0
    %610 = vmatprep.subr.mxu0 0.0
    %611 = vmatpush1.xpose.msra.mxu0 0.0
    %612 = vmatprep.subr.mxu0 0.0
    %613 = vmatpush1.xpose.msra.mxu0 0.0
    %614 = vmatprep.subr.mxu0 0.0
    %615 = vmatpush1.xpose.msra.mxu0 0.0
    %616 = vmatprep.subr.mxu0 0.0
    %617 = vmatpush1.xpose.msra.mxu0 0.0
    %618 = vmatprep.subr.mxu0 0.0
    %619 = vmatpush1.xpose.msra.mxu0 0.0
    %620 = vmatprep.subr.mxu0 0.0
    %621 = vmatpush1.xpose.msra.mxu0 0.0
    %622 = vmatprep.subr.mxu0 0.0
    %623 = vmatpush1.xpose.msra.mxu0 0.0
    %624 = vmatprep.subr.mxu0 0.0
    %625 = vmatpush1.xpose.msra.mxu0 0.0
    %626 = vmatprep.subr.mxu0 0.0
    %627 = vmatpush1.xpose.msra.mxu0 0.0
    %628 = vmatprep.subr.mxu0 0.0
    %629 = vmatpush1.xpose.msra.mxu0 0.0
    %630 = vmatprep.subr.mxu0 0.0
    %631 = vmatpush1.xpose.msra.mxu0 0.0
    %632 = vmatprep.subr.mxu0 0.0
    %633 = vmatpush1.xpose.msra.mxu0 0.0
    %634 = vmatprep.subr.mxu0 0.0
    %635 = vmatpush1.xpose.msra.mxu0 0.0
    %636 = vmatprep.subr.mxu0 0.0
    %637 = vmatpush1.xpose.msra.mxu0 0.0
    %638 = vmatprep.subr.mxu0 0.0
    %639 = vmatpush1.xpose.msra.mxu0 0.0
    %640 = vmatprep.subr.mxu0 0.0
    %641 = vmatpush1.xpose.msra.mxu0 0.0
    %642 = vmatprep.subr.mxu0 0.0
    %643 = vmatpush1.xpose.msra.mxu0 0.0
    %644 = vmatprep.subr.mxu0 0.0
    %645 = vmatpush1.xpose.msra.mxu0 0.0
    %646 = vmatprep.subr.mxu0 0.0
    %647 = vmatpush1.xpose.msra.mxu0 0.0
    %648 = vmatprep.subr.mxu0 0.0
    %649 = vmatpush1.xpose.msra.mxu0 0.0
    %650 = vmatprep.subr.mxu0 0.0
    %651 = vmatpush1.xpose.msra.mxu0 0.0
    %652 = vmatprep.subr.mxu0 0.0
    %653 = vmatpush1.xpose.msra.mxu0 0.0
    %654 = vmatprep.subr.mxu0 0.0
    %655 = vmatpush1.xpose.msra.mxu0 0.0
    %656 = vmatprep.subr.mxu0 0.0
    %657 = vmatpush1.xpose.msra.mxu0 0.0
    %658 = vmatprep.subr.mxu0 0.0
    %659 = vmatpush1.xpose.msra.mxu0 0.0
    %660 = vmatprep.subr.mxu0 0.0
    %661 = vmatpush1.xpose.msra.mxu0 0.0
    %662 = vmatprep.mubr.f32.mxu0 0.0
    %663 = vmatmul.mubr.f32.gmra.mrb[0].mxu0 %v581
    %v664 = vpop.f32.mrb[0].mxu0
    %v665 = vadd.f32 %v144, %v664
    %v666 = vpop.f32.mrb[0].mxu0
    %667 = vmatprep.mubr.f32.mxu0 0.0
    %668 = vmatmul.mubr.f32.gmra.mrb[0].mxu0 %v584
    %v669 = vpop.f32.mrb[0].mxu0
    %v670 = vadd.f32 %v145, %v669
    %v671 = vpop.f32.mrb[0].mxu0
    %672 = vmatprep.mubr.f32.mxu0 0.0
    %673 = vmatmul.mubr.f32.gmra.mrb[0].mxu0 %v587
    %v674 = vpop.f32.mrb[0].mxu0
    %v675 = vadd.f32 %v146, %v674
    %v676 = vpop.f32.mrb[0].mxu0
    %677 = vdwg.mxu0
    %v679 = vsel %vm579, %v358, 0
    %v682 = vsel %vm579, %v363, 0
    %v685 = vsel %vm579, %v368, 0
    %v688 = vsel %vm579, %v462, 0
    %v691 = vsel %vm579, %v467, 0
    %v694 = vsel %vm579, %v472, 0
    %696 = vmatprep.subr.mxu0 0.0
    %697 = vmatpush1.xpose.msra.mxu0 %v688
    %698 = vmatprep.subr.mxu0 0.0
    %699 = vmatpush1.xpose.msra.mxu0 %v691
    %700 = vmatprep.subr.mxu0 0.0
    %701 = vmatpush1.xpose.msra.mxu0 %v694
    %702 = vmatprep.subr.mxu0 0.0
    %703 = vmatpush1.xpose.msra.mxu0 0.0
    %704 = vmatprep.subr.mxu0 0.0
    %705 = vmatpush1.xpose.msra.mxu0 0.0
    %706 = vmatprep.subr.mxu0 0.0
    %707 = vmatpush1.xpose.msra.mxu0 0.0
    %708 = vmatprep.subr.mxu0 0.0
    %709 = vmatpush1.xpose.msra.mxu0 0.0
    %710 = vmatprep.subr.mxu0 0.0
    %711 = vmatpush1.xpose.msra.mxu0 0.0
    %712 = vmatprep.subr.mxu0 0.0
    %713 = vmatpush1.xpose.msra.mxu0 0.0
    %714 = vmatprep.subr.mxu0 0.0
    %715 = vmatpush1.xpose.msra.mxu0 0.0
    %716 = vmatprep.subr.mxu0 0.0
    %717 = vmatpush1.xpose.msra.mxu0 0.0
    %718 = vmatprep.subr.mxu0 0.0
    %719 = vmatpush1.xpose.msra.mxu0 0.0
    %720 = vmatprep.subr.mxu0 0.0
    %721 = vmatpush1.xpose.msra.mxu0 0.0
    %722 = vmatprep.subr.mxu0 0.0
    %723 = vmatpush1.xpose.msra.mxu0 0.0
    %724 = vmatprep.subr.mxu0 0.0
    %725 = vmatpush1.xpose.msra.mxu0 0.0
    %726 = vmatprep.subr.mxu0 0.0
    %727 = vmatpush1.xpose.msra.mxu0 0.0
    %728 = vmatprep.subr.mxu0 0.0
    %729 = vmatpush1.xpose.msra.mxu0 0.0
    %730 = vmatprep.subr.mxu0 0.0
    %731 = vmatpush1.xpose.msra.mxu0 0.0
    %732 = vmatprep.subr.mxu0 0.0
    %733 = vmatpush1.xpose.msra.mxu0 0.0
    %734 = vmatprep.subr.mxu0 0.0
    %735 = vmatpush1.xpose.msra.mxu0 0.0
    %736 = vmatprep.subr.mxu0 0.0
    %737 = vmatpush1.xpose.msra.mxu0 0.0
    %738 = vmatprep.subr.mxu0 0.0
    %739 = vmatpush1.xpose.msra.mxu0 0.0
    %740 = vmatprep.subr.mxu0 0.0
    %741 = vmatpush1.xpose.msra.mxu0 0.0
    %742 = vmatprep.subr.mxu0 0.0
    %743 = vmatpush1.xpose.msra.mxu0 0.0
    %744 = vmatprep.subr.mxu0 0.0
    %745 = vmatpush1.xpose.msra.mxu0 0.0
    %746 = vmatprep.subr.mxu0 0.0
    %747 = vmatpush1.xpose.msra.mxu0 0.0
    %748 = vmatprep.subr.mxu0 0.0
    %749 = vmatpush1.xpose.msra.mxu0 0.0
    %750 = vmatprep.subr.mxu0 0.0
    %751 = vmatpush1.xpose.msra.mxu0 0.0
    %752 = vmatprep.subr.mxu0 0.0
    %753 = vmatpush1.xpose.msra.mxu0 0.0
    %754 = vmatprep.subr.mxu0 0.0
    %755 = vmatpush1.xpose.msra.mxu0 0.0
    %756 = vmatprep.subr.mxu0 0.0
    %757 = vmatpush1.xpose.msra.mxu0 0.0
    %758 = vmatprep.subr.mxu0 0.0
    %759 = vmatpush1.xpose.msra.mxu0 0.0
    %760 = vmatprep.mubr.f32.mxu0 0.0
    %761 = vmatmul.mubr.f32.gmra.mrb[0].mxu0 %v679
    %v762 = vpop.f32.mrb[0].mxu0
    %v763 = vadd.f32 %v144, %v762
    %v764 = vpop.f32.mrb[0].mxu0
    %765 = vmatprep.mubr.f32.mxu0 0.0
    %766 = vmatmul.mubr.f32.gmra.mrb[0].mxu0 %v682
    %v767 = vpop.f32.mrb[0].mxu0
    %v768 = vadd.f32 %v145, %v767
    %v769 = vpop.f32.mrb[0].mxu0
    %770 = vmatprep.mubr.f32.mxu0 0.0
    %771 = vmatmul.mubr.f32.gmra.mrb[0].mxu0 %v685
    %v772 = vpop.f32.mrb[0].mxu0
    %v773 = vadd.f32 %v146, %v772
    %v774 = vpop.f32.mrb[0].mxu0
    %775 = vdwg.mxu0
    %vm776 = vcmask 195584
    %v777 = vsel %vm776, %v665, -inf
    %778 = vmax.xlane.f32.xlu0 %v777
    %v779 = vpop.xlane.xlu0 %778
    %v780 = vsel %vm776, %v670, -inf
    %781 = vmax.xlane.f32.xlu0 %v780
    %v782 = vpop.xlane.xlu0 %781
    %v783 = vsel %vm776, %v675, -inf
    %784 = vmax.xlane.f32.xlu0 %v783
    %v785 = vpop.xlane.xlu0 %784
    %v786 = vsel %vm776, %v763, -inf
    %787 = vmax.xlane.f32.xlu0 %v786
    %v788 = vpop.xlane.xlu0 %787
    %v789 = vsel %vm776, %v768, -inf
    %790 = vmax.xlane.f32.xlu0 %v789
    %v791 = vpop.xlane.xlu0 %790
    %v792 = vsel %vm776, %v773, -inf
    %793 = vmax.xlane.f32.xlu0 %v792
    %v794 = vpop.xlane.xlu0 %793
    %v795 = vsub.f32 %v665, %v779
    %v796 = vsub.f32 %v670, %v782
    %v797 = vsub.f32 %v675, %v785
    %v798 = vsub.f32 %v763, %v788
    %v799 = vsub.f32 %v768, %v791
    %v800 = vsub.f32 %v773, %v794
    %v801 = vmul.f32 %v795, 1.442695
    %v802 = vpow.pop %v801
    %v803 = vmul.f32 %v796, 1.442695
    %v804 = vpow.pop %v803
    %v805 = vmul.f32 %v797, 1.442695
    %v806 = vpow.pop %v805
    %v807 = vmul.f32 %v798, 1.442695
    %v808 = vpow.pop %v807
    %v809 = vmul.f32 %v799, 1.442695
    %v810 = vpow.pop %v809
    %v811 = vmul.f32 %v800, 1.442695
    %v812 = vpow.pop %v811
    %v813 = vsel %vm776, %v802, 0.0
    %814 = vadd.xlane.f32.xlu0 %v813
    %v815 = vpop.xlane.xlu0 %814
    %v816 = vsel %vm776, %v804, 0.0
    %817 = vadd.xlane.f32.xlu0 %v816
    %v818 = vpop.xlane.xlu0 %817
    %v819 = vsel %vm776, %v806, 0.0
    %820 = vadd.xlane.f32.xlu0 %v819
    %v821 = vpop.xlane.xlu0 %820
    %v822 = vsel %vm776, %v808, 0.0
    %823 = vadd.xlane.f32.xlu0 %v822
    %v824 = vpop.xlane.xlu0 %823
    %v825 = vsel %vm776, %v810, 0.0
    %826 = vadd.xlane.f32.xlu0 %v825
    %v827 = vpop.xlane.xlu0 %826
    %v828 = vsel %vm776, %v812, 0.0
    %829 = vadd.xlane.f32.xlu0 %v828
    %v830 = vpop.xlane.xlu0 %829
    %v831 = vrcp.pop %v815
    %v832 = vrcp.pop %v818
    %v833 = vrcp.pop %v821
    %v834 = vrcp.pop %v824
    %v835 = vrcp.pop %v827
    %v836 = vrcp.pop %v830
    %v837 = vmul.f32 %v802, %v831
    %v838 = vmul.f32 %v804, %v832
    %v839 = vmul.f32 %v806, %v833
    %v840 = vmul.f32 %v808, %v834
    %v841 = vmul.f32 %v810, %v835
    %v842 = vmul.f32 %v812, %v836
    %v844 = vsel %vm776, %v837, 0
    %v847 = vsel %vm776, %v838, 0
    %v850 = vsel %vm776, %v839, 0
    %852 = vmatprep.subr.mxu0 0.0
    %853 = vmatpush1.msra.mxu0 %v551
    %854 = vmatprep.subr.mxu0 0.0
    %855 = vmatpush1.msra.mxu0 %v556
    %856 = vmatprep.subr.mxu0 0.0
    %857 = vmatpush1.msra.mxu0 %v561
    %858 = vmatprep.subr.mxu0 0.0
    %859 = vmatpush1.msra.mxu0 0.0
    %860 = vmatprep.subr.mxu0 0.0
    %861 = vmatpush1.msra.mxu0 0.0
    %862 = vmatprep.subr.mxu0 0.0
    %863 = vmatpush1.msra.mxu0 0.0
    %864 = vmatprep.subr.mxu0 0.0
    %865 = vmatpush1.msra.mxu0 0.0
    %866 = vmatprep.subr.mxu0 0.0
    %867 = vmatpush1.msra.mxu0 0.0
    %868 = vmatprep.subr.mxu0 0.0
    %869 = vmatpush1.msra.mxu0 0.0
    %870 = vmatprep.subr.mxu0 0.0
    %871 = vmatpush1.msra.mxu0 0.0
    %872 = vmatprep.subr.mxu0 0.0
    %873 = vmatpush1.msra.mxu0 0.0
    %874 = vmatprep.subr.mxu0 0.0
    %875 = vmatpush1.msra.mxu0 0.0
    %876 = vmatprep.subr.mxu0 0.0
    %877 = vmatpush1.msra.mxu0 0.0
    %878 = vmatprep.subr.mxu0 0.0
    %879 = vmatpush1.msra.mxu0 0.0
    %880 = vmatprep.subr.mxu0 0.0
    %881 = vmatpush1.msra.mxu0 0.0
    %882 = vmatprep.subr.mxu0 0.0
    %883 = vmatpush1.msra.mxu0 0.0
    %884 = vmatprep.subr.mxu0 0.0
    %885 = vmatpush1.msra.mxu0 0.0
    %886 = vmatprep.subr.mxu0 0.0
    %887 = vmatpush1.msra.mxu0 0.0
    %888 = vmatprep.subr.mxu0 0.0
    %889 = vmatpush1.msra.mxu0 0.0
    %890 = vmatprep.subr.mxu0 0.0
    %891 = vmatpush1.msra.mxu0 0.0
    %892 = vmatprep.subr.mxu0 0.0
    %893 = vmatpush1.msra.mxu0 0.0
    %894 = vmatprep.subr.mxu0 0.0
    %895 = vmatpush1.msra.mxu0 0.0
    %896 = vmatprep.subr.mxu0 0.0
    %897 = vmatpush1.msra.mxu0 0.0
    %898 = vmatprep.subr.mxu0 0.0
    %899 = vmatpush1.msra.mxu0 0.0
    %900 = vmatprep.subr.mxu0 0.0
    %901 = vmatpush1.msra.mxu0 0.0
    %902 = vmatprep.subr.mxu0 0.0
    %903 = vmatpush1.msra.mxu0 0.0
    %904 = vmatprep.subr.mxu0 0.0
    %905 = vmatpush1.msra.mxu0 0.0
    %906 = vmatprep.subr.mxu0 0.0
    %907 = vmatpush1.msra.mxu0 0.0
    %908 = vmatprep.subr.mxu0 0.0
    %909 = vmatpush1.msra.mxu0 0.0
    %910 = vmatprep.subr.mxu0 0.0
    %911 = vmatpush1.msra.mxu0 0.0
    %912 = vmatprep.subr.mxu0 0.0
    %913 = vmatpush1.msra.mxu0 0.0
    %914 = vmatprep.subr.mxu0 0.0
    %915 = vmatpush1.msra.mxu0 0.0
    %916 = vmatprep.mubr.f32.mxu0 0.0
    %917 = vmatmul.mubr.f32.gmra.mrb[0].mxu0 %v844
    %v918 = vpop.f32.mrb[0].mxu0
    %v919 = vadd.f32 0.0, %v918
    %v920 = vpop.f32.mrb[0].mxu0
    %921 = vmatprep.mubr.f32.mxu0 0.0
    %922 = vmatmul.mubr.f32.gmra.mrb[0].mxu0 %v847
    %v923 = vpop.f32.mrb[0].mxu0
    %v924 = vadd.f32 0.0, %v923
    %v925 = vpop.f32.mrb[0].mxu0
    %926 = vmatprep.mubr.f32.mxu0 0.0
    %927 = vmatmul.mubr.f32.gmra.mrb[0].mxu0 %v850
    %v928 = vpop.f32.mrb[0].mxu0
    %v929 = vadd.f32 0.0, %v928
    %v930 = vpop.f32.mrb[0].mxu0
    %931 = vdwg.mxu0
    %v933 = vsel %vm776, %v840, 0
    %v936 = vsel %vm776, %v841, 0
    %v939 = vsel %vm776, %v842, 0
    %941 = vmatprep.subr.mxu0 0.0
    %942 = vmatpush1.msra.mxu0 %v566
    %943 = vmatprep.subr.mxu0 0.0
    %944 = vmatpush1.msra.mxu0 %v571
    %945 = vmatprep.subr.mxu0 0.0
    %946 = vmatpush1.msra.mxu0 %v576
    %947 = vmatprep.subr.mxu0 0.0
    %948 = vmatpush1.msra.mxu0 0.0
    %949 = vmatprep.subr.mxu0 0.0
    %950 = vmatpush1.msra.mxu0 0.0
    %951 = vmatprep.subr.mxu0 0.0
    %952 = vmatpush1.msra.mxu0 0.0
    %953 = vmatprep.subr.mxu0 0.0
    %954 = vmatpush1.msra.mxu0 0.0
    %955 = vmatprep.subr.mxu0 0.0
    %956 = vmatpush1.msra.mxu0 0.0
    %957 = vmatprep.subr.mxu0 0.0
    %958 = vmatpush1.msra.mxu0 0.0
    %959 = vmatprep.subr.mxu0 0.0
    %960 = vmatpush1.msra.mxu0 0.0
    %961 = vmatprep.subr.mxu0 0.0
    %962 = vmatpush1.msra.mxu0 0.0
    %963 = vmatprep.subr.mxu0 0.0
    %964 = vmatpush1.msra.mxu0 0.0
    %965 = vmatprep.subr.mxu0 0.0
    %966 = vmatpush1.msra.mxu0 0.0
    %967 = vmatprep.subr.mxu0 0.0
    %968 = vmatpush1.msra.mxu0 0.0
    %969 = vmatprep.subr.mxu0 0.0
    %970 = vmatpush1.msra.mxu0 0.0
    %971 = vmatprep.subr.mxu0 0.0
    %972 = vmatpush1.msra.mxu0 0.0
    %973 = vmatprep.subr.mxu0 0.0
    %974 = vmatpush1.msra.mxu0 0.0
    %975 = vmatprep.subr.mxu0 0.0
    %976 = vmatpush1.msra.mxu0 0.0
    %977 = vmatprep.subr.mxu0 0.0
    %978 = vmatpush1.msra.mxu0 0.0
    %979 = vmatprep.subr.mxu0 0.0
    %980 = vmatpush1.msra.mxu0 0.0
    %981 = vmatprep.subr.mxu0 0.0
    %982 = vmatpush1.msra.mxu0 0.0
    %983 = vmatprep.subr.mxu0 0.0
    %984 = vmatpush1.msra.mxu0 0.0
    %985 = vmatprep.subr.mxu0 0.0
    %986 = vmatpush1.msra.mxu0 0.0
    %987 = vmatprep.subr.mxu0 0.0
    %988 = vmatpush1.msra.mxu0 0.0
    %989 = vmatprep.subr.mxu0 0.0
    %990 = vmatpush1.msra.mxu0 0.0
    %991 = vmatprep.subr.mxu0 0.0
    %992 = vmatpush1.msra.mxu0 0.0
    %993 = vmatprep.subr.mxu0 0.0
    %994 = vmatpush1.msra.mxu0 0.0
    %995 = vmatprep.subr.mxu0 0.0
    %996 = vmatpush1.msra.mxu0 0.0
    %997 = vmatprep.subr.mxu0 0.0
    %998 = vmatpush1.msra.mxu0 0.0
    %999 = vmatprep.subr.mxu0 0.0
    %1000 = vmatpush1.msra.mxu0 0.0
    %1001 = vmatprep.subr.mxu0 0.0
    %1002 = vmatpush1.msra.mxu0 0.0
    %1003 = vmatprep.subr.mxu0 0.0
    %1004 = vmatpush1.msra.mxu0 0.0
    %1005 = vmatprep.mubr.f32.mxu0 0.0
    %1006 = vmatmul.mubr.f32.gmra.mrb[0].mxu0 %v933
    %v1007 = vpop.f32.mrb[0].mxu0
    %v1008 = vadd.f32 0.0, %v1007
    %v1009 = vpop.f32.mrb[0].mxu0
    %1010 = vmatprep.mubr.f32.mxu0 0.0
    %1011 = vmatmul.mubr.f32.gmra.mrb[0].mxu0 %v936
    %v1012 = vpop.f32.mrb[0].mxu0
    %v1013 = vadd.f32 0.0, %v1012
    %v1014 = vpop.f32.mrb[0].mxu0
    %1015 = vmatprep.mubr.f32.mxu0 0.0
    %1016 = vmatmul.mubr.f32.gmra.mrb[0].mxu0 %v939
    %v1017 = vpop.f32.mrb[0].mxu0
    %v1018 = vadd.f32 0.0, %v1017
    %v1019 = vpop.f32.mrb[0].mxu0
    %1020 = vdwg.mxu0
    %v1021 = vld [vmem:[%s1 + $0xe8] sm:$0xff]
    %v1022 = vld [vmem:[%s1 + $0x108] sm:$0xff]
    %v1023 = vld [vmem:[%s1 + $0x110] sm:$0xff]
    %v1024 = vld [vmem:[%s1 + $0x118] sm:$0xff]
    %v1025 = vld [vmem:[%s1 + $0x120] sm:$0xff]
    %v1026 = vld [vmem:[%s1 + $0x170] sm:$0x1]
    %v1027 = vlaneseq
    %v1028 = vshrl.u32 %v1027, 7
    %v1029 = vsub.s32 0, %v1028
    %v1030 = vrot.slane %v1026, %v1029
    %1031 = vmatprep.subr.mxu0 0.0
    %1032 = vmatpush1.msra.mxu0 %v1022
    %1033 = vmatprep.subr.mxu0 0.0
    %1034 = vmatpush1.msra.mxu0 %v1023
    %1035 = vmatprep.subr.mxu0 0.0
    %1036 = vmatpush1.msra.mxu0 %v1024
    %1037 = vmatprep.subr.mxu0 0.0
    %1038 = vmatpush1.msra.mxu0 %v1025
    %1039 = vmatprep.subr.mxu0 0.0
    %1040 = vmatpush1.msra.mxu0 0.0
    %1041 = vmatprep.subr.mxu0 0.0
    %1042 = vmatpush1.msra.mxu0 0.0
    %1043 = vmatprep.subr.mxu0 0.0
    %1044 = vmatpush1.msra.mxu0 0.0
    %1045 = vmatprep.subr.mxu0 0.0
    %1046 = vmatpush1.msra.mxu0 0.0
    %1047 = vmatprep.subr.mxu0 0.0
    %1048 = vmatpush1.msra.mxu0 0.0
    %1049 = vmatprep.subr.mxu0 0.0
    %1050 = vmatpush1.msra.mxu0 0.0
    %1051 = vmatprep.subr.mxu0 0.0
    %1052 = vmatpush1.msra.mxu0 0.0
    %1053 = vmatprep.subr.mxu0 0.0
    %1054 = vmatpush1.msra.mxu0 0.0
    %1055 = vmatprep.subr.mxu0 0.0
    %1056 = vmatpush1.msra.mxu0 0.0
    %1057 = vmatprep.subr.mxu0 0.0
    %1058 = vmatpush1.msra.mxu0 0.0
    %1059 = vmatprep.subr.mxu0 0.0
    %1060 = vmatpush1.msra.mxu0 0.0
    %1061 = vmatprep.subr.mxu0 0.0
    %1062 = vmatpush1.msra.mxu0 0.0
    %1063 = vmatprep.subr.mxu0 0.0
    %1064 = vmatpush1.msra.mxu0 0.0
    %1065 = vmatprep.subr.mxu0 0.0
    %1066 = vmatpush1.msra.mxu0 0.0
    %1067 = vmatprep.subr.mxu0 0.0
    %1068 = vmatpush1.msra.mxu0 0.0
    %1069 = vmatprep.subr.mxu0 0.0
    %1070 = vmatpush1.msra.mxu0 0.0
    %1071 = vmatprep.subr.mxu0 0.0
    %1072 = vmatpush1.msra.mxu0 0.0
    %1073 = vmatprep.subr.mxu0 0.0
    %1074 = vmatpush1.msra.mxu0 0.0
    %1075 = vmatprep.subr.mxu0 0.0
    %1076 = vmatpush1.msra.mxu0 0.0
    %1077 = vmatprep.subr.mxu0 0.0
    %1078 = vmatpush1.msra.mxu0 0.0
    %1079 = vmatprep.subr.mxu0 0.0
    %1080 = vmatpush1.msra.mxu0 0.0
    %1081 = vmatprep.subr.mxu0 0.0
    %1082 = vmatpush1.msra.mxu0 0.0
    %1083 = vmatprep.subr.mxu0 0.0
    %1084 = vmatpush1.msra.mxu0 0.0
    %1085 = vmatprep.subr.mxu0 0.0
    %1086 = vmatpush1.msra.mxu0 0.0
    %1087 = vmatprep.subr.mxu0 0.0
    %1088 = vmatpush1.msra.mxu0 0.0
    %1089 = vmatprep.subr.mxu0 0.0
    %1090 = vmatpush1.msra.mxu0 0.0
    %1091 = vmatprep.subr.mxu0 0.0
    %1092 = vmatpush1.msra.mxu0 0.0
    %1093 = vmatprep.subr.mxu0 0.0
    %1094 = vmatpush1.msra.mxu0 0.0
    %1095 = vmatprep.mubr.f32.mxu0 0.0
    %1096 = vmatmul.mubr.f32.gmra.mrb[0].mxu0 %v259
    %v1097 = vpop.f32.mrb[0].mxu0
    %v1098 = vadd.f32 %v1030, %v1097
    %v1099 = vpop.f32.mrb[0].mxu0
    %1100 = vmatprep.mubr.f32.mxu0 0.0
    %1101 = vmatmul.mubr.f32.gmra.mrb[0].mxu0 %v262
    %v1102 = vpop.f32.mrb[0].mxu0
    %v1103 = vadd.f32 %v1030, %v1102
    %v1104 = vpop.f32.mrb[0].mxu0
    %1105 = vmatprep.mubr.f32.mxu0 0.0
    %1106 = vmatmul.mubr.f32.gmra.mrb[0].mxu0 %v265
    %v1107 = vpop.f32.mrb[0].mxu0
    %v1108 = vadd.f32 %v1030, %v1107
    %v1109 = vpop.f32.mrb[0].mxu0
    %1110 = vmatprep.mubr.f32.mxu0 0.0
    %1111 = vmatmul.mubr.f32.gmra.mrb[0].mxu0 %v268
    %v1112 = vpop.f32.mrb[0].mxu0
    %v1113 = vadd.f32 %v1030, %v1112
    %v1114 = vpop.f32.mrb[0].mxu0
    %1115 = vmatprep.mubr.f32.mxu0 0.0
    %1116 = vmatmul.mubr.f32.gmra.mrb[0].mxu0 %v271
    %v1117 = vpop.f32.mrb[0].mxu0
    %v1118 = vadd.f32 %v1030, %v1117
    %v1119 = vpop.f32.mrb[0].mxu0
    %1120 = vmatprep.mubr.f32.mxu0 0.0
    %1121 = vmatmul.mubr.f32.gmra.mrb[0].mxu0 %v274
    %v1122 = vpop.f32.mrb[0].mxu0
    %v1123 = vadd.f32 %v1030, %v1122
    %v1124 = vpop.f32.mrb[0].mxu0
    %1125 = vdwg.mxu0
    %v1126 = vld [vmem:[%s1 + $0x128] sm:$0xff]
    %v1127 = vld [vmem:[%s1 + $0x130] sm:$0xff]
    %v1128 = vld [vmem:[%s1 + $0x138] sm:$0xff]
    %v1129 = vld [vmem:[%s1 + $0x140] sm:$0xff]
    %v1130 = vld [vmem:[%s1 + $0x178] sm:$0x1]
    %v1131 = vlaneseq
    %v1132 = vshrl.u32 %v1131, 7
    %v1133 = vsub.s32 0, %v1132
    %v1134 = vrot.slane %v1130, %v1133
    %1135 = vmatprep.subr.mxu0 0.0
    %1136 = vmatpush1.msra.mxu0 %v1126
    %1137 = vmatprep.subr.mxu0 0.0
    %1138 = vmatpush1.msra.mxu0 %v1127
    %1139 = vmatprep.subr.mxu0 0.0
    %1140 = vmatpush1.msra.mxu0 %v1128
    %1141 = vmatprep.subr.mxu0 0.0
    %1142 = vmatpush1.msra.mxu0 %v1129
    %1143 = vmatprep.subr.mxu0 0.0
    %1144 = vmatpush1.msra.mxu0 0.0
    %1145 = vmatprep.subr.mxu0 0.0
    %1146 = vmatpush1.msra.mxu0 0.0
    %1147 = vmatprep.subr.mxu0 0.0
    %1148 = vmatpush1.msra.mxu0 0.0
    %1149 = vmatprep.subr.mxu0 0.0
    %1150 = vmatpush1.msra.mxu0 0.0
    %1151 = vmatprep.subr.mxu0 0.0
    %1152 = vmatpush1.msra.mxu0 0.0
    %1153 = vmatprep.subr.mxu0 0.0
    %1154 = vmatpush1.msra.mxu0 0.0
    %1155 = vmatprep.subr.mxu0 0.0
    %1156 = vmatpush1.msra.mxu0 0.0
    %1157 = vmatprep.subr.mxu0 0.0
    %1158 = vmatpush1.msra.mxu0 0.0
    %1159 = vmatprep.subr.mxu0 0.0
    %1160 = vmatpush1.msra.mxu0 0.0
    %1161 = vmatprep.subr.mxu0 0.0
    %1162 = vmatpush1.msra.mxu0 0.0
    %1163 = vmatprep.subr.mxu0 0.0
    %1164 = vmatpush1.msra.mxu0 0.0
    %1165 = vmatprep.subr.mxu0 0.0
    %1166 = vmatpush1.msra.mxu0 0.0
    %1167 = vmatprep.subr.mxu0 0.0
    %1168 = vmatpush1.msra.mxu0 0.0
    %1169 = vmatprep.subr.mxu0 0.0
    %1170 = vmatpush1.msra.mxu0 0.0
    %1171 = vmatprep.subr.mxu0 0.0
    %1172 = vmatpush1.msra.mxu0 0.0
    %1173 = vmatprep.subr.mxu0 0.0
    %1174 = vmatpush1.msra.mxu0 0.0
    %1175 = vmatprep.subr.mxu0 0.0
    %1176 = vmatpush1.msra.mxu0 0.0
    %1177 = vmatprep.subr.mxu0 0.0
    %1178 = vmatpush1.msra.mxu0 0.0
    %1179 = vmatprep.subr.mxu0 0.0
    %1180 = vmatpush1.msra.mxu0 0.0
    %1181 = vmatprep.subr.mxu0 0.0
    %1182 = vmatpush1.msra.mxu0 0.0
    %1183 = vmatprep.subr.mxu0 0.0
    %1184 = vmatpush1.msra.mxu0 0.0
    %1185 = vmatprep.subr.mxu0 0.0
    %1186 = vmatpush1.msra.mxu0 0.0
    %1187 = vmatprep.subr.mxu0 0.0
    %1188 = vmatpush1.msra.mxu0 0.0
    %1189 = vmatprep.subr.mxu0 0.0
    %1190 = vmatpush1.msra.mxu0 0.0
    %1191 = vmatprep.subr.mxu0 0.0
    %1192 = vmatpush1.msra.mxu0 0.0
    %1193 = vmatprep.subr.mxu0 0.0
    %1194 = vmatpush1.msra.mxu0 0.0
    %1195 = vmatprep.subr.mxu0 0.0
    %1196 = vmatpush1.msra.mxu0 0.0
    %1197 = vmatprep.subr.mxu0 0.0
    %1198 = vmatpush1.msra.mxu0 0.0
    %1199 = vmatprep.mubr.f32.mxu0 0.0
    %1200 = vmatmul.mubr.f32.gmra.mrb[0].mxu0 %v259
    %v1201 = vpop.f32.mrb[0].mxu0
    %v1202 = vadd.f32 %v1134, %v1201
    %v1203 = vpop.f32.mrb[0].mxu0
    %1204 = vmatprep.mubr.f32.mxu0 0.0
    %1205 = vmatmul.mubr.f32.gmra.mrb[0].mxu0 %v262
    %v1206 = vpop.f32.mrb[0].mxu0
    %v1207 = vadd.f32 %v1134, %v1206
    %v1208 = vpop.f32.mrb[0].mxu0
    %1209 = vmatprep.mubr.f32.mxu0 0.0
    %1210 = vmatmul.mubr.f32.gmra.mrb[0].mxu0 %v265
    %v1211 = vpop.f32.mrb[0].mxu0
    %v1212 = vadd.f32 %v1134, %v1211
    %v1213 = vpop.f32.mrb[0].mxu0
    %1214 = vmatprep.mubr.f32.mxu0 0.0
    %1215 = vmatmul.mubr.f32.gmra.mrb[0].mxu0 %v268
    %v1216 = vpop.f32.mrb[0].mxu0
    %v1217 = vadd.f32 %v1134, %v1216
    %v1218 = vpop.f32.mrb[0].mxu0
    %1219 = vmatprep.mubr.f32.mxu0 0.0
    %1220 = vmatmul.mubr.f32.gmra.mrb[0].mxu0 %v271
    %v1221 = vpop.f32.mrb[0].mxu0
    %v1222 = vadd.f32 %v1134, %v1221
    %v1223 = vpop.f32.mrb[0].mxu0
    %1224 = vmatprep.mubr.f32.mxu0 0.0
    %1225 = vmatmul.mubr.f32.gmra.mrb[0].mxu0 %v274
    %v1226 = vpop.f32.mrb[0].mxu0
    %v1227 = vadd.f32 %v1134, %v1226
    %v1228 = vpop.f32.mrb[0].mxu0
    %1229 = vdwg.mxu0
    %v1230 = vld [vmem:[%s1 + $0x148] sm:$0xff]
    %v1231 = vld [vmem:[%s1 + $0x150] sm:$0xff]
    %v1232 = vld [vmem:[%s1 + $0x158] sm:$0xff]
    %v1233 = vld [vmem:[%s1 + $0x160] sm:$0xff]
    %v1234 = vld [vmem:[%s1 + $0x180] sm:$0x1]
    %v1235 = vlaneseq
    %v1236 = vshrl.u32 %v1235, 7
    %v1237 = vsub.s32 0, %v1236
    %v1238 = vrot.slane %v1234, %v1237
    %1239 = vmatprep.subr.mxu0 0.0
    %1240 = vmatpush1.msra.mxu0 %v1230
    %1241 = vmatprep.subr.mxu0 0.0
    %1242 = vmatpush1.msra.mxu0 %v1231
    %1243 = vmatprep.subr.mxu0 0.0
    %1244 = vmatpush1.msra.mxu0 %v1232
    %1245 = vmatprep.subr.mxu0 0.0
    %1246 = vmatpush1.msra.mxu0 %v1233
    %1247 = vmatprep.subr.mxu0 0.0
    %1248 = vmatpush1.msra.mxu0 0.0
    %1249 = vmatprep.subr.mxu0 0.0
    %1250 = vmatpush1.msra.mxu0 0.0
    %1251 = vmatprep.subr.mxu0 0.0
    %1252 = vmatpush1.msra.mxu0 0.0
    %1253 = vmatprep.subr.mxu0 0.0
    %1254 = vmatpush1.msra.mxu0 0.0
    %1255 = vmatprep.subr.mxu0 0.0
    %1256 = vmatpush1.msra.mxu0 0.0
    %1257 = vmatprep.subr.mxu0 0.0
    %1258 = vmatpush1.msra.mxu0 0.0
    %1259 = vmatprep.subr.mxu0 0.0
    %1260 = vmatpush1.msra.mxu0 0.0
    %1261 = vmatprep.subr.mxu0 0.0
    %1262 = vmatpush1.msra.mxu0 0.0
    %1263 = vmatprep.subr.mxu0 0.0
    %1264 = vmatpush1.msra.mxu0 0.0
    %1265 = vmatprep.subr.mxu0 0.0
    %1266 = vmatpush1.msra.mxu0 0.0
    %1267 = vmatprep.subr.mxu0 0.0
    %1268 = vmatpush1.msra.mxu0 0.0
    %1269 = vmatprep.subr.mxu0 0.0
    %1270 = vmatpush1.msra.mxu0 0.0
    %1271 = vmatprep.subr.mxu0 0.0
    %1272 = vmatpush1.msra.mxu0 0.0
    %1273 = vmatprep.subr.mxu0 0.0
    %1274 = vmatpush1.msra.mxu0 0.0
    %1275 = vmatprep.subr.mxu0 0.0
    %1276 = vmatpush1.msra.mxu0 0.0
    %1277 = vmatprep.subr.mxu0 0.0
    %1278 = vmatpush1.msra.mxu0 0.0
    %1279 = vmatprep.subr.mxu0 0.0
    %1280 = vmatpush1.msra.mxu0 0.0
    %1281 = vmatprep.subr.mxu0 0.0
    %1282 = vmatpush1.msra.mxu0 0.0
    %1283 = vmatprep.subr.mxu0 0.0
    %1284 = vmatpush1.msra.mxu0 0.0
    %1285 = vmatprep.subr.mxu0 0.0
    %1286 = vmatpush1.msra.mxu0 0.0
    %1287 = vmatprep.subr.mxu0 0.0
    %1288 = vmatpush1.msra.mxu0 0.0
    %1289 = vmatprep.subr.mxu0 0.0
    %1290 = vmatpush1.msra.mxu0 0.0
    %1291 = vmatprep.subr.mxu0 0.0
    %1292 = vmatpush1.msra.mxu0 0.0
    %1293 = vmatprep.subr.mxu0 0.0
    %1294 = vmatpush1.msra.mxu0 0.0
    %1295 = vmatprep.subr.mxu0 0.0
    %1296 = vmatpush1.msra.mxu0 0.0
    %1297 = vmatprep.subr.mxu0 0.0
    %1298 = vmatpush1.msra.mxu0 0.0
    %1299 = vmatprep.subr.mxu0 0.0
    %1300 = vmatpush1.msra.mxu0 0.0
    %1301 = vmatprep.subr.mxu0 0.0
    %1302 = vmatpush1.msra.mxu0 0.0
    %1303 = vmatprep.mubr.f32.mxu0 0.0
    %1304 = vmatmul.mubr.f32.gmra.mrb[0].mxu0 %v259
    %v1305 = vpop.f32.mrb[0].mxu0
    %v1306 = vadd.f32 %v1238, %v1305
    %v1307 = vpop.f32.mrb[0].mxu0
    %1308 = vmatprep.mubr.f32.mxu0 0.0
    %1309 = vmatmul.mubr.f32.gmra.mrb[0].mxu0 %v262
    %v1310 = vpop.f32.mrb[0].mxu0
    %v1311 = vadd.f32 %v1238, %v1310
    %v1312 = vpop.f32.mrb[0].mxu0
    %1313 = vmatprep.mubr.f32.mxu0 0.0
    %1314 = vmatmul.mubr.f32.gmra.mrb[0].mxu0 %v265
    %v1315 = vpop.f32.mrb[0].mxu0
    %v1316 = vadd.f32 %v1238, %v1315
    %v1317 = vpop.f32.mrb[0].mxu0
    %1318 = vmatprep.mubr.f32.mxu0 0.0
    %1319 = vmatmul.mubr.f32.gmra.mrb[0].mxu0 %v268
    %v1320 = vpop.f32.mrb[0].mxu0
    %v1321 = vadd.f32 %v1238, %v1320
    %v1322 = vpop.f32.mrb[0].mxu0
    %1323 = vmatprep.mubr.f32.mxu0 0.0
    %1324 = vmatmul.mubr.f32.gmra.mrb[0].mxu0 %v271
    %v1325 = vpop.f32.mrb[0].mxu0
    %v1326 = vadd.f32 %v1238, %v1325
    %v1327 = vpop.f32.mrb[0].mxu0
    %1328 = vmatprep.mubr.f32.mxu0 0.0
    %1329 = vmatmul.mubr.f32.gmra.mrb[0].mxu0 %v274
    %v1330 = vpop.f32.mrb[0].mxu0
    %v1331 = vadd.f32 %v1238, %v1330
    %v1332 = vpop.f32.mrb[0].mxu0
    %1333 = vdwg.mxu0
    %v1335 = vsel %vm579, %v1098, 0
    %v1338 = vsel %vm579, %v1103, 0
    %v1341 = vsel %vm579, %v1108, 0
    %v1344 = vsel %vm579, %v1202, 0
    %v1347 = vsel %vm579, %v1207, 0
    %v1350 = vsel %vm579, %v1212, 0
    %1352 = vmatprep.subr.mxu0 0.0
    %1353 = vmatpush1.xpose.msra.mxu0 %v1344
    %1354 = vmatprep.subr.mxu0 0.0
    %1355 = vmatpush1.xpose.msra.mxu0 %v1347
    %1356 = vmatprep.subr.mxu0 0.0
    %1357 = vmatpush1.xpose.msra.mxu0 %v1350
    %1358 = vmatprep.subr.mxu0 0.0
    %1359 = vmatpush1.xpose.msra.mxu0 0.0
    %1360 = vmatprep.subr.mxu0 0.0
    %1361 = vmatpush1.xpose.msra.mxu0 0.0
    %1362 = vmatprep.subr.mxu0 0.0
    %1363 = vmatpush1.xpose.msra.mxu0 0.0
    %1364 = vmatprep.subr.mxu0 0.0
    %1365 = vmatpush1.xpose.msra.mxu0 0.0
    %1366 = vmatprep.subr.mxu0 0.0
    %1367 = vmatpush1.xpose.msra.mxu0 0.0
    %1368 = vmatprep.subr.mxu0 0.0
    %1369 = vmatpush1.xpose.msra.mxu0 0.0
    %1370 = vmatprep.subr.mxu0 0.0
    %1371 = vmatpush1.xpose.msra.mxu0 0.0
    %1372 = vmatprep.subr.mxu0 0.0
    %1373 = vmatpush1.xpose.msra.mxu0 0.0
    %1374 = vmatprep.subr.mxu0 0.0
    %1375 = vmatpush1.xpose.msra.mxu0 0.0
    %1376 = vmatprep.subr.mxu0 0.0
    %1377 = vmatpush1.xpose.msra.mxu0 0.0
    %1378 = vmatprep.subr.mxu0 0.0
    %1379 = vmatpush1.xpose.msra.mxu0 0.0
    %1380 = vmatprep.subr.mxu0 0.0
    %1381 = vmatpush1.xpose.msra.mxu0 0.0
    %1382 = vmatprep.subr.mxu0 0.0
    %1383 = vmatpush1.xpose.msra.mxu0 0.0
    %1384 = vmatprep.subr.mxu0 0.0
    %1385 = vmatpush1.xpose.msra.mxu0 0.0
    %1386 = vmatprep.subr.mxu0 0.0
    %1387 = vmatpush1.xpose.msra.mxu0 0.0
    %1388 = vmatprep.subr.mxu0 0.0
    %1389 = vmatpush1.xpose.msra.mxu0 0.0
    %1390 = vmatprep.subr.mxu0 0.0
    %1391 = vmatpush1.xpose.msra.mxu0 0.0
    %1392 = vmatprep.subr.mxu0 0.0
    %1393 = vmatpush1.xpose.msra.mxu0 0.0
    %1394 = vmatprep.subr.mxu0 0.0
    %1395 = vmatpush1.xpose.msra.mxu0 0.0
    %1396 = vmatprep.subr.mxu0 0.0
    %1397 = vmatpush1.xpose.msra.mxu0 0.0
    %1398 = vmatprep.subr.mxu0 0.0
    %1399 = vmatpush1.xpose.msra.mxu0 0.0
    %1400 = vmatprep.subr.mxu0 0.0
    %1401 = vmatpush1.xpose.msra.mxu0 0.0
    %1402 = vmatprep.subr.mxu0 0.0
    %1403 = vmatpush1.xpose.msra.mxu0 0.0
    %1404 = vmatprep.subr.mxu0 0.0
    %1405 = vmatpush1.xpose.msra.mxu0 0.0
    %1406 = vmatprep.subr.mxu0 0.0
    %1407 = vmatpush1.xpose.msra.mxu0 0.0
    %1408 = vmatprep.subr.mxu0 0.0
    %1409 = vmatpush1.xpose.msra.mxu0 0.0
    %1410 = vmatprep.subr.mxu0 0.0
    %1411 = vmatpush1.xpose.msra.mxu0 0.0
    %1412 = vmatprep.subr.mxu0 0.0
    %1413 = vmatpush1.xpose.msra.mxu0 0.0
    %1414 = vmatprep.subr.mxu0 0.0
    %1415 = vmatpush1.xpose.msra.mxu0 0.0
    %1416 = vmatprep.mubr.f32.mxu0 0.0
    %1417 = vmatmul.mubr.f32.gmra.mrb[0].mxu0 %v1335
    %v1418 = vpop.f32.mrb[0].mxu0
    %v1419 = vadd.f32 %v144, %v1418
    %v1420 = vpop.f32.mrb[0].mxu0
    %1421 = vmatprep.mubr.f32.mxu0 0.0
    %1422 = vmatmul.mubr.f32.gmra.mrb[0].mxu0 %v1338
    %v1423 = vpop.f32.mrb[0].mxu0
    %v1424 = vadd.f32 %v145, %v1423
    %v1425 = vpop.f32.mrb[0].mxu0
    %1426 = vmatprep.mubr.f32.mxu0 0.0
    %1427 = vmatmul.mubr.f32.gmra.mrb[0].mxu0 %v1341
    %v1428 = vpop.f32.mrb[0].mxu0
    %v1429 = vadd.f32 %v146, %v1428
    %v1430 = vpop.f32.mrb[0].mxu0
    %1431 = vdwg.mxu0
    %v1433 = vsel %vm579, %v1113, 0
    %v1436 = vsel %vm579, %v1118, 0
    %v1439 = vsel %vm579, %v1123, 0
    %v1442 = vsel %vm579, %v1217, 0
    %v1445 = vsel %vm579, %v1222, 0
    %v1448 = vsel %vm579, %v1227, 0
    %1450 = vmatprep.subr.mxu0 0.0
    %1451 = vmatpush1.xpose.msra.mxu0 %v1442
    %1452 = vmatprep.subr.mxu0 0.0
    %1453 = vmatpush1.xpose.msra.mxu0 %v1445
    %1454 = vmatprep.subr.mxu0 0.0
    %1455 = vmatpush1.xpose.msra.mxu0 %v1448
    %1456 = vmatprep.subr.mxu0 0.0
    %1457 = vmatpush1.xpose.msra.mxu0 0.0
    %1458 = vmatprep.subr.mxu0 0.0
    %1459 = vmatpush1.xpose.msra.mxu0 0.0
    %1460 = vmatprep.subr.mxu0 0.0
    %1461 = vmatpush1.xpose.msra.mxu0 0.0
    %1462 = vmatprep.subr.mxu0 0.0
    %1463 = vmatpush1.xpose.msra.mxu0 0.0
    %1464 = vmatprep.subr.mxu0 0.0
    %1465 = vmatpush1.xpose.msra.mxu0 0.0
    %1466 = vmatprep.subr.mxu0 0.0
    %1467 = vmatpush1.xpose.msra.mxu0 0.0
    %1468 = vmatprep.subr.mxu0 0.0
    %1469 = vmatpush1.xpose.msra.mxu0 0.0
    %1470 = vmatprep.subr.mxu0 0.0
    %1471 = vmatpush1.xpose.msra.mxu0 0.0
    %1472 = vmatprep.subr.mxu0 0.0
    %1473 = vmatpush1.xpose.msra.mxu0 0.0
    %1474 = vmatprep.subr.mxu0 0.0
    %1475 = vmatpush1.xpose.msra.mxu0 0.0
    %1476 = vmatprep.subr.mxu0 0.0
    %1477 = vmatpush1.xpose.msra.mxu0 0.0
    %1478 = vmatprep.subr.mxu0 0.0
    %1479 = vmatpush1.xpose.msra.mxu0 0.0
    %1480 = vmatprep.subr.mxu0 0.0
    %1481 = vmatpush1.xpose.msra.mxu0 0.0
    %1482 = vmatprep.subr.mxu0 0.0
    %1483 = vmatpush1.xpose.msra.mxu0 0.0
    %1484 = vmatprep.subr.mxu0 0.0
    %1485 = vmatpush1.xpose.msra.mxu0 0.0
    %1486 = vmatprep.subr.mxu0 0.0
    %1487 = vmatpush1.xpose.msra.mxu0 0.0
    %1488 = vmatprep.subr.mxu0 0.0
    %1489 = vmatpush1.xpose.msra.mxu0 0.0
    %1490 = vmatprep.subr.mxu0 0.0
    %1491 = vmatpush1.xpose.msra.mxu0 0.0
    %1492 = vmatprep.subr.mxu0 0.0
    %1493 = vmatpush1.xpose.msra.mxu0 0.0
    %1494 = vmatprep.subr.mxu0 0.0
    %1495 = vmatpush1.xpose.msra.mxu0 0.0
    %1496 = vmatprep.subr.mxu0 0.0
    %1497 = vmatpush1.xpose.msra.mxu0 0.0
    %1498 = vmatprep.subr.mxu0 0.0
    %1499 = vmatpush1.xpose.msra.mxu0 0.0
    %1500 = vmatprep.subr.mxu0 0.0
    %1501 = vmatpush1.xpose.msra.mxu0 0.0
    %1502 = vmatprep.subr.mxu0 0.0
    %1503 = vmatpush1.xpose.msra.mxu0 0.0
    %1504 = vmatprep.subr.mxu0 0.0
    %1505 = vmatpush1.xpose.msra.mxu0 0.0
    %1506 = vmatprep.subr.mxu0 0.0
    %1507 = vmatpush1.xpose.msra.mxu0 0.0
    %1508 = vmatprep.subr.mxu0 0.0
    %1509 = vmatpush1.xpose.msra.mxu0 0.0
    %1510 = vmatprep.subr.mxu0 0.0
    %1511 = vmatpush1.xpose.msra.mxu0 0.0
    %1512 = vmatprep.subr.mxu0 0.0
    %1513 = vmatpush1.xpose.msra.mxu0 0.0
    %1514 = vmatprep.mubr.f32.mxu0 0.0
    %1515 = vmatmul.mubr.f32.gmra.mrb[0].mxu0 %v1433
    %v1516 = vpop.f32.mrb[0].mxu0
    %v1517 = vadd.f32 %v144, %v1516
    %v1518 = vpop.f32.mrb[0].mxu0
    %1519 = vmatprep.mubr.f32.mxu0 0.0
    %1520 = vmatmul.mubr.f32.gmra.mrb[0].mxu0 %v1436
    %v1521 = vpop.f32.mrb[0].mxu0
    %v1522 = vadd.f32 %v145, %v1521
    %v1523 = vpop.f32.mrb[0].mxu0
    %1524 = vmatprep.mubr.f32.mxu0 0.0
    %1525 = vmatmul.mubr.f32.gmra.mrb[0].mxu0 %v1439
    %v1526 = vpop.f32.mrb[0].mxu0
    %v1527 = vadd.f32 %v146, %v1526
    %v1528 = vpop.f32.mrb[0].mxu0
    %1529 = vdwg.mxu0
    %v1530 = vsel %vm776, %v1419, -inf
    %1531 = vmax.xlane.f32.xlu0 %v1530
    %v1532 = vpop.xlane.xlu0 %1531
    %v1533 = vsel %vm776, %v1424, -inf
    %1534 = vmax.xlane.f32.xlu0 %v1533
    %v1535 = vpop.xlane.xlu0 %1534
    %v1536 = vsel %vm776, %v1429, -inf
    %1537 = vmax.xlane.f32.xlu0 %v1536
    %v1538 = vpop.xlane.xlu0 %1537
    %v1539 = vsel %vm776, %v1517, -inf
    %1540 = vmax.xlane.f32.xlu0 %v1539
    %v1541 = vpop.xlane.xlu0 %1540
    %v1542 = vsel %vm776, %v1522, -inf
    %1543 = vmax.xlane.f32.xlu0 %v1542
    %v1544 = vpop.xlane.xlu0 %1543
    %v1545 = vsel %vm776, %v1527, -inf
    %1546 = vmax.xlane.f32.xlu0 %v1545
    %v1547 = vpop.xlane.xlu0 %1546
    %v1548 = vsub.f32 %v1419, %v1532
    %v1549 = vsub.f32 %v1424, %v1535
    %v1550 = vsub.f32 %v1429, %v1538
    %v1551 = vsub.f32 %v1517, %v1541
    %v1552 = vsub.f32 %v1522, %v1544
    %v1553 = vsub.f32 %v1527, %v1547
    %v1554 = vmul.f32 %v1548, 1.442695
    %v1555 = vpow.pop %v1554
    %v1556 = vmul.f32 %v1549, 1.442695
    %v1557 = vpow.pop %v1556
    %v1558 = vmul.f32 %v1550, 1.442695
    %v1559 = vpow.pop %v1558
    %v1560 = vmul.f32 %v1551, 1.442695
    %v1561 = vpow.pop %v1560
    %v1562 = vmul.f32 %v1552, 1.442695
    %v1563 = vpow.pop %v1562
    %v1564 = vmul.f32 %v1553, 1.442695
    %v1565 = vpow.pop %v1564
    %v1566 = vsel %vm776, %v1555, 0.0
    %1567 = vadd.xlane.f32.xlu0 %v1566
    %v1568 = vpop.xlane.xlu0 %1567
    %v1569 = vsel %vm776, %v1557, 0.0
    %1570 = vadd.xlane.f32.xlu0 %v1569
    %v1571 = vpop.xlane.xlu0 %1570
    %v1572 = vsel %vm776, %v1559, 0.0
    %1573 = vadd.xlane.f32.xlu0 %v1572
    %v1574 = vpop.xlane.xlu0 %1573
    %v1575 = vsel %vm776, %v1561, 0.0
    %1576 = vadd.xlane.f32.xlu0 %v1575
    %v1577 = vpop.xlane.xlu0 %1576
    %v1578 = vsel %vm776, %v1563, 0.0
    %1579 = vadd.xlane.f32.xlu0 %v1578
    %v1580 = vpop.xlane.xlu0 %1579
    %v1581 = vsel %vm776, %v1565, 0.0
    %1582 = vadd.xlane.f32.xlu0 %v1581
    %v1583 = vpop.xlane.xlu0 %1582
    %v1584 = vrcp.pop %v1568
    %v1585 = vrcp.pop %v1571
    %v1586 = vrcp.pop %v1574
    %v1587 = vrcp.pop %v1577
    %v1588 = vrcp.pop %v1580
    %v1589 = vrcp.pop %v1583
    %v1590 = vmul.f32 %v1555, %v1584
    %v1591 = vmul.f32 %v1557, %v1585
    %v1592 = vmul.f32 %v1559, %v1586
    %v1593 = vmul.f32 %v1561, %v1587
    %v1594 = vmul.f32 %v1563, %v1588
    %v1595 = vmul.f32 %v1565, %v1589
    %v1597 = vsel %vm776, %v1590, 0
    %v1600 = vsel %vm776, %v1591, 0
    %v1603 = vsel %vm776, %v1592, 0
    %1605 = vmatprep.subr.mxu0 0.0
    %1606 = vmatpush1.msra.mxu0 %v1306
    %1607 = vmatprep.subr.mxu0 0.0
    %1608 = vmatpush1.msra.mxu0 %v1311
    %1609 = vmatprep.subr.mxu0 0.0
    %1610 = vmatpush1.msra.mxu0 %v1316
    %1611 = vmatprep.subr.mxu0 0.0
    %1612 = vmatpush1.msra.mxu0 0.0
    %1613 = vmatprep.subr.mxu0 0.0
    %1614 = vmatpush1.msra.mxu0 0.0
    %1615 = vmatprep.subr.mxu0 0.0
    %1616 = vmatpush1.msra.mxu0 0.0
    %1617 = vmatprep.subr.mxu0 0.0
    %1618 = vmatpush1.msra.mxu0 0.0
    %1619 = vmatprep.subr.mxu0 0.0
    %1620 = vmatpush1.msra.mxu0 0.0
    %1621 = vmatprep.subr.mxu0 0.0
    %1622 = vmatpush1.msra.mxu0 0.0
    %1623 = vmatprep.subr.mxu0 0.0
    %1624 = vmatpush1.msra.mxu0 0.0
    %1625 = vmatprep.subr.mxu0 0.0
    %1626 = vmatpush1.msra.mxu0 0.0
    %1627 = vmatprep.subr.mxu0 0.0
    %1628 = vmatpush1.msra.mxu0 0.0
    %1629 = vmatprep.subr.mxu0 0.0
    %1630 = vmatpush1.msra.mxu0 0.0
    %1631 = vmatprep.subr.mxu0 0.0
    %1632 = vmatpush1.msra.mxu0 0.0
    %1633 = vmatprep.subr.mxu0 0.0
    %1634 = vmatpush1.msra.mxu0 0.0
    %1635 = vmatprep.subr.mxu0 0.0
    %1636 = vmatpush1.msra.mxu0 0.0
    %1637 = vmatprep.subr.mxu0 0.0
    %1638 = vmatpush1.msra.mxu0 0.0
    %1639 = vmatprep.subr.mxu0 0.0
    %1640 = vmatpush1.msra.mxu0 0.0
    %1641 = vmatprep.subr.mxu0 0.0
    %1642 = vmatpush1.msra.mxu0 0.0
    %1643 = vmatprep.subr.mxu0 0.0
    %1644 = vmatpush1.msra.mxu0 0.0
    %1645 = vmatprep.subr.mxu0 0.0
    %1646 = vmatpush1.msra.mxu0 0.0
    %1647 = vmatprep.subr.mxu0 0.0
    %1648 = vmatpush1.msra.mxu0 0.0
    %1649 = vmatprep.subr.mxu0 0.0
    %1650 = vmatpush1.msra.mxu0 0.0
    %1651 = vmatprep.subr.mxu0 0.0
    %1652 = vmatpush1.msra.mxu0 0.0
    %1653 = vmatprep.subr.mxu0 0.0
    %1654 = vmatpush1.msra.mxu0 0.0
    %1655 = vmatprep.subr.mxu0 0.0
    %1656 = vmatpush1.msra.mxu0 0.0
    %1657 = vmatprep.subr.mxu0 0.0
    %1658 = vmatpush1.msra.mxu0 0.0
    %1659 = vmatprep.subr.mxu0 0.0
    %1660 = vmatpush1.msra.mxu0 0.0
    %1661 = vmatprep.subr.mxu0 0.0
    %1662 = vmatpush1.msra.mxu0 0.0
    %1663 = vmatprep.subr.mxu0 0.0
    %1664 = vmatpush1.msra.mxu0 0.0
    %1665 = vmatprep.subr.mxu0 0.0
    %1666 = vmatpush1.msra.mxu0 0.0
    %1667 = vmatprep.subr.mxu0 0.0
    %1668 = vmatpush1.msra.mxu0 0.0
    %1669 = vmatprep.mubr.f32.mxu0 0.0
    %1670 = vmatmul.mubr.f32.gmra.mrb[0].mxu0 %v1597
    %v1671 = vpop.f32.mrb[0].mxu0
    %v1672 = vadd.f32 0.0, %v1671
    %v1673 = vpop.f32.mrb[0].mxu0
    %1674 = vmatprep.mubr.f32.mxu0 0.0
    %1675 = vmatmul.mubr.f32.gmra.mrb[0].mxu0 %v1600
    %v1676 = vpop.f32.mrb[0].mxu0
    %v1677 = vadd.f32 0.0, %v1676
    %v1678 = vpop.f32.mrb[0].mxu0
    %1679 = vmatprep.mubr.f32.mxu0 0.0
    %1680 = vmatmul.mubr.f32.gmra.mrb[0].mxu0 %v1603
    %v1681 = vpop.f32.mrb[0].mxu0
    %v1682 = vadd.f32 0.0, %v1681
    %v1683 = vpop.f32.mrb[0].mxu0
    %1684 = vdwg.mxu0
    %v1686 = vsel %vm776, %v1593, 0
    %v1689 = vsel %vm776, %v1594, 0
    %v1692 = vsel %vm776, %v1595, 0
    %1694 = vmatprep.subr.mxu0 0.0
    %1695 = vmatpush1.msra.mxu0 %v1321
    %1696 = vmatprep.subr.mxu0 0.0
    %1697 = vmatpush1.msra.mxu0 %v1326
    %1698 = vmatprep.subr.mxu0 0.0
    %1699 = vmatpush1.msra.mxu0 %v1331
    %1700 = vmatprep.subr.mxu0 0.0
    %1701 = vmatpush1.msra.mxu0 0.0
    %1702 = vmatprep.subr.mxu0 0.0
    %1703 = vmatpush1.msra.mxu0 0.0
    %1704 = vmatprep.subr.mxu0 0.0
    %1705 = vmatpush1.msra.mxu0 0.0
    %1706 = vmatprep.subr.mxu0 0.0
    %1707 = vmatpush1.msra.mxu0 0.0
    %1708 = vmatprep.subr.mxu0 0.0
    %1709 = vmatpush1.msra.mxu0 0.0
    %1710 = vmatprep.subr.mxu0 0.0
    %1711 = vmatpush1.msra.mxu0 0.0
    %1712 = vmatprep.subr.mxu0 0.0
    %1713 = vmatpush1.msra.mxu0 0.0
    %1714 = vmatprep.subr.mxu0 0.0
    %1715 = vmatpush1.msra.mxu0 0.0
    %1716 = vmatprep.subr.mxu0 0.0
    %1717 = vmatpush1.msra.mxu0 0.0
    %1718 = vmatprep.subr.mxu0 0.0
    %1719 = vmatpush1.msra.mxu0 0.0
    %1720 = vmatprep.subr.mxu0 0.0
    %1721 = vmatpush1.msra.mxu0 0.0
    %1722 = vmatprep.subr.mxu0 0.0
    %1723 = vmatpush1.msra.mxu0 0.0
    %1724 = vmatprep.subr.mxu0 0.0
    %1725 = vmatpush1.msra.mxu0 0.0
    %1726 = vmatprep.subr.mxu0 0.0
    %1727 = vmatpush1.msra.mxu0 0.0
    %1728 = vmatprep.subr.mxu0 0.0
    %1729 = vmatpush1.msra.mxu0 0.0
    %1730 = vmatprep.subr.mxu0 0.0
    %1731 = vmatpush1.msra.mxu0 0.0
    %1732 = vmatprep.subr.mxu0 0.0
    %1733 = vmatpush1.msra.mxu0 0.0
    %1734 = vmatprep.subr.mxu0 0.0
    %1735 = vmatpush1.msra.mxu0 0.0
    %1736 = vmatprep.subr.mxu0 0.0
    %1737 = vmatpush1.msra.mxu0 0.0
    %1738 = vmatprep.subr.mxu0 0.0
    %1739 = vmatpush1.msra.mxu0 0.0
    %1740 = vmatprep.subr.mxu0 0.0
    %1741 = vmatpush1.msra.mxu0 0.0
    %1742 = vmatprep.subr.mxu0 0.0
    %1743 = vmatpush1.msra.mxu0 0.0
    %1744 = vmatprep.subr.mxu0 0.0
    %1745 = vmatpush1.msra.mxu0 0.0
    %1746 = vmatprep.subr.mxu0 0.0
    %1747 = vmatpush1.msra.mxu0 0.0
    %1748 = vmatprep.subr.mxu0 0.0
    %1749 = vmatpush1.msra.mxu0 0.0
    %1750 = vmatprep.subr.mxu0 0.0
    %1751 = vmatpush1.msra.mxu0 0.0
    %1752 = vmatprep.subr.mxu0 0.0
    %1753 = vmatpush1.msra.mxu0 0.0
    %1754 = vmatprep.subr.mxu0 0.0
    %1755 = vmatpush1.msra.mxu0 0.0
    %1756 = vmatprep.subr.mxu0 0.0
    %1757 = vmatpush1.msra.mxu0 0.0
    %1758 = vmatprep.mubr.f32.mxu0 0.0
    %1759 = vmatmul.mubr.f32.gmra.mrb[0].mxu0 %v1686
    %v1760 = vpop.f32.mrb[0].mxu0
    %v1761 = vadd.f32 0.0, %v1760
    %v1762 = vpop.f32.mrb[0].mxu0
    %1763 = vmatprep.mubr.f32.mxu0 0.0
    %1764 = vmatmul.mubr.f32.gmra.mrb[0].mxu0 %v1689
    %v1765 = vpop.f32.mrb[0].mxu0
    %v1766 = vadd.f32 0.0, %v1765
    %v1767 = vpop.f32.mrb[0].mxu0
    %1768 = vmatprep.mubr.f32.mxu0 0.0
    %1769 = vmatmul.mubr.f32.gmra.mrb[0].mxu0 %v1692
    %v1770 = vpop.f32.mrb[0].mxu0
    %v1771 = vadd.f32 0.0, %v1770
    %v1772 = vpop.f32.mrb[0].mxu0
    %1773 = vdwg.mxu0
    %v1774 = vld [vmem:[%s1 + $0x168] sm:$0xff]
    %v1776 = vsel %vm579, %v1672, 0
    %v1779 = vsel %vm579, %v1677, 0
    %v1782 = vsel %vm579, %v1682, 0
    %v1785 = vsel %vm579, %v1761, 0
    %v1788 = vsel %vm579, %v1766, 0
    %v1791 = vsel %vm579, %v1771, 0
    %1793 = vmatprep.subr.mxu0 0.0
    %1794 = vmatpush1.msra.mxu0 %v1774
    %1795 = vmatprep.subr.mxu0 0.0
    %1796 = vmatpush1.msra.mxu0 0.0
    %1797 = vmatprep.subr.mxu0 0.0
    %1798 = vmatpush1.msra.mxu0 0.0
    %1799 = vmatprep.subr.mxu0 0.0
    %1800 = vmatpush1.msra.mxu0 0.0
    %1801 = vmatprep.subr.mxu0 0.0
    %1802 = vmatpush1.msra.mxu0 0.0
    %1803 = vmatprep.subr.mxu0 0.0
    %1804 = vmatpush1.msra.mxu0 0.0
    %1805 = vmatprep.subr.mxu0 0.0
    %1806 = vmatpush1.msra.mxu0 0.0
    %1807 = vmatprep.subr.mxu0 0.0
    %1808 = vmatpush1.msra.mxu0 0.0
    %1809 = vmatprep.subr.mxu0 0.0
    %1810 = vmatpush1.msra.mxu0 0.0
    %1811 = vmatprep.subr.mxu0 0.0
    %1812 = vmatpush1.msra.mxu0 0.0
    %1813 = vmatprep.subr.mxu0 0.0
    %1814 = vmatpush1.msra.mxu0 0.0
    %1815 = vmatprep.subr.mxu0 0.0
    %1816 = vmatpush1.msra.mxu0 0.0
    %1817 = vmatprep.subr.mxu0 0.0
    %1818 = vmatpush1.msra.mxu0 0.0
    %1819 = vmatprep.subr.mxu0 0.0
    %1820 = vmatpush1.msra.mxu0 0.0
    %1821 = vmatprep.subr.mxu0 0.0
    %1822 = vmatpush1.msra.mxu0 0.0
    %1823 = vmatprep.subr.mxu0 0.0
    %1824 = vmatpush1.msra.mxu0 0.0
    %1825 = vmatprep.subr.mxu0 0.0
    %1826 = vmatpush1.msra.mxu0 0.0
    %1827 = vmatprep.subr.mxu0 0.0
    %1828 = vmatpush1.msra.mxu0 0.0
    %1829 = vmatprep.subr.mxu0 0.0
    %1830 = vmatpush1.msra.mxu0 0.0
    %1831 = vmatprep.subr.mxu0 0.0
    %1832 = vmatpush1.msra.mxu0 0.0
    %1833 = vmatprep.subr.mxu0 0.0
    %1834 = vmatpush1.msra.mxu0 0.0
    %1835 = vmatprep.subr.mxu0 0.0
    %1836 = vmatpush1.msra.mxu0 0.0
    %1837 = vmatprep.subr.mxu0 0.0
    %1838 = vmatpush1.msra.mxu0 0.0
    %1839 = vmatprep.subr.mxu0 0.0
    %1840 = vmatpush1.msra.mxu0 0.0
    %1841 = vmatprep.subr.mxu0 0.0
    %1842 = vmatpush1.msra.mxu0 0.0
    %1843 = vmatprep.subr.mxu0 0.0
    %1844 = vmatpush1.msra.mxu0 0.0
    %1845 = vmatprep.subr.mxu0 0.0
    %1846 = vmatpush1.msra.mxu0 0.0
    %1847 = vmatprep.subr.mxu0 0.0
    %1848 = vmatpush1.msra.mxu0 0.0
    %1849 = vmatprep.subr.mxu0 0.0
    %1850 = vmatpush1.msra.mxu0 0.0
    %1851 = vmatprep.subr.mxu0 0.0
    %1852 = vmatpush1.msra.mxu0 0.0
    %1853 = vmatprep.subr.mxu0 0.0
    %1854 = vmatpush1.msra.mxu0 0.0
    %1855 = vmatprep.subr.mxu0 0.0
    %1856 = vmatpush1.msra.mxu0 0.0
    %1857 = vmatprep.mubr.f32.mxu0 0.0
    %1858 = vmatmul.mubr.f32.gmra.mrb[0].mxu0 %v1776
    %v1859 = vpop.f32.mrb[0].mxu0
    %v1860 = vadd.f32 0.0, %v1859
    %v1861 = vpop.f32.mrb[0].mxu0
    %1862 = vmatprep.mubr.f32.mxu0 0.0
    %1863 = vmatmul.mubr.f32.gmra.mrb[0].mxu0 %v1779
    %v1864 = vpop.f32.mrb[0].mxu0
    %v1865 = vadd.f32 0.0, %v1864
    %v1866 = vpop.f32.mrb[0].mxu0
    %1867 = vmatprep.mubr.f32.mxu0 0.0
    %1868 = vmatmul.mubr.f32.gmra.mrb[0].mxu0 %v1782
    %v1869 = vpop.f32.mrb[0].mxu0
    %v1870 = vadd.f32 0.0, %v1869
    %v1871 = vpop.f32.mrb[0].mxu0
    %1872 = vmatprep.mubr.f32.mxu0 0.0
    %1873 = vmatmul.mubr.f32.gmra.mrb[0].mxu0 %v1785
    %v1874 = vpop.f32.mrb[0].mxu0
    %v1875 = vadd.f32 0.0, %v1874
    %v1876 = vpop.f32.mrb[0].mxu0
    %1877 = vmatprep.mubr.f32.mxu0 0.0
    %1878 = vmatmul.mubr.f32.gmra.mrb[0].mxu0 %v1788
    %v1879 = vpop.f32.mrb[0].mxu0
    %v1880 = vadd.f32 0.0, %v1879
    %v1881 = vpop.f32.mrb[0].mxu0
    %1882 = vmatprep.mubr.f32.mxu0 0.0
    %1883 = vmatmul.mubr.f32.gmra.mrb[0].mxu0 %v1791
    %v1884 = vpop.f32.mrb[0].mxu0
    %v1885 = vadd.f32 0.0, %v1884
    %v1886 = vpop.f32.mrb[0].mxu0
    %1887 = vdwg.mxu0
    %v1889 = vsel %vm579, %v919, 0
    %v1892 = vsel %vm579, %v924, 0
    %v1895 = vsel %vm579, %v929, 0
    %v1898 = vsel %vm579, %v1008, 0
    %v1901 = vsel %vm579, %v1013, 0
    %v1904 = vsel %vm579, %v1018, 0
    %1906 = vmatprep.subr.mxu0 0.0
    %1907 = vmatpush1.msra.mxu0 %v1021
    %1908 = vmatprep.subr.mxu0 0.0
    %1909 = vmatpush1.msra.mxu0 0.0
    %1910 = vmatprep.subr.mxu0 0.0
    %1911 = vmatpush1.msra.mxu0 0.0
    %1912 = vmatprep.subr.mxu0 0.0
    %1913 = vmatpush1.msra.mxu0 0.0
    %1914 = vmatprep.subr.mxu0 0.0
    %1915 = vmatpush1.msra.mxu0 0.0
    %1916 = vmatprep.subr.mxu0 0.0
    %1917 = vmatpush1.msra.mxu0 0.0
    %1918 = vmatprep.subr.mxu0 0.0
    %1919 = vmatpush1.msra.mxu0 0.0
    %1920 = vmatprep.subr.mxu0 0.0
    %1921 = vmatpush1.msra.mxu0 0.0
    %1922 = vmatprep.subr.mxu0 0.0
    %1923 = vmatpush1.msra.mxu0 0.0
    %1924 = vmatprep.subr.mxu0 0.0
    %1925 = vmatpush1.msra.mxu0 0.0
    %1926 = vmatprep.subr.mxu0 0.0
    %1927 = vmatpush1.msra.mxu0 0.0
    %1928 = vmatprep.subr.mxu0 0.0
    %1929 = vmatpush1.msra.mxu0 0.0
    %1930 = vmatprep.subr.mxu0 0.0
    %1931 = vmatpush1.msra.mxu0 0.0
    %1932 = vmatprep.subr.mxu0 0.0
    %1933 = vmatpush1.msra.mxu0 0.0
    %1934 = vmatprep.subr.mxu0 0.0
    %1935 = vmatpush1.msra.mxu0 0.0
    %1936 = vmatprep.subr.mxu0 0.0
    %1937 = vmatpush1.msra.mxu0 0.0
    %1938 = vmatprep.subr.mxu0 0.0
    %1939 = vmatpush1.msra.mxu0 0.0
    %1940 = vmatprep.subr.mxu0 0.0
    %1941 = vmatpush1.msra.mxu0 0.0
    %1942 = vmatprep.subr.mxu0 0.0
    %1943 = vmatpush1.msra.mxu0 0.0
    %1944 = vmatprep.subr.mxu0 0.0
    %1945 = vmatpush1.msra.mxu0 0.0
    %1946 = vmatprep.subr.mxu0 0.0
    %1947 = vmatpush1.msra.mxu0 0.0
    %1948 = vmatprep.subr.mxu0 0.0
    %1949 = vmatpush1.msra.mxu0 0.0
    %1950 = vmatprep.subr.mxu0 0.0
    %1951 = vmatpush1.msra.mxu0 0.0
    %1952 = vmatprep.subr.mxu0 0.0
    %1953 = vmatpush1.msra.mxu0 0.0
    %1954 = vmatprep.subr.mxu0 0.0
    %1955 = vmatpush1.msra.mxu0 0.0
    %1956 = vmatprep.subr.mxu0 0.0
    %1957 = vmatpush1.msra.mxu0 0.0
    %1958 = vmatprep.subr.mxu0 0.0
    %1959 = vmatpush1.msra.mxu0 0.0
    %1960 = vmatprep.subr.mxu0 0.0
    %1961 = vmatpush1.msra.mxu0 0.0
    %1962 = vmatprep.subr.mxu0 0.0
    %1963 = vmatpush1.msra.mxu0 0.0
    %1964 = vmatprep.subr.mxu0 0.0
    %1965 = vmatpush1.msra.mxu0 0.0
    %1966 = vmatprep.subr.mxu0 0.0
    %1967 = vmatpush1.msra.mxu0 0.0
    %1968 = vmatprep.subr.mxu0 0.0
    %1969 = vmatpush1.msra.mxu0 0.0
    %1970 = vmatprep.mubr.f32.mxu0 0.0
    %1971 = vmatmul.mubr.f32.gmra.mrb[0].mxu0 %v1889
    %v1972 = vpop.f32.mrb[0].mxu0
    %v1973 = vadd.f32 %v1860, %v1972
    %v1974 = vpop.f32.mrb[0].mxu0
    %1975 = vmatprep.mubr.f32.mxu0 0.0
    %1976 = vmatmul.mubr.f32.gmra.mrb[0].mxu0 %v1892
    %v1977 = vpop.f32.mrb[0].mxu0
    %v1978 = vadd.f32 %v1865, %v1977
    %v1979 = vpop.f32.mrb[0].mxu0
    %1980 = vmatprep.mubr.f32.mxu0 0.0
    %1981 = vmatmul.mubr.f32.gmra.mrb[0].mxu0 %v1895
    %v1982 = vpop.f32.mrb[0].mxu0
    %v1983 = vadd.f32 %v1870, %v1982
    %v1984 = vpop.f32.mrb[0].mxu0
    %1985 = vmatprep.mubr.f32.mxu0 0.0
    %1986 = vmatmul.mubr.f32.gmra.mrb[0].mxu0 %v1898
    %v1987 = vpop.f32.mrb[0].mxu0
    %v1988 = vadd.f32 %v1875, %v1987
    %v1989 = vpop.f32.mrb[0].mxu0
    %1990 = vmatprep.mubr.f32.mxu0 0.0
    %1991 = vmatmul.mubr.f32.gmra.mrb[0].mxu0 %v1901
    %v1992 = vpop.f32.mrb[0].mxu0
    %v1993 = vadd.f32 %v1880, %v1992
    %v1994 = vpop.f32.mrb[0].mxu0
    %1995 = vmatprep.mubr.f32.mxu0 0.0
    %1996 = vmatmul.mubr.f32.gmra.mrb[0].mxu0 %v1904
    %v1997 = vpop.f32.mrb[0].mxu0
    %v1998 = vadd.f32 %v1885, %v1997
    %v1999 = vpop.f32.mrb[0].mxu0
    %2000 = vdwg.mxu0
    %v2001 = vld [vmem:[%s1 + $0x188] sm:$0xff]
    %v2002 = vld [vmem:[%s1 + $0x190] sm:$0xff]
    %v2003 = vld [vmem:[%s1 + $0x198] sm:$0xff]
    %v2004 = vld [vmem:[%s1 + $0x1a0] sm:$0xff]
    %v2005 = vld [vmem:[%s1 + $0x1f0] sm:$0x1]
    %v2006 = vlaneseq
    %v2007 = vshrl.u32 %v2006, 7
    %v2008 = vsub.s32 0, %v2007
    %v2009 = vrot.slane %v2005, %v2008
    %2010 = vmatprep.subr.mxu0 0.0
    %2011 = vmatpush1.msra.mxu0 %v2001
    %2012 = vmatprep.subr.mxu0 0.0
    %2013 = vmatpush1.msra.mxu0 %v2002
    %2014 = vmatprep.subr.mxu0 0.0
    %2015 = vmatpush1.msra.mxu0 %v2003
    %2016 = vmatprep.subr.mxu0 0.0
    %2017 = vmatpush1.msra.mxu0 %v2004
    %2018 = vmatprep.subr.mxu0 0.0
    %2019 = vmatpush1.msra.mxu0 0.0
    %2020 = vmatprep.subr.mxu0 0.0
    %2021 = vmatpush1.msra.mxu0 0.0
    %2022 = vmatprep.subr.mxu0 0.0
    %2023 = vmatpush1.msra.mxu0 0.0
    %2024 = vmatprep.subr.mxu0 0.0
    %2025 = vmatpush1.msra.mxu0 0.0
    %2026 = vmatprep.subr.mxu0 0.0
    %2027 = vmatpush1.msra.mxu0 0.0
    %2028 = vmatprep.subr.mxu0 0.0
    %2029 = vmatpush1.msra.mxu0 0.0
    %2030 = vmatprep.subr.mxu0 0.0
    %2031 = vmatpush1.msra.mxu0 0.0
    %2032 = vmatprep.subr.mxu0 0.0
    %2033 = vmatpush1.msra.mxu0 0.0
    %2034 = vmatprep.subr.mxu0 0.0
    %2035 = vmatpush1.msra.mxu0 0.0
    %2036 = vmatprep.subr.mxu0 0.0
    %2037 = vmatpush1.msra.mxu0 0.0
    %2038 = vmatprep.subr.mxu0 0.0
    %2039 = vmatpush1.msra.mxu0 0.0
    %2040 = vmatprep.subr.mxu0 0.0
    %2041 = vmatpush1.msra.mxu0 0.0
    %2042 = vmatprep.subr.mxu0 0.0
    %2043 = vmatpush1.msra.mxu0 0.0
    %2044 = vmatprep.subr.mxu0 0.0
    %2045 = vmatpush1.msra.mxu0 0.0
    %2046 = vmatprep.subr.mxu0 0.0
    %2047 = vmatpush1.msra.mxu0 0.0
    %2048 = vmatprep.subr.mxu0 0.0
    %2049 = vmatpush1.msra.mxu0 0.0
    %2050 = vmatprep.subr.mxu0 0.0
    %2051 = vmatpush1.msra.mxu0 0.0
    %2052 = vmatprep.subr.mxu0 0.0
    %2053 = vmatpush1.msra.mxu0 0.0
    %2054 = vmatprep.subr.mxu0 0.0
    %2055 = vmatpush1.msra.mxu0 0.0
    %2056 = vmatprep.subr.mxu0 0.0
    %2057 = vmatpush1.msra.mxu0 0.0
    %2058 = vmatprep.subr.mxu0 0.0
    %2059 = vmatpush1.msra.mxu0 0.0
    %2060 = vmatprep.subr.mxu0 0.0
    %2061 = vmatpush1.msra.mxu0 0.0
    %2062 = vmatprep.subr.mxu0 0.0
    %2063 = vmatpush1.msra.mxu0 0.0
    %2064 = vmatprep.subr.mxu0 0.0
    %2065 = vmatpush1.msra.mxu0 0.0
    %2066 = vmatprep.subr.mxu0 0.0
    %2067 = vmatpush1.msra.mxu0 0.0
    %2068 = vmatprep.subr.mxu0 0.0
    %2069 = vmatpush1.msra.mxu0 0.0
    %2070 = vmatprep.subr.mxu0 0.0
    %2071 = vmatpush1.msra.mxu0 0.0
    %2072 = vmatprep.subr.mxu0 0.0
    %2073 = vmatpush1.msra.mxu0 0.0
    %2074 = vmatprep.mubr.f32.mxu0 0.0
    %2075 = vmatmul.mubr.f32.gmra.mrb[0].mxu0 %v259
    %v2076 = vpop.f32.mrb[0].mxu0
    %v2077 = vadd.f32 %v2009, %v2076
    %v2078 = vpop.f32.mrb[0].mxu0
    %2079 = vmatprep.mubr.f32.mxu0 0.0
    %2080 = vmatmul.mubr.f32.gmra.mrb[0].mxu0 %v262
    %v2081 = vpop.f32.mrb[0].mxu0
    %v2082 = vadd.f32 %v2009, %v2081
    %v2083 = vpop.f32.mrb[0].mxu0
    %2084 = vmatprep.mubr.f32.mxu0 0.0
    %2085 = vmatmul.mubr.f32.gmra.mrb[0].mxu0 %v265
    %v2086 = vpop.f32.mrb[0].mxu0
    %v2087 = vadd.f32 %v2009, %v2086
    %v2088 = vpop.f32.mrb[0].mxu0
    %2089 = vmatprep.mubr.f32.mxu0 0.0
    %2090 = vmatmul.mubr.f32.gmra.mrb[0].mxu0 %v268
    %v2091 = vpop.f32.mrb[0].mxu0
    %v2092 = vadd.f32 %v2009, %v2091
    %v2093 = vpop.f32.mrb[0].mxu0
    %2094 = vmatprep.mubr.f32.mxu0 0.0
    %2095 = vmatmul.mubr.f32.gmra.mrb[0].mxu0 %v271
    %v2096 = vpop.f32.mrb[0].mxu0
    %v2097 = vadd.f32 %v2009, %v2096
    %v2098 = vpop.f32.mrb[0].mxu0
    %2099 = vmatprep.mubr.f32.mxu0 0.0
    %2100 = vmatmul.mubr.f32.gmra.mrb[0].mxu0 %v274
    %v2101 = vpop.f32.mrb[0].mxu0
    %v2102 = vadd.f32 %v2009, %v2101
    %v2103 = vpop.f32.mrb[0].mxu0
    %2104 = vdwg.mxu0
    %v2105 = vld [vmem:[%s1 + $0x1a8] sm:$0xff]
    %v2106 = vld [vmem:[%s1 + $0x1b0] sm:$0xff]
    %v2107 = vld [vmem:[%s1 + $0x1b8] sm:$0xff]
    %v2108 = vld [vmem:[%s1 + $0x1c0] sm:$0xff]
    %v2109 = vld [vmem:[%s1 + $0x1f8] sm:$0x1]
    %v2110 = vlaneseq
    %v2111 = vshrl.u32 %v2110, 7
    %v2112 = vsub.s32 0, %v2111
    %v2113 = vrot.slane %v2109, %v2112
    %2114 = vmatprep.subr.mxu0 0.0
    %2115 = vmatpush1.msra.mxu0 %v2105
    %2116 = vmatprep.subr.mxu0 0.0
    %2117 = vmatpush1.msra.mxu0 %v2106
    %2118 = vmatprep.subr.mxu0 0.0
    %2119 = vmatpush1.msra.mxu0 %v2107
    %2120 = vmatprep.subr.mxu0 0.0
    %2121 = vmatpush1.msra.mxu0 %v2108
    %2122 = vmatprep.subr.mxu0 0.0
    %2123 = vmatpush1.msra.mxu0 0.0
    %2124 = vmatprep.subr.mxu0 0.0
    %2125 = vmatpush1.msra.mxu0 0.0
    %2126 = vmatprep.subr.mxu0 0.0
    %2127 = vmatpush1.msra.mxu0 0.0
    %2128 = vmatprep.subr.mxu0 0.0
    %2129 = vmatpush1.msra.mxu0 0.0
    %2130 = vmatprep.subr.mxu0 0.0
    %2131 = vmatpush1.msra.mxu0 0.0
    %2132 = vmatprep.subr.mxu0 0.0
    %2133 = vmatpush1.msra.mxu0 0.0
    %2134 = vmatprep.subr.mxu0 0.0
    %2135 = vmatpush1.msra.mxu0 0.0
    %2136 = vmatprep.subr.mxu0 0.0
    %2137 = vmatpush1.msra.mxu0 0.0
    %2138 = vmatprep.subr.mxu0 0.0
    %2139 = vmatpush1.msra.mxu0 0.0
    %2140 = vmatprep.subr.mxu0 0.0
    %2141 = vmatpush1.msra.mxu0 0.0
    %2142 = vmatprep.subr.mxu0 0.0
    %2143 = vmatpush1.msra.mxu0 0.0
    %2144 = vmatprep.subr.mxu0 0.0
    %2145 = vmatpush1.msra.mxu0 0.0
    %2146 = vmatprep.subr.mxu0 0.0
    %2147 = vmatpush1.msra.mxu0 0.0
    %2148 = vmatprep.subr.mxu0 0.0
    %2149 = vmatpush1.msra.mxu0 0.0
    %2150 = vmatprep.subr.mxu0 0.0
    %2151 = vmatpush1.msra.mxu0 0.0
    %2152 = vmatprep.subr.mxu0 0.0
    %2153 = vmatpush1.msra.mxu0 0.0
    %2154 = vmatprep.subr.mxu0 0.0
    %2155 = vmatpush1.msra.mxu0 0.0
    %2156 = vmatprep.subr.mxu0 0.0
    %2157 = vmatpush1.msra.mxu0 0.0
    %2158 = vmatprep.subr.mxu0 0.0
    %2159 = vmatpush1.msra.mxu0 0.0
    %2160 = vmatprep.subr.mxu0 0.0
    %2161 = vmatpush1.msra.mxu0 0.0
    %2162 = vmatprep.subr.mxu0 0.0
    %2163 = vmatpush1.msra.mxu0 0.0
    %2164 = vmatprep.subr.mxu0 0.0
    %2165 = vmatpush1.msra.mxu0 0.0
    %2166 = vmatprep.subr.mxu0 0.0
    %2167 = vmatpush1.msra.mxu0 0.0
    %2168 = vmatprep.subr.mxu0 0.0
    %2169 = vmatpush1.msra.mxu0 0.0
    %2170 = vmatprep.subr.mxu0 0.0
    %2171 = vmatpush1.msra.mxu0 0.0
    %2172 = vmatprep.subr.mxu0 0.0
    %2173 = vmatpush1.msra.mxu0 0.0
    %2174 = vmatprep.subr.mxu0 0.0
    %2175 = vmatpush1.msra.mxu0 0.0
    %2176 = vmatprep.subr.mxu0 0.0
    %2177 = vmatpush1.msra.mxu0 0.0
    %2178 = vmatprep.mubr.f32.mxu0 0.0
    %2179 = vmatmul.mubr.f32.gmra.mrb[0].mxu0 %v259
    %v2180 = vpop.f32.mrb[0].mxu0
    %v2181 = vadd.f32 %v2113, %v2180
    %v2182 = vpop.f32.mrb[0].mxu0
    %2183 = vmatprep.mubr.f32.mxu0 0.0
    %2184 = vmatmul.mubr.f32.gmra.mrb[0].mxu0 %v262
    %v2185 = vpop.f32.mrb[0].mxu0
    %v2186 = vadd.f32 %v2113, %v2185
    %v2187 = vpop.f32.mrb[0].mxu0
    %2188 = vmatprep.mubr.f32.mxu0 0.0
    %2189 = vmatmul.mubr.f32.gmra.mrb[0].mxu0 %v265
    %v2190 = vpop.f32.mrb[0].mxu0
    %v2191 = vadd.f32 %v2113, %v2190
    %v2192 = vpop.f32.mrb[0].mxu0
    %2193 = vmatprep.mubr.f32.mxu0 0.0
    %2194 = vmatmul.mubr.f32.gmra.mrb[0].mxu0 %v268
    %v2195 = vpop.f32.mrb[0].mxu0
    %v2196 = vadd.f32 %v2113, %v2195
    %v2197 = vpop.f32.mrb[0].mxu0
    %2198 = vmatprep.mubr.f32.mxu0 0.0
    %2199 = vmatmul.mubr.f32.gmra.mrb[0].mxu0 %v271
    %v2200 = vpop.f32.mrb[0].mxu0
    %v2201 = vadd.f32 %v2113, %v2200
    %v2202 = vpop.f32.mrb[0].mxu0
    %2203 = vmatprep.mubr.f32.mxu0 0.0
    %2204 = vmatmul.mubr.f32.gmra.mrb[0].mxu0 %v274
    %v2205 = vpop.f32.mrb[0].mxu0
    %v2206 = vadd.f32 %v2113, %v2205
    %v2207 = vpop.f32.mrb[0].mxu0
    %2208 = vdwg.mxu0
    %v2209 = vld [vmem:[%s1 + $0x1c8] sm:$0xff]
    %v2210 = vld [vmem:[%s1 + $0x1d0] sm:$0xff]
    %v2211 = vld [vmem:[%s1 + $0x1d8] sm:$0xff]
    %v2212 = vld [vmem:[%s1 + $0x1e0] sm:$0xff]
    %v2213 = vld [vmem:[%s1 + $0x200] sm:$0x1]
    %v2214 = vlaneseq
    %v2215 = vshrl.u32 %v2214, 7
    %v2216 = vsub.s32 0, %v2215
    %v2217 = vrot.slane %v2213, %v2216
    %2218 = vmatprep.subr.mxu0 0.0
    %2219 = vmatpush1.msra.mxu0 %v2209
    %2220 = vmatprep.subr.mxu0 0.0
    %2221 = vmatpush1.msra.mxu0 %v2210
    %2222 = vmatprep.subr.mxu0 0.0
    %2223 = vmatpush1.msra.mxu0 %v2211
    %2224 = vmatprep.subr.mxu0 0.0
    %2225 = vmatpush1.msra.mxu0 %v2212
    %2226 = vmatprep.subr.mxu0 0.0
    %2227 = vmatpush1.msra.mxu0 0.0
    %2228 = vmatprep.subr.mxu0 0.0
    %2229 = vmatpush1.msra.mxu0 0.0
    %2230 = vmatprep.subr.mxu0 0.0
    %2231 = vmatpush1.msra.mxu0 0.0
    %2232 = vmatprep.subr.mxu0 0.0
    %2233 = vmatpush1.msra.mxu0 0.0
    %2234 = vmatprep.subr.mxu0 0.0
    %2235 = vmatpush1.msra.mxu0 0.0
    %2236 = vmatprep.subr.mxu0 0.0
    %2237 = vmatpush1.msra.mxu0 0.0
    %2238 = vmatprep.subr.mxu0 0.0
    %2239 = vmatpush1.msra.mxu0 0.0
    %2240 = vmatprep.subr.mxu0 0.0
    %2241 = vmatpush1.msra.mxu0 0.0
    %2242 = vmatprep.subr.mxu0 0.0
    %2243 = vmatpush1.msra.mxu0 0.0
    %2244 = vmatprep.subr.mxu0 0.0
    %2245 = vmatpush1.msra.mxu0 0.0
    %2246 = vmatprep.subr.mxu0 0.0
    %2247 = vmatpush1.msra.mxu0 0.0
    %2248 = vmatprep.subr.mxu0 0.0
    %2249 = vmatpush1.msra.mxu0 0.0
    %2250 = vmatprep.subr.mxu0 0.0
    %2251 = vmatpush1.msra.mxu0 0.0
    %2252 = vmatprep.subr.mxu0 0.0
    %2253 = vmatpush1.msra.mxu0 0.0
    %2254 = vmatprep.subr.mxu0 0.0
    %2255 = vmatpush1.msra.mxu0 0.0
    %2256 = vmatprep.subr.mxu0 0.0
    %2257 = vmatpush1.msra.mxu0 0.0
    %2258 = vmatprep.subr.mxu0 0.0
    %2259 = vmatpush1.msra.mxu0 0.0
    %2260 = vmatprep.subr.mxu0 0.0
    %2261 = vmatpush1.msra.mxu0 0.0
    %2262 = vmatprep.subr.mxu0 0.0
    %2263 = vmatpush1.msra.mxu0 0.0
    %2264 = vmatprep.subr.mxu0 0.0
    %2265 = vmatpush1.msra.mxu0 0.0
    %2266 = vmatprep.subr.mxu0 0.0
    %2267 = vmatpush1.msra.mxu0 0.0
    %2268 = vmatprep.subr.mxu0 0.0
    %2269 = vmatpush1.msra.mxu0 0.0
    %2270 = vmatprep.subr.mxu0 0.0
    %2271 = vmatpush1.msra.mxu0 0.0
    %2272 = vmatprep.subr.mxu0 0.0
    %2273 = vmatpush1.msra.mxu0 0.0
    %2274 = vmatprep.subr.mxu0 0.0
    %2275 = vmatpush1.msra.mxu0 0.0
    %2276 = vmatprep.subr.mxu0 0.0
    %2277 = vmatpush1.msra.mxu0 0.0
    %2278 = vmatprep.subr.mxu0 0.0
    %2279 = vmatpush1.msra.mxu0 0.0
    %2280 = vmatprep.subr.mxu0 0.0
    %2281 = vmatpush1.msra.mxu0 0.0
    %2282 = vmatprep.mubr.f32.mxu0 0.0
    %2283 = vmatmul.mubr.f32.gmra.mrb[0].mxu0 %v259
    %v2284 = vpop.f32.mrb[0].mxu0
    %v2285 = vadd.f32 %v2217, %v2284
    %v2286 = vpop.f32.mrb[0].mxu0
    %2287 = vmatprep.mubr.f32.mxu0 0.0
    %2288 = vmatmul.mubr.f32.gmra.mrb[0].mxu0 %v262
    %v2289 = vpop.f32.mrb[0].mxu0
    %v2290 = vadd.f32 %v2217, %v2289
    %v2291 = vpop.f32.mrb[0].mxu0
    %2292 = vmatprep.mubr.f32.mxu0 0.0
    %2293 = vmatmul.mubr.f32.gmra.mrb[0].mxu0 %v265
    %v2294 = vpop.f32.mrb[0].mxu0
    %v2295 = vadd.f32 %v2217, %v2294
    %v2296 = vpop.f32.mrb[0].mxu0
    %2297 = vmatprep.mubr.f32.mxu0 0.0
    %2298 = vmatmul.mubr.f32.gmra.mrb[0].mxu0 %v268
    %v2299 = vpop.f32.mrb[0].mxu0
    %v2300 = vadd.f32 %v2217, %v2299
    %v2301 = vpop.f32.mrb[0].mxu0
    %2302 = vmatprep.mubr.f32.mxu0 0.0
    %2303 = vmatmul.mubr.f32.gmra.mrb[0].mxu0 %v271
    %v2304 = vpop.f32.mrb[0].mxu0
    %v2305 = vadd.f32 %v2217, %v2304
    %v2306 = vpop.f32.mrb[0].mxu0
    %2307 = vmatprep.mubr.f32.mxu0 0.0
    %2308 = vmatmul.mubr.f32.gmra.mrb[0].mxu0 %v274
    %v2309 = vpop.f32.mrb[0].mxu0
    %v2310 = vadd.f32 %v2217, %v2309
    %v2311 = vpop.f32.mrb[0].mxu0
    %2312 = vdwg.mxu0
    %v2314 = vsel %vm579, %v2077, 0
    %v2317 = vsel %vm579, %v2082, 0
    %v2320 = vsel %vm579, %v2087, 0
    %v2323 = vsel %vm579, %v2181, 0
    %v2326 = vsel %vm579, %v2186, 0
    %v2329 = vsel %vm579, %v2191, 0
    %2331 = vmatprep.subr.mxu0 0.0
    %2332 = vmatpush1.xpose.msra.mxu0 %v2323
    %2333 = vmatprep.subr.mxu0 0.0
    %2334 = vmatpush1.xpose.msra.mxu0 %v2326
    %2335 = vmatprep.subr.mxu0 0.0
    %2336 = vmatpush1.xpose.msra.mxu0 %v2329
    %2337 = vmatprep.subr.mxu0 0.0
    %2338 = vmatpush1.xpose.msra.mxu0 0.0
    %2339 = vmatprep.subr.mxu0 0.0
    %2340 = vmatpush1.xpose.msra.mxu0 0.0
    %2341 = vmatprep.subr.mxu0 0.0
    %2342 = vmatpush1.xpose.msra.mxu0 0.0
    %2343 = vmatprep.subr.mxu0 0.0
    %2344 = vmatpush1.xpose.msra.mxu0 0.0
    %2345 = vmatprep.subr.mxu0 0.0
    %2346 = vmatpush1.xpose.msra.mxu0 0.0
    %2347 = vmatprep.subr.mxu0 0.0
    %2348 = vmatpush1.xpose.msra.mxu0 0.0
    %2349 = vmatprep.subr.mxu0 0.0
    %2350 = vmatpush1.xpose.msra.mxu0 0.0
    %2351 = vmatprep.subr.mxu0 0.0
    %2352 = vmatpush1.xpose.msra.mxu0 0.0
    %2353 = vmatprep.subr.mxu0 0.0
    %2354 = vmatpush1.xpose.msra.mxu0 0.0
    %2355 = vmatprep.subr.mxu0 0.0
    %2356 = vmatpush1.xpose.msra.mxu0 0.0
    %2357 = vmatprep.subr.mxu0 0.0
    %2358 = vmatpush1.xpose.msra.mxu0 0.0
    %2359 = vmatprep.subr.mxu0 0.0
    %2360 = vmatpush1.xpose.msra.mxu0 0.0
    %2361 = vmatprep.subr.mxu0 0.0
    %2362 = vmatpush1.xpose.msra.mxu0 0.0
    %2363 = vmatprep.subr.mxu0 0.0
    %2364 = vmatpush1.xpose.msra.mxu0 0.0
    %2365 = vmatprep.subr.mxu0 0.0
    %2366 = vmatpush1.xpose.msra.mxu0 0.0
    %2367 = vmatprep.subr.mxu0 0.0
    %2368 = vmatpush1.xpose.msra.mxu0 0.0
    %2369 = vmatprep.subr.mxu0 0.0
    %2370 = vmatpush1.xpose.msra.mxu0 0.0
    %2371 = vmatprep.subr.mxu0 0.0
    %2372 = vmatpush1.xpose.msra.mxu0 0.0
    %2373 = vmatprep.subr.mxu0 0.0
    %2374 = vmatpush1.xpose.msra.mxu0 0.0
    %2375 = vmatprep.subr.mxu0 0.0
    %2376 = vmatpush1.xpose.msra.mxu0 0.0
    %2377 = vmatprep.subr.mxu0 0.0
    %2378 = vmatpush1.xpose.msra.mxu0 0.0
    %2379 = vmatprep.subr.mxu0 0.0
    %2380 = vmatpush1.xpose.msra.mxu0 0.0
    %2381 = vmatprep.subr.mxu0 0.0
    %2382 = vmatpush1.xpose.msra.mxu0 0.0
    %2383 = vmatprep.subr.mxu0 0.0
    %2384 = vmatpush1.xpose.msra.mxu0 0.0
    %2385 = vmatprep.subr.mxu0 0.0
    %2386 = vmatpush1.xpose.msra.mxu0 0.0
    %2387 = vmatprep.subr.mxu0 0.0
    %2388 = vmatpush1.xpose.msra.mxu0 0.0
    %2389 = vmatprep.subr.mxu0 0.0
    %2390 = vmatpush1.xpose.msra.mxu0 0.0
    %2391 = vmatprep.subr.mxu0 0.0
    %2392 = vmatpush1.xpose.msra.mxu0 0.0
    %2393 = vmatprep.subr.mxu0 0.0
    %2394 = vmatpush1.xpose.msra.mxu0 0.0
    %2395 = vmatprep.mubr.f32.mxu0 0.0
    %2396 = vmatmul.mubr.f32.gmra.mrb[0].mxu0 %v2314
    %v2397 = vpop.f32.mrb[0].mxu0
    %v2398 = vadd.f32 %v144, %v2397
    %v2399 = vpop.f32.mrb[0].mxu0
    %2400 = vmatprep.mubr.f32.mxu0 0.0
    %2401 = vmatmul.mubr.f32.gmra.mrb[0].mxu0 %v2317
    %v2402 = vpop.f32.mrb[0].mxu0
    %v2403 = vadd.f32 %v145, %v2402
    %v2404 = vpop.f32.mrb[0].mxu0
    %2405 = vmatprep.mubr.f32.mxu0 0.0
    %2406 = vmatmul.mubr.f32.gmra.mrb[0].mxu0 %v2320
    %v2407 = vpop.f32.mrb[0].mxu0
    %v2408 = vadd.f32 %v146, %v2407
    %v2409 = vpop.f32.mrb[0].mxu0
    %2410 = vdwg.mxu0
    %v2412 = vsel %vm579, %v2092, 0
    %v2415 = vsel %vm579, %v2097, 0
    %v2418 = vsel %vm579, %v2102, 0
    %v2421 = vsel %vm579, %v2196, 0
    %v2424 = vsel %vm579, %v2201, 0
    %v2427 = vsel %vm579, %v2206, 0
    %2429 = vmatprep.subr.mxu0 0.0
    %2430 = vmatpush1.xpose.msra.mxu0 %v2421
    %2431 = vmatprep.subr.mxu0 0.0
    %2432 = vmatpush1.xpose.msra.mxu0 %v2424
    %2433 = vmatprep.subr.mxu0 0.0
    %2434 = vmatpush1.xpose.msra.mxu0 %v2427
    %2435 = vmatprep.subr.mxu0 0.0
    %2436 = vmatpush1.xpose.msra.mxu0 0.0
    %2437 = vmatprep.subr.mxu0 0.0
    %2438 = vmatpush1.xpose.msra.mxu0 0.0
    %2439 = vmatprep.subr.mxu0 0.0
    %2440 = vmatpush1.xpose.msra.mxu0 0.0
    %2441 = vmatprep.subr.mxu0 0.0
    %2442 = vmatpush1.xpose.msra.mxu0 0.0
    %2443 = vmatprep.subr.mxu0 0.0
    %2444 = vmatpush1.xpose.msra.mxu0 0.0
    %2445 = vmatprep.subr.mxu0 0.0
    %2446 = vmatpush1.xpose.msra.mxu0 0.0
    %2447 = vmatprep.subr.mxu0 0.0
    %2448 = vmatpush1.xpose.msra.mxu0 0.0
    %2449 = vmatprep.subr.mxu0 0.0
    %2450 = vmatpush1.xpose.msra.mxu0 0.0
    %2451 = vmatprep.subr.mxu0 0.0
    %2452 = vmatpush1.xpose.msra.mxu0 0.0
    %2453 = vmatprep.subr.mxu0 0.0
    %2454 = vmatpush1.xpose.msra.mxu0 0.0
    %2455 = vmatprep.subr.mxu0 0.0
    %2456 = vmatpush1.xpose.msra.mxu0 0.0
    %2457 = vmatprep.subr.mxu0 0.0
    %2458 = vmatpush1.xpose.msra.mxu0 0.0
    %2459 = vmatprep.subr.mxu0 0.0
    %2460 = vmatpush1.xpose.msra.mxu0 0.0
    %2461 = vmatprep.subr.mxu0 0.0
    %2462 = vmatpush1.xpose.msra.mxu0 0.0
    %2463 = vmatprep.subr.mxu0 0.0
    %2464 = vmatpush1.xpose.msra.mxu0 0.0
    %2465 = vmatprep.subr.mxu0 0.0
    %2466 = vmatpush1.xpose.msra.mxu0 0.0
    %2467 = vmatprep.subr.mxu0 0.0
    %2468 = vmatpush1.xpose.msra.mxu0 0.0
    %2469 = vmatprep.subr.mxu0 0.0
    %2470 = vmatpush1.xpose.msra.mxu0 0.0
    %2471 = vmatprep.subr.mxu0 0.0
    %2472 = vmatpush1.xpose.msra.mxu0 0.0
    %2473 = vmatprep.subr.mxu0 0.0
    %2474 = vmatpush1.xpose.msra.mxu0 0.0
    %2475 = vmatprep.subr.mxu0 0.0
    %2476 = vmatpush1.xpose.msra.mxu0 0.0
    %2477 = vmatprep.subr.mxu0 0.0
    %2478 = vmatpush1.xpose.msra.mxu0 0.0
    %2479 = vmatprep.subr.mxu0 0.0
    %2480 = vmatpush1.xpose.msra.mxu0 0.0
    %2481 = vmatprep.subr.mxu0 0.0
    %2482 = vmatpush1.xpose.msra.mxu0 0.0
    %2483 = vmatprep.subr.mxu0 0.0
    %2484 = vmatpush1.xpose.msra.mxu0 0.0
    %2485 = vmatprep.subr.mxu0 0.0
    %2486 = vmatpush1.xpose.msra.mxu0 0.0
    %2487 = vmatprep.subr.mxu0 0.0
    %2488 = vmatpush1.xpose.msra.mxu0 0.0
    %2489 = vmatprep.subr.mxu0 0.0
    %2490 = vmatpush1.xpose.msra.mxu0 0.0
    %2491 = vmatprep.subr.mxu0 0.0
    %2492 = vmatpush1.xpose.msra.mxu0 0.0
    %2493 = vmatprep.mubr.f32.mxu0 0.0
    %2494 = vmatmul.mubr.f32.gmra.mrb[0].mxu0 %v2412
    %v2495 = vpop.f32.mrb[0].mxu0
    %v2496 = vadd.f32 %v144, %v2495
    %v2497 = vpop.f32.mrb[0].mxu0
    %2498 = vmatprep.mubr.f32.mxu0 0.0
    %2499 = vmatmul.mubr.f32.gmra.mrb[0].mxu0 %v2415
    %v2500 = vpop.f32.mrb[0].mxu0
    %v2501 = vadd.f32 %v145, %v2500
    %v2502 = vpop.f32.mrb[0].mxu0
    %2503 = vmatprep.mubr.f32.mxu0 0.0
    %2504 = vmatmul.mubr.f32.gmra.mrb[0].mxu0 %v2418
    %v2505 = vpop.f32.mrb[0].mxu0
    %v2506 = vadd.f32 %v146, %v2505
    %v2507 = vpop.f32.mrb[0].mxu0
    %2508 = vdwg.mxu0
    %v2509 = vsel %vm776, %v2398, -inf
    %2510 = vmax.xlane.f32.xlu0 %v2509
    %v2511 = vpop.xlane.xlu0 %2510
    %v2512 = vsel %vm776, %v2403, -inf
    %2513 = vmax.xlane.f32.xlu0 %v2512
    %v2514 = vpop.xlane.xlu0 %2513
    %v2515 = vsel %vm776, %v2408, -inf
    %2516 = vmax.xlane.f32.xlu0 %v2515
    %v2517 = vpop.xlane.xlu0 %2516
    %v2518 = vsel %vm776, %v2496, -inf
    %2519 = vmax.xlane.f32.xlu0 %v2518
    %v2520 = vpop.xlane.xlu0 %2519
    %v2521 = vsel %vm776, %v2501, -inf
    %2522 = vmax.xlane.f32.xlu0 %v2521
    %v2523 = vpop.xlane.xlu0 %2522
    %v2524 = vsel %vm776, %v2506, -inf
    %2525 = vmax.xlane.f32.xlu0 %v2524
    %v2526 = vpop.xlane.xlu0 %2525
    %v2527 = vsub.f32 %v2398, %v2511
    %v2528 = vsub.f32 %v2403, %v2514
    %v2529 = vsub.f32 %v2408, %v2517
    %v2530 = vsub.f32 %v2496, %v2520
    %v2531 = vsub.f32 %v2501, %v2523
    %v2532 = vsub.f32 %v2506, %v2526
    %v2533 = vmul.f32 %v2527, 1.442695
    %v2534 = vpow.pop %v2533
    %v2535 = vmul.f32 %v2528, 1.442695
    %v2536 = vpow.pop %v2535
    %v2537 = vmul.f32 %v2529, 1.442695
    %v2538 = vpow.pop %v2537
    %v2539 = vmul.f32 %v2530, 1.442695
    %v2540 = vpow.pop %v2539
    %v2541 = vmul.f32 %v2531, 1.442695
    %v2542 = vpow.pop %v2541
    %v2543 = vmul.f32 %v2532, 1.442695
    %v2544 = vpow.pop %v2543
    %v2545 = vsel %vm776, %v2534, 0.0
    %2546 = vadd.xlane.f32.xlu0 %v2545
    %v2547 = vpop.xlane.xlu0 %2546
    %v2548 = vsel %vm776, %v2536, 0.0
    %2549 = vadd.xlane.f32.xlu0 %v2548
    %v2550 = vpop.xlane.xlu0 %2549
    %v2551 = vsel %vm776, %v2538, 0.0
    %2552 = vadd.xlane.f32.xlu0 %v2551
    %v2553 = vpop.xlane.xlu0 %2552
    %v2554 = vsel %vm776, %v2540, 0.0
    %2555 = vadd.xlane.f32.xlu0 %v2554
    %v2556 = vpop.xlane.xlu0 %2555
    %v2557 = vsel %vm776, %v2542, 0.0
    %2558 = vadd.xlane.f32.xlu0 %v2557
    %v2559 = vpop.xlane.xlu0 %2558
    %v2560 = vsel %vm776, %v2544, 0.0
    %2561 = vadd.xlane.f32.xlu0 %v2560
    %v2562 = vpop.xlane.xlu0 %2561
    %v2563 = vrcp.pop %v2547
    %v2564 = vrcp.pop %v2550
    %v2565 = vrcp.pop %v2553
    %v2566 = vrcp.pop %v2556
    %v2567 = vrcp.pop %v2559
    %v2568 = vrcp.pop %v2562
    %v2569 = vmul.f32 %v2534, %v2563
    %v2570 = vmul.f32 %v2536, %v2564
    %v2571 = vmul.f32 %v2538, %v2565
    %v2572 = vmul.f32 %v2540, %v2566
    %v2573 = vmul.f32 %v2542, %v2567
    %v2574 = vmul.f32 %v2544, %v2568
    %v2576 = vsel %vm776, %v2569, 0
    %v2579 = vsel %vm776, %v2570, 0
    %v2582 = vsel %vm776, %v2571, 0
    %2584 = vmatprep.subr.mxu0 0.0
    %2585 = vmatpush1.msra.mxu0 %v2285
    %2586 = vmatprep.subr.mxu0 0.0
    %2587 = vmatpush1.msra.mxu0 %v2290
    %2588 = vmatprep.subr.mxu0 0.0
    %2589 = vmatpush1.msra.mxu0 %v2295
    %2590 = vmatprep.subr.mxu0 0.0
    %2591 = vmatpush1.msra.mxu0 0.0
    %2592 = vmatprep.subr.mxu0 0.0
    %2593 = vmatpush1.msra.mxu0 0.0
    %2594 = vmatprep.subr.mxu0 0.0
    %2595 = vmatpush1.msra.mxu0 0.0
    %2596 = vmatprep.subr.mxu0 0.0
    %2597 = vmatpush1.msra.mxu0 0.0
    %2598 = vmatprep.subr.mxu0 0.0
    %2599 = vmatpush1.msra.mxu0 0.0
    %2600 = vmatprep.subr.mxu0 0.0
    %2601 = vmatpush1.msra.mxu0 0.0
    %2602 = vmatprep.subr.mxu0 0.0
    %2603 = vmatpush1.msra.mxu0 0.0
    %2604 = vmatprep.subr.mxu0 0.0
    %2605 = vmatpush1.msra.mxu0 0.0
    %2606 = vmatprep.subr.mxu0 0.0
    %2607 = vmatpush1.msra.mxu0 0.0
    %2608 = vmatprep.subr.mxu0 0.0
    %2609 = vmatpush1.msra.mxu0 0.0
    %2610 = vmatprep.subr.mxu0 0.0
    %2611 = vmatpush1.msra.mxu0 0.0
    %2612 = vmatprep.subr.mxu0 0.0
    %2613 = vmatpush1.msra.mxu0 0.0
    %2614 = vmatprep.subr.mxu0 0.0
    %2615 = vmatpush1.msra.mxu0 0.0
    %2616 = vmatprep.subr.mxu0 0.0
    %2617 = vmatpush1.msra.mxu0 0.0
    %2618 = vmatprep.subr.mxu0 0.0
    %2619 = vmatpush1.msra.mxu0 0.0
    %2620 = vmatprep.subr.mxu0 0.0
    %2621 = vmatpush1.msra.mxu0 0.0
    %2622 = vmatprep.subr.mxu0 0.0
    %2623 = vmatpush1.msra.mxu0 0.0
    %2624 = vmatprep.subr.mxu0 0.0
    %2625 = vmatpush1.msra.mxu0 0.0
    %2626 = vmatprep.subr.mxu0 0.0
    %2627 = vmatpush1.msra.mxu0 0.0
    %2628 = vmatprep.subr.mxu0 0.0
    %2629 = vmatpush1.msra.mxu0 0.0
    %2630 = vmatprep.subr.mxu0 0.0
    %2631 = vmatpush1.msra.mxu0 0.0
    %2632 = vmatprep.subr.mxu0 0.0
    %2633 = vmatpush1.msra.mxu0 0.0
    %2634 = vmatprep.subr.mxu0 0.0
    %2635 = vmatpush1.msra.mxu0 0.0
    %2636 = vmatprep.subr.mxu0 0.0
    %2637 = vmatpush1.msra.mxu0 0.0
    %2638 = vmatprep.subr.mxu0 0.0
    %2639 = vmatpush1.msra.mxu0 0.0
    %2640 = vmatprep.subr.mxu0 0.0
    %2641 = vmatpush1.msra.mxu0 0.0
    %2642 = vmatprep.subr.mxu0 0.0
    %2643 = vmatpush1.msra.mxu0 0.0
    %2644 = vmatprep.subr.mxu0 0.0
    %2645 = vmatpush1.msra.mxu0 0.0
    %2646 = vmatprep.subr.mxu0 0.0
    %2647 = vmatpush1.msra.mxu0 0.0
    %2648 = vmatprep.mubr.f32.mxu0 0.0
    %2649 = vmatmul.mubr.f32.gmra.mrb[0].mxu0 %v2576
    %v2650 = vpop.f32.mrb[0].mxu0
    %v2651 = vadd.f32 0.0, %v2650
    %v2652 = vpop.f32.mrb[0].mxu0
    %2653 = vmatprep.mubr.f32.mxu0 0.0
    %2654 = vmatmul.mubr.f32.gmra.mrb[0].mxu0 %v2579
    %v2655 = vpop.f32.mrb[0].mxu0
    %v2656 = vadd.f32 0.0, %v2655
    %v2657 = vpop.f32.mrb[0].mxu0
    %2658 = vmatprep.mubr.f32.mxu0 0.0
    %2659 = vmatmul.mubr.f32.gmra.mrb[0].mxu0 %v2582
    %v2660 = vpop.f32.mrb[0].mxu0
    %v2661 = vadd.f32 0.0, %v2660
    %v2662 = vpop.f32.mrb[0].mxu0
    %2663 = vdwg.mxu0
    %v2665 = vsel %vm776, %v2572, 0
    %v2668 = vsel %vm776, %v2573, 0
    %v2671 = vsel %vm776, %v2574, 0
    %2673 = vmatprep.subr.mxu0 0.0
    %2674 = vmatpush1.msra.mxu0 %v2300
    %2675 = vmatprep.subr.mxu0 0.0
    %2676 = vmatpush1.msra.mxu0 %v2305
    %2677 = vmatprep.subr.mxu0 0.0
    %2678 = vmatpush1.msra.mxu0 %v2310
    %2679 = vmatprep.subr.mxu0 0.0
    %2680 = vmatpush1.msra.mxu0 0.0
    %2681 = vmatprep.subr.mxu0 0.0
    %2682 = vmatpush1.msra.mxu0 0.0
    %2683 = vmatprep.subr.mxu0 0.0
    %2684 = vmatpush1.msra.mxu0 0.0
    %2685 = vmatprep.subr.mxu0 0.0
    %2686 = vmatpush1.msra.mxu0 0.0
    %2687 = vmatprep.subr.mxu0 0.0
    %2688 = vmatpush1.msra.mxu0 0.0
    %2689 = vmatprep.subr.mxu0 0.0
    %2690 = vmatpush1.msra.mxu0 0.0
    %2691 = vmatprep.subr.mxu0 0.0
    %2692 = vmatpush1.msra.mxu0 0.0
    %2693 = vmatprep.subr.mxu0 0.0
    %2694 = vmatpush1.msra.mxu0 0.0
    %2695 = vmatprep.subr.mxu0 0.0
    %2696 = vmatpush1.msra.mxu0 0.0
    %2697 = vmatprep.subr.mxu0 0.0
    %2698 = vmatpush1.msra.mxu0 0.0
    %2699 = vmatprep.subr.mxu0 0.0
    %2700 = vmatpush1.msra.mxu0 0.0
    %2701 = vmatprep.subr.mxu0 0.0
    %2702 = vmatpush1.msra.mxu0 0.0
    %2703 = vmatprep.subr.mxu0 0.0
    %2704 = vmatpush1.msra.mxu0 0.0
    %2705 = vmatprep.subr.mxu0 0.0
    %2706 = vmatpush1.msra.mxu0 0.0
    %2707 = vmatprep.subr.mxu0 0.0
    %2708 = vmatpush1.msra.mxu0 0.0
    %2709 = vmatprep.subr.mxu0 0.0
    %2710 = vmatpush1.msra.mxu0 0.0
    %2711 = vmatprep.subr.mxu0 0.0
    %2712 = vmatpush1.msra.mxu0 0.0
    %2713 = vmatprep.subr.mxu0 0.0
    %2714 = vmatpush1.msra.mxu0 0.0
    %2715 = vmatprep.subr.mxu0 0.0
    %2716 = vmatpush1.msra.mxu0 0.0
    %2717 = vmatprep.subr.mxu0 0.0
    %2718 = vmatpush1.msra.mxu0 0.0
    %2719 = vmatprep.subr.mxu0 0.0
    %2720 = vmatpush1.msra.mxu0 0.0
    %2721 = vmatprep.subr.mxu0 0.0
    %2722 = vmatpush1.msra.mxu0 0.0
    %2723 = vmatprep.subr.mxu0 0.0
    %2724 = vmatpush1.msra.mxu0 0.0
    %2725 = vmatprep.subr.mxu0 0.0
    %2726 = vmatpush1.msra.mxu0 0.0
    %2727 = vmatprep.subr.mxu0 0.0
    %2728 = vmatpush1.msra.mxu0 0.0
    %2729 = vmatprep.subr.mxu0 0.0
    %2730 = vmatpush1.msra.mxu0 0.0
    %2731 = vmatprep.subr.mxu0 0.0
    %2732 = vmatpush1.msra.mxu0 0.0
    %2733 = vmatprep.subr.mxu0 0.0
    %2734 = vmatpush1.msra.mxu0 0.0
    %2735 = vmatprep.subr.mxu0 0.0
    %2736 = vmatpush1.msra.mxu0 0.0
    %2737 = vmatprep.mubr.f32.mxu0 0.0
    %2738 = vmatmul.mubr.f32.gmra.mrb[0].mxu0 %v2665
    %v2739 = vpop.f32.mrb[0].mxu0
    %v2740 = vadd.f32 0.0, %v2739
    %v2741 = vpop.f32.mrb[0].mxu0
    %2742 = vmatprep.mubr.f32.mxu0 0.0
    %2743 = vmatmul.mubr.f32.gmra.mrb[0].mxu0 %v2668
    %v2744 = vpop.f32.mrb[0].mxu0
    %v2745 = vadd.f32 0.0, %v2744
    %v2746 = vpop.f32.mrb[0].mxu0
    %2747 = vmatprep.mubr.f32.mxu0 0.0
    %2748 = vmatmul.mubr.f32.gmra.mrb[0].mxu0 %v2671
    %v2749 = vpop.f32.mrb[0].mxu0
    %v2750 = vadd.f32 0.0, %v2749
    %v2751 = vpop.f32.mrb[0].mxu0
    %2752 = vdwg.mxu0
    %v2753 = vld [vmem:[%s1 + $0x1e8] sm:$0xff]
    %v2755 = vsel %vm579, %v2651, 0
    %v2758 = vsel %vm579, %v2656, 0
    %v2761 = vsel %vm579, %v2661, 0
    %v2764 = vsel %vm579, %v2740, 0
    %v2767 = vsel %vm579, %v2745, 0
    %v2770 = vsel %vm579, %v2750, 0
    %2772 = vmatprep.subr.mxu0 0.0
    %2773 = vmatpush1.msra.mxu0 %v2753
    %2774 = vmatprep.subr.mxu0 0.0
    %2775 = vmatpush1.msra.mxu0 0.0
    %2776 = vmatprep.subr.mxu0 0.0
    %2777 = vmatpush1.msra.mxu0 0.0
    %2778 = vmatprep.subr.mxu0 0.0
    %2779 = vmatpush1.msra.mxu0 0.0
    %2780 = vmatprep.subr.mxu0 0.0
    %2781 = vmatpush1.msra.mxu0 0.0
    %2782 = vmatprep.subr.mxu0 0.0
    %2783 = vmatpush1.msra.mxu0 0.0
    %2784 = vmatprep.subr.mxu0 0.0
    %2785 = vmatpush1.msra.mxu0 0.0
    %2786 = vmatprep.subr.mxu0 0.0
    %2787 = vmatpush1.msra.mxu0 0.0
    %2788 = vmatprep.subr.mxu0 0.0
    %2789 = vmatpush1.msra.mxu0 0.0
    %2790 = vmatprep.subr.mxu0 0.0
    %2791 = vmatpush1.msra.mxu0 0.0
    %2792 = vmatprep.subr.mxu0 0.0
    %2793 = vmatpush1.msra.mxu0 0.0
    %2794 = vmatprep.subr.mxu0 0.0
    %2795 = vmatpush1.msra.mxu0 0.0
    %2796 = vmatprep.subr.mxu0 0.0
    %2797 = vmatpush1.msra.mxu0 0.0
    %2798 = vmatprep.subr.mxu0 0.0
    %2799 = vmatpush1.msra.mxu0 0.0
    %2800 = vmatprep.subr.mxu0 0.0
    %2801 = vmatpush1.msra.mxu0 0.0
    %2802 = vmatprep.subr.mxu0 0.0
    %2803 = vmatpush1.msra.mxu0 0.0
    %2804 = vmatprep.subr.mxu0 0.0
    %2805 = vmatpush1.msra.mxu0 0.0
    %2806 = vmatprep.subr.mxu0 0.0
    %2807 = vmatpush1.msra.mxu0 0.0
    %2808 = vmatprep.subr.mxu0 0.0
    %2809 = vmatpush1.msra.mxu0 0.0
    %2810 = vmatprep.subr.mxu0 0.0
    %2811 = vmatpush1.msra.mxu0 0.0
    %2812 = vmatprep.subr.mxu0 0.0
    %2813 = vmatpush1.msra.mxu0 0.0
    %2814 = vmatprep.subr.mxu0 0.0
    %2815 = vmatpush1.msra.mxu0 0.0
    %2816 = vmatprep.subr.mxu0 0.0
    %2817 = vmatpush1.msra.mxu0 0.0
    %2818 = vmatprep.subr.mxu0 0.0
    %2819 = vmatpush1.msra.mxu0 0.0
    %2820 = vmatprep.subr.mxu0 0.0
    %2821 = vmatpush1.msra.mxu0 0.0
    %2822 = vmatprep.subr.mxu0 0.0
    %2823 = vmatpush1.msra.mxu0 0.0
    %2824 = vmatprep.subr.mxu0 0.0
    %2825 = vmatpush1.msra.mxu0 0.0
    %2826 = vmatprep.subr.mxu0 0.0
    %2827 = vmatpush1.msra.mxu0 0.0
    %2828 = vmatprep.subr.mxu0 0.0
    %2829 = vmatpush1.msra.mxu0 0.0
    %2830 = vmatprep.subr.mxu0 0.0
    %2831 = vmatpush1.msra.mxu0 0.0
    %2832 = vmatprep.subr.mxu0 0.0
    %2833 = vmatpush1.msra.mxu0 0.0
    %2834 = vmatprep.subr.mxu0 0.0
    %2835 = vmatpush1.msra.mxu0 0.0
    %2836 = vmatprep.mubr.f32.mxu0 0.0
    %2837 = vmatmul.mubr.f32.gmra.mrb[0].mxu0 %v2755
    %v2838 = vpop.f32.mrb[0].mxu0
    %v2839 = vadd.f32 0.0, %v2838
    %v2840 = vpop.f32.mrb[0].mxu0
    %2841 = vmatprep.mubr.f32.mxu0 0.0
    %2842 = vmatmul.mubr.f32.gmra.mrb[0].mxu0 %v2758
    %v2843 = vpop.f32.mrb[0].mxu0
    %v2844 = vadd.f32 0.0, %v2843
    %v2845 = vpop.f32.mrb[0].mxu0
    %2846 = vmatprep.mubr.f32.mxu0 0.0
    %2847 = vmatmul.mubr.f32.gmra.mrb[0].mxu0 %v2761
    %v2848 = vpop.f32.mrb[0].mxu0
    %v2849 = vadd.f32 0.0, %v2848
    %v2850 = vpop.f32.mrb[0].mxu0
    %2851 = vmatprep.mubr.f32.mxu0 0.0
    %2852 = vmatmul.mubr.f32.gmra.mrb[0].mxu0 %v2764
    %v2853 = vpop.f32.mrb[0].mxu0
    %v2854 = vadd.f32 0.0, %v2853
    %v2855 = vpop.f32.mrb[0].mxu0
    %2856 = vmatprep.mubr.f32.mxu0 0.0
    %2857 = vmatmul.mubr.f32.gmra.mrb[0].mxu0 %v2767
    %v2858 = vpop.f32.mrb[0].mxu0
    %v2859 = vadd.f32 0.0, %v2858
    %v2860 = vpop.f32.mrb[0].mxu0
    %2861 = vmatprep.mubr.f32.mxu0 0.0
    %2862 = vmatmul.mubr.f32.gmra.mrb[0].mxu0 %v2770
    %v2863 = vpop.f32.mrb[0].mxu0
    %v2864 = vadd.f32 0.0, %v2863
    %v2865 = vpop.f32.mrb[0].mxu0
    %2866 = vdwg.mxu0
    %v2867 = vadd.f32 %v1973, %v2839
    %v2868 = vadd.f32 %v1978, %v2844
    %v2869 = vadd.f32 %v1983, %v2849
    %v2870 = vadd.f32 %v1988, %v2854
    %v2871 = vadd.f32 %v1993, %v2859
    %v2872 = vadd.f32 %v1998, %v2864
    %v2873 = vld [vmem:[%s1 + $0x208] sm:$0xff]
    %v2874 = vld [vmem:[%s1 + $0x210] sm:$0xff]
    %v2875 = vld [vmem:[%s1 + $0x218] sm:$0xff]
    %v2876 = vld [vmem:[%s1 + $0x220] sm:$0xff]
    %v2877 = vld [vmem:[%s1 + $0x270] sm:$0x1]
    %v2878 = vlaneseq
    %v2879 = vshrl.u32 %v2878, 7
    %v2880 = vsub.s32 0, %v2879
    %v2881 = vrot.slane %v2877, %v2880
    %2882 = vmatprep.subr.mxu0 0.0
    %2883 = vmatpush1.msra.mxu0 %v2873
    %2884 = vmatprep.subr.mxu0 0.0
    %2885 = vmatpush1.msra.mxu0 %v2874
    %2886 = vmatprep.subr.mxu0 0.0
    %2887 = vmatpush1.msra.mxu0 %v2875
    %2888 = vmatprep.subr.mxu0 0.0
    %2889 = vmatpush1.msra.mxu0 %v2876
    %2890 = vmatprep.subr.mxu0 0.0
    %2891 = vmatpush1.msra.mxu0 0.0
    %2892 = vmatprep.subr.mxu0 0.0
    %2893 = vmatpush1.msra.mxu0 0.0
    %2894 = vmatprep.subr.mxu0 0.0
    %2895 = vmatpush1.msra.mxu0 0.0
    %2896 = vmatprep.subr.mxu0 0.0
    %2897 = vmatpush1.msra.mxu0 0.0
    %2898 = vmatprep.subr.mxu0 0.0
    %2899 = vmatpush1.msra.mxu0 0.0
    %2900 = vmatprep.subr.mxu0 0.0
    %2901 = vmatpush1.msra.mxu0 0.0
    %2902 = vmatprep.subr.mxu0 0.0
    %2903 = vmatpush1.msra.mxu0 0.0
    %2904 = vmatprep.subr.mxu0 0.0
    %2905 = vmatpush1.msra.mxu0 0.0
    %2906 = vmatprep.subr.mxu0 0.0
    %2907 = vmatpush1.msra.mxu0 0.0
    %2908 = vmatprep.subr.mxu0 0.0
    %2909 = vmatpush1.msra.mxu0 0.0
    %2910 = vmatprep.subr.mxu0 0.0
    %2911 = vmatpush1.msra.mxu0 0.0
    %2912 = vmatprep.subr.mxu0 0.0
    %2913 = vmatpush1.msra.mxu0 0.0
    %2914 = vmatprep.subr.mxu0 0.0
    %2915 = vmatpush1.msra.mxu0 0.0
    %2916 = vmatprep.subr.mxu0 0.0
    %2917 = vmatpush1.msra.mxu0 0.0
    %2918 = vmatprep.subr.mxu0 0.0
    %2919 = vmatpush1.msra.mxu0 0.0
    %2920 = vmatprep.subr.mxu0 0.0
    %2921 = vmatpush1.msra.mxu0 0.0
    %2922 = vmatprep.subr.mxu0 0.0
    %2923 = vmatpush1.msra.mxu0 0.0
    %2924 = vmatprep.subr.mxu0 0.0
    %2925 = vmatpush1.msra.mxu0 0.0
    %2926 = vmatprep.subr.mxu0 0.0
    %2927 = vmatpush1.msra.mxu0 0.0
    %2928 = vmatprep.subr.mxu0 0.0
    %2929 = vmatpush1.msra.mxu0 0.0
    %2930 = vmatprep.subr.mxu0 0.0
    %2931 = vmatpush1.msra.mxu0 0.0
    %2932 = vmatprep.subr.mxu0 0.0
    %2933 = vmatpush1.msra.mxu0 0.0
    %2934 = vmatprep.subr.mxu0 0.0
    %2935 = vmatpush1.msra.mxu0 0.0
    %2936 = vmatprep.subr.mxu0 0.0
    %2937 = vmatpush1.msra.mxu0 0.0
    %2938 = vmatprep.subr.mxu0 0.0
    %2939 = vmatpush1.msra.mxu0 0.0
    %2940 = vmatprep.subr.mxu0 0.0
    %2941 = vmatpush1.msra.mxu0 0.0
    %2942 = vmatprep.subr.mxu0 0.0
    %2943 = vmatpush1.msra.mxu0 0.0
    %2944 = vmatprep.subr.mxu0 0.0
    %2945 = vmatpush1.msra.mxu0 0.0
    %2946 = vmatprep.mubr.f32.mxu0 0.0
    %2947 = vmatmul.mubr.f32.gmra.mrb[0].mxu0 %v259
    %v2948 = vpop.f32.mrb[0].mxu0
    %v2949 = vadd.f32 %v2881, %v2948
    %v2950 = vpop.f32.mrb[0].mxu0
    %2951 = vmatprep.mubr.f32.mxu0 0.0
    %2952 = vmatmul.mubr.f32.gmra.mrb[0].mxu0 %v262
    %v2953 = vpop.f32.mrb[0].mxu0
    %v2954 = vadd.f32 %v2881, %v2953
    %v2955 = vpop.f32.mrb[0].mxu0
    %2956 = vmatprep.mubr.f32.mxu0 0.0
    %2957 = vmatmul.mubr.f32.gmra.mrb[0].mxu0 %v265
    %v2958 = vpop.f32.mrb[0].mxu0
    %v2959 = vadd.f32 %v2881, %v2958
    %v2960 = vpop.f32.mrb[0].mxu0
    %2961 = vmatprep.mubr.f32.mxu0 0.0
    %2962 = vmatmul.mubr.f32.gmra.mrb[0].mxu0 %v268
    %v2963 = vpop.f32.mrb[0].mxu0
    %v2964 = vadd.f32 %v2881, %v2963
    %v2965 = vpop.f32.mrb[0].mxu0
    %2966 = vmatprep.mubr.f32.mxu0 0.0
    %2967 = vmatmul.mubr.f32.gmra.mrb[0].mxu0 %v271
    %v2968 = vpop.f32.mrb[0].mxu0
    %v2969 = vadd.f32 %v2881, %v2968
    %v2970 = vpop.f32.mrb[0].mxu0
    %2971 = vmatprep.mubr.f32.mxu0 0.0
    %2972 = vmatmul.mubr.f32.gmra.mrb[0].mxu0 %v274
    %v2973 = vpop.f32.mrb[0].mxu0
    %v2974 = vadd.f32 %v2881, %v2973
    %v2975 = vpop.f32.mrb[0].mxu0
    %2976 = vdwg.mxu0
    %v2977 = vld [vmem:[%s1 + $0x228] sm:$0xff]
    %v2978 = vld [vmem:[%s1 + $0x230] sm:$0xff]
    %v2979 = vld [vmem:[%s1 + $0x238] sm:$0xff]
    %v2980 = vld [vmem:[%s1 + $0x240] sm:$0xff]
    %v2981 = vld [vmem:[%s1 + $0x278] sm:$0x1]
    %v2982 = vlaneseq
    %v2983 = vshrl.u32 %v2982, 7
    %v2984 = vsub.s32 0, %v2983
    %v2985 = vrot.slane %v2981, %v2984
    %2986 = vmatprep.subr.mxu0 0.0
    %2987 = vmatpush1.msra.mxu0 %v2977
    %2988 = vmatprep.subr.mxu0 0.0
    %2989 = vmatpush1.msra.mxu0 %v2978
    %2990 = vmatprep.subr.mxu0 0.0
    %2991 = vmatpush1.msra.mxu0 %v2979
    %2992 = vmatprep.subr.mxu0 0.0
    %2993 = vmatpush1.msra.mxu0 %v2980
    %2994 = vmatprep.subr.mxu0 0.0
    %2995 = vmatpush1.msra.mxu0 0.0
    %2996 = vmatprep.subr.mxu0 0.0
    %2997 = vmatpush1.msra.mxu0 0.0
    %2998 = vmatprep.subr.mxu0 0.0
    %2999 = vmatpush1.msra.mxu0 0.0
    %3000 = vmatprep.subr.mxu0 0.0
    %3001 = vmatpush1.msra.mxu0 0.0
    %3002 = vmatprep.subr.mxu0 0.0
    %3003 = vmatpush1.msra.mxu0 0.0
    %3004 = vmatprep.subr.mxu0 0.0
    %3005 = vmatpush1.msra.mxu0 0.0
    %3006 = vmatprep.subr.mxu0 0.0
    %3007 = vmatpush1.msra.mxu0 0.0
    %3008 = vmatprep.subr.mxu0 0.0
    %3009 = vmatpush1.msra.mxu0 0.0
    %3010 = vmatprep.subr.mxu0 0.0
    %3011 = vmatpush1.msra.mxu0 0.0
    %3012 = vmatprep.subr.mxu0 0.0
    %3013 = vmatpush1.msra.mxu0 0.0
    %3014 = vmatprep.subr.mxu0 0.0
    %3015 = vmatpush1.msra.mxu0 0.0
    %3016 = vmatprep.subr.mxu0 0.0
    %3017 = vmatpush1.msra.mxu0 0.0
    %3018 = vmatprep.subr.mxu0 0.0
    %3019 = vmatpush1.msra.mxu0 0.0
    %3020 = vmatprep.subr.mxu0 0.0
    %3021 = vmatpush1.msra.mxu0 0.0
    %3022 = vmatprep.subr.mxu0 0.0
    %3023 = vmatpush1.msra.mxu0 0.0
    %3024 = vmatprep.subr.mxu0 0.0
    %3025 = vmatpush1.msra.mxu0 0.0
    %3026 = vmatprep.subr.mxu0 0.0
    %3027 = vmatpush1.msra.mxu0 0.0
    %3028 = vmatprep.subr.mxu0 0.0
    %3029 = vmatpush1.msra.mxu0 0.0
    %3030 = vmatprep.subr.mxu0 0.0
    %3031 = vmatpush1.msra.mxu0 0.0
    %3032 = vmatprep.subr.mxu0 0.0
    %3033 = vmatpush1.msra.mxu0 0.0
    %3034 = vmatprep.subr.mxu0 0.0
    %3035 = vmatpush1.msra.mxu0 0.0
    %3036 = vmatprep.subr.mxu0 0.0
    %3037 = vmatpush1.msra.mxu0 0.0
    %3038 = vmatprep.subr.mxu0 0.0
    %3039 = vmatpush1.msra.mxu0 0.0
    %3040 = vmatprep.subr.mxu0 0.0
    %3041 = vmatpush1.msra.mxu0 0.0
    %3042 = vmatprep.subr.mxu0 0.0
    %3043 = vmatpush1.msra.mxu0 0.0
    %3044 = vmatprep.subr.mxu0 0.0
    %3045 = vmatpush1.msra.mxu0 0.0
    %3046 = vmatprep.subr.mxu0 0.0
    %3047 = vmatpush1.msra.mxu0 0.0
    %3048 = vmatprep.subr.mxu0 0.0
    %3049 = vmatpush1.msra.mxu0 0.0
    %3050 = vmatprep.mubr.f32.mxu0 0.0
    %3051 = vmatmul.mubr.f32.gmra.mrb[0].mxu0 %v259
    %v3052 = vpop.f32.mrb[0].mxu0
    %v3053 = vadd.f32 %v2985, %v3052
    %v3054 = vpop.f32.mrb[0].mxu0
    %3055 = vmatprep.mubr.f32.mxu0 0.0
    %3056 = vmatmul.mubr.f32.gmra.mrb[0].mxu0 %v262
    %v3057 = vpop.f32.mrb[0].mxu0
    %v3058 = vadd.f32 %v2985, %v3057
    %v3059 = vpop.f32.mrb[0].mxu0
    %3060 = vmatprep.mubr.f32.mxu0 0.0
    %3061 = vmatmul.mubr.f32.gmra.mrb[0].mxu0 %v265
    %v3062 = vpop.f32.mrb[0].mxu0
    %v3063 = vadd.f32 %v2985, %v3062
    %v3064 = vpop.f32.mrb[0].mxu0
    %3065 = vmatprep.mubr.f32.mxu0 0.0
    %3066 = vmatmul.mubr.f32.gmra.mrb[0].mxu0 %v268
    %v3067 = vpop.f32.mrb[0].mxu0
    %v3068 = vadd.f32 %v2985, %v3067
    %v3069 = vpop.f32.mrb[0].mxu0
    %3070 = vmatprep.mubr.f32.mxu0 0.0
    %3071 = vmatmul.mubr.f32.gmra.mrb[0].mxu0 %v271
    %v3072 = vpop.f32.mrb[0].mxu0
    %v3073 = vadd.f32 %v2985, %v3072
    %v3074 = vpop.f32.mrb[0].mxu0
    %3075 = vmatprep.mubr.f32.mxu0 0.0
    %3076 = vmatmul.mubr.f32.gmra.mrb[0].mxu0 %v274
    %v3077 = vpop.f32.mrb[0].mxu0
    %v3078 = vadd.f32 %v2985, %v3077
    %v3079 = vpop.f32.mrb[0].mxu0
    %3080 = vdwg.mxu0
    %v3081 = vld [vmem:[%s1 + $0x248] sm:$0xff]
    %v3082 = vld [vmem:[%s1 + $0x250] sm:$0xff]
    %v3083 = vld [vmem:[%s1 + $0x258] sm:$0xff]
    %v3084 = vld [vmem:[%s1 + $0x260] sm:$0xff]
    %v3085 = vld [vmem:[%s1 + $0x280] sm:$0x1]
    %v3086 = vlaneseq
    %v3087 = vshrl.u32 %v3086, 7
    %v3088 = vsub.s32 0, %v3087
    %v3089 = vrot.slane %v3085, %v3088
    %3090 = vmatprep.subr.mxu0 0.0
    %3091 = vmatpush1.msra.mxu0 %v3081
    %3092 = vmatprep.subr.mxu0 0.0
    %3093 = vmatpush1.msra.mxu0 %v3082
    %3094 = vmatprep.subr.mxu0 0.0
    %3095 = vmatpush1.msra.mxu0 %v3083
    %3096 = vmatprep.subr.mxu0 0.0
    %3097 = vmatpush1.msra.mxu0 %v3084
    %3098 = vmatprep.subr.mxu0 0.0
    %3099 = vmatpush1.msra.mxu0 0.0
    %3100 = vmatprep.subr.mxu0 0.0
    %3101 = vmatpush1.msra.mxu0 0.0
    %3102 = vmatprep.subr.mxu0 0.0
    %3103 = vmatpush1.msra.mxu0 0.0
    %3104 = vmatprep.subr.mxu0 0.0
    %3105 = vmatpush1.msra.mxu0 0.0
    %3106 = vmatprep.subr.mxu0 0.0
    %3107 = vmatpush1.msra.mxu0 0.0
    %3108 = vmatprep.subr.mxu0 0.0
    %3109 = vmatpush1.msra.mxu0 0.0
    %3110 = vmatprep.subr.mxu0 0.0
    %3111 = vmatpush1.msra.mxu0 0.0
    %3112 = vmatprep.subr.mxu0 0.0
    %3113 = vmatpush1.msra.mxu0 0.0
    %3114 = vmatprep.subr.mxu0 0.0
    %3115 = vmatpush1.msra.mxu0 0.0
    %3116 = vmatprep.subr.mxu0 0.0
    %3117 = vmatpush1.msra.mxu0 0.0
    %3118 = vmatprep.subr.mxu0 0.0
    %3119 = vmatpush1.msra.mxu0 0.0
    %3120 = vmatprep.subr.mxu0 0.0
    %3121 = vmatpush1.msra.mxu0 0.0
    %3122 = vmatprep.subr.mxu0 0.0
    %3123 = vmatpush1.msra.mxu0 0.0
    %3124 = vmatprep.subr.mxu0 0.0
    %3125 = vmatpush1.msra.mxu0 0.0
    %3126 = vmatprep.subr.mxu0 0.0
    %3127 = vmatpush1.msra.mxu0 0.0
    %3128 = vmatprep.subr.mxu0 0.0
    %3129 = vmatpush1.msra.mxu0 0.0
    %3130 = vmatprep.subr.mxu0 0.0
    %3131 = vmatpush1.msra.mxu0 0.0
    %3132 = vmatprep.subr.mxu0 0.0
    %3133 = vmatpush1.msra.mxu0 0.0
    %3134 = vmatprep.subr.mxu0 0.0
    %3135 = vmatpush1.msra.mxu0 0.0
    %3136 = vmatprep.subr.mxu0 0.0
    %3137 = vmatpush1.msra.mxu0 0.0
    %3138 = vmatprep.subr.mxu0 0.0
    %3139 = vmatpush1.msra.mxu0 0.0
    %3140 = vmatprep.subr.mxu0 0.0
    %3141 = vmatpush1.msra.mxu0 0.0
    %3142 = vmatprep.subr.mxu0 0.0
    %3143 = vmatpush1.msra.mxu0 0.0
    %3144 = vmatprep.subr.mxu0 0.0
    %3145 = vmatpush1.msra.mxu0 0.0
    %3146 = vmatprep.subr.mxu0 0.0
    %3147 = vmatpush1.msra.mxu0 0.0
    %3148 = vmatprep.subr.mxu0 0.0
    %3149 = vmatpush1.msra.mxu0 0.0
    %3150 = vmatprep.subr.mxu0 0.0
    %3151 = vmatpush1.msra.mxu0 0.0
    %3152 = vmatprep.subr.mxu0 0.0
    %3153 = vmatpush1.msra.mxu0 0.0
    %3154 = vmatprep.mubr.f32.mxu0 0.0
    %3155 = vmatmul.mubr.f32.gmra.mrb[0].mxu0 %v259
    %v3156 = vpop.f32.mrb[0].mxu0
    %v3157 = vadd.f32 %v3089, %v3156
    %v3158 = vpop.f32.mrb[0].mxu0
    %3159 = vmatprep.mubr.f32.mxu0 0.0
    %3160 = vmatmul.mubr.f32.gmra.mrb[0].mxu0 %v262
    %v3161 = vpop.f32.mrb[0].mxu0
    %v3162 = vadd.f32 %v3089, %v3161
    %v3163 = vpop.f32.mrb[0].mxu0
    %3164 = vmatprep.mubr.f32.mxu0 0.0
    %3165 = vmatmul.mubr.f32.gmra.mrb[0].mxu0 %v265
    %v3166 = vpop.f32.mrb[0].mxu0
    %v3167 = vadd.f32 %v3089, %v3166
    %v3168 = vpop.f32.mrb[0].mxu0
    %3169 = vmatprep.mubr.f32.mxu0 0.0
    %3170 = vmatmul.mubr.f32.gmra.mrb[0].mxu0 %v268
    %v3171 = vpop.f32.mrb[0].mxu0
    %v3172 = vadd.f32 %v3089, %v3171
    %v3173 = vpop.f32.mrb[0].mxu0
    %3174 = vmatprep.mubr.f32.mxu0 0.0
    %3175 = vmatmul.mubr.f32.gmra.mrb[0].mxu0 %v271
    %v3176 = vpop.f32.mrb[0].mxu0
    %v3177 = vadd.f32 %v3089, %v3176
    %v3178 = vpop.f32.mrb[0].mxu0
    %3179 = vmatprep.mubr.f32.mxu0 0.0
    %3180 = vmatmul.mubr.f32.gmra.mrb[0].mxu0 %v274
    %v3181 = vpop.f32.mrb[0].mxu0
    %v3182 = vadd.f32 %v3089, %v3181
    %v3183 = vpop.f32.mrb[0].mxu0
    %3184 = vdwg.mxu0
    %v3186 = vsel %vm579, %v2949, 0
    %v3189 = vsel %vm579, %v2954, 0
    %v3192 = vsel %vm579, %v2959, 0
    %v3195 = vsel %vm579, %v3053, 0
    %v3198 = vsel %vm579, %v3058, 0
    %v3201 = vsel %vm579, %v3063, 0
    %3203 = vmatprep.subr.mxu0 0.0
    %3204 = vmatpush1.xpose.msra.mxu0 %v3195
    %3205 = vmatprep.subr.mxu0 0.0
    %3206 = vmatpush1.xpose.msra.mxu0 %v3198
    %3207 = vmatprep.subr.mxu0 0.0
    %3208 = vmatpush1.xpose.msra.mxu0 %v3201
    %3209 = vmatprep.subr.mxu0 0.0
    %3210 = vmatpush1.xpose.msra.mxu0 0.0
    %3211 = vmatprep.subr.mxu0 0.0
    %3212 = vmatpush1.xpose.msra.mxu0 0.0
    %3213 = vmatprep.subr.mxu0 0.0
    %3214 = vmatpush1.xpose.msra.mxu0 0.0
    %3215 = vmatprep.subr.mxu0 0.0
    %3216 = vmatpush1.xpose.msra.mxu0 0.0
    %3217 = vmatprep.subr.mxu0 0.0
    %3218 = vmatpush1.xpose.msra.mxu0 0.0
    %3219 = vmatprep.subr.mxu0 0.0
    %3220 = vmatpush1.xpose.msra.mxu0 0.0
    %3221 = vmatprep.subr.mxu0 0.0
    %3222 = vmatpush1.xpose.msra.mxu0 0.0
    %3223 = vmatprep.subr.mxu0 0.0
    %3224 = vmatpush1.xpose.msra.mxu0 0.0
    %3225 = vmatprep.subr.mxu0 0.0
    %3226 = vmatpush1.xpose.msra.mxu0 0.0
    %3227 = vmatprep.subr.mxu0 0.0
    %3228 = vmatpush1.xpose.msra.mxu0 0.0
    %3229 = vmatprep.subr.mxu0 0.0
    %3230 = vmatpush1.xpose.msra.mxu0 0.0
    %3231 = vmatprep.subr.mxu0 0.0
    %3232 = vmatpush1.xpose.msra.mxu0 0.0
    %3233 = vmatprep.subr.mxu0 0.0
    %3234 = vmatpush1.xpose.msra.mxu0 0.0
    %3235 = vmatprep.subr.mxu0 0.0
    %3236 = vmatpush1.xpose.msra.mxu0 0.0
    %3237 = vmatprep.subr.mxu0 0.0
    %3238 = vmatpush1.xpose.msra.mxu0 0.0
    %3239 = vmatprep.subr.mxu0 0.0
    %3240 = vmatpush1.xpose.msra.mxu0 0.0
    %3241 = vmatprep.subr.mxu0 0.0
    %3242 = vmatpush1.xpose.msra.mxu0 0.0
    %3243 = vmatprep.subr.mxu0 0.0
    %3244 = vmatpush1.xpose.msra.mxu0 0.0
    %3245 = vmatprep.subr.mxu0 0.0
    %3246 = vmatpush1.xpose.msra.mxu0 0.0
    %3247 = vmatprep.subr.mxu0 0.0
    %3248 = vmatpush1.xpose.msra.mxu0 0.0
    %3249 = vmatprep.subr.mxu0 0.0
    %3250 = vmatpush1.xpose.msra.mxu0 0.0
    %3251 = vmatprep.subr.mxu0 0.0
    %3252 = vmatpush1.xpose.msra.mxu0 0.0
    %3253 = vmatprep.subr.mxu0 0.0
    %3254 = vmatpush1.xpose.msra.mxu0 0.0
    %3255 = vmatprep.subr.mxu0 0.0
    %3256 = vmatpush1.xpose.msra.mxu0 0.0
    %3257 = vmatprep.subr.mxu0 0.0
    %3258 = vmatpush1.xpose.msra.mxu0 0.0
    %3259 = vmatprep.subr.mxu0 0.0
    %3260 = vmatpush1.xpose.msra.mxu0 0.0
    %3261 = vmatprep.subr.mxu0 0.0
    %3262 = vmatpush1.xpose.msra.mxu0 0.0
    %3263 = vmatprep.subr.mxu0 0.0
    %3264 = vmatpush1.xpose.msra.mxu0 0.0
    %3265 = vmatprep.subr.mxu0 0.0
    %3266 = vmatpush1.xpose.msra.mxu0 0.0
    %3267 = vmatprep.mubr.f32.mxu0 0.0
    %3268 = vmatmul.mubr.f32.gmra.mrb[0].mxu0 %v3186
    %v3269 = vpop.f32.mrb[0].mxu0
    %v3270 = vadd.f32 %v144, %v3269
    %v3271 = vpop.f32.mrb[0].mxu0
    %3272 = vmatprep.mubr.f32.mxu0 0.0
    %3273 = vmatmul.mubr.f32.gmra.mrb[0].mxu0 %v3189
    %v3274 = vpop.f32.mrb[0].mxu0
    %v3275 = vadd.f32 %v145, %v3274
    %v3276 = vpop.f32.mrb[0].mxu0
    %3277 = vmatprep.mubr.f32.mxu0 0.0
    %3278 = vmatmul.mubr.f32.gmra.mrb[0].mxu0 %v3192
    %v3279 = vpop.f32.mrb[0].mxu0
    %v3280 = vadd.f32 %v146, %v3279
    %v3281 = vpop.f32.mrb[0].mxu0
    %3282 = vdwg.mxu0
    %v3284 = vsel %vm579, %v2964, 0
    %v3287 = vsel %vm579, %v2969, 0
    %v3290 = vsel %vm579, %v2974, 0
    %v3293 = vsel %vm579, %v3068, 0
    %v3296 = vsel %vm579, %v3073, 0
    %v3299 = vsel %vm579, %v3078, 0
    %3301 = vmatprep.subr.mxu0 0.0
    %3302 = vmatpush1.xpose.msra.mxu0 %v3293
    %3303 = vmatprep.subr.mxu0 0.0
    %3304 = vmatpush1.xpose.msra.mxu0 %v3296
    %3305 = vmatprep.subr.mxu0 0.0
    %3306 = vmatpush1.xpose.msra.mxu0 %v3299
    %3307 = vmatprep.subr.mxu0 0.0
    %3308 = vmatpush1.xpose.msra.mxu0 0.0
    %3309 = vmatprep.subr.mxu0 0.0
    %3310 = vmatpush1.xpose.msra.mxu0 0.0
    %3311 = vmatprep.subr.mxu0 0.0
    %3312 = vmatpush1.xpose.msra.mxu0 0.0
    %3313 = vmatprep.subr.mxu0 0.0
    %3314 = vmatpush1.xpose.msra.mxu0 0.0
    %3315 = vmatprep.subr.mxu0 0.0
    %3316 = vmatpush1.xpose.msra.mxu0 0.0
    %3317 = vmatprep.subr.mxu0 0.0
    %3318 = vmatpush1.xpose.msra.mxu0 0.0
    %3319 = vmatprep.subr.mxu0 0.0
    %3320 = vmatpush1.xpose.msra.mxu0 0.0
    %3321 = vmatprep.subr.mxu0 0.0
    %3322 = vmatpush1.xpose.msra.mxu0 0.0
    %3323 = vmatprep.subr.mxu0 0.0
    %3324 = vmatpush1.xpose.msra.mxu0 0.0
    %3325 = vmatprep.subr.mxu0 0.0
    %3326 = vmatpush1.xpose.msra.mxu0 0.0
    %3327 = vmatprep.subr.mxu0 0.0
    %3328 = vmatpush1.xpose.msra.mxu0 0.0
    %3329 = vmatprep.subr.mxu0 0.0
    %3330 = vmatpush1.xpose.msra.mxu0 0.0
    %3331 = vmatprep.subr.mxu0 0.0
    %3332 = vmatpush1.xpose.msra.mxu0 0.0
    %3333 = vmatprep.subr.mxu0 0.0
    %3334 = vmatpush1.xpose.msra.mxu0 0.0
    %3335 = vmatprep.subr.mxu0 0.0
    %3336 = vmatpush1.xpose.msra.mxu0 0.0
    %3337 = vmatprep.subr.mxu0 0.0
    %3338 = vmatpush1.xpose.msra.mxu0 0.0
    %3339 = vmatprep.subr.mxu0 0.0
    %3340 = vmatpush1.xpose.msra.mxu0 0.0
    %3341 = vmatprep.subr.mxu0 0.0
    %3342 = vmatpush1.xpose.msra.mxu0 0.0
    %3343 = vmatprep.subr.mxu0 0.0
    %3344 = vmatpush1.xpose.msra.mxu0 0.0
    %3345 = vmatprep.subr.mxu0 0.0
    %3346 = vmatpush1.xpose.msra.mxu0 0.0
    %3347 = vmatprep.subr.mxu0 0.0
    %3348 = vmatpush1.xpose.msra.mxu0 0.0
    %3349 = vmatprep.subr.mxu0 0.0
    %3350 = vmatpush1.xpose.msra.mxu0 0.0
    %3351 = vmatprep.subr.mxu0 0.0
    %3352 = vmatpush1.xpose.msra.mxu0 0.0
    %3353 = vmatprep.subr.mxu0 0.0
    %3354 = vmatpush1.xpose.msra.mxu0 0.0
    %3355 = vmatprep.subr.mxu0 0.0
    %3356 = vmatpush1.xpose.msra.mxu0 0.0
    %3357 = vmatprep.subr.mxu0 0.0
    %3358 = vmatpush1.xpose.msra.mxu0 0.0
    %3359 = vmatprep.subr.mxu0 0.0
    %3360 = vmatpush1.xpose.msra.mxu0 0.0
    %3361 = vmatprep.subr.mxu0 0.0
    %3362 = vmatpush1.xpose.msra.mxu0 0.0
    %3363 = vmatprep.subr.mxu0 0.0
    %3364 = vmatpush1.xpose.msra.mxu0 0.0
    %3365 = vmatprep.mubr.f32.mxu0 0.0
    %3366 = vmatmul.mubr.f32.gmra.mrb[0].mxu0 %v3284
    %v3367 = vpop.f32.mrb[0].mxu0
    %v3368 = vadd.f32 %v144, %v3367
    %v3369 = vpop.f32.mrb[0].mxu0
    %3370 = vmatprep.mubr.f32.mxu0 0.0
    %3371 = vmatmul.mubr.f32.gmra.mrb[0].mxu0 %v3287
    %v3372 = vpop.f32.mrb[0].mxu0
    %v3373 = vadd.f32 %v145, %v3372
    %v3374 = vpop.f32.mrb[0].mxu0
    %3375 = vmatprep.mubr.f32.mxu0 0.0
    %3376 = vmatmul.mubr.f32.gmra.mrb[0].mxu0 %v3290
    %v3377 = vpop.f32.mrb[0].mxu0
    %v3378 = vadd.f32 %v146, %v3377
    %v3379 = vpop.f32.mrb[0].mxu0
    %3380 = vdwg.mxu0
    %v3381 = vsel %vm776, %v3270, -inf
    %3382 = vmax.xlane.f32.xlu0 %v3381
    %v3383 = vpop.xlane.xlu0 %3382
    %v3384 = vsel %vm776, %v3275, -inf
    %3385 = vmax.xlane.f32.xlu0 %v3384
    %v3386 = vpop.xlane.xlu0 %3385
    %v3387 = vsel %vm776, %v3280, -inf
    %3388 = vmax.xlane.f32.xlu0 %v3387
    %v3389 = vpop.xlane.xlu0 %3388
    %v3390 = vsel %vm776, %v3368, -inf
    %3391 = vmax.xlane.f32.xlu0 %v3390
    %v3392 = vpop.xlane.xlu0 %3391
    %v3393 = vsel %vm776, %v3373, -inf
    %3394 = vmax.xlane.f32.xlu0 %v3393
    %v3395 = vpop.xlane.xlu0 %3394
    %v3396 = vsel %vm776, %v3378, -inf
    %3397 = vmax.xlane.f32.xlu0 %v3396
    %v3398 = vpop.xlane.xlu0 %3397
    %v3399 = vsub.f32 %v3270, %v3383
    %v3400 = vsub.f32 %v3275, %v3386
    %v3401 = vsub.f32 %v3280, %v3389
    %v3402 = vsub.f32 %v3368, %v3392
    %v3403 = vsub.f32 %v3373, %v3395
    %v3404 = vsub.f32 %v3378, %v3398
    %v3405 = vmul.f32 %v3399, 1.442695
    %v3406 = vpow.pop %v3405
    %v3407 = vmul.f32 %v3400, 1.442695
    %v3408 = vpow.pop %v3407
    %v3409 = vmul.f32 %v3401, 1.442695
    %v3410 = vpow.pop %v3409
    %v3411 = vmul.f32 %v3402, 1.442695
    %v3412 = vpow.pop %v3411
    %v3413 = vmul.f32 %v3403, 1.442695
    %v3414 = vpow.pop %v3413
    %v3415 = vmul.f32 %v3404, 1.442695
    %v3416 = vpow.pop %v3415
    %v3417 = vsel %vm776, %v3406, 0.0
    %3418 = vadd.xlane.f32.xlu0 %v3417
    %v3419 = vpop.xlane.xlu0 %3418
    %v3420 = vsel %vm776, %v3408, 0.0
    %3421 = vadd.xlane.f32.xlu0 %v3420
    %v3422 = vpop.xlane.xlu0 %3421
    %v3423 = vsel %vm776, %v3410, 0.0
    %3424 = vadd.xlane.f32.xlu0 %v3423
    %v3425 = vpop.xlane.xlu0 %3424
    %v3426 = vsel %vm776, %v3412, 0.0
    %3427 = vadd.xlane.f32.xlu0 %v3426
    %v3428 = vpop.xlane.xlu0 %3427
    %v3429 = vsel %vm776, %v3414, 0.0
    %3430 = vadd.xlane.f32.xlu0 %v3429
    %v3431 = vpop.xlane.xlu0 %3430
    %v3432 = vsel %vm776, %v3416, 0.0
    %3433 = vadd.xlane.f32.xlu0 %v3432
    %v3434 = vpop.xlane.xlu0 %3433
    %v3435 = vrcp.pop %v3419
    %v3436 = vrcp.pop %v3422
    %v3437 = vrcp.pop %v3425
    %v3438 = vrcp.pop %v3428
    %v3439 = vrcp.pop %v3431
    %v3440 = vrcp.pop %v3434
    %v3441 = vmul.f32 %v3406, %v3435
    %v3442 = vmul.f32 %v3408, %v3436
    %v3443 = vmul.f32 %v3410, %v3437
    %v3444 = vmul.f32 %v3412, %v3438
    %v3445 = vmul.f32 %v3414, %v3439
    %v3446 = vmul.f32 %v3416, %v3440
    %v3448 = vsel %vm776, %v3441, 0
    %v3451 = vsel %vm776, %v3442, 0
    %v3454 = vsel %vm776, %v3443, 0
    %3456 = vmatprep.subr.mxu0 0.0
    %3457 = vmatpush1.msra.mxu0 %v3157
    %3458 = vmatprep.subr.mxu0 0.0
    %3459 = vmatpush1.msra.mxu0 %v3162
    %3460 = vmatprep.subr.mxu0 0.0
    %3461 = vmatpush1.msra.mxu0 %v3167
    %3462 = vmatprep.subr.mxu0 0.0
    %3463 = vmatpush1.msra.mxu0 0.0
    %3464 = vmatprep.subr.mxu0 0.0
    %3465 = vmatpush1.msra.mxu0 0.0
    %3466 = vmatprep.subr.mxu0 0.0
    %3467 = vmatpush1.msra.mxu0 0.0
    %3468 = vmatprep.subr.mxu0 0.0
    %3469 = vmatpush1.msra.mxu0 0.0
    %3470 = vmatprep.subr.mxu0 0.0
    %3471 = vmatpush1.msra.mxu0 0.0
    %3472 = vmatprep.subr.mxu0 0.0
    %3473 = vmatpush1.msra.mxu0 0.0
    %3474 = vmatprep.subr.mxu0 0.0
    %3475 = vmatpush1.msra.mxu0 0.0
    %3476 = vmatprep.subr.mxu0 0.0
    %3477 = vmatpush1.msra.mxu0 0.0
    %3478 = vmatprep.subr.mxu0 0.0
    %3479 = vmatpush1.msra.mxu0 0.0
    %3480 = vmatprep.subr.mxu0 0.0
    %3481 = vmatpush1.msra.mxu0 0.0
    %3482 = vmatprep.subr.mxu0 0.0
    %3483 = vmatpush1.msra.mxu0 0.0
    %3484 = vmatprep.subr.mxu0 0.0
    %3485 = vmatpush1.msra.mxu0 0.0
    %3486 = vmatprep.subr.mxu0 0.0
    %3487 = vmatpush1.msra.mxu0 0.0
    %3488 = vmatprep.subr.mxu0 0.0
    %3489 = vmatpush1.msra.mxu0 0.0
    %3490 = vmatprep.subr.mxu0 0.0
    %3491 = vmatpush1.msra.mxu0 0.0
    %3492 = vmatprep.subr.mxu0 0.0
    %3493 = vmatpush1.msra.mxu0 0.0
    %3494 = vmatprep.subr.mxu0 0.0
    %3495 = vmatpush1.msra.mxu0 0.0
    %3496 = vmatprep.subr.mxu0 0.0
    %3497 = vmatpush1.msra.mxu0 0.0
    %3498 = vmatprep.subr.mxu0 0.0
    %3499 = vmatpush1.msra.mxu0 0.0
    %3500 = vmatprep.subr.mxu0 0.0
    %3501 = vmatpush1.msra.mxu0 0.0
    %3502 = vmatprep.subr.mxu0 0.0
    %3503 = vmatpush1.msra.mxu0 0.0
    %3504 = vmatprep.subr.mxu0 0.0
    %3505 = vmatpush1.msra.mxu0 0.0
    %3506 = vmatprep.subr.mxu0 0.0
    %3507 = vmatpush1.msra.mxu0 0.0
    %3508 = vmatprep.subr.mxu0 0.0
    %3509 = vmatpush1.msra.mxu0 0.0
    %3510 = vmatprep.subr.mxu0 0.0
    %3511 = vmatpush1.msra.mxu0 0.0
    %3512 = vmatprep.subr.mxu0 0.0
    %3513 = vmatpush1.msra.mxu0 0.0
    %3514 = vmatprep.subr.mxu0 0.0
    %3515 = vmatpush1.msra.mxu0 0.0
    %3516 = vmatprep.subr.mxu0 0.0
    %3517 = vmatpush1.msra.mxu0 0.0
    %3518 = vmatprep.subr.mxu0 0.0
    %3519 = vmatpush1.msra.mxu0 0.0
    %3520 = vmatprep.mubr.f32.mxu0 0.0
    %3521 = vmatmul.mubr.f32.gmra.mrb[0].mxu0 %v3448
    %v3522 = vpop.f32.mrb[0].mxu0
    %v3523 = vadd.f32 0.0, %v3522
    %v3524 = vpop.f32.mrb[0].mxu0
    %3525 = vmatprep.mubr.f32.mxu0 0.0
    %3526 = vmatmul.mubr.f32.gmra.mrb[0].mxu0 %v3451
    %v3527 = vpop.f32.mrb[0].mxu0
    %v3528 = vadd.f32 0.0, %v3527
    %v3529 = vpop.f32.mrb[0].mxu0
    %3530 = vmatprep.mubr.f32.mxu0 0.0
    %3531 = vmatmul.mubr.f32.gmra.mrb[0].mxu0 %v3454
    %v3532 = vpop.f32.mrb[0].mxu0
    %v3533 = vadd.f32 0.0, %v3532
    %v3534 = vpop.f32.mrb[0].mxu0
    %3535 = vdwg.mxu0
    %v3537 = vsel %vm776, %v3444, 0
    %v3540 = vsel %vm776, %v3445, 0
    %v3543 = vsel %vm776, %v3446, 0
    %3545 = vmatprep.subr.mxu0 0.0
    %3546 = vmatpush1.msra.mxu0 %v3172
    %3547 = vmatprep.subr.mxu0 0.0
    %3548 = vmatpush1.msra.mxu0 %v3177
    %3549 = vmatprep.subr.mxu0 0.0
    %3550 = vmatpush1.msra.mxu0 %v3182
    %3551 = vmatprep.subr.mxu0 0.0
    %3552 = vmatpush1.msra.mxu0 0.0
    %3553 = vmatprep.subr.mxu0 0.0
    %3554 = vmatpush1.msra.mxu0 0.0
    %3555 = vmatprep.subr.mxu0 0.0
    %3556 = vmatpush1.msra.mxu0 0.0
    %3557 = vmatprep.subr.mxu0 0.0
    %3558 = vmatpush1.msra.mxu0 0.0
    %3559 = vmatprep.subr.mxu0 0.0
    %3560 = vmatpush1.msra.mxu0 0.0
    %3561 = vmatprep.subr.mxu0 0.0
    %3562 = vmatpush1.msra.mxu0 0.0
    %3563 = vmatprep.subr.mxu0 0.0
    %3564 = vmatpush1.msra.mxu0 0.0
    %3565 = vmatprep.subr.mxu0 0.0
    %3566 = vmatpush1.msra.mxu0 0.0
    %3567 = vmatprep.subr.mxu0 0.0
    %3568 = vmatpush1.msra.mxu0 0.0
    %3569 = vmatprep.subr.mxu0 0.0
    %3570 = vmatpush1.msra.mxu0 0.0
    %3571 = vmatprep.subr.mxu0 0.0
    %3572 = vmatpush1.msra.mxu0 0.0
    %3573 = vmatprep.subr.mxu0 0.0
    %3574 = vmatpush1.msra.mxu0 0.0
    %3575 = vmatprep.subr.mxu0 0.0
    %3576 = vmatpush1.msra.mxu0 0.0
    %3577 = vmatprep.subr.mxu0 0.0
    %3578 = vmatpush1.msra.mxu0 0.0
    %3579 = vmatprep.subr.mxu0 0.0
    %3580 = vmatpush1.msra.mxu0 0.0
    %3581 = vmatprep.subr.mxu0 0.0
    %3582 = vmatpush1.msra.mxu0 0.0
    %3583 = vmatprep.subr.mxu0 0.0
    %3584 = vmatpush1.msra.mxu0 0.0
    %3585 = vmatprep.subr.mxu0 0.0
    %3586 = vmatpush1.msra.mxu0 0.0
    %3587 = vmatprep.subr.mxu0 0.0
    %3588 = vmatpush1.msra.mxu0 0.0
    %3589 = vmatprep.subr.mxu0 0.0
    %3590 = vmatpush1.msra.mxu0 0.0
    %3591 = vmatprep.subr.mxu0 0.0
    %3592 = vmatpush1.msra.mxu0 0.0
    %3593 = vmatprep.subr.mxu0 0.0
    %3594 = vmatpush1.msra.mxu0 0.0
    %3595 = vmatprep.subr.mxu0 0.0
    %3596 = vmatpush1.msra.mxu0 0.0
    %3597 = vmatprep.subr.mxu0 0.0
    %3598 = vmatpush1.msra.mxu0 0.0
    %3599 = vmatprep.subr.mxu0 0.0
    %3600 = vmatpush1.msra.mxu0 0.0
    %3601 = vmatprep.subr.mxu0 0.0
    %3602 = vmatpush1.msra.mxu0 0.0
    %3603 = vmatprep.subr.mxu0 0.0
    %3604 = vmatpush1.msra.mxu0 0.0
    %3605 = vmatprep.subr.mxu0 0.0
    %3606 = vmatpush1.msra.mxu0 0.0
    %3607 = vmatprep.subr.mxu0 0.0
    %3608 = vmatpush1.msra.mxu0 0.0
    %3609 = vmatprep.mubr.f32.mxu0 0.0
    %3610 = vmatmul.mubr.f32.gmra.mrb[0].mxu0 %v3537
    %v3611 = vpop.f32.mrb[0].mxu0
    %v3612 = vadd.f32 0.0, %v3611
    %v3613 = vpop.f32.mrb[0].mxu0
    %3614 = vmatprep.mubr.f32.mxu0 0.0
    %3615 = vmatmul.mubr.f32.gmra.mrb[0].mxu0 %v3540
    %v3616 = vpop.f32.mrb[0].mxu0
    %v3617 = vadd.f32 0.0, %v3616
    %v3618 = vpop.f32.mrb[0].mxu0
    %3619 = vmatprep.mubr.f32.mxu0 0.0
    %3620 = vmatmul.mubr.f32.gmra.mrb[0].mxu0 %v3543
    %v3621 = vpop.f32.mrb[0].mxu0
    %v3622 = vadd.f32 0.0, %v3621
    %v3623 = vpop.f32.mrb[0].mxu0
    %3624 = vdwg.mxu0
    %v3625 = vld [vmem:[%s1 + $0x268] sm:$0xff]
    %v3627 = vsel %vm579, %v3523, 0
    %v3630 = vsel %vm579, %v3528, 0
    %v3633 = vsel %vm579, %v3533, 0
    %v3636 = vsel %vm579, %v3612, 0
    %v3639 = vsel %vm579, %v3617, 0
    %v3642 = vsel %vm579, %v3622, 0
    %3644 = vmatprep.subr.mxu0 0.0
    %3645 = vmatpush1.msra.mxu0 %v3625
    %3646 = vmatprep.subr.mxu0 0.0
    %3647 = vmatpush1.msra.mxu0 0.0
    %3648 = vmatprep.subr.mxu0 0.0
    %3649 = vmatpush1.msra.mxu0 0.0
    %3650 = vmatprep.subr.mxu0 0.0
    %3651 = vmatpush1.msra.mxu0 0.0
    %3652 = vmatprep.subr.mxu0 0.0
    %3653 = vmatpush1.msra.mxu0 0.0
    %3654 = vmatprep.subr.mxu0 0.0
    %3655 = vmatpush1.msra.mxu0 0.0
    %3656 = vmatprep.subr.mxu0 0.0
    %3657 = vmatpush1.msra.mxu0 0.0
    %3658 = vmatprep.subr.mxu0 0.0
    %3659 = vmatpush1.msra.mxu0 0.0
    %3660 = vmatprep.subr.mxu0 0.0
    %3661 = vmatpush1.msra.mxu0 0.0
    %3662 = vmatprep.subr.mxu0 0.0
    %3663 = vmatpush1.msra.mxu0 0.0
    %3664 = vmatprep.subr.mxu0 0.0
    %3665 = vmatpush1.msra.mxu0 0.0
    %3666 = vmatprep.subr.mxu0 0.0
    %3667 = vmatpush1.msra.mxu0 0.0
    %3668 = vmatprep.subr.mxu0 0.0
    %3669 = vmatpush1.msra.mxu0 0.0
    %3670 = vmatprep.subr.mxu0 0.0
    %3671 = vmatpush1.msra.mxu0 0.0
    %3672 = vmatprep.subr.mxu0 0.0
    %3673 = vmatpush1.msra.mxu0 0.0
    %3674 = vmatprep.subr.mxu0 0.0
    %3675 = vmatpush1.msra.mxu0 0.0
    %3676 = vmatprep.subr.mxu0 0.0
    %3677 = vmatpush1.msra.mxu0 0.0
    %3678 = vmatprep.subr.mxu0 0.0
    %3679 = vmatpush1.msra.mxu0 0.0
    %3680 = vmatprep.subr.mxu0 0.0
    %3681 = vmatpush1.msra.mxu0 0.0
    %3682 = vmatprep.subr.mxu0 0.0
    %3683 = vmatpush1.msra.mxu0 0.0
    %3684 = vmatprep.subr.mxu0 0.0
    %3685 = vmatpush1.msra.mxu0 0.0
    %3686 = vmatprep.subr.mxu0 0.0
    %3687 = vmatpush1.msra.mxu0 0.0
    %3688 = vmatprep.subr.mxu0 0.0
    %3689 = vmatpush1.msra.mxu0 0.0
    %3690 = vmatprep.subr.mxu0 0.0
    %3691 = vmatpush1.msra.mxu0 0.0
    %3692 = vmatprep.subr.mxu0 0.0
    %3693 = vmatpush1.msra.mxu0 0.0
    %3694 = vmatprep.subr.mxu0 0.0
    %3695 = vmatpush1.msra.mxu0 0.0
    %3696 = vmatprep.subr.mxu0 0.0
    %3697 = vmatpush1.msra.mxu0 0.0
    %3698 = vmatprep.subr.mxu0 0.0
    %3699 = vmatpush1.msra.mxu0 0.0
    %3700 = vmatprep.subr.mxu0 0.0
    %3701 = vmatpush1.msra.mxu0 0.0
    %3702 = vmatprep.subr.mxu0 0.0
    %3703 = vmatpush1.msra.mxu0 0.0
    %3704 = vmatprep.subr.mxu0 0.0
    %3705 = vmatpush1.msra.mxu0 0.0
    %3706 = vmatprep.subr.mxu0 0.0
    %3707 = vmatpush1.msra.mxu0 0.0
    %3708 = vmatprep.mubr.f32.mxu0 0.0
    %3709 = vmatmul.mubr.f32.gmra.mrb[0].mxu0 %v3627
    %v3710 = vpop.f32.mrb[0].mxu0
    %v3711 = vadd.f32 0.0, %v3710
    %v3712 = vpop.f32.mrb[0].mxu0
    %3713 = vmatprep.mubr.f32.mxu0 0.0
    %3714 = vmatmul.mubr.f32.gmra.mrb[0].mxu0 %v3630
    %v3715 = vpop.f32.mrb[0].mxu0
    %v3716 = vadd.f32 0.0, %v3715
    %v3717 = vpop.f32.mrb[0].mxu0
    %3718 = vmatprep.mubr.f32.mxu0 0.0
    %3719 = vmatmul.mubr.f32.gmra.mrb[0].mxu0 %v3633
    %v3720 = vpop.f32.mrb[0].mxu0
    %v3721 = vadd.f32 0.0, %v3720
    %v3722 = vpop.f32.mrb[0].mxu0
    %3723 = vmatprep.mubr.f32.mxu0 0.0
    %3724 = vmatmul.mubr.f32.gmra.mrb[0].mxu0 %v3636
    %v3725 = vpop.f32.mrb[0].mxu0
    %v3726 = vadd.f32 0.0, %v3725
    %v3727 = vpop.f32.mrb[0].mxu0
    %3728 = vmatprep.mubr.f32.mxu0 0.0
    %3729 = vmatmul.mubr.f32.gmra.mrb[0].mxu0 %v3639
    %v3730 = vpop.f32.mrb[0].mxu0
    %v3731 = vadd.f32 0.0, %v3730
    %v3732 = vpop.f32.mrb[0].mxu0
    %3733 = vmatprep.mubr.f32.mxu0 0.0
    %3734 = vmatmul.mubr.f32.gmra.mrb[0].mxu0 %v3642
    %v3735 = vpop.f32.mrb[0].mxu0
    %v3736 = vadd.f32 0.0, %v3735
    %v3737 = vpop.f32.mrb[0].mxu0
    %3738 = vdwg.mxu0
    %v3739 = vadd.f32 %v2867, %v3711
    %v3740 = vadd.f32 %v2868, %v3716
    %v3741 = vadd.f32 %v2869, %v3721
    %v3742 = vadd.f32 %v2870, %v3726
    %v3743 = vadd.f32 %v2871, %v3731
    %v3744 = vadd.f32 %v2872, %v3736
    %v3745 = vadd.f32 %v116, %v3739
    %v3746 = vadd.f32 %v121, %v3740
    %v3747 = vadd.f32 %v126, %v3741
    %v3748 = vadd.f32 %v131, %v3742
    %v3749 = vadd.f32 %v136, %v3743
    %v3750 = vadd.f32 %v141, %v3744
    %v3751 = vld [vmem:[%s1 + $0x288] sm:$0x1]
    %v3752 = vlaneseq
    %v3753 = vshrl.u32 %v3752, 7
    %v3754 = vsub.s32 0, %v3753
    %v3755 = vrot.slane %v3751, %v3754
    %v3756 = vadd.f32 %v3745, %v3755
    %v3757 = vadd.f32 %v3746, %v3755
    %v3758 = vadd.f32 %v3747, %v3755
    %v3759 = vadd.f32 %v3748, %v3755
    %v3760 = vadd.f32 %v3749, %v3755
    %v3761 = vadd.f32 %v3750, %v3755
    %v3762 = vld [vmem:[%s1 + $0x290] sm:$0x1]
    %v3763 = vld [vmem:[%s1 + $0x298] sm:$0x1]
    %v3764 = vsel %vm149, %v3756, 0.0
    %3765 = vadd.xlane.f32.xlu0 %v3764
    %v3766 = vpop.xlane.xlu0 %3765
    %v3767 = vsel %vm149, %v3757, 0.0
    %3768 = vadd.xlane.f32.xlu0 %v3767
    %v3769 = vpop.xlane.xlu0 %3768
    %v3770 = vsel %vm149, %v3758, 0.0
    %3771 = vadd.xlane.f32.xlu0 %v3770
    %v3772 = vpop.xlane.xlu0 %3771
    %v3773 = vsel %vm149, %v3759, 0.0
    %3774 = vadd.xlane.f32.xlu0 %v3773
    %v3775 = vpop.xlane.xlu0 %3774
    %v3776 = vsel %vm149, %v3760, 0.0
    %3777 = vadd.xlane.f32.xlu0 %v3776
    %v3778 = vpop.xlane.xlu0 %3777
    %v3779 = vsel %vm149, %v3761, 0.0
    %3780 = vadd.xlane.f32.xlu0 %v3779
    %v3781 = vpop.xlane.xlu0 %3780
    %v3782 = vmul.f32 %v3766, %v168
    %v3783 = vmul.f32 %v3769, %v168
    %v3784 = vmul.f32 %v3772, %v168
    %v3785 = vmul.f32 %v3775, %v168
    %v3786 = vmul.f32 %v3778, %v168
    %v3787 = vmul.f32 %v3781, %v168
    %v3788 = vsub.f32 %v3756, %v3782
    %v3789 = vsub.f32 %v3757, %v3783
    %v3790 = vsub.f32 %v3758, %v3784
    %v3791 = vsub.f32 %v3759, %v3785
    %v3792 = vsub.f32 %v3760, %v3786
    %v3793 = vsub.f32 %v3761, %v3787
    %v3794 = vmul.f32 %v3788, %v3788
    %v3795 = vmul.f32 %v3789, %v3789
    %v3796 = vmul.f32 %v3790, %v3790
    %v3797 = vmul.f32 %v3791, %v3791
    %v3798 = vmul.f32 %v3792, %v3792
    %v3799 = vmul.f32 %v3793, %v3793
    %v3800 = vsel %vm149, %v3794, 0.0
    %3801 = vadd.xlane.f32.xlu0 %v3800
    %v3802 = vpop.xlane.xlu0 %3801
    %v3803 = vsel %vm149, %v3795, 0.0
    %3804 = vadd.xlane.f32.xlu0 %v3803
    %v3805 = vpop.xlane.xlu0 %3804
    %v3806 = vsel %vm149, %v3796, 0.0
    %3807 = vadd.xlane.f32.xlu0 %v3806
    %v3808 = vpop.xlane.xlu0 %3807
    %v3809 = vsel %vm149, %v3797, 0.0
    %3810 = vadd.xlane.f32.xlu0 %v3809
    %v3811 = vpop.xlane.xlu0 %3810
    %v3812 = vsel %vm149, %v3798, 0.0
    %3813 = vadd.xlane.f32.xlu0 %v3812
    %v3814 = vpop.xlane.xlu0 %3813
    %v3815 = vsel %vm149, %v3799, 0.0
    %3816 = vadd.xlane.f32.xlu0 %v3815
    %v3817 = vpop.xlane.xlu0 %3816
    %v3818 = vmul.f32 %v3802, %v168
    %v3819 = vmul.f32 %v3805, %v168
    %v3820 = vmul.f32 %v3808, %v168
    %v3821 = vmul.f32 %v3811, %v168
    %v3822 = vmul.f32 %v3814, %v168
    %v3823 = vmul.f32 %v3817, %v168
    %v3824 = vadd.f32 %v3818, 1e-06
    %v3825 = vadd.f32 %v3819, 1e-06
    %v3826 = vadd.f32 %v3820, 1e-06
    %v3827 = vadd.f32 %v3821, 1e-06
    %v3828 = vadd.f32 %v3822, 1e-06
    %v3829 = vadd.f32 %v3823, 1e-06
    %v3830 = vrsqrt.pop %v3824
    %v3831 = vrsqrt.pop %v3825
    %v3832 = vrsqrt.pop %v3826
    %v3833 = vrsqrt.pop %v3827
    %v3834 = vrsqrt.pop %v3828
    %v3835 = vrsqrt.pop %v3829
    %v3836 = vmul.f32 %v3788, %v3830
    %v3837 = vmul.f32 %v3789, %v3831
    %v3838 = vmul.f32 %v3790, %v3832
    %v3839 = vmul.f32 %v3791, %v3833
    %v3840 = vmul.f32 %v3792, %v3834
    %v3841 = vmul.f32 %v3793, %v3835
    %v3842 = vlaneseq
    %v3843 = vshrl.u32 %v3842, 7
    %v3844 = vsub.s32 0, %v3843
    %v3845 = vrot.slane %v3762, %v3844
    %v3846 = vmul.f32 %v3836, %v3845
    %v3847 = vmul.f32 %v3837, %v3845
    %v3848 = vmul.f32 %v3838, %v3845
    %v3849 = vmul.f32 %v3839, %v3845
    %v3850 = vmul.f32 %v3840, %v3845
    %v3851 = vmul.f32 %v3841, %v3845
    %v3852 = vlaneseq
    %v3853 = vshrl.u32 %v3852, 7
    %v3854 = vsub.s32 0, %v3853
    %v3855 = vrot.slane %v3763, %v3854
    %v3856 = vadd.f32 %v3846, %v3855
    %v3857 = vadd.f32 %v3847, %v3855
    %v3858 = vadd.f32 %v3848, %v3855
    %v3859 = vadd.f32 %v3849, %v3855
    %v3860 = vadd.f32 %v3850, %v3855
    %v3861 = vadd.f32 %v3851, %v3855
    %v3862 = vld [vmem:[%s1 + $0x2a0] sm:$0xff]
    %v3863 = vld [vmem:[%s1 + $0x2a8] sm:$0xff]
    %v3864 = vld [vmem:[%s1 + $0x2b0] sm:$0xff]
    %v3865 = vld [vmem:[%s1 + $0x2b8] sm:$0xff]
    %v3866 = vld [vmem:[%s1 + $0x2c0] sm:$0x1]
    %v3867 = vlaneseq
    %v3868 = vshrl.u32 %v3867, 7
    %v3869 = vsub.s32 0, %v3868
    %v3870 = vrot.slane %v3866, %v3869
    %v3872 = vsel %vm149, %v3856, 0
    %v3875 = vsel %vm149, %v3857, 0
    %v3878 = vsel %vm149, %v3858, 0
    %v3881 = vsel %vm149, %v3859, 0
    %v3884 = vsel %vm149, %v3860, 0
    %v3887 = vsel %vm149, %v3861, 0
    %3889 = vmatprep.subr.mxu0 0.0
    %3890 = vmatpush1.msra.mxu0 %v3862
    %3891 = vmatprep.subr.mxu0 0.0
    %3892 = vmatpush1.msra.mxu0 %v3863
    %3893 = vmatprep.subr.mxu0 0.0
    %3894 = vmatpush1.msra.mxu0 %v3864
    %3895 = vmatprep.subr.mxu0 0.0
    %3896 = vmatpush1.msra.mxu0 %v3865
    %3897 = vmatprep.subr.mxu0 0.0
    %3898 = vmatpush1.msra.mxu0 0.0
    %3899 = vmatprep.subr.mxu0 0.0
    %3900 = vmatpush1.msra.mxu0 0.0
    %3901 = vmatprep.subr.mxu0 0.0
    %3902 = vmatpush1.msra.mxu0 0.0
    %3903 = vmatprep.subr.mxu0 0.0
    %3904 = vmatpush1.msra.mxu0 0.0
    %3905 = vmatprep.subr.mxu0 0.0
    %3906 = vmatpush1.msra.mxu0 0.0
    %3907 = vmatprep.subr.mxu0 0.0
    %3908 = vmatpush1.msra.mxu0 0.0
    %3909 = vmatprep.subr.mxu0 0.0
    %3910 = vmatpush1.msra.mxu0 0.0
    %3911 = vmatprep.subr.mxu0 0.0
    %3912 = vmatpush1.msra.mxu0 0.0
    %3913 = vmatprep.subr.mxu0 0.0
    %3914 = vmatpush1.msra.mxu0 0.0
    %3915 = vmatprep.subr.mxu0 0.0
    %3916 = vmatpush1.msra.mxu0 0.0
    %3917 = vmatprep.subr.mxu0 0.0
    %3918 = vmatpush1.msra.mxu0 0.0
    %3919 = vmatprep.subr.mxu0 0.0
    %3920 = vmatpush1.msra.mxu0 0.0
    %3921 = vmatprep.subr.mxu0 0.0
    %3922 = vmatpush1.msra.mxu0 0.0
    %3923 = vmatprep.subr.mxu0 0.0
    %3924 = vmatpush1.msra.mxu0 0.0
    %3925 = vmatprep.subr.mxu0 0.0
    %3926 = vmatpush1.msra.mxu0 0.0
    %3927 = vmatprep.subr.mxu0 0.0
    %3928 = vmatpush1.msra.mxu0 0.0
    %3929 = vmatprep.subr.mxu0 0.0
    %3930 = vmatpush1.msra.mxu0 0.0
    %3931 = vmatprep.subr.mxu0 0.0
    %3932 = vmatpush1.msra.mxu0 0.0
    %3933 = vmatprep.subr.mxu0 0.0
    %3934 = vmatpush1.msra.mxu0 0.0
    %3935 = vmatprep.subr.mxu0 0.0
    %3936 = vmatpush1.msra.mxu0 0.0
    %3937 = vmatprep.subr.mxu0 0.0
    %3938 = vmatpush1.msra.mxu0 0.0
    %3939 = vmatprep.subr.mxu0 0.0
    %3940 = vmatpush1.msra.mxu0 0.0
    %3941 = vmatprep.subr.mxu0 0.0
    %3942 = vmatpush1.msra.mxu0 0.0
    %3943 = vmatprep.subr.mxu0 0.0
    %3944 = vmatpush1.msra.mxu0 0.0
    %3945 = vmatprep.subr.mxu0 0.0
    %3946 = vmatpush1.msra.mxu0 0.0
    %3947 = vmatprep.subr.mxu0 0.0
    %3948 = vmatpush1.msra.mxu0 0.0
    %3949 = vmatprep.subr.mxu0 0.0
    %3950 = vmatpush1.msra.mxu0 0.0
    %3951 = vmatprep.subr.mxu0 0.0
    %3952 = vmatpush1.msra.mxu0 0.0
    %3953 = vmatprep.mubr.f32.mxu0 0.0
    %3954 = vmatmul.mubr.f32.gmra.mrb[0].mxu0 %v3872
    %v3955 = vpop.f32.mrb[0].mxu0
    %v3956 = vadd.f32 %v3870, %v3955
    %v3957 = vpop.f32.mrb[0].mxu0
    %3958 = vmatprep.mubr.f32.mxu0 0.0
    %3959 = vmatmul.mubr.f32.gmra.mrb[0].mxu0 %v3875
    %v3960 = vpop.f32.mrb[0].mxu0
    %v3961 = vadd.f32 %v3870, %v3960
    %v3962 = vpop.f32.mrb[0].mxu0
    %3963 = vmatprep.mubr.f32.mxu0 0.0
    %3964 = vmatmul.mubr.f32.gmra.mrb[0].mxu0 %v3878
    %v3965 = vpop.f32.mrb[0].mxu0
    %v3966 = vadd.f32 %v3870, %v3965
    %v3967 = vpop.f32.mrb[0].mxu0
    %3968 = vmatprep.mubr.f32.mxu0 0.0
    %3969 = vmatmul.mubr.f32.gmra.mrb[0].mxu0 %v3881
    %v3970 = vpop.f32.mrb[0].mxu0
    %v3971 = vadd.f32 %v3870, %v3970
    %v3972 = vpop.f32.mrb[0].mxu0
    %3973 = vmatprep.mubr.f32.mxu0 0.0
    %3974 = vmatmul.mubr.f32.gmra.mrb[0].mxu0 %v3884
    %v3975 = vpop.f32.mrb[0].mxu0
    %v3976 = vadd.f32 %v3870, %v3975
    %v3977 = vpop.f32.mrb[0].mxu0
    %3978 = vmatprep.mubr.f32.mxu0 0.0
    %3979 = vmatmul.mubr.f32.gmra.mrb[0].mxu0 %v3887
    %v3980 = vpop.f32.mrb[0].mxu0
    %v3981 = vadd.f32 %v3870, %v3980
    %v3982 = vpop.f32.mrb[0].mxu0
    %3983 = vdwg.mxu0
    %v3984 = vmul.f32 %v3956, %v3956
    %v3985 = vmul.f32 %v3961, %v3961
    %v3986 = vmul.f32 %v3966, %v3966
    %v3987 = vmul.f32 %v3971, %v3971
    %v3988 = vmul.f32 %v3976, %v3976
    %v3989 = vmul.f32 %v3981, %v3981
    %v3990 = vmul.f32 %v3956, %v3984
    %v3991 = vmul.f32 %v3961, %v3985
    %v3992 = vmul.f32 %v3966, %v3986
    %v3993 = vmul.f32 %v3971, %v3987
    %v3994 = vmul.f32 %v3976, %v3988
    %v3995 = vmul.f32 %v3981, %v3989
    %v3996 = vmul.f32 %v3990, 0.044715
    %v3997 = vmul.f32 %v3991, 0.044715
    %v3998 = vmul.f32 %v3992, 0.044715
    %v3999 = vmul.f32 %v3993, 0.044715
    %v4000 = vmul.f32 %v3994, 0.044715
    %v4001 = vmul.f32 %v3995, 0.044715
    %v4002 = vadd.f32 %v3956, %v3996
    %v4003 = vadd.f32 %v3961, %v3997
    %v4004 = vadd.f32 %v3966, %v3998
    %v4005 = vadd.f32 %v3971, %v3999
    %v4006 = vadd.f32 %v3976, %v4000
    %v4007 = vadd.f32 %v3981, %v4001
    %v4008 = vmul.f32 %v4002, 0.7978846
    %v4009 = vmul.f32 %v4003, 0.7978846
    %v4010 = vmul.f32 %v4004, 0.7978846
    %v4011 = vmul.f32 %v4005, 0.7978846
    %v4012 = vmul.f32 %v4006, 0.7978846
    %v4013 = vmul.f32 %v4007, 0.7978846
    %v4014 = vtanh.pop %v4008
    %v4015 = vtanh.pop %v4009
    %v4016 = vtanh.pop %v4010
    %v4017 = vtanh.pop %v4011
    %v4018 = vtanh.pop %v4012
    %v4019 = vtanh.pop %v4013
    %v4020 = vadd.f32 %v4014, 1.0
    %v4021 = vadd.f32 %v4015, 1.0
    %v4022 = vadd.f32 %v4016, 1.0
    %v4023 = vadd.f32 %v4017, 1.0
    %v4024 = vadd.f32 %v4018, 1.0
    %v4025 = vadd.f32 %v4019, 1.0
    %v4026 = vmul.f32 %v4020, 0.5
    %v4027 = vmul.f32 %v4021, 0.5
    %v4028 = vmul.f32 %v4022, 0.5
    %v4029 = vmul.f32 %v4023, 0.5
    %v4030 = vmul.f32 %v4024, 0.5
    %v4031 = vmul.f32 %v4025, 0.5
    %v4032 = vmul.f32 %v3956, %v4026
    %v4033 = vmul.f32 %v3961, %v4027
    %v4034 = vmul.f32 %v3966, %v4028
    %v4035 = vmul.f32 %v3971, %v4029
    %v4036 = vmul.f32 %v3976, %v4030
    %v4037 = vmul.f32 %v3981, %v4031
    %v4038 = vld [vmem:[%s1 + $0x2c8] sm:$0xff]
    %v4039 = vld [vmem:[%s1 + $0x2d0] sm:$0xff]
    %v4040 = vld [vmem:[%s1 + $0x2d8] sm:$0xff]
    %v4041 = vld [vmem:[%s1 + $0x2e0] sm:$0xff]
    %v4042 = vld [vmem:[%s1 + $0x2e8] sm:$0xff]
    %v4043 = vld [vmem:[%s1 + $0x2f0] sm:$0xff]
    %v4044 = vld [vmem:[%s1 + $0x2f8] sm:$0xff]
    %v4045 = vld [vmem:[%s1 + $0x300] sm:$0xff]
    %v4046 = vld [vmem:[%s1 + $0x308] sm:$0xff]
    %v4047 = vld [vmem:[%s1 + $0x310] sm:$0xff]
    %v4048 = vld [vmem:[%s1 + $0x318] sm:$0xff]
    %v4049 = vld [vmem:[%s1 + $0x320] sm:$0xff]
    %v4050 = vld [vmem:[%s1 + $0x328] sm:$0xff]
    %v4051 = vld [vmem:[%s1 + $0x330] sm:$0xff]
    %v4052 = vld [vmem:[%s1 + $0x338] sm:$0xff]
    %v4053 = vld [vmem:[%s1 + $0x340] sm:$0xff]
    %4054 = vmatprep.subr.mxu0 0.0
    %4055 = vmatpush1.msra.mxu0 %v4038
    %4056 = vmatprep.subr.mxu0 0.0
    %4057 = vmatpush1.msra.mxu0 %v4039
    %4058 = vmatprep.subr.mxu0 0.0
    %4059 = vmatpush1.msra.mxu0 %v4040
    %4060 = vmatprep.subr.mxu0 0.0
    %4061 = vmatpush1.msra.mxu0 %v4041
    %4062 = vmatprep.subr.mxu0 0.0
    %4063 = vmatpush1.msra.mxu0 %v4042
    %4064 = vmatprep.subr.mxu0 0.0
    %4065 = vmatpush1.msra.mxu0 %v4043
    %4066 = vmatprep.subr.mxu0 0.0
    %4067 = vmatpush1.msra.mxu0 %v4044
    %4068 = vmatprep.subr.mxu0 0.0
    %4069 = vmatpush1.msra.mxu0 %v4045
    %4070 = vmatprep.subr.mxu0 0.0
    %4071 = vmatpush1.msra.mxu0 %v4046
    %4072 = vmatprep.subr.mxu0 0.0
    %4073 = vmatpush1.msra.mxu0 %v4047
    %4074 = vmatprep.subr.mxu0 0.0
    %4075 = vmatpush1.msra.mxu0 %v4048
    %4076 = vmatprep.subr.mxu0 0.0
    %4077 = vmatpush1.msra.mxu0 %v4049
    %4078 = vmatprep.subr.mxu0 0.0
    %4079 = vmatpush1.msra.mxu0 %v4050
    %4080 = vmatprep.subr.mxu0 0.0
    %4081 = vmatpush1.msra.mxu0 %v4051
    %4082 = vmatprep.subr.mxu0 0.0
    %4083 = vmatpush1.msra.mxu0 %v4052
    %4084 = vmatprep.subr.mxu0 0.0
    %4085 = vmatpush1.msra.mxu0 %v4053
    %4086 = vmatprep.subr.mxu0 0.0
    %4087 = vmatpush1.msra.mxu0 0.0
    %4088 = vmatprep.subr.mxu0 0.0
    %4089 = vmatpush1.msra.mxu0 0.0
    %4090 = vmatprep.subr.mxu0 0.0
    %4091 = vmatpush1.msra.mxu0 0.0
    %4092 = vmatprep.subr.mxu0 0.0
    %4093 = vmatpush1.msra.mxu0 0.0
    %4094 = vmatprep.subr.mxu0 0.0
    %4095 = vmatpush1.msra.mxu0 0.0
    %4096 = vmatprep.subr.mxu0 0.0
    %4097 = vmatpush1.msra.mxu0 0.0
    %4098 = vmatprep.subr.mxu0 0.0
    %4099 = vmatpush1.msra.mxu0 0.0
    %4100 = vmatprep.subr.mxu0 0.0
    %4101 = vmatpush1.msra.mxu0 0.0
    %4102 = vmatprep.subr.mxu0 0.0
    %4103 = vmatpush1.msra.mxu0 0.0
    %4104 = vmatprep.subr.mxu0 0.0
    %4105 = vmatpush1.msra.mxu0 0.0
    %4106 = vmatprep.subr.mxu0 0.0
    %4107 = vmatpush1.msra.mxu0 0.0
    %4108 = vmatprep.subr.mxu0 0.0
    %4109 = vmatpush1.msra.mxu0 0.0
    %4110 = vmatprep.subr.mxu0 0.0
    %4111 = vmatpush1.msra.mxu0 0.0
    %4112 = vmatprep.subr.mxu0 0.0
    %4113 = vmatpush1.msra.mxu0 0.0
    %4114 = vmatprep.subr.mxu0 0.0
    %4115 = vmatpush1.msra.mxu0 0.0
    %4116 = vmatprep.subr.mxu0 0.0
    %4117 = vmatpush1.msra.mxu0 0.0
    %4118 = vmatprep.mubr.f32.mxu0 0.0
    %4119 = vmatmul.mubr.f32.gmra.mrb[0].mxu0 %v4032
    %v4120 = vpop.f32.mrb[0].mxu0
    %v4121 = vadd.f32 0.0, %v4120
    %v4122 = vpop.f32.mrb[0].mxu0
    %4123 = vmatprep.mubr.f32.mxu0 0.0
    %4124 = vmatmul.mubr.f32.gmra.mrb[0].mxu0 %v4033
    %v4125 = vpop.f32.mrb[0].mxu0
    %v4126 = vadd.f32 0.0, %v4125
    %v4127 = vpop.f32.mrb[0].mxu0
    %4128 = vmatprep.mubr.f32.mxu0 0.0
    %4129 = vmatmul.mubr.f32.gmra.mrb[0].mxu0 %v4034
    %v4130 = vpop.f32.mrb[0].mxu0
    %v4131 = vadd.f32 0.0, %v4130
    %v4132 = vpop.f32.mrb[0].mxu0
    %4133 = vmatprep.mubr.f32.mxu0 0.0
    %4134 = vmatmul.mubr.f32.gmra.mrb[0].mxu0 %v4035
    %v4135 = vpop.f32.mrb[0].mxu0
    %v4136 = vadd.f32 0.0, %v4135
    %v4137 = vpop.f32.mrb[0].mxu0
    %4138 = vmatprep.mubr.f32.mxu0 0.0
    %4139 = vmatmul.mubr.f32.gmra.mrb[0].mxu0 %v4036
    %v4140 = vpop.f32.mrb[0].mxu0
    %v4141 = vadd.f32 0.0, %v4140
    %v4142 = vpop.f32.mrb[0].mxu0
    %4143 = vmatprep.mubr.f32.mxu0 0.0
    %4144 = vmatmul.mubr.f32.gmra.mrb[0].mxu0 %v4037
    %v4145 = vpop.f32.mrb[0].mxu0
    %v4146 = vadd.f32 0.0, %v4145
    %v4147 = vpop.f32.mrb[0].mxu0
    %4148 = vdwg.mxu0
    %v4149 = vadd.f32 %v3756, %v4121
    %v4150 = vadd.f32 %v3757, %v4126
    %v4151 = vadd.f32 %v3758, %v4131
    %v4152 = vadd.f32 %v3759, %v4136
    %v4153 = vadd.f32 %v3760, %v4141
    %v4154 = vadd.f32 %v3761, %v4146
    %v4155 = vld [vmem:[%s1 + $0x348] sm:$0x1]
    %v4156 = vlaneseq
    %v4157 = vshrl.u32 %v4156, 7
    %v4158 = vsub.s32 0, %v4157
    %v4159 = vrot.slane %v4155, %v4158
    %v4160 = vadd.f32 %v4149, %v4159
    %v4161 = vadd.f32 %v4150, %v4159
    %v4162 = vadd.f32 %v4151, %v4159
    %v4163 = vadd.f32 %v4152, %v4159
    %v4164 = vadd.f32 %v4153, %v4159
    %v4165 = vadd.f32 %v4154, %v4159
    %v4166 = vld [vmem:[%s1 + $0x350] sm:$0x1]
    %v4167 = vld [vmem:[%s1 + $0x358] sm:$0x1]
    %v4168 = vsel %vm149, %v4160, 0.0
    %4169 = vadd.xlane.f32.xlu0 %v4168
    %v4170 = vpop.xlane.xlu0 %4169
    %v4171 = vsel %vm149, %v4161, 0.0
    %4172 = vadd.xlane.f32.xlu0 %v4171
    %v4173 = vpop.xlane.xlu0 %4172
    %v4174 = vsel %vm149, %v4162, 0.0
    %4175 = vadd.xlane.f32.xlu0 %v4174
    %v4176 = vpop.xlane.xlu0 %4175
    %v4177 = vsel %vm149, %v4163, 0.0
    %4178 = vadd.xlane.f32.xlu0 %v4177
    %v4179 = vpop.xlane.xlu0 %4178
    %v4180 = vsel %vm149, %v4164, 0.0
    %4181 = vadd.xlane.f32.xlu0 %v4180
    %v4182 = vpop.xlane.xlu0 %4181
    %v4183 = vsel %vm149, %v4165, 0.0
    %4184 = vadd.xlane.f32.xlu0 %v4183
    %v4185 = vpop.xlane.xlu0 %4184
    %v4186 = vmul.f32 %v4170, %v168
    %v4187 = vmul.f32 %v4173, %v168
    %v4188 = vmul.f32 %v4176, %v168
    %v4189 = vmul.f32 %v4179, %v168
    %v4190 = vmul.f32 %v4182, %v168
    %v4191 = vmul.f32 %v4185, %v168
    %v4192 = vsub.f32 %v4160, %v4186
    %v4193 = vsub.f32 %v4161, %v4187
    %v4194 = vsub.f32 %v4162, %v4188
    %v4195 = vsub.f32 %v4163, %v4189
    %v4196 = vsub.f32 %v4164, %v4190
    %v4197 = vsub.f32 %v4165, %v4191
    %v4198 = vmul.f32 %v4192, %v4192
    %v4199 = vmul.f32 %v4193, %v4193
    %v4200 = vmul.f32 %v4194, %v4194
    %v4201 = vmul.f32 %v4195, %v4195
    %v4202 = vmul.f32 %v4196, %v4196
    %v4203 = vmul.f32 %v4197, %v4197
    %v4204 = vsel %vm149, %v4198, 0.0
    %4205 = vadd.xlane.f32.xlu0 %v4204
    %v4206 = vpop.xlane.xlu0 %4205
    %v4207 = vsel %vm149, %v4199, 0.0
    %4208 = vadd.xlane.f32.xlu0 %v4207
    %v4209 = vpop.xlane.xlu0 %4208
    %v4210 = vsel %vm149, %v4200, 0.0
    %4211 = vadd.xlane.f32.xlu0 %v4210
    %v4212 = vpop.xlane.xlu0 %4211
    %v4213 = vsel %vm149, %v4201, 0.0
    %4214 = vadd.xlane.f32.xlu0 %v4213
    %v4215 = vpop.xlane.xlu0 %4214
    %v4216 = vsel %vm149, %v4202, 0.0
    %4217 = vadd.xlane.f32.xlu0 %v4216
    %v4218 = vpop.xlane.xlu0 %4217
    %v4219 = vsel %vm149, %v4203, 0.0
    %4220 = vadd.xlane.f32.xlu0 %v4219
    %v4221 = vpop.xlane.xlu0 %4220
    %v4222 = vmul.f32 %v4206, %v168
    %v4223 = vmul.f32 %v4209, %v168
    %v4224 = vmul.f32 %v4212, %v168
    %v4225 = vmul.f32 %v4215, %v168
    %v4226 = vmul.f32 %v4218, %v168
    %v4227 = vmul.f32 %v4221, %v168
    %v4228 = vadd.f32 %v4222, 1e-06
    %v4229 = vadd.f32 %v4223, 1e-06
    %v4230 = vadd.f32 %v4224, 1e-06
    %v4231 = vadd.f32 %v4225, 1e-06
    %v4232 = vadd.f32 %v4226, 1e-06
    %v4233 = vadd.f32 %v4227, 1e-06
    %v4234 = vrsqrt.pop %v4228
    %v4235 = vrsqrt.pop %v4229
    %v4236 = vrsqrt.pop %v4230
    %v4237 = vrsqrt.pop %v4231
    %v4238 = vrsqrt.pop %v4232
    %v4239 = vrsqrt.pop %v4233
    %v4240 = vmul.f32 %v4192, %v4234
    %v4241 = vmul.f32 %v4193, %v4235
    %v4242 = vmul.f32 %v4194, %v4236
    %v4243 = vmul.f32 %v4195, %v4237
    %v4244 = vmul.f32 %v4196, %v4238
    %v4245 = vmul.f32 %v4197, %v4239
    %v4246 = vlaneseq
    %v4247 = vshrl.u32 %v4246, 7
    %v4248 = vsub.s32 0, %v4247
    %v4249 = vrot.slane %v4166, %v4248
    %v4250 = vmul.f32 %v4240, %v4249
    %v4251 = vmul.f32 %v4241, %v4249
    %v4252 = vmul.f32 %v4242, %v4249
    %v4253 = vmul.f32 %v4243, %v4249
    %v4254 = vmul.f32 %v4244, %v4249
    %v4255 = vmul.f32 %v4245, %v4249
    %v4256 = vlaneseq
    %v4257 = vshrl.u32 %v4256, 7
    %v4258 = vsub.s32 0, %v4257
    %v4259 = vrot.slane %v4167, %v4258
    %v4260 = vadd.f32 %v4250, %v4259
    %v4261 = vadd.f32 %v4251, %v4259
    %v4262 = vadd.f32 %v4252, %v4259
    %v4263 = vadd.f32 %v4253, %v4259
    %v4264 = vadd.f32 %v4254, %v4259
    %v4265 = vadd.f32 %v4255, %v4259
    %v4266 = vld [vmem:[%s1 + $0x360] sm:$0xff]
    %v4267 = vld [vmem:[%s1 + $0x368] sm:$0xff]
    %v4268 = vld [vmem:[%s1 + $0x370] sm:$0xff]
    %v4269 = vld [vmem:[%s1 + $0x378] sm:$0xff]
    %v4270 = vld [vmem:[%s1 + $0x3c8] sm:$0x1]
    %v4271 = vlaneseq
    %v4272 = vshrl.u32 %v4271, 7
    %v4273 = vsub.s32 0, %v4272
    %v4274 = vrot.slane %v4270, %v4273
    %v4276 = vsel %vm149, %v4260, 0
    %v4279 = vsel %vm149, %v4261, 0
    %v4282 = vsel %vm149, %v4262, 0
    %v4285 = vsel %vm149, %v4263, 0
    %v4288 = vsel %vm149, %v4264, 0
    %v4291 = vsel %vm149, %v4265, 0
    %4293 = vmatprep.subr.mxu0 0.0
    %4294 = vmatpush1.msra.mxu0 %v4266
    %4295 = vmatprep.subr.mxu0 0.0
    %4296 = vmatpush1.msra.mxu0 %v4267
    %4297 = vmatprep.subr.mxu0 0.0
    %4298 = vmatpush1.msra.mxu0 %v4268
    %4299 = vmatprep.subr.mxu0 0.0
    %4300 = vmatpush1.msra.mxu0 %v4269
    %4301 = vmatprep.subr.mxu0 0.0
    %4302 = vmatpush1.msra.mxu0 0.0
    %4303 = vmatprep.subr.mxu0 0.0
    %4304 = vmatpush1.msra.mxu0 0.0
    %4305 = vmatprep.subr.mxu0 0.0
    %4306 = vmatpush1.msra.mxu0 0.0
    %4307 = vmatprep.subr.mxu0 0.0
    %4308 = vmatpush1.msra.mxu0 0.0
    %4309 = vmatprep.subr.mxu0 0.0
    %4310 = vmatpush1.msra.mxu0 0.0
    %4311 = vmatprep.subr.mxu0 0.0
    %4312 = vmatpush1.msra.mxu0 0.0
    %4313 = vmatprep.subr.mxu0 0.0
    %4314 = vmatpush1.msra.mxu0 0.0
    %4315 = vmatprep.subr.mxu0 0.0
    %4316 = vmatpush1.msra.mxu0 0.0
    %4317 = vmatprep.subr.mxu0 0.0
    %4318 = vmatpush1.msra.mxu0 0.0
    %4319 = vmatprep.subr.mxu0 0.0
    %4320 = vmatpush1.msra.mxu0 0.0
    %4321 = vmatprep.subr.mxu0 0.0
    %4322 = vmatpush1.msra.mxu0 0.0
    %4323 = vmatprep.subr.mxu0 0.0
    %4324 = vmatpush1.msra.mxu0 0.0
    %4325 = vmatprep.subr.mxu0 0.0
    %4326 = vmatpush1.msra.mxu0 0.0
    %4327 = vmatprep.subr.mxu0 0.0
    %4328 = vmatpush1.msra.mxu0 0.0
    %4329 = vmatprep.subr.mxu0 0.0
    %4330 = vmatpush1.msra.mxu0 0.0
    %4331 = vmatprep.subr.mxu0 0.0
    %4332 = vmatpush1.msra.mxu0 0.0
    %4333 = vmatprep.subr.mxu0 0.0
    %4334 = vmatpush1.msra.mxu0 0.0
    %4335 = vmatprep.subr.mxu0 0.0
    %4336 = vmatpush1.msra.mxu0 0.0
    %4337 = vmatprep.subr.mxu0 0.0
    %4338 = vmatpush1.msra.mxu0 0.0
    %4339 = vmatprep.subr.mxu0 0.0
    %4340 = vmatpush1.msra.mxu0 0.0
    %4341 = vmatprep.subr.mxu0 0.0
    %4342 = vmatpush1.msra.mxu0 0.0
    %4343 = vmatprep.subr.mxu0 0.0
    %4344 = vmatpush1.msra.mxu0 0.0
    %4345 = vmatprep.subr.mxu0 0.0
    %4346 = vmatpush1.msra.mxu0 0.0
    %4347 = vmatprep.subr.mxu0 0.0
    %4348 = vmatpush1.msra.mxu0 0.0
    %4349 = vmatprep.subr.mxu0 0.0
    %4350 = vmatpush1.msra.mxu0 0.0
    %4351 = vmatprep.subr.mxu0 0.0
    %4352 = vmatpush1.msra.mxu0 0.0
    %4353 = vmatprep.subr.mxu0 0.0
    %4354 = vmatpush1.msra.mxu0 0.0
    %4355 = vmatprep.subr.mxu0 0.0
    %4356 = vmatpush1.msra.mxu0 0.0
    %4357 = vmatprep.mubr.f32.mxu0 0.0
    %4358 = vmatmul.mubr.f32.gmra.mrb[0].mxu0 %v4276
    %v4359 = vpop.f32.mrb[0].mxu0
    %v4360 = vadd.f32 %v4274, %v4359
    %v4361 = vpop.f32.mrb[0].mxu0
    %4362 = vmatprep.mubr.f32.mxu0 0.0
    %4363 = vmatmul.mubr.f32.gmra.mrb[0].mxu0 %v4279
    %v4364 = vpop.f32.mrb[0].mxu0
    %v4365 = vadd.f32 %v4274, %v4364
    %v4366 = vpop.f32.mrb[0].mxu0
    %4367 = vmatprep.mubr.f32.mxu0 0.0
    %4368 = vmatmul.mubr.f32.gmra.mrb[0].mxu0 %v4282
    %v4369 = vpop.f32.mrb[0].mxu0
    %v4370 = vadd.f32 %v4274, %v4369
    %v4371 = vpop.f32.mrb[0].mxu0
    %4372 = vmatprep.mubr.f32.mxu0 0.0
    %4373 = vmatmul.mubr.f32.gmra.mrb[0].mxu0 %v4285
    %v4374 = vpop.f32.mrb[0].mxu0
    %v4375 = vadd.f32 %v4274, %v4374
    %v4376 = vpop.f32.mrb[0].mxu0
    %4377 = vmatprep.mubr.f32.mxu0 0.0
    %4378 = vmatmul.mubr.f32.gmra.mrb[0].mxu0 %v4288
    %v4379 = vpop.f32.mrb[0].mxu0
    %v4380 = vadd.f32 %v4274, %v4379
    %v4381 = vpop.f32.mrb[0].mxu0
    %4382 = vmatprep.mubr.f32.mxu0 0.0
    %4383 = vmatmul.mubr.f32.gmra.mrb[0].mxu0 %v4291
    %v4384 = vpop.f32.mrb[0].mxu0
    %v4385 = vadd.f32 %v4274, %v4384
    %v4386 = vpop.f32.mrb[0].mxu0
    %4387 = vdwg.mxu0
    %v4388 = vld [vmem:[%s1 + $0x380] sm:$0xff]
    %v4389 = vld [vmem:[%s1 + $0x388] sm:$0xff]
    %v4390 = vld [vmem:[%s1 + $0x390] sm:$0xff]
    %v4391 = vld [vmem:[%s1 + $0x398] sm:$0xff]
    %v4392 = vld [vmem:[%s1 + $0x3d0] sm:$0x1]
    %v4393 = vlaneseq
    %v4394 = vshrl.u32 %v4393, 7
    %v4395 = vsub.s32 0, %v4394
    %v4396 = vrot.slane %v4392, %v4395
    %4397 = vmatprep.subr.mxu0 0.0
    %4398 = vmatpush1.msra.mxu0 %v4388
    %4399 = vmatprep.subr.mxu0 0.0
    %4400 = vmatpush1.msra.mxu0 %v4389
    %4401 = vmatprep.subr.mxu0 0.0
    %4402 = vmatpush1.msra.mxu0 %v4390
    %4403 = vmatprep.subr.mxu0 0.0
    %4404 = vmatpush1.msra.mxu0 %v4391
    %4405 = vmatprep.subr.mxu0 0.0
    %4406 = vmatpush1.msra.mxu0 0.0
    %4407 = vmatprep.subr.mxu0 0.0
    %4408 = vmatpush1.msra.mxu0 0.0
    %4409 = vmatprep.subr.mxu0 0.0
    %4410 = vmatpush1.msra.mxu0 0.0
    %4411 = vmatprep.subr.mxu0 0.0
    %4412 = vmatpush1.msra.mxu0 0.0
    %4413 = vmatprep.subr.mxu0 0.0
    %4414 = vmatpush1.msra.mxu0 0.0
    %4415 = vmatprep.subr.mxu0 0.0
    %4416 = vmatpush1.msra.mxu0 0.0
    %4417 = vmatprep.subr.mxu0 0.0
    %4418 = vmatpush1.msra.mxu0 0.0
    %4419 = vmatprep.subr.mxu0 0.0
    %4420 = vmatpush1.msra.mxu0 0.0
    %4421 = vmatprep.subr.mxu0 0.0
    %4422 = vmatpush1.msra.mxu0 0.0
    %4423 = vmatprep.subr.mxu0 0.0
    %4424 = vmatpush1.msra.mxu0 0.0
    %4425 = vmatprep.subr.mxu0 0.0
    %4426 = vmatpush1.msra.mxu0 0.0
    %4427 = vmatprep.subr.mxu0 0.0
    %4428 = vmatpush1.msra.mxu0 0.0
    %4429 = vmatprep.subr.mxu0 0.0
    %4430 = vmatpush1.msra.mxu0 0.0
    %4431 = vmatprep.subr.mxu0 0.0
    %4432 = vmatpush1.msra.mxu0 0.0
    %4433 = vmatprep.subr.mxu0 0.0
    %4434 = vmatpush1.msra.mxu0 0.0
    %4435 = vmatprep.subr.mxu0 0.0
    %4436 = vmatpush1.msra.mxu0 0.0
    %4437 = vmatprep.subr.mxu0 0.0
    %4438 = vmatpush1.msra.mxu0 0.0
    %4439 = vmatprep.subr.mxu0 0.0
    %4440 = vmatpush1.msra.mxu0 0.0
    %4441 = vmatprep.subr.mxu0 0.0
    %4442 = vmatpush1.msra.mxu0 0.0
    %4443 = vmatprep.subr.mxu0 0.0
    %4444 = vmatpush1.msra.mxu0 0.0
    %4445 = vmatprep.subr.mxu0 0.0
    %4446 = vmatpush1.msra.mxu0 0.0
    %4447 = vmatprep.subr.mxu0 0.0
    %4448 = vmatpush1.msra.mxu0 0.0
    %4449 = vmatprep.subr.mxu0 0.0
    %4450 = vmatpush1.msra.mxu0 0.0
    %4451 = vmatprep.subr.mxu0 0.0
    %4452 = vmatpush1.msra.mxu0 0.0
    %4453 = vmatprep.subr.mxu0 0.0
    %4454 = vmatpush1.msra.mxu0 0.0
    %4455 = vmatprep.subr.mxu0 0.0
    %4456 = vmatpush1.msra.mxu0 0.0
    %4457 = vmatprep.subr.mxu0 0.0
    %4458 = vmatpush1.msra.mxu0 0.0
    %4459 = vmatprep.subr.mxu0 0.0
    %4460 = vmatpush1.msra.mxu0 0.0
    %4461 = vmatprep.mubr.f32.mxu0 0.0
    %4462 = vmatmul.mubr.f32.gmra.mrb[0].mxu0 %v4276
    %v4463 = vpop.f32.mrb[0].mxu0
    %v4464 = vadd.f32 %v4396, %v4463
    %v4465 = vpop.f32.mrb[0].mxu0
    %4466 = vmatprep.mubr.f32.mxu0 0.0
    %4467 = vmatmul.mubr.f32.gmra.mrb[0].mxu0 %v4279
    %v4468 = vpop.f32.mrb[0].mxu0
    %v4469 = vadd.f32 %v4396, %v4468
    %v4470 = vpop.f32.mrb[0].mxu0
    %4471 = vmatprep.mubr.f32.mxu0 0.0
    %4472 = vmatmul.mubr.f32.gmra.mrb[0].mxu0 %v4282
    %v4473 = vpop.f32.mrb[0].mxu0
    %v4474 = vadd.f32 %v4396, %v4473
    %v4475 = vpop.f32.mrb[0].mxu0
    %4476 = vmatprep.mubr.f32.mxu0 0.0
    %4477 = vmatmul.mubr.f32.gmra.mrb[0].mxu0 %v4285
    %v4478 = vpop.f32.mrb[0].mxu0
    %v4479 = vadd.f32 %v4396, %v4478
    %v4480 = vpop.f32.mrb[0].mxu0
    %4481 = vmatprep.mubr.f32.mxu0 0.0
    %4482 = vmatmul.mubr.f32.gmra.mrb[0].mxu0 %v4288
    %v4483 = vpop.f32.mrb[0].mxu0
    %v4484 = vadd.f32 %v4396, %v4483
    %v4485 = vpop.f32.mrb[0].mxu0
    %4486 = vmatprep.mubr.f32.mxu0 0.0
    %4487 = vmatmul.mubr.f32.gmra.mrb[0].mxu0 %v4291
    %v4488 = vpop.f32.mrb[0].mxu0
    %v4489 = vadd.f32 %v4396, %v4488
    %v4490 = vpop.f32.mrb[0].mxu0
    %4491 = vdwg.mxu0
    %v4492 = vld [vmem:[%s1 + $0x3a0] sm:$0xff]
    %v4493 = vld [vmem:[%s1 + $0x3a8] sm:$0xff]
    %v4494 = vld [vmem:[%s1 + $0x3b0] sm:$0xff]
    %v4495 = vld [vmem:[%s1 + $0x3b8] sm:$0xff]
    %v4496 = vld [vmem:[%s1 + $0x3d8] sm:$0x1]
    %v4497 = vlaneseq
    %v4498 = vshrl.u32 %v4497, 7
    %v4499 = vsub.s32 0, %v4498
    %v4500 = vrot.slane %v4496, %v4499
    %4501 = vmatprep.subr.mxu0 0.0
    %4502 = vmatpush1.msra.mxu0 %v4492
    %4503 = vmatprep.subr.mxu0 0.0
    %4504 = vmatpush1.msra.mxu0 %v4493
    %4505 = vmatprep.subr.mxu0 0.0
    %4506 = vmatpush1.msra.mxu0 %v4494
    %4507 = vmatprep.subr.mxu0 0.0
    %4508 = vmatpush1.msra.mxu0 %v4495
    %4509 = vmatprep.subr.mxu0 0.0
    %4510 = vmatpush1.msra.mxu0 0.0
    %4511 = vmatprep.subr.mxu0 0.0
    %4512 = vmatpush1.msra.mxu0 0.0
    %4513 = vmatprep.subr.mxu0 0.0
    %4514 = vmatpush1.msra.mxu0 0.0
    %4515 = vmatprep.subr.mxu0 0.0
    %4516 = vmatpush1.msra.mxu0 0.0
    %4517 = vmatprep.subr.mxu0 0.0
    %4518 = vmatpush1.msra.mxu0 0.0
    %4519 = vmatprep.subr.mxu0 0.0
    %4520 = vmatpush1.msra.mxu0 0.0
    %4521 = vmatprep.subr.mxu0 0.0
    %4522 = vmatpush1.msra.mxu0 0.0
    %4523 = vmatprep.subr.mxu0 0.0
    %4524 = vmatpush1.msra.mxu0 0.0
    %4525 = vmatprep.subr.mxu0 0.0
    %4526 = vmatpush1.msra.mxu0 0.0
    %4527 = vmatprep.subr.mxu0 0.0
    %4528 = vmatpush1.msra.mxu0 0.0
    %4529 = vmatprep.subr.mxu0 0.0
    %4530 = vmatpush1.msra.mxu0 0.0
    %4531 = vmatprep.subr.mxu0 0.0
    %4532 = vmatpush1.msra.mxu0 0.0
    %4533 = vmatprep.subr.mxu0 0.0
    %4534 = vmatpush1.msra.mxu0 0.0
    %4535 = vmatprep.subr.mxu0 0.0
    %4536 = vmatpush1.msra.mxu0 0.0
    %4537 = vmatprep.subr.mxu0 0.0
    %4538 = vmatpush1.msra.mxu0 0.0
    %4539 = vmatprep.subr.mxu0 0.0
    %4540 = vmatpush1.msra.mxu0 0.0
    %4541 = vmatprep.subr.mxu0 0.0
    %4542 = vmatpush1.msra.mxu0 0.0
    %4543 = vmatprep.subr.mxu0 0.0
    %4544 = vmatpush1.msra.mxu0 0.0
    %4545 = vmatprep.subr.mxu0 0.0
    %4546 = vmatpush1.msra.mxu0 0.0
    %4547 = vmatprep.subr.mxu0 0.0
    %4548 = vmatpush1.msra.mxu0 0.0
    %4549 = vmatprep.subr.mxu0 0.0
    %4550 = vmatpush1.msra.mxu0 0.0
    %4551 = vmatprep.subr.mxu0 0.0
    %4552 = vmatpush1.msra.mxu0 0.0
    %4553 = vmatprep.subr.mxu0 0.0
    %4554 = vmatpush1.msra.mxu0 0.0
    %4555 = vmatprep.subr.mxu0 0.0
    %4556 = vmatpush1.msra.mxu0 0.0
    %4557 = vmatprep.subr.mxu0 0.0
    %4558 = vmatpush1.msra.mxu0 0.0
    %4559 = vmatprep.subr.mxu0 0.0
    %4560 = vmatpush1.msra.mxu0 0.0
    %4561 = vmatprep.subr.mxu0 0.0
    %4562 = vmatpush1.msra.mxu0 0.0
    %4563 = vmatprep.subr.mxu0 0.0
    %4564 = vmatpush1.msra.mxu0 0.0
    %4565 = vmatprep.mubr.f32.mxu0 0.0
    %4566 = vmatmul.mubr.f32.gmra.mrb[0].mxu0 %v4276
    %v4567 = vpop.f32.mrb[0].mxu0
    %v4568 = vadd.f32 %v4500, %v4567
    %v4569 = vpop.f32.mrb[0].mxu0
    %4570 = vmatprep.mubr.f32.mxu0 0.0
    %4571 = vmatmul.mubr.f32.gmra.mrb[0].mxu0 %v4279
    %v4572 = vpop.f32.mrb[0].mxu0
    %v4573 = vadd.f32 %v4500, %v4572
    %v4574 = vpop.f32.mrb[0].mxu0
    %4575 = vmatprep.mubr.f32.mxu0 0.0
    %4576 = vmatmul.mubr.f32.gmra.mrb[0].mxu0 %v4282
    %v4577 = vpop.f32.mrb[0].mxu0
    %v4578 = vadd.f32 %v4500, %v4577
    %v4579 = vpop.f32.mrb[0].mxu0
    %4580 = vmatprep.mubr.f32.mxu0 0.0
    %4581 = vmatmul.mubr.f32.gmra.mrb[0].mxu0 %v4285
    %v4582 = vpop.f32.mrb[0].mxu0
    %v4583 = vadd.f32 %v4500, %v4582
    %v4584 = vpop.f32.mrb[0].mxu0
    %4585 = vmatprep.mubr.f32.mxu0 0.0
    %4586 = vmatmul.mubr.f32.gmra.mrb[0].mxu0 %v4288
    %v4587 = vpop.f32.mrb[0].mxu0
    %v4588 = vadd.f32 %v4500, %v4587
    %v4589 = vpop.f32.mrb[0].mxu0
    %4590 = vmatprep.mubr.f32.mxu0 0.0
    %4591 = vmatmul.mubr.f32.gmra.mrb[0].mxu0 %v4291
    %v4592 = vpop.f32.mrb[0].mxu0
    %v4593 = vadd.f32 %v4500, %v4592
    %v4594 = vpop.f32.mrb[0].mxu0
    %4595 = vdwg.mxu0
    %v4597 = vsel %vm579, %v4360, 0
    %v4600 = vsel %vm579, %v4365, 0
    %v4603 = vsel %vm579, %v4370, 0
    %v4606 = vsel %vm579, %v4464, 0
    %v4609 = vsel %vm579, %v4469, 0
    %v4612 = vsel %vm579, %v4474, 0
    %4614 = vmatprep.subr.mxu0 0.0
    %4615 = vmatpush1.xpose.msra.mxu0 %v4606
    %4616 = vmatprep.subr.mxu0 0.0
    %4617 = vmatpush1.xpose.msra.mxu0 %v4609
    %4618 = vmatprep.subr.mxu0 0.0
    %4619 = vmatpush1.xpose.msra.mxu0 %v4612
    %4620 = vmatprep.subr.mxu0 0.0
    %4621 = vmatpush1.xpose.msra.mxu0 0.0
    %4622 = vmatprep.subr.mxu0 0.0
    %4623 = vmatpush1.xpose.msra.mxu0 0.0
    %4624 = vmatprep.subr.mxu0 0.0
    %4625 = vmatpush1.xpose.msra.mxu0 0.0
    %4626 = vmatprep.subr.mxu0 0.0
    %4627 = vmatpush1.xpose.msra.mxu0 0.0
    %4628 = vmatprep.subr.mxu0 0.0
    %4629 = vmatpush1.xpose.msra.mxu0 0.0
    %4630 = vmatprep.subr.mxu0 0.0
    %4631 = vmatpush1.xpose.msra.mxu0 0.0
    %4632 = vmatprep.subr.mxu0 0.0
    %4633 = vmatpush1.xpose.msra.mxu0 0.0
    %4634 = vmatprep.subr.mxu0 0.0
    %4635 = vmatpush1.xpose.msra.mxu0 0.0
    %4636 = vmatprep.subr.mxu0 0.0
    %4637 = vmatpush1.xpose.msra.mxu0 0.0
    %4638 = vmatprep.subr.mxu0 0.0
    %4639 = vmatpush1.xpose.msra.mxu0 0.0
    %4640 = vmatprep.subr.mxu0 0.0
    %4641 = vmatpush1.xpose.msra.mxu0 0.0
    %4642 = vmatprep.subr.mxu0 0.0
    %4643 = vmatpush1.xpose.msra.mxu0 0.0
    %4644 = vmatprep.subr.mxu0 0.0
    %4645 = vmatpush1.xpose.msra.mxu0 0.0
    %4646 = vmatprep.subr.mxu0 0.0
    %4647 = vmatpush1.xpose.msra.mxu0 0.0
    %4648 = vmatprep.subr.mxu0 0.0
    %4649 = vmatpush1.xpose.msra.mxu0 0.0
    %4650 = vmatprep.subr.mxu0 0.0
    %4651 = vmatpush1.xpose.msra.mxu0 0.0
    %4652 = vmatprep.subr.mxu0 0.0
    %4653 = vmatpush1.xpose.msra.mxu0 0.0
    %4654 = vmatprep.subr.mxu0 0.0
    %4655 = vmatpush1.xpose.msra.mxu0 0.0
    %4656 = vmatprep.subr.mxu0 0.0
    %4657 = vmatpush1.xpose.msra.mxu0 0.0
    %4658 = vmatprep.subr.mxu0 0.0
    %4659 = vmatpush1.xpose.msra.mxu0 0.0
    %4660 = vmatprep.subr.mxu0 0.0
    %4661 = vmatpush1.xpose.msra.mxu0 0.0
    %4662 = vmatprep.subr.mxu0 0.0
    %4663 = vmatpush1.xpose.msra.mxu0 0.0
    %4664 = vmatprep.subr.mxu0 0.0
    %4665 = vmatpush1.xpose.msra.mxu0 0.0
    %4666 = vmatprep.subr.mxu0 0.0
    %4667 = vmatpush1.xpose.msra.mxu0 0.0
    %4668 = vmatprep.subr.mxu0 0.0
    %4669 = vmatpush1.xpose.msra.mxu0 0.0
    %4670 = vmatprep.subr.mxu0 0.0
    %4671 = vmatpush1.xpose.msra.mxu0 0.0
    %4672 = vmatprep.subr.mxu0 0.0
    %4673 = vmatpush1.xpose.msra.mxu0 0.0
    %4674 = vmatprep.subr.mxu0 0.0
    %4675 = vmatpush1.xpose.msra.mxu0 0.0
    %4676 = vmatprep.subr.mxu0 0.0
    %4677 = vmatpush1.xpose.msra.mxu0 0.0
    %4678 = vmatprep.mubr.f32.mxu0 0.0
    %4679 = vmatmul.mubr.f32.gmra.mrb[0].mxu0 %v4597
    %v4680 = vpop.f32.mrb[0].mxu0
    %v4681 = vadd.f32 %v144, %v4680
    %v4682 = vpop.f32.mrb[0].mxu0
    %4683 = vmatprep.mubr.f32.mxu0 0.0
    %4684 = vmatmul.mubr.f32.gmra.mrb[0].mxu0 %v4600
    %v4685 = vpop.f32.mrb[0].mxu0
    %v4686 = vadd.f32 %v145, %v4685
    %v4687 = vpop.f32.mrb[0].mxu0
    %4688 = vmatprep.mubr.f32.mxu0 0.0
    %4689 = vmatmul.mubr.f32.gmra.mrb[0].mxu0 %v4603
    %v4690 = vpop.f32.mrb[0].mxu0
    %v4691 = vadd.f32 %v146, %v4690
    %v4692 = vpop.f32.mrb[0].mxu0
    %4693 = vdwg.mxu0
    %v4695 = vsel %vm579, %v4375, 0
    %v4698 = vsel %vm579, %v4380, 0
    %v4701 = vsel %vm579, %v4385, 0
    %v4704 = vsel %vm579, %v4479, 0
    %v4707 = vsel %vm579, %v4484, 0
    %v4710 = vsel %vm579, %v4489, 0
    %4712 = vmatprep.subr.mxu0 0.0
    %4713 = vmatpush1.xpose.msra.mxu0 %v4704
    %4714 = vmatprep.subr.mxu0 0.0
    %4715 = vmatpush1.xpose.msra.mxu0 %v4707
    %4716 = vmatprep.subr.mxu0 0.0
    %4717 = vmatpush1.xpose.msra.mxu0 %v4710
    %4718 = vmatprep.subr.mxu0 0.0
    %4719 = vmatpush1.xpose.msra.mxu0 0.0
    %4720 = vmatprep.subr.mxu0 0.0
    %4721 = vmatpush1.xpose.msra.mxu0 0.0
    %4722 = vmatprep.subr.mxu0 0.0
    %4723 = vmatpush1.xpose.msra.mxu0 0.0
    %4724 = vmatprep.subr.mxu0 0.0
    %4725 = vmatpush1.xpose.msra.mxu0 0.0
    %4726 = vmatprep.subr.mxu0 0.0
    %4727 = vmatpush1.xpose.msra.mxu0 0.0
    %4728 = vmatprep.subr.mxu0 0.0
    %4729 = vmatpush1.xpose.msra.mxu0 0.0
    %4730 = vmatprep.subr.mxu0 0.0
    %4731 = vmatpush1.xpose.msra.mxu0 0.0
    %4732 = vmatprep.subr.mxu0 0.0
    %4733 = vmatpush1.xpose.msra.mxu0 0.0
    %4734 = vmatprep.subr.mxu0 0.0
    %4735 = vmatpush1.xpose.msra.mxu0 0.0
    %4736 = vmatprep.subr.mxu0 0.0
    %4737 = vmatpush1.xpose.msra.mxu0 0.0
    %4738 = vmatprep.subr.mxu0 0.0
    %4739 = vmatpush1.xpose.msra.mxu0 0.0
    %4740 = vmatprep.subr.mxu0 0.0
    %4741 = vmatpush1.xpose.msra.mxu0 0.0
    %4742 = vmatprep.subr.mxu0 0.0
    %4743 = vmatpush1.xpose.msra.mxu0 0.0
    %4744 = vmatprep.subr.mxu0 0.0
    %4745 = vmatpush1.xpose.msra.mxu0 0.0
    %4746 = vmatprep.subr.mxu0 0.0
    %4747 = vmatpush1.xpose.msra.mxu0 0.0
    %4748 = vmatprep.subr.mxu0 0.0
    %4749 = vmatpush1.xpose.msra.mxu0 0.0
    %4750 = vmatprep.subr.mxu0 0.0
    %4751 = vmatpush1.xpose.msra.mxu0 0.0
    %4752 = vmatprep.subr.mxu0 0.0
    %4753 = vmatpush1.xpose.msra.mxu0 0.0
    %4754 = vmatprep.subr.mxu0 0.0
    %4755 = vmatpush1.xpose.msra.mxu0 0.0
    %4756 = vmatprep.subr.mxu0 0.0
    %4757 = vmatpush1.xpose.msra.mxu0 0.0
    %4758 = vmatprep.subr.mxu0 0.0
    %4759 = vmatpush1.xpose.msra.mxu0 0.0
    %4760 = vmatprep.subr.mxu0 0.0
    %4761 = vmatpush1.xpose.msra.mxu0 0.0
    %4762 = vmatprep.subr.mxu0 0.0
    %4763 = vmatpush1.xpose.msra.mxu0 0.0
    %4764 = vmatprep.subr.mxu0 0.0
    %4765 = vmatpush1.xpose.msra.mxu0 0.0
    %4766 = vmatprep.subr.mxu0 0.0
    %4767 = vmatpush1.xpose.msra.mxu0 0.0
    %4768 = vmatprep.subr.mxu0 0.0
    %4769 = vmatpush1.xpose.msra.mxu0 0.0
    %4770 = vmatprep.subr.mxu0 0.0
    %4771 = vmatpush1.xpose.msra.mxu0 0.0
    %4772 = vmatprep.subr.mxu0 0.0
    %4773 = vmatpush1.xpose.msra.mxu0 0.0
    %4774 = vmatprep.subr.mxu0 0.0
    %4775 = vmatpush1.xpose.msra.mxu0 0.0
    %4776 = vmatprep.mubr.f32.mxu0 0.0
    %4777 = vmatmul.mubr.f32.gmra.mrb[0].mxu0 %v4695
    %v4778 = vpop.f32.mrb[0].mxu0
    %v4779 = vadd.f32 %v144, %v4778
    %v4780 = vpop.f32.mrb[0].mxu0
    %4781 = vmatprep.mubr.f32.mxu0 0.0
    %4782 = vmatmul.mubr.f32.gmra.mrb[0].mxu0 %v4698
    %v4783 = vpop.f32.mrb[0].mxu0
    %v4784 = vadd.f32 %v145, %v4783
    %v4785 = vpop.f32.mrb[0].mxu0
    %4786 = vmatprep.mubr.f32.mxu0 0.0
    %4787 = vmatmul.mubr.f32.gmra.mrb[0].mxu0 %v4701
    %v4788 = vpop.f32.mrb[0].mxu0
    %v4789 = vadd.f32 %v146, %v4788
    %v4790 = vpop.f32.mrb[0].mxu0
    %4791 = vdwg.mxu0
    %v4792 = vsel %vm776, %v4681, -inf
    %4793 = vmax.xlane.f32.xlu0 %v4792
    %v4794 = vpop.xlane.xlu0 %4793
    %v4795 = vsel %vm776, %v4686, -inf
    %4796 = vmax.xlane.f32.xlu0 %v4795
    %v4797 = vpop.xlane.xlu0 %4796
    %v4798 = vsel %vm776, %v4691, -inf
    %4799 = vmax.xlane.f32.xlu0 %v4798
    %v4800 = vpop.xlane.xlu0 %4799
    %v4801 = vsel %vm776, %v4779, -inf
    %4802 = vmax.xlane.f32.xlu0 %v4801
    %v4803 = vpop.xlane.xlu0 %4802
    %v4804 = vsel %vm776, %v4784, -inf
    %4805 = vmax.xlane.f32.xlu0 %v4804
    %v4806 = vpop.xlane.xlu0 %4805
    %v4807 = vsel %vm776, %v4789, -inf
    %4808 = vmax.xlane.f32.xlu0 %v4807
    %v4809 = vpop.xlane.xlu0 %4808
    %v4810 = vsub.f32 %v4681, %v4794
    %v4811 = vsub.f32 %v4686, %v4797
    %v4812 = vsub.f32 %v4691, %v4800
    %v4813 = vsub.f32 %v4779, %v4803
    %v4814 = vsub.f32 %v4784, %v4806
    %v4815 = vsub.f32 %v4789, %v4809
    %v4816 = vmul.f32 %v4810, 1.442695
    %v4817 = vpow.pop %v4816
    %v4818 = vmul.f32 %v4811, 1.442695
    %v4819 = vpow.pop %v4818
    %v4820 = vmul.f32 %v4812, 1.442695
    %v4821 = vpow.pop %v4820
    %v4822 = vmul.f32 %v4813, 1.442695
    %v4823 = vpow.pop %v4822
    %v4824 = vmul.f32 %v4814, 1.442695
    %v4825 = vpow.pop %v4824
    %v4826 = vmul.f32 %v4815, 1.442695
    %v4827 = vpow.pop %v4826
    %v4828 = vsel %vm776, %v4817, 0.0
    %4829 = vadd.xlane.f32.xlu0 %v4828
    %v4830 = vpop.xlane.xlu0 %4829
    %v4831 = vsel %vm776, %v4819, 0.0
    %4832 = vadd.xlane.f32.xlu0 %v4831
    %v4833 = vpop.xlane.xlu0 %4832
    %v4834 = vsel %vm776, %v4821, 0.0
    %4835 = vadd.xlane.f32.xlu0 %v4834
    %v4836 = vpop.xlane.xlu0 %4835
    %v4837 = vsel %vm776, %v4823, 0.0
    %4838 = vadd.xlane.f32.xlu0 %v4837
    %v4839 = vpop.xlane.xlu0 %4838
    %v4840 = vsel %vm776, %v4825, 0.0
    %4841 = vadd.xlane.f32.xlu0 %v4840
    %v4842 = vpop.xlane.xlu0 %4841
    %v4843 = vsel %vm776, %v4827, 0.0
    %4844 = vadd.xlane.f32.xlu0 %v4843
    %v4845 = vpop.xlane.xlu0 %4844
    %v4846 = vrcp.pop %v4830
    %v4847 = vrcp.pop %v4833
    %v4848 = vrcp.pop %v4836
    %v4849 = vrcp.pop %v4839
    %v4850 = vrcp.pop %v4842
    %v4851 = vrcp.pop %v4845
    %v4852 = vmul.f32 %v4817, %v4846
    %v4853 = vmul.f32 %v4819, %v4847
    %v4854 = vmul.f32 %v4821, %v4848
    %v4855 = vmul.f32 %v4823, %v4849
    %v4856 = vmul.f32 %v4825, %v4850
    %v4857 = vmul.f32 %v4827, %v4851
    %v4859 = vsel %vm776, %v4852, 0
    %v4862 = vsel %vm776, %v4853, 0
    %v4865 = vsel %vm776, %v4854, 0
    %4867 = vmatprep.subr.mxu0 0.0
    %4868 = vmatpush1.msra.mxu0 %v4568
    %4869 = vmatprep.subr.mxu0 0.0
    %4870 = vmatpush1.msra.mxu0 %v4573
    %4871 = vmatprep.subr.mxu0 0.0
    %4872 = vmatpush1.msra.mxu0 %v4578
    %4873 = vmatprep.subr.mxu0 0.0
    %4874 = vmatpush1.msra.mxu0 0.0
    %4875 = vmatprep.subr.mxu0 0.0
    %4876 = vmatpush1.msra.mxu0 0.0
    %4877 = vmatprep.subr.mxu0 0.0
    %4878 = vmatpush1.msra.mxu0 0.0
    %4879 = vmatprep.subr.mxu0 0.0
    %4880 = vmatpush1.msra.mxu0 0.0
    %4881 = vmatprep.subr.mxu0 0.0
    %4882 = vmatpush1.msra.mxu0 0.0
    %4883 = vmatprep.subr.mxu0 0.0
    %4884 = vmatpush1.msra.mxu0 0.0
    %4885 = vmatprep.subr.mxu0 0.0
    %4886 = vmatpush1.msra.mxu0 0.0
    %4887 = vmatprep.subr.mxu0 0.0
    %4888 = vmatpush1.msra.mxu0 0.0
    %4889 = vmatprep.subr.mxu0 0.0
    %4890 = vmatpush1.msra.mxu0 0.0
    %4891 = vmatprep.subr.mxu0 0.0
    %4892 = vmatpush1.msra.mxu0 0.0
    %4893 = vmatprep.subr.mxu0 0.0
    %4894 = vmatpush1.msra.mxu0 0.0
    %4895 = vmatprep.subr.mxu0 0.0
    %4896 = vmatpush1.msra.mxu0 0.0
    %4897 = vmatprep.subr.mxu0 0.0
    %4898 = vmatpush1.msra.mxu0 0.0
    %4899 = vmatprep.subr.mxu0 0.0
    %4900 = vmatpush1.msra.mxu0 0.0
    %4901 = vmatprep.subr.mxu0 0.0
    %4902 = vmatpush1.msra.mxu0 0.0
    %4903 = vmatprep.subr.mxu0 0.0
    %4904 = vmatpush1.msra.mxu0 0.0
    %4905 = vmatprep.subr.mxu0 0.0
    %4906 = vmatpush1.msra.mxu0 0.0
    %4907 = vmatprep.subr.mxu0 0.0
    %4908 = vmatpush1.msra.mxu0 0.0
    %4909 = vmatprep.subr.mxu0 0.0
    %4910 = vmatpush1.msra.mxu0 0.0
    %4911 = vmatprep.subr.mxu0 0.0
    %4912 = vmatpush1.msra.mxu0 0.0
    %4913 = vmatprep.subr.mxu0 0.0
    %4914 = vmatpush1.msra.mxu0 0.0
    %4915 = vmatprep.subr.mxu0 0.0
    %4916 = vmatpush1.msra.mxu0 0.0
    %4917 = vmatprep.subr.mxu0 0.0
    %4918 = vmatpush1.msra.mxu0 0.0
    %4919 = vmatprep.subr.mxu0 0.0
    %4920 = vmatpush1.msra.mxu0 0.0
    %4921 = vmatprep.subr.mxu0 0.0
    %4922 = vmatpush1.msra.mxu0 0.0
    %4923 = vmatprep.subr.mxu0 0.0
    %4924 = vmatpush1.msra.mxu0 0.0
    %4925 = vmatprep.subr.mxu0 0.0
    %4926 = vmatpush1.msra.mxu0 0.0
    %4927 = vmatprep.subr.mxu0 0.0
    %4928 = vmatpush1.msra.mxu0 0.0
    %4929 = vmatprep.subr.mxu0 0.0
    %4930 = vmatpush1.msra.mxu0 0.0
    %4931 = vmatprep.mubr.f32.mxu0 0.0
    %4932 = vmatmul.mubr.f32.gmra.mrb[0].mxu0 %v4859
    %v4933 = vpop.f32.mrb[0].mxu0
    %v4934 = vadd.f32 0.0, %v4933
    %v4935 = vpop.f32.mrb[0].mxu0
    %4936 = vmatprep.mubr.f32.mxu0 0.0
    %4937 = vmatmul.mubr.f32.gmra.mrb[0].mxu0 %v4862
    %v4938 = vpop.f32.mrb[0].mxu0
    %v4939 = vadd.f32 0.0, %v4938
    %v4940 = vpop.f32.mrb[0].mxu0
    %4941 = vmatprep.mubr.f32.mxu0 0.0
    %4942 = vmatmul.mubr.f32.gmra.mrb[0].mxu0 %v4865
    %v4943 = vpop.f32.mrb[0].mxu0
    %v4944 = vadd.f32 0.0, %v4943
    %v4945 = vpop.f32.mrb[0].mxu0
    %4946 = vdwg.mxu0
    %v4948 = vsel %vm776, %v4855, 0
    %v4951 = vsel %vm776, %v4856, 0
    %v4954 = vsel %vm776, %v4857, 0
    %4956 = vmatprep.subr.mxu0 0.0
    %4957 = vmatpush1.msra.mxu0 %v4583
    %4958 = vmatprep.subr.mxu0 0.0
    %4959 = vmatpush1.msra.mxu0 %v4588
    %4960 = vmatprep.subr.mxu0 0.0
    %4961 = vmatpush1.msra.mxu0 %v4593
    %4962 = vmatprep.subr.mxu0 0.0
    %4963 = vmatpush1.msra.mxu0 0.0
    %4964 = vmatprep.subr.mxu0 0.0
    %4965 = vmatpush1.msra.mxu0 0.0
    %4966 = vmatprep.subr.mxu0 0.0
    %4967 = vmatpush1.msra.mxu0 0.0
    %4968 = vmatprep.subr.mxu0 0.0
    %4969 = vmatpush1.msra.mxu0 0.0
    %4970 = vmatprep.subr.mxu0 0.0
    %4971 = vmatpush1.msra.mxu0 0.0
    %4972 = vmatprep.subr.mxu0 0.0
    %4973 = vmatpush1.msra.mxu0 0.0
    %4974 = vmatprep.subr.mxu0 0.0
    %4975 = vmatpush1.msra.mxu0 0.0
    %4976 = vmatprep.subr.mxu0 0.0
    %4977 = vmatpush1.msra.mxu0 0.0
    %4978 = vmatprep.subr.mxu0 0.0
    %4979 = vmatpush1.msra.mxu0 0.0
    %4980 = vmatprep.subr.mxu0 0.0
    %4981 = vmatpush1.msra.mxu0 0.0
    %4982 = vmatprep.subr.mxu0 0.0
    %4983 = vmatpush1.msra.mxu0 0.0
    %4984 = vmatprep.subr.mxu0 0.0
    %4985 = vmatpush1.msra.mxu0 0.0
    %4986 = vmatprep.subr.mxu0 0.0
    %4987 = vmatpush1.msra.mxu0 0.0
    %4988 = vmatprep.subr.mxu0 0.0
    %4989 = vmatpush1.msra.mxu0 0.0
    %4990 = vmatprep.subr.mxu0 0.0
    %4991 = vmatpush1.msra.mxu0 0.0
    %4992 = vmatprep.subr.mxu0 0.0
    %4993 = vmatpush1.msra.mxu0 0.0
    %4994 = vmatprep.subr.mxu0 0.0
    %4995 = vmatpush1.msra.mxu0 0.0
    %4996 = vmatprep.subr.mxu0 0.0
    %4997 = vmatpush1.msra.mxu0 0.0
    %4998 = vmatprep.subr.mxu0 0.0
    %4999 = vmatpush1.msra.mxu0 0.0
    %5000 = vmatprep.subr.mxu0 0.0
    %5001 = vmatpush1.msra.mxu0 0.0
    %5002 = vmatprep.subr.mxu0 0.0
    %5003 = vmatpush1.msra.mxu0 0.0
    %5004 = vmatprep.subr.mxu0 0.0
    %5005 = vmatpush1.msra.mxu0 0.0
    %5006 = vmatprep.subr.mxu0 0.0
    %5007 = vmatpush1.msra.mxu0 0.0
    %5008 = vmatprep.subr.mxu0 0.0
    %5009 = vmatpush1.msra.mxu0 0.0
    %5010 = vmatprep.subr.mxu0 0.0
    %5011 = vmatpush1.msra.mxu0 0.0
    %5012 = vmatprep.subr.mxu0 0.0
    %5013 = vmatpush1.msra.mxu0 0.0
    %5014 = vmatprep.subr.mxu0 0.0
    %5015 = vmatpush1.msra.mxu0 0.0
    %5016 = vmatprep.subr.mxu0 0.0
    %5017 = vmatpush1.msra.mxu0 0.0
    %5018 = vmatprep.subr.mxu0 0.0
    %5019 = vmatpush1.msra.mxu0 0.0
    %5020 = vmatprep.mubr.f32.mxu0 0.0
    %5021 = vmatmul.mubr.f32.gmra.mrb[0].mxu0 %v4948
    %v5022 = vpop.f32.mrb[0].mxu0
    %v5023 = vadd.f32 0.0, %v5022
    %v5024 = vpop.f32.mrb[0].mxu0
    %5025 = vmatprep.mubr.f32.mxu0 0.0
    %5026 = vmatmul.mubr.f32.gmra.mrb[0].mxu0 %v4951
    %v5027 = vpop.f32.mrb[0].mxu0
    %v5028 = vadd.f32 0.0, %v5027
    %v5029 = vpop.f32.mrb[0].mxu0
    %5030 = vmatprep.mubr.f32.mxu0 0.0
    %5031 = vmatmul.mubr.f32.gmra.mrb[0].mxu0 %v4954
    %v5032 = vpop.f32.mrb[0].mxu0
    %v5033 = vadd.f32 0.0, %v5032
    %v5034 = vpop.f32.mrb[0].mxu0
    %5035 = vdwg.mxu0
    %v5036 = vld [vmem:[%s1 + $0x3c0] sm:$0xff]
    %v5037 = vld [vmem:[%s1 + $0x3e0] sm:$0xff]
    %v5038 = vld [vmem:[%s1 + $0x3e8] sm:$0xff]
    %v5039 = vld [vmem:[%s1 + $0x3f0] sm:$0xff]
    %v5040 = vld [vmem:[%s1 + $0x3f8] sm:$0xff]
    %v5041 = vld [vmem:[%s1 + $0x448] sm:$0x1]
    %v5042 = vlaneseq
    %v5043 = vshrl.u32 %v5042, 7
    %v5044 = vsub.s32 0, %v5043
    %v5045 = vrot.slane %v5041, %v5044
    %5046 = vmatprep.subr.mxu0 0.0
    %5047 = vmatpush1.msra.mxu0 %v5037
    %5048 = vmatprep.subr.mxu0 0.0
    %5049 = vmatpush1.msra.mxu0 %v5038
    %5050 = vmatprep.subr.mxu0 0.0
    %5051 = vmatpush1.msra.mxu0 %v5039
    %5052 = vmatprep.subr.mxu0 0.0
    %5053 = vmatpush1.msra.mxu0 %v5040
    %5054 = vmatprep.subr.mxu0 0.0
    %5055 = vmatpush1.msra.mxu0 0.0
    %5056 = vmatprep.subr.mxu0 0.0
    %5057 = vmatpush1.msra.mxu0 0.0
    %5058 = vmatprep.subr.mxu0 0.0
    %5059 = vmatpush1.msra.mxu0 0.0
    %5060 = vmatprep.subr.mxu0 0.0
    %5061 = vmatpush1.msra.mxu0 0.0
    %5062 = vmatprep.subr.mxu0 0.0
    %5063 = vmatpush1.msra.mxu0 0.0
    %5064 = vmatprep.subr.mxu0 0.0
    %5065 = vmatpush1.msra.mxu0 0.0
    %5066 = vmatprep.subr.mxu0 0.0
    %5067 = vmatpush1.msra.mxu0 0.0
    %5068 = vmatprep.subr.mxu0 0.0
    %5069 = vmatpush1.msra.mxu0 0.0
    %5070 = vmatprep.subr.mxu0 0.0
    %5071 = vmatpush1.msra.mxu0 0.0
    %5072 = vmatprep.subr.mxu0 0.0
    %5073 = vmatpush1.msra.mxu0 0.0
    %5074 = vmatprep.subr.mxu0 0.0
    %5075 = vmatpush1.msra.mxu0 0.0
    %5076 = vmatprep.subr.mxu0 0.0
    %5077 = vmatpush1.msra.mxu0 0.0
    %5078 = vmatprep.subr.mxu0 0.0
    %5079 = vmatpush1.msra.mxu0 0.0
    %5080 = vmatprep.subr.mxu0 0.0
    %5081 = vmatpush1.msra.mxu0 0.0
    %5082 = vmatprep.subr.mxu0 0.0
    %5083 = vmatpush1.msra.mxu0 0.0
    %5084 = vmatprep.subr.mxu0 0.0
    %5085 = vmatpush1.msra.mxu0 0.0
    %5086 = vmatprep.subr.mxu0 0.0
    %5087 = vmatpush1.msra.mxu0 0.0
    %5088 = vmatprep.subr.mxu0 0.0
    %5089 = vmatpush1.msra.mxu0 0.0
    %5090 = vmatprep.subr.mxu0 0.0
    %5091 = vmatpush1.msra.mxu0 0.0
    %5092 = vmatprep.subr.mxu0 0.0
    %5093 = vmatpush1.msra.mxu0 0.0
    %5094 = vmatprep.subr.mxu0 0.0
    %5095 = vmatpush1.msra.mxu0 0.0
    %5096 = vmatprep.subr.mxu0 0.0
    %5097 = vmatpush1.msra.mxu0 0.0
    %5098 = vmatprep.subr.mxu0 0.0
    %5099 = vmatpush1.msra.mxu0 0.0
    %5100 = vmatprep.subr.mxu0 0.0
    %5101 = vmatpush1.msra.mxu0 0.0
    %5102 = vmatprep.subr.mxu0 0.0
    %5103 = vmatpush1.msra.mxu0 0.0
    %5104 = vmatprep.subr.mxu0 0.0
    %5105 = vmatpush1.msra.mxu0 0.0
    %5106 = vmatprep.subr.mxu0 0.0
    %5107 = vmatpush1.msra.mxu0 0.0
    %5108 = vmatprep.subr.mxu0 0.0
    %5109 = vmatpush1.msra.mxu0 0.0
    %5110 = vmatprep.mubr.f32.mxu0 0.0
    %5111 = vmatmul.mubr.f32.gmra.mrb[0].mxu0 %v4276
    %v5112 = vpop.f32.mrb[0].mxu0
    %v5113 = vadd.f32 %v5045, %v5112
    %v5114 = vpop.f32.mrb[0].mxu0
    %5115 = vmatprep.mubr.f32.mxu0 0.0
    %5116 = vmatmul.mubr.f32.gmra.mrb[0].mxu0 %v4279
    %v5117 = vpop.f32.mrb[0].mxu0
    %v5118 = vadd.f32 %v5045, %v5117
    %v5119 = vpop.f32.mrb[0].mxu0
    %5120 = vmatprep.mubr.f32.mxu0 0.0
    %5121 = vmatmul.mubr.f32.gmra.mrb[0].mxu0 %v4282
    %v5122 = vpop.f32.mrb[0].mxu0
    %v5123 = vadd.f32 %v5045, %v5122
    %v5124 = vpop.f32.mrb[0].mxu0
    %5125 = vmatprep.mubr.f32.mxu0 0.0
    %5126 = vmatmul.mubr.f32.gmra.mrb[0].mxu0 %v4285
    %v5127 = vpop.f32.mrb[0].mxu0
    %v5128 = vadd.f32 %v5045, %v5127
    %v5129 = vpop.f32.mrb[0].mxu0
    %5130 = vmatprep.mubr.f32.mxu0 0.0
    %5131 = vmatmul.mubr.f32.gmra.mrb[0].mxu0 %v4288
    %v5132 = vpop.f32.mrb[0].mxu0
    %v5133 = vadd.f32 %v5045, %v5132
    %v5134 = vpop.f32.mrb[0].mxu0
    %5135 = vmatprep.mubr.f32.mxu0 0.0
    %5136 = vmatmul.mubr.f32.gmra.mrb[0].mxu0 %v4291
    %v5137 = vpop.f32.mrb[0].mxu0
    %v5138 = vadd.f32 %v5045, %v5137
    %v5139 = vpop.f32.mrb[0].mxu0
    %5140 = vdwg.mxu0
    %v5141 = vld [vmem:[%s1 + $0x400] sm:$0xff]
    %v5142 = vld [vmem:[%s1 + $0x408] sm:$0xff]
    %v5143 = vld [vmem:[%s1 + $0x410] sm:$0xff]
    %v5144 = vld [vmem:[%s1 + $0x418] sm:$0xff]
    %v5145 = vld [vmem:[%s1 + $0x450] sm:$0x1]
    %v5146 = vlaneseq
    %v5147 = vshrl.u32 %v5146, 7
    %v5148 = vsub.s32 0, %v5147
    %v5149 = vrot.slane %v5145, %v5148
    %5150 = vmatprep.subr.mxu0 0.0
    %5151 = vmatpush1.msra.mxu0 %v5141
    %5152 = vmatprep.subr.mxu0 0.0
    %5153 = vmatpush1.msra.mxu0 %v5142
    %5154 = vmatprep.subr.mxu0 0.0
    %5155 = vmatpush1.msra.mxu0 %v5143
    %5156 = vmatprep.subr.mxu0 0.0
    %5157 = vmatpush1.msra.mxu0 %v5144
    %5158 = vmatprep.subr.mxu0 0.0
    %5159 = vmatpush1.msra.mxu0 0.0
    %5160 = vmatprep.subr.mxu0 0.0
    %5161 = vmatpush1.msra.mxu0 0.0
    %5162 = vmatprep.subr.mxu0 0.0
    %5163 = vmatpush1.msra.mxu0 0.0
    %5164 = vmatprep.subr.mxu0 0.0
    %5165 = vmatpush1.msra.mxu0 0.0
    %5166 = vmatprep.subr.mxu0 0.0
    %5167 = vmatpush1.msra.mxu0 0.0
    %5168 = vmatprep.subr.mxu0 0.0
    %5169 = vmatpush1.msra.mxu0 0.0
    %5170 = vmatprep.subr.mxu0 0.0
    %5171 = vmatpush1.msra.mxu0 0.0
    %5172 = vmatprep.subr.mxu0 0.0
    %5173 = vmatpush1.msra.mxu0 0.0
    %5174 = vmatprep.subr.mxu0 0.0
    %5175 = vmatpush1.msra.mxu0 0.0
    %5176 = vmatprep.subr.mxu0 0.0
    %5177 = vmatpush1.msra.mxu0 0.0
    %5178 = vmatprep.subr.mxu0 0.0
    %5179 = vmatpush1.msra.mxu0 0.0
    %5180 = vmatprep.subr.mxu0 0.0
    %5181 = vmatpush1.msra.mxu0 0.0
    %5182 = vmatprep.subr.mxu0 0.0
    %5183 = vmatpush1.msra.mxu0 0.0
    %5184 = vmatprep.subr.mxu0 0.0
    %5185 = vmatpush1.msra.mxu0 0.0
    %5186 = vmatprep.subr.mxu0 0.0
    %5187 = vmatpush1.msra.mxu0 0.0
    %5188 = vmatprep.subr.mxu0 0.0
    %5189 = vmatpush1.msra.mxu0 0.0
    %5190 = vmatprep.subr.mxu0 0.0
    %5191 = vmatpush1.msra.mxu0 0.0
    %5192 = vmatprep.subr.mxu0 0.0
    %5193 = vmatpush1.msra.mxu0 0.0
    %5194 = vmatprep.subr.mxu0 0.0
    %5195 = vmatpush1.msra.mxu0 0.0
    %5196 = vmatprep.subr.mxu0 0.0
    %5197 = vmatpush1.msra.mxu0 0.0
    %5198 = vmatprep.subr.mxu0 0.0
    %5199 = vmatpush1.msra.mxu0 0.0
    %5200 = vmatprep.subr.mxu0 0.0
    %5201 = vmatpush1.msra.mxu0 0.0
    %5202 = vmatprep.subr.mxu0 0.0
    %5203 = vmatpush1.msra.mxu0 0.0
    %5204 = vmatprep.subr.mxu0 0.0
    %5205 = vmatpush1.msra.mxu0 0.0
    %5206 = vmatprep.subr.mxu0 0.0
    %5207 = vmatpush1.msra.mxu0 0.0
    %5208 = vmatprep.subr.mxu0 0.0
    %5209 = vmatpush1.msra.mxu0 0.0
    %5210 = vmatprep.subr.mxu0 0.0
    %5211 = vmatpush1.msra.mxu0 0.0
    %5212 = vmatprep.subr.mxu0 0.0
    %5213 = vmatpush1.msra.mxu0 0.0
    %5214 = vmatprep.mubr.f32.mxu0 0.0
    %5215 = vmatmul.mubr.f32.gmra.mrb[0].mxu0 %v4276
    %v5216 = vpop.f32.mrb[0].mxu0
    %v5217 = vadd.f32 %v5149, %v5216
    %v5218 = vpop.f32.mrb[0].mxu0
    %5219 = vmatprep.mubr.f32.mxu0 0.0
    %5220 = vmatmul.mubr.f32.gmra.mrb[0].mxu0 %v4279
    %v5221 = vpop.f32.mrb[0].mxu0
    %v5222 = vadd.f32 %v5149, %v5221
    %v5223 = vpop.f32.mrb[0].mxu0
    %5224 = vmatprep.mubr.f32.mxu0 0.0
    %5225 = vmatmul.mubr.f32.gmra.mrb[0].mxu0 %v4282
    %v5226 = vpop.f32.mrb[0].mxu0
    %v5227 = vadd.f32 %v5149, %v5226
    %v5228 = vpop.f32.mrb[0].mxu0
    %5229 = vmatprep.mubr.f32.mxu0 0.0
    %5230 = vmatmul.mubr.f32.gmra.mrb[0].mxu0 %v4285
    %v5231 = vpop.f32.mrb[0].mxu0
    %v5232 = vadd.f32 %v5149, %v5231
    %v5233 = vpop.f32.mrb[0].mxu0
    %5234 = vmatprep.mubr.f32.mxu0 0.0
    %5235 = vmatmul.mubr.f32.gmra.mrb[0].mxu0 %v4288
    %v5236 = vpop.f32.mrb[0].mxu0
    %v5237 = vadd.f32 %v5149, %v5236
    %v5238 = vpop.f32.mrb[0].mxu0
    %5239 = vmatprep.mubr.f32.mxu0 0.0
    %5240 = vmatmul.mubr.f32.gmra.mrb[0].mxu0 %v4291
    %v5241 = vpop.f32.mrb[0].mxu0
    %v5242 = vadd.f32 %v5149, %v5241
    %v5243 = vpop.f32.mrb[0].mxu0
    %5244 = vdwg.mxu0
    %v5245 = vld [vmem:[%s1 + $0x420] sm:$0xff]
    %v5246 = vld [vmem:[%s1 + $0x428] sm:$0xff]
    %v5247 = vld [vmem:[%s1 + $0x430] sm:$0xff]
    %v5248 = vld [vmem:[%s1 + $0x438] sm:$0xff]
    %v5249 = vld [vmem:[%s1 + $0x458] sm:$0x1]
    %v5250 = vlaneseq
    %v5251 = vshrl.u32 %v5250, 7
    %v5252 = vsub.s32 0, %v5251
    %v5253 = vrot.slane %v5249, %v5252
    %5254 = vmatprep.subr.mxu0 0.0
    %5255 = vmatpush1.msra.mxu0 %v5245
    %5256 = vmatprep.subr.mxu0 0.0
    %5257 = vmatpush1.msra.mxu0 %v5246
    %5258 = vmatprep.subr.mxu0 0.0
    %5259 = vmatpush1.msra.mxu0 %v5247
    %5260 = vmatprep.subr.mxu0 0.0
    %5261 = vmatpush1.msra.mxu0 %v5248
    %5262 = vmatprep.subr.mxu0 0.0
    %5263 = vmatpush1.msra.mxu0 0.0
    %5264 = vmatprep.subr.mxu0 0.0
    %5265 = vmatpush1.msra.mxu0 0.0
    %5266 = vmatprep.subr.mxu0 0.0
    %5267 = vmatpush1.msra.mxu0 0.0
    %5268 = vmatprep.subr.mxu0 0.0
    %5269 = vmatpush1.msra.mxu0 0.0
    %5270 = vmatprep.subr.mxu0 0.0
    %5271 = vmatpush1.msra.mxu0 0.0
    %5272 = vmatprep.subr.mxu0 0.0
    %5273 = vmatpush1.msra.mxu0 0.0
    %5274 = vmatprep.subr.mxu0 0.0
    %5275 = vmatpush1.msra.mxu0 0.0
    %5276 = vmatprep.subr.mxu0 0.0
    %5277 = vmatpush1.msra.mxu0 0.0
    %5278 = vmatprep.subr.mxu0 0.0
    %5279 = vmatpush1.msra.mxu0 0.0
    %5280 = vmatprep.subr.mxu0 0.0
    %5281 = vmatpush1.msra.mxu0 0.0
    %5282 = vmatprep.subr.mxu0 0.0
    %5283 = vmatpush1.msra.mxu0 0.0
    %5284 = vmatprep.subr.mxu0 0.0
    %5285 = vmatpush1.msra.mxu0 0.0
    %5286 = vmatprep.subr.mxu0 0.0
    %5287 = vmatpush1.msra.mxu0 0.0
    %5288 = vmatprep.subr.mxu0 0.0
    %5289 = vmatpush1.msra.mxu0 0.0
    %5290 = vmatprep.subr.mxu0 0.0
    %5291 = vmatpush1.msra.mxu0 0.0
    %5292 = vmatprep.subr.mxu0 0.0
    %5293 = vmatpush1.msra.mxu0 0.0
    %5294 = vmatprep.subr.mxu0 0.0
    %5295 = vmatpush1.msra.mxu0 0.0
    %5296 = vmatprep.subr.mxu0 0.0
    %5297 = vmatpush1.msra.mxu0 0.0
    %5298 = vmatprep.subr.mxu0 0.0
    %5299 = vmatpush1.msra.mxu0 0.0
    %5300 = vmatprep.subr.mxu0 0.0
    %5301 = vmatpush1.msra.mxu0 0.0
    %5302 = vmatprep.subr.mxu0 0.0
    %5303 = vmatpush1.msra.mxu0 0.0
    %5304 = vmatprep.subr.mxu0 0.0
    %5305 = vmatpush1.msra.mxu0 0.0
    %5306 = vmatprep.subr.mxu0 0.0
    %5307 = vmatpush1.msra.mxu0 0.0
    %5308 = vmatprep.subr.mxu0 0.0
    %5309 = vmatpush1.msra.mxu0 0.0
    %5310 = vmatprep.subr.mxu0 0.0
    %5311 = vmatpush1.msra.mxu0 0.0
    %5312 = vmatprep.subr.mxu0 0.0
    %5313 = vmatpush1.msra.mxu0 0.0
    %5314 = vmatprep.subr.mxu0 0.0
    %5315 = vmatpush1.msra.mxu0 0.0
    %5316 = vmatprep.subr.mxu0 0.0
    %5317 = vmatpush1.msra.mxu0 0.0
    %5318 = vmatprep.mubr.f32.mxu0 0.0
    %5319 = vmatmul.mubr.f32.gmra.mrb[0].mxu0 %v4276
    %v5320 = vpop.f32.mrb[0].mxu0
    %v5321 = vadd.f32 %v5253, %v5320
    %v5322 = vpop.f32.mrb[0].mxu0
    %5323 = vmatprep.mubr.f32.mxu0 0.0
    %5324 = vmatmul.mubr.f32.gmra.mrb[0].mxu0 %v4279
    %v5325 = vpop.f32.mrb[0].mxu0
    %v5326 = vadd.f32 %v5253, %v5325
    %v5327 = vpop.f32.mrb[0].mxu0
    %5328 = vmatprep.mubr.f32.mxu0 0.0
    %5329 = vmatmul.mubr.f32.gmra.mrb[0].mxu0 %v4282
    %v5330 = vpop.f32.mrb[0].mxu0
    %v5331 = vadd.f32 %v5253, %v5330
    %v5332 = vpop.f32.mrb[0].mxu0
    %5333 = vmatprep.mubr.f32.mxu0 0.0
    %5334 = vmatmul.mubr.f32.gmra.mrb[0].mxu0 %v4285
    %v5335 = vpop.f32.mrb[0].mxu0
    %v5336 = vadd.f32 %v5253, %v5335
    %v5337 = vpop.f32.mrb[0].mxu0
    %5338 = vmatprep.mubr.f32.mxu0 0.0
    %5339 = vmatmul.mubr.f32.gmra.mrb[0].mxu0 %v4288
    %v5340 = vpop.f32.mrb[0].mxu0
    %v5341 = vadd.f32 %v5253, %v5340
    %v5342 = vpop.f32.mrb[0].mxu0
    %5343 = vmatprep.mubr.f32.mxu0 0.0
    %5344 = vmatmul.mubr.f32.gmra.mrb[0].mxu0 %v4291
    %v5345 = vpop.f32.mrb[0].mxu0
    %v5346 = vadd.f32 %v5253, %v5345
    %v5347 = vpop.f32.mrb[0].mxu0
    %5348 = vdwg.mxu0
    %v5350 = vsel %vm579, %v5113, 0
    %v5353 = vsel %vm579, %v5118, 0
    %v5356 = vsel %vm579, %v5123, 0
    %v5359 = vsel %vm579, %v5217, 0
    %v5362 = vsel %vm579, %v5222, 0
    %v5365 = vsel %vm579, %v5227, 0
    %5367 = vmatprep.subr.mxu0 0.0
    %5368 = vmatpush1.xpose.msra.mxu0 %v5359
    %5369 = vmatprep.subr.mxu0 0.0
    %5370 = vmatpush1.xpose.msra.mxu0 %v5362
    %5371 = vmatprep.subr.mxu0 0.0
    %5372 = vmatpush1.xpose.msra.mxu0 %v5365
    %5373 = vmatprep.subr.mxu0 0.0
    %5374 = vmatpush1.xpose.msra.mxu0 0.0
    %5375 = vmatprep.subr.mxu0 0.0
    %5376 = vmatpush1.xpose.msra.mxu0 0.0
    %5377 = vmatprep.subr.mxu0 0.0
    %5378 = vmatpush1.xpose.msra.mxu0 0.0
    %5379 = vmatprep.subr.mxu0 0.0
    %5380 = vmatpush1.xpose.msra.mxu0 0.0
    %5381 = vmatprep.subr.mxu0 0.0
    %5382 = vmatpush1.xpose.msra.mxu0 0.0
    %5383 = vmatprep.subr.mxu0 0.0
    %5384 = vmatpush1.xpose.msra.mxu0 0.0
    %5385 = vmatprep.subr.mxu0 0.0
    %5386 = vmatpush1.xpose.msra.mxu0 0.0
    %5387 = vmatprep.subr.mxu0 0.0
    %5388 = vmatpush1.xpose.msra.mxu0 0.0
    %5389 = vmatprep.subr.mxu0 0.0
    %5390 = vmatpush1.xpose.msra.mxu0 0.0
    %5391 = vmatprep.subr.mxu0 0.0
    %5392 = vmatpush1.xpose.msra.mxu0 0.0
    %5393 = vmatprep.subr.mxu0 0.0
    %5394 = vmatpush1.xpose.msra.mxu0 0.0
    %5395 = vmatprep.subr.mxu0 0.0
    %5396 = vmatpush1.xpose.msra.mxu0 0.0
    %5397 = vmatprep.subr.mxu0 0.0
    %5398 = vmatpush1.xpose.msra.mxu0 0.0
    %5399 = vmatprep.subr.mxu0 0.0
    %5400 = vmatpush1.xpose.msra.mxu0 0.0
    %5401 = vmatprep.subr.mxu0 0.0
    %5402 = vmatpush1.xpose.msra.mxu0 0.0
    %5403 = vmatprep.subr.mxu0 0.0
    %5404 = vmatpush1.xpose.msra.mxu0 0.0
    %5405 = vmatprep.subr.mxu0 0.0
    %5406 = vmatpush1.xpose.msra.mxu0 0.0
    %5407 = vmatprep.subr.mxu0 0.0
    %5408 = vmatpush1.xpose.msra.mxu0 0.0
    %5409 = vmatprep.subr.mxu0 0.0
    %5410 = vmatpush1.xpose.msra.mxu0 0.0
    %5411 = vmatprep.subr.mxu0 0.0
    %5412 = vmatpush1.xpose.msra.mxu0 0.0
    %5413 = vmatprep.subr.mxu0 0.0
    %5414 = vmatpush1.xpose.msra.mxu0 0.0
    %5415 = vmatprep.subr.mxu0 0.0
    %5416 = vmatpush1.xpose.msra.mxu0 0.0
    %5417 = vmatprep.subr.mxu0 0.0
    %5418 = vmatpush1.xpose.msra.mxu0 0.0
    %5419 = vmatprep.subr.mxu0 0.0
    %5420 = vmatpush1.xpose.msra.mxu0 0.0
    %5421 = vmatprep.subr.mxu0 0.0
    %5422 = vmatpush1.xpose.msra.mxu0 0.0
    %5423 = vmatprep.subr.mxu0 0.0
    %5424 = vmatpush1.xpose.msra.mxu0 0.0
    %5425 = vmatprep.subr.mxu0 0.0
    %5426 = vmatpush1.xpose.msra.mxu0 0.0
    %5427 = vmatprep.subr.mxu0 0.0
    %5428 = vmatpush1.xpose.msra.mxu0 0.0
    %5429 = vmatprep.subr.mxu0 0.0
    %5430 = vmatpush1.xpose.msra.mxu0 0.0
    %5431 = vmatprep.mubr.f32.mxu0 0.0
    %5432 = vmatmul.mubr.f32.gmra.mrb[0].mxu0 %v5350
    %v5433 = vpop.f32.mrb[0].mxu0
    %v5434 = vadd.f32 %v144, %v5433
    %v5435 = vpop.f32.mrb[0].mxu0
    %5436 = vmatprep.mubr.f32.mxu0 0.0
    %5437 = vmatmul.mubr.f32.gmra.mrb[0].mxu0 %v5353
    %v5438 = vpop.f32.mrb[0].mxu0
    %v5439 = vadd.f32 %v145, %v5438
    %v5440 = vpop.f32.mrb[0].mxu0
    %5441 = vmatprep.mubr.f32.mxu0 0.0
    %5442 = vmatmul.mubr.f32.gmra.mrb[0].mxu0 %v5356
    %v5443 = vpop.f32.mrb[0].mxu0
    %v5444 = vadd.f32 %v146, %v5443
    %v5445 = vpop.f32.mrb[0].mxu0
    %5446 = vdwg.mxu0
    %v5448 = vsel %vm579, %v5128, 0
    %v5451 = vsel %vm579, %v5133, 0
    %v5454 = vsel %vm579, %v5138, 0
    %v5457 = vsel %vm579, %v5232, 0
    %v5460 = vsel %vm579, %v5237, 0
    %v5463 = vsel %vm579, %v5242, 0
    %5465 = vmatprep.subr.mxu0 0.0
    %5466 = vmatpush1.xpose.msra.mxu0 %v5457
    %5467 = vmatprep.subr.mxu0 0.0
    %5468 = vmatpush1.xpose.msra.mxu0 %v5460
    %5469 = vmatprep.subr.mxu0 0.0
    %5470 = vmatpush1.xpose.msra.mxu0 %v5463
    %5471 = vmatprep.subr.mxu0 0.0
    %5472 = vmatpush1.xpose.msra.mxu0 0.0
    %5473 = vmatprep.subr.mxu0 0.0
    %5474 = vmatpush1.xpose.msra.mxu0 0.0
    %5475 = vmatprep.subr.mxu0 0.0
    %5476 = vmatpush1.xpose.msra.mxu0 0.0
    %5477 = vmatprep.subr.mxu0 0.0
    %5478 = vmatpush1.xpose.msra.mxu0 0.0
    %5479 = vmatprep.subr.mxu0 0.0
    %5480 = vmatpush1.xpose.msra.mxu0 0.0
    %5481 = vmatprep.subr.mxu0 0.0
    %5482 = vmatpush1.xpose.msra.mxu0 0.0
    %5483 = vmatprep.subr.mxu0 0.0
    %5484 = vmatpush1.xpose.msra.mxu0 0.0
    %5485 = vmatprep.subr.mxu0 0.0
    %5486 = vmatpush1.xpose.msra.mxu0 0.0
    %5487 = vmatprep.subr.mxu0 0.0
    %5488 = vmatpush1.xpose.msra.mxu0 0.0
    %5489 = vmatprep.subr.mxu0 0.0
    %5490 = vmatpush1.xpose.msra.mxu0 0.0
    %5491 = vmatprep.subr.mxu0 0.0
    %5492 = vmatpush1.xpose.msra.mxu0 0.0
    %5493 = vmatprep.subr.mxu0 0.0
    %5494 = vmatpush1.xpose.msra.mxu0 0.0
    %5495 = vmatprep.subr.mxu0 0.0
    %5496 = vmatpush1.xpose.msra.mxu0 0.0
    %5497 = vmatprep.subr.mxu0 0.0
    %5498 = vmatpush1.xpose.msra.mxu0 0.0
    %5499 = vmatprep.subr.mxu0 0.0
    %5500 = vmatpush1.xpose.msra.mxu0 0.0
    %5501 = vmatprep.subr.mxu0 0.0
    %5502 = vmatpush1.xpose.msra.mxu0 0.0
    %5503 = vmatprep.subr.mxu0 0.0
    %5504 = vmatpush1.xpose.msra.mxu0 0.0
    %5505 = vmatprep.subr.mxu0 0.0
    %5506 = vmatpush1.xpose.msra.mxu0 0.0
    %5507 = vmatprep.subr.mxu0 0.0
    %5508 = vmatpush1.xpose.msra.mxu0 0.0
    %5509 = vmatprep.subr.mxu0 0.0
    %5510 = vmatpush1.xpose.msra.mxu0 0.0
    %5511 = vmatprep.subr.mxu0 0.0
    %5512 = vmatpush1.xpose.msra.mxu0 0.0
    %5513 = vmatprep.subr.mxu0 0.0
    %5514 = vmatpush1.xpose.msra.mxu0 0.0
    %5515 = vmatprep.subr.mxu0 0.0
    %5516 = vmatpush1.xpose.msra.mxu0 0.0
    %5517 = vmatprep.subr.mxu0 0.0
    %5518 = vmatpush1.xpose.msra.mxu0 0.0
    %5519 = vmatprep.subr.mxu0 0.0
    %5520 = vmatpush1.xpose.msra.mxu0 0.0
    %5521 = vmatprep.subr.mxu0 0.0
    %5522 = vmatpush1.xpose.msra.mxu0 0.0
    %5523 = vmatprep.subr.mxu0 0.0
    %5524 = vmatpush1.xpose.msra.mxu0 0.0
    %5525 = vmatprep.subr.mxu0 0.0
    %5526 = vmatpush1.xpose.msra.mxu0 0.0
    %5527 = vmatprep.subr.mxu0 0.0
    %5528 = vmatpush1.xpose.msra.mxu0 0.0
    %5529 = vmatprep.mubr.f32.mxu0 0.0
    %5530 = vmatmul.mubr.f32.gmra.mrb[0].mxu0 %v5448
    %v5531 = vpop.f32.mrb[0].mxu0
    %v5532 = vadd.f32 %v144, %v5531
    %v5533 = vpop.f32.mrb[0].mxu0
    %5534 = vmatprep.mubr.f32.mxu0 0.0
    %5535 = vmatmul.mubr.f32.gmra.mrb[0].mxu0 %v5451
    %v5536 = vpop.f32.mrb[0].mxu0
    %v5537 = vadd.f32 %v145, %v5536
    %v5538 = vpop.f32.mrb[0].mxu0
    %5539 = vmatprep.mubr.f32.mxu0 0.0
    %5540 = vmatmul.mubr.f32.gmra.mrb[0].mxu0 %v5454
    %v5541 = vpop.f32.mrb[0].mxu0
    %v5542 = vadd.f32 %v146, %v5541
    %v5543 = vpop.f32.mrb[0].mxu0
    %5544 = vdwg.mxu0
    %v5545 = vsel %vm776, %v5434, -inf
    %5546 = vmax.xlane.f32.xlu0 %v5545
    %v5547 = vpop.xlane.xlu0 %5546
    %v5548 = vsel %vm776, %v5439, -inf
    %5549 = vmax.xlane.f32.xlu0 %v5548
    %v5550 = vpop.xlane.xlu0 %5549
    %v5551 = vsel %vm776, %v5444, -inf
    %5552 = vmax.xlane.f32.xlu0 %v5551
    %v5553 = vpop.xlane.xlu0 %5552
    %v5554 = vsel %vm776, %v5532, -inf
    %5555 = vmax.xlane.f32.xlu0 %v5554
    %v5556 = vpop.xlane.xlu0 %5555
    %v5557 = vsel %vm776, %v5537, -inf
    %5558 = vmax.xlane.f32.xlu0 %v5557
    %v5559 = vpop.xlane.xlu0 %5558
    %v5560 = vsel %vm776, %v5542, -inf
    %5561 = vmax.xlane.f32.xlu0 %v5560
    %v5562 = vpop.xlane.xlu0 %5561
    %v5563 = vsub.f32 %v5434, %v5547
    %v5564 = vsub.f32 %v5439, %v5550
    %v5565 = vsub.f32 %v5444, %v5553
    %v5566 = vsub.f32 %v5532, %v5556
    %v5567 = vsub.f32 %v5537, %v5559
    %v5568 = vsub.f32 %v5542, %v5562
    %v5569 = vmul.f32 %v5563, 1.442695
    %v5570 = vpow.pop %v5569
    %v5571 = vmul.f32 %v5564, 1.442695
    %v5572 = vpow.pop %v5571
    %v5573 = vmul.f32 %v5565, 1.442695
    %v5574 = vpow.pop %v5573
    %v5575 = vmul.f32 %v5566, 1.442695
    %v5576 = vpow.pop %v5575
    %v5577 = vmul.f32 %v5567, 1.442695
    %v5578 = vpow.pop %v5577
    %v5579 = vmul.f32 %v5568, 1.442695
    %v5580 = vpow.pop %v5579
    %v5581 = vsel %vm776, %v5570, 0.0
    %5582 = vadd.xlane.f32.xlu0 %v5581
    %v5583 = vpop.xlane.xlu0 %5582
    %v5584 = vsel %vm776, %v5572, 0.0
    %5585 = vadd.xlane.f32.xlu0 %v5584
    %v5586 = vpop.xlane.xlu0 %5585
    %v5587 = vsel %vm776, %v5574, 0.0
    %5588 = vadd.xlane.f32.xlu0 %v5587
    %v5589 = vpop.xlane.xlu0 %5588
    %v5590 = vsel %vm776, %v5576, 0.0
    %5591 = vadd.xlane.f32.xlu0 %v5590
    %v5592 = vpop.xlane.xlu0 %5591
    %v5593 = vsel %vm776, %v5578, 0.0
    %5594 = vadd.xlane.f32.xlu0 %v5593
    %v5595 = vpop.xlane.xlu0 %5594
    %v5596 = vsel %vm776, %v5580, 0.0
    %5597 = vadd.xlane.f32.xlu0 %v5596
    %v5598 = vpop.xlane.xlu0 %5597
    %v5599 = vrcp.pop %v5583
    %v5600 = vrcp.pop %v5586
    %v5601 = vrcp.pop %v5589
    %v5602 = vrcp.pop %v5592
    %v5603 = vrcp.pop %v5595
    %v5604 = vrcp.pop %v5598
    %v5605 = vmul.f32 %v5570, %v5599
    %v5606 = vmul.f32 %v5572, %v5600
    %v5607 = vmul.f32 %v5574, %v5601
    %v5608 = vmul.f32 %v5576, %v5602
    %v5609 = vmul.f32 %v5578, %v5603
    %v5610 = vmul.f32 %v5580, %v5604
    %v5612 = vsel %vm776, %v5605, 0
    %v5615 = vsel %vm776, %v5606, 0
    %v5618 = vsel %vm776, %v5607, 0
    %5620 = vmatprep.subr.mxu0 0.0
    %5621 = vmatpush1.msra.mxu0 %v5321
    %5622 = vmatprep.subr.mxu0 0.0
    %5623 = vmatpush1.msra.mxu0 %v5326
    %5624 = vmatprep.subr.mxu0 0.0
    %5625 = vmatpush1.msra.mxu0 %v5331
    %5626 = vmatprep.subr.mxu0 0.0
    %5627 = vmatpush1.msra.mxu0 0.0
    %5628 = vmatprep.subr.mxu0 0.0
    %5629 = vmatpush1.msra.mxu0 0.0
    %5630 = vmatprep.subr.mxu0 0.0
    %5631 = vmatpush1.msra.mxu0 0.0
    %5632 = vmatprep.subr.mxu0 0.0
    %5633 = vmatpush1.msra.mxu0 0.0
    %5634 = vmatprep.subr.mxu0 0.0
    %5635 = vmatpush1.msra.mxu0 0.0
    %5636 = vmatprep.subr.mxu0 0.0
    %5637 = vmatpush1.msra.mxu0 0.0
    %5638 = vmatprep.subr.mxu0 0.0
    %5639 = vmatpush1.msra.mxu0 0.0
    %5640 = vmatprep.subr.mxu0 0.0
    %5641 = vmatpush1.msra.mxu0 0.0
    %5642 = vmatprep.subr.mxu0 0.0
    %5643 = vmatpush1.msra.mxu0 0.0
    %5644 = vmatprep.subr.mxu0 0.0
    %5645 = vmatpush1.msra.mxu0 0.0
    %5646 = vmatprep.subr.mxu0 0.0
    %5647 = vmatpush1.msra.mxu0 0.0
    %5648 = vmatprep.subr.mxu0 0.0
    %5649 = vmatpush1.msra.mxu0 0.0
    %5650 = vmatprep.subr.mxu0 0.0
    %5651 = vmatpush1.msra.mxu0 0.0
    %5652 = vmatprep.subr.mxu0 0.0
    %5653 = vmatpush1.msra.mxu0 0.0
    %5654 = vmatprep.subr.mxu0 0.0
    %5655 = vmatpush1.msra.mxu0 0.0
    %5656 = vmatprep.subr.mxu0 0.0
    %5657 = vmatpush1.msra.mxu0 0.0
    %5658 = vmatprep.subr.mxu0 0.0
    %5659 = vmatpush1.msra.mxu0 0.0
    %5660 = vmatprep.subr.mxu0 0.0
    %5661 = vmatpush1.msra.mxu0 0.0
    %5662 = vmatprep.subr.mxu0 0.0
    %5663 = vmatpush1.msra.mxu0 0.0
    %5664 = vmatprep.subr.mxu0 0.0
    %5665 = vmatpush1.msra.mxu0 0.0
    %5666 = vmatprep.subr.mxu0 0.0
    %5667 = vmatpush1.msra.mxu0 0.0
    %5668 = vmatprep.subr.mxu0 0.0
    %5669 = vmatpush1.msra.mxu0 0.0
    %5670 = vmatprep.subr.mxu0 0.0
    %5671 = vmatpush1.msra.mxu0 0.0
    %5672 = vmatprep.subr.mxu0 0.0
    %5673 = vmatpush1.msra.mxu0 0.0
    %5674 = vmatprep.subr.mxu0 0.0
    %5675 = vmatpush1.msra.mxu0 0.0
    %5676 = vmatprep.subr.mxu0 0.0
    %5677 = vmatpush1.msra.mxu0 0.0
    %5678 = vmatprep.subr.mxu0 0.0
    %5679 = vmatpush1.msra.mxu0 0.0
    %5680 = vmatprep.subr.mxu0 0.0
    %5681 = vmatpush1.msra.mxu0 0.0
    %5682 = vmatprep.subr.mxu0 0.0
    %5683 = vmatpush1.msra.mxu0 0.0
    %5684 = vmatprep.mubr.f32.mxu0 0.0
    %5685 = vmatmul.mubr.f32.gmra.mrb[0].mxu0 %v5612
    %v5686 = vpop.f32.mrb[0].mxu0
    %v5687 = vadd.f32 0.0, %v5686
    %v5688 = vpop.f32.mrb[0].mxu0
    %5689 = vmatprep.mubr.f32.mxu0 0.0
    %5690 = vmatmul.mubr.f32.gmra.mrb[0].mxu0 %v5615
    %v5691 = vpop.f32.mrb[0].mxu0
    %v5692 = vadd.f32 0.0, %v5691
    %v5693 = vpop.f32.mrb[0].mxu0
    %5694 = vmatprep.mubr.f32.mxu0 0.0
    %5695 = vmatmul.mubr.f32.gmra.mrb[0].mxu0 %v5618
    %v5696 = vpop.f32.mrb[0].mxu0
    %v5697 = vadd.f32 0.0, %v5696
    %v5698 = vpop.f32.mrb[0].mxu0
    %5699 = vdwg.mxu0
    %v5701 = vsel %vm776, %v5608, 0
    %v5704 = vsel %vm776, %v5609, 0
    %v5707 = vsel %vm776, %v5610, 0
    %5709 = vmatprep.subr.mxu0 0.0
    %5710 = vmatpush1.msra.mxu0 %v5336
    %5711 = vmatprep.subr.mxu0 0.0
    %5712 = vmatpush1.msra.mxu0 %v5341
    %5713 = vmatprep.subr.mxu0 0.0
    %5714 = vmatpush1.msra.mxu0 %v5346
    %5715 = vmatprep.subr.mxu0 0.0
    %5716 = vmatpush1.msra.mxu0 0.0
    %5717 = vmatprep.subr.mxu0 0.0
    %5718 = vmatpush1.msra.mxu0 0.0
    %5719 = vmatprep.subr.mxu0 0.0
    %5720 = vmatpush1.msra.mxu0 0.0
    %5721 = vmatprep.subr.mxu0 0.0
    %5722 = vmatpush1.msra.mxu0 0.0
    %5723 = vmatprep.subr.mxu0 0.0
    %5724 = vmatpush1.msra.mxu0 0.0
    %5725 = vmatprep.subr.mxu0 0.0
    %5726 = vmatpush1.msra.mxu0 0.0
    %5727 = vmatprep.subr.mxu0 0.0
    %5728 = vmatpush1.msra.mxu0 0.0
    %5729 = vmatprep.subr.mxu0 0.0
    %5730 = vmatpush1.msra.mxu0 0.0
    %5731 = vmatprep.subr.mxu0 0.0
    %5732 = vmatpush1.msra.mxu0 0.0
    %5733 = vmatprep.subr.mxu0 0.0
    %5734 = vmatpush1.msra.mxu0 0.0
    %5735 = vmatprep.subr.mxu0 0.0
    %5736 = vmatpush1.msra.mxu0 0.0
    %5737 = vmatprep.subr.mxu0 0.0
    %5738 = vmatpush1.msra.mxu0 0.0
    %5739 = vmatprep.subr.mxu0 0.0
    %5740 = vmatpush1.msra.mxu0 0.0
    %5741 = vmatprep.subr.mxu0 0.0
    %5742 = vmatpush1.msra.mxu0 0.0
    %5743 = vmatprep.subr.mxu0 0.0
    %5744 = vmatpush1.msra.mxu0 0.0
    %5745 = vmatprep.subr.mxu0 0.0
    %5746 = vmatpush1.msra.mxu0 0.0
    %5747 = vmatprep.subr.mxu0 0.0
    %5748 = vmatpush1.msra.mxu0 0.0
    %5749 = vmatprep.subr.mxu0 0.0
    %5750 = vmatpush1.msra.mxu0 0.0
    %5751 = vmatprep.subr.mxu0 0.0
    %5752 = vmatpush1.msra.mxu0 0.0
    %5753 = vmatprep.subr.mxu0 0.0
    %5754 = vmatpush1.msra.mxu0 0.0
    %5755 = vmatprep.subr.mxu0 0.0
    %5756 = vmatpush1.msra.mxu0 0.0
    %5757 = vmatprep.subr.mxu0 0.0
    %5758 = vmatpush1.msra.mxu0 0.0
    %5759 = vmatprep.subr.mxu0 0.0
    %5760 = vmatpush1.msra.mxu0 0.0
    %5761 = vmatprep.subr.mxu0 0.0
    %5762 = vmatpush1.msra.mxu0 0.0
    %5763 = vmatprep.subr.mxu0 0.0
    %5764 = vmatpush1.msra.mxu0 0.0
    %5765 = vmatprep.subr.mxu0 0.0
    %5766 = vmatpush1.msra.mxu0 0.0
    %5767 = vmatprep.subr.mxu0 0.0
    %5768 = vmatpush1.msra.mxu0 0.0
    %5769 = vmatprep.subr.mxu0 0.0
    %5770 = vmatpush1.msra.mxu0 0.0
    %5771 = vmatprep.subr.mxu0 0.0
    %5772 = vmatpush1.msra.mxu0 0.0
    %5773 = vmatprep.mubr.f32.mxu0 0.0
    %5774 = vmatmul.mubr.f32.gmra.mrb[0].mxu0 %v5701
    %v5775 = vpop.f32.mrb[0].mxu0
    %v5776 = vadd.f32 0.0, %v5775
    %v5777 = vpop.f32.mrb[0].mxu0
    %5778 = vmatprep.mubr.f32.mxu0 0.0
    %5779 = vmatmul.mubr.f32.gmra.mrb[0].mxu0 %v5704
    %v5780 = vpop.f32.mrb[0].mxu0
    %v5781 = vadd.f32 0.0, %v5780
    %v5782 = vpop.f32.mrb[0].mxu0
    %5783 = vmatprep.mubr.f32.mxu0 0.0
    %5784 = vmatmul.mubr.f32.gmra.mrb[0].mxu0 %v5707
    %v5785 = vpop.f32.mrb[0].mxu0
    %v5786 = vadd.f32 0.0, %v5785
    %v5787 = vpop.f32.mrb[0].mxu0
    %5788 = vdwg.mxu0
    %v5789 = vld [vmem:[%s1 + $0x440] sm:$0xff]
    %v5791 = vsel %vm579, %v5687, 0
    %v5794 = vsel %vm579, %v5692, 0
    %v5797 = vsel %vm579, %v5697, 0
    %v5800 = vsel %vm579, %v5776, 0
    %v5803 = vsel %vm579, %v5781, 0
    %v5806 = vsel %vm579, %v5786, 0
    %5808 = vmatprep.subr.mxu0 0.0
    %5809 = vmatpush1.msra.mxu0 %v5789
    %5810 = vmatprep.subr.mxu0 0.0
    %5811 = vmatpush1.msra.mxu0 0.0
    %5812 = vmatprep.subr.mxu0 0.0
    %5813 = vmatpush1.msra.mxu0 0.0
    %5814 = vmatprep.subr.mxu0 0.0
    %5815 = vmatpush1.msra.mxu0 0.0
    %5816 = vmatprep.subr.mxu0 0.0
    %5817 = vmatpush1.msra.mxu0 0.0
    %5818 = vmatprep.subr.mxu0 0.0
    %5819 = vmatpush1.msra.mxu0 0.0
    %5820 = vmatprep.subr.mxu0 0.0
    %5821 = vmatpush1.msra.mxu0 0.0
    %5822 = vmatprep.subr.mxu0 0.0
    %5823 = vmatpush1.msra.mxu0 0.0
    %5824 = vmatprep.subr.mxu0 0.0
    %5825 = vmatpush1.msra.mxu0 0.0
    %5826 = vmatprep.subr.mxu0 0.0
    %5827 = vmatpush1.msra.mxu0 0.0
    %5828 = vmatprep.subr.mxu0 0.0
    %5829 = vmatpush1.msra.mxu0 0.0
    %5830 = vmatprep.subr.mxu0 0.0
    %5831 = vmatpush1.msra.mxu0 0.0
    %5832 = vmatprep.subr.mxu0 0.0
    %5833 = vmatpush1.msra.mxu0 0.0
    %5834 = vmatprep.subr.mxu0 0.0
    %5835 = vmatpush1.msra.mxu0 0.0
    %5836 = vmatprep.subr.mxu0 0.0
    %5837 = vmatpush1.msra.mxu0 0.0
    %5838 = vmatprep.subr.mxu0 0.0
    %5839 = vmatpush1.msra.mxu0 0.0
    %5840 = vmatprep.subr.mxu0 0.0
    %5841 = vmatpush1.msra.mxu0 0.0
    %5842 = vmatprep.subr.mxu0 0.0
    %5843 = vmatpush1.msra.mxu0 0.0
    %5844 = vmatprep.subr.mxu0 0.0
    %5845 = vmatpush1.msra.mxu0 0.0
    %5846 = vmatprep.subr.mxu0 0.0
    %5847 = vmatpush1.msra.mxu0 0.0
    %5848 = vmatprep.subr.mxu0 0.0
    %5849 = vmatpush1.msra.mxu0 0.0
    %5850 = vmatprep.subr.mxu0 0.0
    %5851 = vmatpush1.msra.mxu0 0.0
    %5852 = vmatprep.subr.mxu0 0.0
    %5853 = vmatpush1.msra.mxu0 0.0
    %5854 = vmatprep.subr.mxu0 0.0
    %5855 = vmatpush1.msra.mxu0 0.0
    %5856 = vmatprep.subr.mxu0 0.0
    %5857 = vmatpush1.msra.mxu0 0.0
    %5858 = vmatprep.subr.mxu0 0.0
    %5859 = vmatpush1.msra.mxu0 0.0
    %5860 = vmatprep.subr.mxu0 0.0
    %5861 = vmatpush1.msra.mxu0 0.0
    %5862 = vmatprep.subr.mxu0 0.0
    %5863 = vmatpush1.msra.mxu0 0.0
    %5864 = vmatprep.subr.mxu0 0.0
    %5865 = vmatpush1.msra.mxu0 0.0
    %5866 = vmatprep.subr.mxu0 0.0
    %5867 = vmatpush1.msra.mxu0 0.0
    %5868 = vmatprep.subr.mxu0 0.0
    %5869 = vmatpush1.msra.mxu0 0.0
    %5870 = vmatprep.subr.mxu0 0.0
    %5871 = vmatpush1.msra.mxu0 0.0
    %5872 = vmatprep.mubr.f32.mxu0 0.0
    %5873 = vmatmul.mubr.f32.gmra.mrb[0].mxu0 %v5791
    %v5874 = vpop.f32.mrb[0].mxu0
    %v5875 = vadd.f32 0.0, %v5874
    %v5876 = vpop.f32.mrb[0].mxu0
    %5877 = vmatprep.mubr.f32.mxu0 0.0
    %5878 = vmatmul.mubr.f32.gmra.mrb[0].mxu0 %v5794
    %v5879 = vpop.f32.mrb[0].mxu0
    %v5880 = vadd.f32 0.0, %v5879
    %v5881 = vpop.f32.mrb[0].mxu0
    %5882 = vmatprep.mubr.f32.mxu0 0.0
    %5883 = vmatmul.mubr.f32.gmra.mrb[0].mxu0 %v5797
    %v5884 = vpop.f32.mrb[0].mxu0
    %v5885 = vadd.f32 0.0, %v5884
    %v5886 = vpop.f32.mrb[0].mxu0
    %5887 = vmatprep.mubr.f32.mxu0 0.0
    %5888 = vmatmul.mubr.f32.gmra.mrb[0].mxu0 %v5800
    %v5889 = vpop.f32.mrb[0].mxu0
    %v5890 = vadd.f32 0.0, %v5889
    %v5891 = vpop.f32.mrb[0].mxu0
    %5892 = vmatprep.mubr.f32.mxu0 0.0
    %5893 = vmatmul.mubr.f32.gmra.mrb[0].mxu0 %v5803
    %v5894 = vpop.f32.mrb[0].mxu0
    %v5895 = vadd.f32 0.0, %v5894
    %v5896 = vpop.f32.mrb[0].mxu0
    %5897 = vmatprep.mubr.f32.mxu0 0.0
    %5898 = vmatmul.mubr.f32.gmra.mrb[0].mxu0 %v5806
    %v5899 = vpop.f32.mrb[0].mxu0
    %v5900 = vadd.f32 0.0, %v5899
    %v5901 = vpop.f32.mrb[0].mxu0
    %5902 = vdwg.mxu0
    %v5904 = vsel %vm579, %v4934, 0
    %v5907 = vsel %vm579, %v4939, 0
    %v5910 = vsel %vm579, %v4944, 0
    %v5913 = vsel %vm579, %v5023, 0
    %v5916 = vsel %vm579, %v5028, 0
    %v5919 = vsel %vm579, %v5033, 0
    %5921 = vmatprep.subr.mxu0 0.0
    %5922 = vmatpush1.msra.mxu0 %v5036
    %5923 = vmatprep.subr.mxu0 0.0
    %5924 = vmatpush1.msra.mxu0 0.0
    %5925 = vmatprep.subr.mxu0 0.0
    %5926 = vmatpush1.msra.mxu0 0.0
    %5927 = vmatprep.subr.mxu0 0.0
    %5928 = vmatpush1.msra.mxu0 0.0
    %5929 = vmatprep.subr.mxu0 0.0
    %5930 = vmatpush1.msra.mxu0 0.0
    %5931 = vmatprep.subr.mxu0 0.0
    %5932 = vmatpush1.msra.mxu0 0.0
    %5933 = vmatprep.subr.mxu0 0.0
    %5934 = vmatpush1.msra.mxu0 0.0
    %5935 = vmatprep.subr.mxu0 0.0
    %5936 = vmatpush1.msra.mxu0 0.0
    %5937 = vmatprep.subr.mxu0 0.0
    %5938 = vmatpush1.msra.mxu0 0.0
    %5939 = vmatprep.subr.mxu0 0.0
    %5940 = vmatpush1.msra.mxu0 0.0
    %5941 = vmatprep.subr.mxu0 0.0
    %5942 = vmatpush1.msra.mxu0 0.0
    %5943 = vmatprep.subr.mxu0 0.0
    %5944 = vmatpush1.msra.mxu0 0.0
    %5945 = vmatprep.subr.mxu0 0.0
    %5946 = vmatpush1.msra.mxu0 0.0
    %5947 = vmatprep.subr.mxu0 0.0
    %5948 = vmatpush1.msra.mxu0 0.0
    %5949 = vmatprep.subr.mxu0 0.0
    %5950 = vmatpush1.msra.mxu0 0.0
    %5951 = vmatprep.subr.mxu0 0.0
    %5952 = vmatpush1.msra.mxu0 0.0
    %5953 = vmatprep.subr.mxu0 0.0
    %5954 = vmatpush1.msra.mxu0 0.0
    %5955 = vmatprep.subr.mxu0 0.0
    %5956 = vmatpush1.msra.mxu0 0.0
    %5957 = vmatprep.subr.mxu0 0.0
    %5958 = vmatpush1.msra.mxu0 0.0
    %5959 = vmatprep.subr.mxu0 0.0
    %5960 = vmatpush1.msra.mxu0 0.0
    %5961 = vmatprep.subr.mxu0 0.0
    %5962 = vmatpush1.msra.mxu0 0.0
    %5963 = vmatprep.subr.mxu0 0.0
    %5964 = vmatpush1.msra.mxu0 0.0
    %5965 = vmatprep.subr.mxu0 0.0
    %5966 = vmatpush1.msra.mxu0 0.0
    %5967 = vmatprep.subr.mxu0 0.0
    %5968 = vmatpush1.msra.mxu0 0.0
    %5969 = vmatprep.subr.mxu0 0.0
    %5970 = vmatpush1.msra.mxu0 0.0
    %5971 = vmatprep.subr.mxu0 0.0
    %5972 = vmatpush1.msra.mxu0 0.0
    %5973 = vmatprep.subr.mxu0 0.0
    %5974 = vmatpush1.msra.mxu0 0.0
    %5975 = vmatprep.subr.mxu0 0.0
    %5976 = vmatpush1.msra.mxu0 0.0
    %5977 = vmatprep.subr.mxu0 0.0
    %5978 = vmatpush1.msra.mxu0 0.0
    %5979 = vmatprep.subr.mxu0 0.0
    %5980 = vmatpush1.msra.mxu0 0.0
    %5981 = vmatprep.subr.mxu0 0.0
    %5982 = vmatpush1.msra.mxu0 0.0
    %5983 = vmatprep.subr.mxu0 0.0
    %5984 = vmatpush1.msra.mxu0 0.0
    %5985 = vmatprep.mubr.f32.mxu0 0.0
    %5986 = vmatmul.mubr.f32.gmra.mrb[0].mxu0 %v5904
    %v5987 = vpop.f32.mrb[0].mxu0
    %v5988 = vadd.f32 %v5875, %v5987
    %v5989 = vpop.f32.mrb[0].mxu0
    %5990 = vmatprep.mubr.f32.mxu0 0.0
    %5991 = vmatmul.mubr.f32.gmra.mrb[0].mxu0 %v5907
    %v5992 = vpop.f32.mrb[0].mxu0
    %v5993 = vadd.f32 %v5880, %v5992
    %v5994 = vpop.f32.mrb[0].mxu0
    %5995 = vmatprep.mubr.f32.mxu0 0.0
    %5996 = vmatmul.mubr.f32.gmra.mrb[0].mxu0 %v5910
    %v5997 = vpop.f32.mrb[0].mxu0
    %v5998 = vadd.f32 %v5885, %v5997
    %v5999 = vpop.f32.mrb[0].mxu0
    %6000 = vmatprep.mubr.f32.mxu0 0.0
    %6001 = vmatmul.mubr.f32.gmra.mrb[0].mxu0 %v5913
    %v6002 = vpop.f32.mrb[0].mxu0
    %v6003 = vadd.f32 %v5890, %v6002
    %v6004 = vpop.f32.mrb[0].mxu0
    %6005 = vmatprep.mubr.f32.mxu0 0.0
    %6006 = vmatmul.mubr.f32.gmra.mrb[0].mxu0 %v5916
    %v6007 = vpop.f32.mrb[0].mxu0
    %v6008 = vadd.f32 %v5895, %v6007
    %v6009 = vpop.f32.mrb[0].mxu0
    %6010 = vmatprep.mubr.f32.mxu0 0.0
    %6011 = vmatmul.mubr.f32.gmra.mrb[0].mxu0 %v5919
    %v6012 = vpop.f32.mrb[0].mxu0
    %v6013 = vadd.f32 %v5900, %v6012
    %v6014 = vpop.f32.mrb[0].mxu0
    %6015 = vdwg.mxu0
    %v6016 = vld [vmem:[%s1 + $0x460] sm:$0xff]
    %v6017 = vld [vmem:[%s1 + $0x468] sm:$0xff]
    %v6018 = vld [vmem:[%s1 + $0x470] sm:$0xff]
    %v6019 = vld [vmem:[%s1 + $0x478] sm:$0xff]
    %v6020 = vld [vmem:[%s1 + $0x4c8] sm:$0x1]
    %v6021 = vlaneseq
    %v6022 = vshrl.u32 %v6021, 7
    %v6023 = vsub.s32 0, %v6022
    %v6024 = vrot.slane %v6020, %v6023
    %6025 = vmatprep.subr.mxu0 0.0
    %6026 = vmatpush1.msra.mxu0 %v6016
    %6027 = vmatprep.subr.mxu0 0.0
    %6028 = vmatpush1.msra.mxu0 %v6017
    %6029 = vmatprep.subr.mxu0 0.0
    %6030 = vmatpush1.msra.mxu0 %v6018
    %6031 = vmatprep.subr.mxu0 0.0
    %6032 = vmatpush1.msra.mxu0 %v6019
    %6033 = vmatprep.subr.mxu0 0.0
    %6034 = vmatpush1.msra.mxu0 0.0
    %6035 = vmatprep.subr.mxu0 0.0
    %6036 = vmatpush1.msra.mxu0 0.0
    %6037 = vmatprep.subr.mxu0 0.0
    %6038 = vmatpush1.msra.mxu0 0.0
    %6039 = vmatprep.subr.mxu0 0.0
    %6040 = vmatpush1.msra.mxu0 0.0
    %6041 = vmatprep.subr.mxu0 0.0
    %6042 = vmatpush1.msra.mxu0 0.0
    %6043 = vmatprep.subr.mxu0 0.0
    %6044 = vmatpush1.msra.mxu0 0.0
    %6045 = vmatprep.subr.mxu0 0.0
    %6046 = vmatpush1.msra.mxu0 0.0
    %6047 = vmatprep.subr.mxu0 0.0
    %6048 = vmatpush1.msra.mxu0 0.0
    %6049 = vmatprep.subr.mxu0 0.0
    %6050 = vmatpush1.msra.mxu0 0.0
    %6051 = vmatprep.subr.mxu0 0.0
    %6052 = vmatpush1.msra.mxu0 0.0
    %6053 = vmatprep.subr.mxu0 0.0
    %6054 = vmatpush1.msra.mxu0 0.0
    %6055 = vmatprep.subr.mxu0 0.0
    %6056 = vmatpush1.msra.mxu0 0.0
    %6057 = vmatprep.subr.mxu0 0.0
    %6058 = vmatpush1.msra.mxu0 0.0
    %6059 = vmatprep.subr.mxu0 0.0
    %6060 = vmatpush1.msra.mxu0 0.0
    %6061 = vmatprep.subr.mxu0 0.0
    %6062 = vmatpush1.msra.mxu0 0.0
    %6063 = vmatprep.subr.mxu0 0.0
    %6064 = vmatpush1.msra.mxu0 0.0
    %6065 = vmatprep.subr.mxu0 0.0
    %6066 = vmatpush1.msra.mxu0 0.0
    %6067 = vmatprep.subr.mxu0 0.0
    %6068 = vmatpush1.msra.mxu0 0.0
    %6069 = vmatprep.subr.mxu0 0.0
    %6070 = vmatpush1.msra.mxu0 0.0
    %6071 = vmatprep.subr.mxu0 0.0
    %6072 = vmatpush1.msra.mxu0 0.0
    %6073 = vmatprep.subr.mxu0 0.0
    %6074 = vmatpush1.msra.mxu0 0.0
    %6075 = vmatprep.subr.mxu0 0.0
    %6076 = vmatpush1.msra.mxu0 0.0
    %6077 = vmatprep.subr.mxu0 0.0
    %6078 = vmatpush1.msra.mxu0 0.0
    %6079 = vmatprep.subr.mxu0 0.0
    %6080 = vmatpush1.msra.mxu0 0.0
    %6081 = vmatprep.subr.mxu0 0.0
    %6082 = vmatpush1.msra.mxu0 0.0
    %6083 = vmatprep.subr.mxu0 0.0
    %6084 = vmatpush1.msra.mxu0 0.0
    %6085 = vmatprep.subr.mxu0 0.0
    %6086 = vmatpush1.msra.mxu0 0.0
    %6087 = vmatprep.subr.mxu0 0.0
    %6088 = vmatpush1.msra.mxu0 0.0
    %6089 = vmatprep.mubr.f32.mxu0 0.0
    %6090 = vmatmul.mubr.f32.gmra.mrb[0].mxu0 %v4276
    %v6091 = vpop.f32.mrb[0].mxu0
    %v6092 = vadd.f32 %v6024, %v6091
    %v6093 = vpop.f32.mrb[0].mxu0
    %6094 = vmatprep.mubr.f32.mxu0 0.0
    %6095 = vmatmul.mubr.f32.gmra.mrb[0].mxu0 %v4279
    %v6096 = vpop.f32.mrb[0].mxu0
    %v6097 = vadd.f32 %v6024, %v6096
    %v6098 = vpop.f32.mrb[0].mxu0
    %6099 = vmatprep.mubr.f32.mxu0 0.0
    %6100 = vmatmul.mubr.f32.gmra.mrb[0].mxu0 %v4282
    %v6101 = vpop.f32.mrb[0].mxu0
    %v6102 = vadd.f32 %v6024, %v6101
    %v6103 = vpop.f32.mrb[0].mxu0
    %6104 = vmatprep.mubr.f32.mxu0 0.0
    %6105 = vmatmul.mubr.f32.gmra.mrb[0].mxu0 %v4285
    %v6106 = vpop.f32.mrb[0].mxu0
    %v6107 = vadd.f32 %v6024, %v6106
    %v6108 = vpop.f32.mrb[0].mxu0
    %6109 = vmatprep.mubr.f32.mxu0 0.0
    %6110 = vmatmul.mubr.f32.gmra.mrb[0].mxu0 %v4288
    %v6111 = vpop.f32.mrb[0].mxu0
    %v6112 = vadd.f32 %v6024, %v6111
    %v6113 = vpop.f32.mrb[0].mxu0
    %6114 = vmatprep.mubr.f32.mxu0 0.0
    %6115 = vmatmul.mubr.f32.gmra.mrb[0].mxu0 %v4291
    %v6116 = vpop.f32.mrb[0].mxu0
    %v6117 = vadd.f32 %v6024, %v6116
    %v6118 = vpop.f32.mrb[0].mxu0
    %6119 = vdwg.mxu0
    %v6120 = vld [vmem:[%s1 + $0x480] sm:$0xff]
    %v6121 = vld [vmem:[%s1 + $0x488] sm:$0xff]
    %v6122 = vld [vmem:[%s1 + $0x490] sm:$0xff]
    %v6123 = vld [vmem:[%s1 + $0x498] sm:$0xff]
    %v6124 = vld [vmem:[%s1 + $0x4d0] sm:$0x1]
    %v6125 = vlaneseq
    %v6126 = vshrl.u32 %v6125, 7
    %v6127 = vsub.s32 0, %v6126
    %v6128 = vrot.slane %v6124, %v6127
    %6129 = vmatprep.subr.mxu0 0.0
    %6130 = vmatpush1.msra.mxu0 %v6120
    %6131 = vmatprep.subr.mxu0 0.0
    %6132 = vmatpush1.msra.mxu0 %v6121
    %6133 = vmatprep.subr.mxu0 0.0
    %6134 = vmatpush1.msra.mxu0 %v6122
    %6135 = vmatprep.subr.mxu0 0.0
    %6136 = vmatpush1.msra.mxu0 %v6123
    %6137 = vmatprep.subr.mxu0 0.0
    %6138 = vmatpush1.msra.mxu0 0.0
    %6139 = vmatprep.subr.mxu0 0.0
    %6140 = vmatpush1.msra.mxu0 0.0
    %6141 = vmatprep.subr.mxu0 0.0
    %6142 = vmatpush1.msra.mxu0 0.0
    %6143 = vmatprep.subr.mxu0 0.0
    %6144 = vmatpush1.msra.mxu0 0.0
    %6145 = vmatprep.subr.mxu0 0.0
    %6146 = vmatpush1.msra.mxu0 0.0
    %6147 = vmatprep.subr.mxu0 0.0
    %6148 = vmatpush1.msra.mxu0 0.0
    %6149 = vmatprep.subr.mxu0 0.0
    %6150 = vmatpush1.msra.mxu0 0.0
    %6151 = vmatprep.subr.mxu0 0.0
    %6152 = vmatpush1.msra.mxu0 0.0
    %6153 = vmatprep.subr.mxu0 0.0
    %6154 = vmatpush1.msra.mxu0 0.0
    %6155 = vmatprep.subr.mxu0 0.0
    %6156 = vmatpush1.msra.mxu0 0.0
    %6157 = vmatprep.subr.mxu0 0.0
    %6158 = vmatpush1.msra.mxu0 0.0
    %6159 = vmatprep.subr.mxu0 0.0
    %6160 = vmatpush1.msra.mxu0 0.0
    %6161 = vmatprep.subr.mxu0 0.0
    %6162 = vmatpush1.msra.mxu0 0.0
    %6163 = vmatprep.subr.mxu0 0.0
    %6164 = vmatpush1.msra.mxu0 0.0
    %6165 = vmatprep.subr.mxu0 0.0
    %6166 = vmatpush1.msra.mxu0 0.0
    %6167 = vmatprep.subr.mxu0 0.0
    %6168 = vmatpush1.msra.mxu0 0.0
    %6169 = vmatprep.subr.mxu0 0.0
    %6170 = vmatpush1.msra.mxu0 0.0
    %6171 = vmatprep.subr.mxu0 0.0
    %6172 = vmatpush1.msra.mxu0 0.0
    %6173 = vmatprep.subr.mxu0 0.0
    %6174 = vmatpush1.msra.mxu0 0.0
    %6175 = vmatprep.subr.mxu0 0.0
    %6176 = vmatpush1.msra.mxu0 0.0
    %6177 = vmatprep.subr.mxu0 0.0
    %6178 = vmatpush1.msra.mxu0 0.0
    %6179 = vmatprep.subr.mxu0 0.0
    %6180 = vmatpush1.msra.mxu0 0.0
    %6181 = vmatprep.subr.mxu0 0.0
    %6182 = vmatpush1.msra.mxu0 0.0
    %6183 = vmatprep.subr.mxu0 0.0
    %6184 = vmatpush1.msra.mxu0 0.0
    %6185 = vmatprep.subr.mxu0 0.0
    %6186 = vmatpush1.msra.mxu0 0.0
    %6187 = vmatprep.subr.mxu0 0.0
    %6188 = vmatpush1.msra.mxu0 0.0
    %6189 = vmatprep.subr.mxu0 0.0
    %6190 = vmatpush1.msra.mxu0 0.0
    %6191 = vmatprep.subr.mxu0 0.0
    %6192 = vmatpush1.msra.mxu0 0.0
    %6193 = vmatprep.mubr.f32.mxu0 0.0
    %6194 = vmatmul.mubr.f32.gmra.mrb[0].mxu0 %v4276
    %v6195 = vpop.f32.mrb[0].mxu0
    %v6196 = vadd.f32 %v6128, %v6195
    %v6197 = vpop.f32.mrb[0].mxu0
    %6198 = vmatprep.mubr.f32.mxu0 0.0
    %6199 = vmatmul.mubr.f32.gmra.mrb[0].mxu0 %v4279
    %v6200 = vpop.f32.mrb[0].mxu0
    %v6201 = vadd.f32 %v6128, %v6200
    %v6202 = vpop.f32.mrb[0].mxu0
    %6203 = vmatprep.mubr.f32.mxu0 0.0
    %6204 = vmatmul.mubr.f32.gmra.mrb[0].mxu0 %v4282
    %v6205 = vpop.f32.mrb[0].mxu0
    %v6206 = vadd.f32 %v6128, %v6205
    %v6207 = vpop.f32.mrb[0].mxu0
    %6208 = vmatprep.mubr.f32.mxu0 0.0
    %6209 = vmatmul.mubr.f32.gmra.mrb[0].mxu0 %v4285
    %v6210 = vpop.f32.mrb[0].mxu0
    %v6211 = vadd.f32 %v6128, %v6210
    %v6212 = vpop.f32.mrb[0].mxu0
    %6213 = vmatprep.mubr.f32.mxu0 0.0
    %6214 = vmatmul.mubr.f32.gmra.mrb[0].mxu0 %v4288
    %v6215 = vpop.f32.mrb[0].mxu0
    %v6216 = vadd.f32 %v6128, %v6215
    %v6217 = vpop.f32.mrb[0].mxu0
    %6218 = vmatprep.mubr.f32.mxu0 0.0
    %6219 = vmatmul.mubr.f32.gmra.mrb[0].mxu0 %v4291
    %v6220 = vpop.f32.mrb[0].mxu0
    %v6221 = vadd.f32 %v6128, %v6220
    %v6222 = vpop.f32.mrb[0].mxu0
    %6223 = vdwg.mxu0
    %v6224 = vld [vmem:[%s1 + $0x4a0] sm:$0xff]
    %v6225 = vld [vmem:[%s1 + $0x4a8] sm:$0xff]
    %v6226 = vld [vmem:[%s1 + $0x4b0] sm:$0xff]
    %v6227 = vld [vmem:[%s1 + $0x4b8] sm:$0xff]
    %v6228 = vld [vmem:[%s1 + $0x4d8] sm:$0x1]
    %v6229 = vlaneseq
    %v6230 = vshrl.u32 %v6229, 7
    %v6231 = vsub.s32 0, %v6230
    %v6232 = vrot.slane %v6228, %v6231
    %6233 = vmatprep.subr.mxu0 0.0
    %6234 = vmatpush1.msra.mxu0 %v6224
    %6235 = vmatprep.subr.mxu0 0.0
    %6236 = vmatpush1.msra.mxu0 %v6225
    %6237 = vmatprep.subr.mxu0 0.0
    %6238 = vmatpush1.msra.mxu0 %v6226
    %6239 = vmatprep.subr.mxu0 0.0
    %6240 = vmatpush1.msra.mxu0 %v6227
    %6241 = vmatprep.subr.mxu0 0.0
    %6242 = vmatpush1.msra.mxu0 0.0
    %6243 = vmatprep.subr.mxu0 0.0
    %6244 = vmatpush1.msra.mxu0 0.0
    %6245 = vmatprep.subr.mxu0 0.0
    %6246 = vmatpush1.msra.mxu0 0.0
    %6247 = vmatprep.subr.mxu0 0.0
    %6248 = vmatpush1.msra.mxu0 0.0
    %6249 = vmatprep.subr.mxu0 0.0
    %6250 = vmatpush1.msra.mxu0 0.0
    %6251 = vmatprep.subr.mxu0 0.0
    %6252 = vmatpush1.msra.mxu0 0.0
    %6253 = vmatprep.subr.mxu0 0.0
    %6254 = vmatpush1.msra.mxu0 0.0
    %6255 = vmatprep.subr.mxu0 0.0
    %6256 = vmatpush1.msra.mxu0 0.0
    %6257 = vmatprep.subr.mxu0 0.0
    %6258 = vmatpush1.msra.mxu0 0.0
    %6259 = vmatprep.subr.mxu0 0.0
    %6260 = vmatpush1.msra.mxu0 0.0
    %6261 = vmatprep.subr.mxu0 0.0
    %6262 = vmatpush1.msra.mxu0 0.0
    %6263 = vmatprep.subr.mxu0 0.0
    %6264 = vmatpush1.msra.mxu0 0.0
    %6265 = vmatprep.subr.mxu0 0.0
    %6266 = vmatpush1.msra.mxu0 0.0
    %6267 = vmatprep.subr.mxu0 0.0
    %6268 = vmatpush1.msra.mxu0 0.0
    %6269 = vmatprep.subr.mxu0 0.0
    %6270 = vmatpush1.msra.mxu0 0.0
    %6271 = vmatprep.subr.mxu0 0.0
    %6272 = vmatpush1.msra.mxu0 0.0
    %6273 = vmatprep.subr.mxu0 0.0
    %6274 = vmatpush1.msra.mxu0 0.0
    %6275 = vmatprep.subr.mxu0 0.0
    %6276 = vmatpush1.msra.mxu0 0.0
    %6277 = vmatprep.subr.mxu0 0.0
    %6278 = vmatpush1.msra.mxu0 0.0
    %6279 = vmatprep.subr.mxu0 0.0
    %6280 = vmatpush1.msra.mxu0 0.0
    %6281 = vmatprep.subr.mxu0 0.0
    %6282 = vmatpush1.msra.mxu0 0.0
    %6283 = vmatprep.subr.mxu0 0.0
    %6284 = vmatpush1.msra.mxu0 0.0
    %6285 = vmatprep.subr.mxu0 0.0
    %6286 = vmatpush1.msra.mxu0 0.0
    %6287 = vmatprep.subr.mxu0 0.0
    %6288 = vmatpush1.msra.mxu0 0.0
    %6289 = vmatprep.subr.mxu0 0.0
    %6290 = vmatpush1.msra.mxu0 0.0
    %6291 = vmatprep.subr.mxu0 0.0
    %6292 = vmatpush1.msra.mxu0 0.0
    %6293 = vmatprep.subr.mxu0 0.0
    %6294 = vmatpush1.msra.mxu0 0.0
    %6295 = vmatprep.subr.mxu0 0.0
    %6296 = vmatpush1.msra.mxu0 0.0
    %6297 = vmatprep.mubr.f32.mxu0 0.0
    %6298 = vmatmul.mubr.f32.gmra.mrb[0].mxu0 %v4276
    %v6299 = vpop.f32.mrb[0].mxu0
    %v6300 = vadd.f32 %v6232, %v6299
    %v6301 = vpop.f32.mrb[0].mxu0
    %6302 = vmatprep.mubr.f32.mxu0 0.0
    %6303 = vmatmul.mubr.f32.gmra.mrb[0].mxu0 %v4279
    %v6304 = vpop.f32.mrb[0].mxu0
    %v6305 = vadd.f32 %v6232, %v6304
    %v6306 = vpop.f32.mrb[0].mxu0
    %6307 = vmatprep.mubr.f32.mxu0 0.0
    %6308 = vmatmul.mubr.f32.gmra.mrb[0].mxu0 %v4282
    %v6309 = vpop.f32.mrb[0].mxu0
    %v6310 = vadd.f32 %v6232, %v6309
    %v6311 = vpop.f32.mrb[0].mxu0
    %6312 = vmatprep.mubr.f32.mxu0 0.0
    %6313 = vmatmul.mubr.f32.gmra.mrb[0].mxu0 %v4285
    %v6314 = vpop.f32.mrb[0].mxu0
    %v6315 = vadd.f32 %v6232, %v6314
    %v6316 = vpop.f32.mrb[0].mxu0
    %6317 = vmatprep.mubr.f32.mxu0 0.0
    %6318 = vmatmul.mubr.f32.gmra.mrb[0].mxu0 %v4288
    %v6319 = vpop.f32.mrb[0].mxu0
    %v6320 = vadd.f32 %v6232, %v6319
    %v6321 = vpop.f32.mrb[0].mxu0
    %6322 = vmatprep.mubr.f32.mxu0 0.0
    %6323 = vmatmul.mubr.f32.gmra.mrb[0].mxu0 %v4291
    %v6324 = vpop.f32.mrb[0].mxu0
    %v6325 = vadd.f32 %v6232, %v6324
    %v6326 = vpop.f32.mrb[0].mxu0
    %6327 = vdwg.mxu0
    %v6329 = vsel %vm579, %v6092, 0
    %v6332 = vsel %vm579, %v6097, 0
    %v6335 = vsel %vm579, %v6102, 0
    %v6338 = vsel %vm579, %v6196, 0
    %v6341 = vsel %vm579, %v6201, 0
    %v6344 = vsel %vm579, %v6206, 0
    %6346 = vmatprep.subr.mxu0 0.0
    %6347 = vmatpush1.xpose.msra.mxu0 %v6338
    %6348 = vmatprep.subr.mxu0 0.0
    %6349 = vmatpush1.xpose.msra.mxu0 %v6341
    %6350 = vmatprep.subr.mxu0 0.0
    %6351 = vmatpush1.xpose.msra.mxu0 %v6344
    %6352 = vmatprep.subr.mxu0 0.0
    %6353 = vmatpush1.xpose.msra.mxu0 0.0
    %6354 = vmatprep.subr.mxu0 0.0
    %6355 = vmatpush1.xpose.msra.mxu0 0.0
    %6356 = vmatprep.subr.mxu0 0.0
    %6357 = vmatpush1.xpose.msra.mxu0 0.0
    %6358 = vmatprep.subr.mxu0 0.0
    %6359 = vmatpush1.xpose.msra.mxu0 0.0
    %6360 = vmatprep.subr.mxu0 0.0
    %6361 = vmatpush1.xpose.msra.mxu0 0.0
    %6362 = vmatprep.subr.mxu0 0.0
    %6363 = vmatpush1.xpose.msra.mxu0 0.0
    %6364 = vmatprep.subr.mxu0 0.0
    %6365 = vmatpush1.xpose.msra.mxu0 0.0
    %6366 = vmatprep.subr.mxu0 0.0
    %6367 = vmatpush1.xpose.msra.mxu0 0.0
    %6368 = vmatprep.subr.mxu0 0.0
    %6369 = vmatpush1.xpose.msra.mxu0 0.0
    %6370 = vmatprep.subr.mxu0 0.0
    %6371 = vmatpush1.xpose.msra.mxu0 0.0
    %6372 = vmatprep.subr.mxu0 0.0
    %6373 = vmatpush1.xpose.msra.mxu0 0.0
    %6374 = vmatprep.subr.mxu0 0.0
    %6375 = vmatpush1.xpose.msra.mxu0 0.0
    %6376 = vmatprep.subr.mxu0 0.0
    %6377 = vmatpush1.xpose.msra.mxu0 0.0
    %6378 = vmatprep.subr.mxu0 0.0
    %6379 = vmatpush1.xpose.msra.mxu0 0.0
    %6380 = vmatprep.subr.mxu0 0.0
    %6381 = vmatpush1.xpose.msra.mxu0 0.0
    %6382 = vmatprep.subr.mxu0 0.0
    %6383 = vmatpush1.xpose.msra.mxu0 0.0
    %6384 = vmatprep.subr.mxu0 0.0
    %6385 = vmatpush1.xpose.msra.mxu0 0.0
    %6386 = vmatprep.subr.mxu0 0.0
    %6387 = vmatpush1.xpose.msra.mxu0 0.0
    %6388 = vmatprep.subr.mxu0 0.0
    %6389 = vmatpush1.xpose.msra.mxu0 0.0
    %6390 = vmatprep.subr.mxu0 0.0
    %6391 = vmatpush1.xpose.msra.mxu0 0.0
    %6392 = vmatprep.subr.mxu0 0.0
    %6393 = vmatpush1.xpose.msra.mxu0 0.0
    %6394 = vmatprep.subr.mxu0 0.0
    %6395 = vmatpush1.xpose.msra.mxu0 0.0
    %6396 = vmatprep.subr.mxu0 0.0
    %6397 = vmatpush1.xpose.msra.mxu0 0.0
    %6398 = vmatprep.subr.mxu0 0.0
    %6399 = vmatpush1.xpose.msra.mxu0 0.0
    %6400 = vmatprep.subr.mxu0 0.0
    %6401 = vmatpush1.xpose.msra.mxu0 0.0
    %6402 = vmatprep.subr.mxu0 0.0
    %6403 = vmatpush1.xpose.msra.mxu0 0.0
    %6404 = vmatprep.subr.mxu0 0.0
    %6405 = vmatpush1.xpose.msra.mxu0 0.0
    %6406 = vmatprep.subr.mxu0 0.0
    %6407 = vmatpush1.xpose.msra.mxu0 0.0
    %6408 = vmatprep.subr.mxu0 0.0
    %6409 = vmatpush1.xpose.msra.mxu0 0.0
    %6410 = vmatprep.mubr.f32.mxu0 0.0
    %6411 = vmatmul.mubr.f32.gmra.mrb[0].mxu0 %v6329
    %v6412 = vpop.f32.mrb[0].mxu0
    %v6413 = vadd.f32 %v144, %v6412
    %v6414 = vpop.f32.mrb[0].mxu0
    %6415 = vmatprep.mubr.f32.mxu0 0.0
    %6416 = vmatmul.mubr.f32.gmra.mrb[0].mxu0 %v6332
    %v6417 = vpop.f32.mrb[0].mxu0
    %v6418 = vadd.f32 %v145, %v6417
    %v6419 = vpop.f32.mrb[0].mxu0
    %6420 = vmatprep.mubr.f32.mxu0 0.0
    %6421 = vmatmul.mubr.f32.gmra.mrb[0].mxu0 %v6335
    %v6422 = vpop.f32.mrb[0].mxu0
    %v6423 = vadd.f32 %v146, %v6422
    %v6424 = vpop.f32.mrb[0].mxu0
    %6425 = vdwg.mxu0
    %v6427 = vsel %vm579, %v6107, 0
    %v6430 = vsel %vm579, %v6112, 0
    %v6433 = vsel %vm579, %v6117, 0
    %v6436 = vsel %vm579, %v6211, 0
    %v6439 = vsel %vm579, %v6216, 0
    %v6442 = vsel %vm579, %v6221, 0
    %6444 = vmatprep.subr.mxu0 0.0
    %6445 = vmatpush1.xpose.msra.mxu0 %v6436
    %6446 = vmatprep.subr.mxu0 0.0
    %6447 = vmatpush1.xpose.msra.mxu0 %v6439
    %6448 = vmatprep.subr.mxu0 0.0
    %6449 = vmatpush1.xpose.msra.mxu0 %v6442
    %6450 = vmatprep.subr.mxu0 0.0
    %6451 = vmatpush1.xpose.msra.mxu0 0.0
    %6452 = vmatprep.subr.mxu0 0.0
    %6453 = vmatpush1.xpose.msra.mxu0 0.0
    %6454 = vmatprep.subr.mxu0 0.0
    %6455 = vmatpush1.xpose.msra.mxu0 0.0
    %6456 = vmatprep.subr.mxu0 0.0
    %6457 = vmatpush1.xpose.msra.mxu0 0.0
    %6458 = vmatprep.subr.mxu0 0.0
    %6459 = vmatpush1.xpose.msra.mxu0 0.0
    %6460 = vmatprep.subr.mxu0 0.0
    %6461 = vmatpush1.xpose.msra.mxu0 0.0
    %6462 = vmatprep.subr.mxu0 0.0
    %6463 = vmatpush1.xpose.msra.mxu0 0.0
    %6464 = vmatprep.subr.mxu0 0.0
    %6465 = vmatpush1.xpose.msra.mxu0 0.0
    %6466 = vmatprep.subr.mxu0 0.0
    %6467 = vmatpush1.xpose.msra.mxu0 0.0
    %6468 = vmatprep.subr.mxu0 0.0
    %6469 = vmatpush1.xpose.msra.mxu0 0.0
    %6470 = vmatprep.subr.mxu0 0.0
    %6471 = vmatpush1.xpose.msra.mxu0 0.0
    %6472 = vmatprep.subr.mxu0 0.0
    %6473 = vmatpush1.xpose.msra.mxu0 0.0
    %6474 = vmatprep.subr.mxu0 0.0
    %6475 = vmatpush1.xpose.msra.mxu0 0.0
    %6476 = vmatprep.subr.mxu0 0.0
    %6477 = vmatpush1.xpose.msra.mxu0 0.0
    %6478 = vmatprep.subr.mxu0 0.0
    %6479 = vmatpush1.xpose.msra.mxu0 0.0
    %6480 = vmatprep.subr.mxu0 0.0
    %6481 = vmatpush1.xpose.msra.mxu0 0.0
    %6482 = vmatprep.subr.mxu0 0.0
    %6483 = vmatpush1.xpose.msra.mxu0 0.0
    %6484 = vmatprep.subr.mxu0 0.0
    %6485 = vmatpush1.xpose.msra.mxu0 0.0
    %6486 = vmatprep.subr.mxu0 0.0
    %6487 = vmatpush1.xpose.msra.mxu0 0.0
    %6488 = vmatprep.subr.mxu0 0.0
    %6489 = vmatpush1.xpose.msra.mxu0 0.0
    %6490 = vmatprep.subr.mxu0 0.0
    %6491 = vmatpush1.xpose.msra.mxu0 0.0
    %6492 = vmatprep.subr.mxu0 0.0
    %6493 = vmatpush1.xpose.msra.mxu0 0.0
    %6494 = vmatprep.subr.mxu0 0.0
    %6495 = vmatpush1.xpose.msra.mxu0 0.0
    %6496 = vmatprep.subr.mxu0 0.0
    %6497 = vmatpush1.xpose.msra.mxu0 0.0
    %6498 = vmatprep.subr.mxu0 0.0
    %6499 = vmatpush1.xpose.msra.mxu0 0.0
    %6500 = vmatprep.subr.mxu0 0.0
    %6501 = vmatpush1.xpose.msra.mxu0 0.0
    %6502 = vmatprep.subr.mxu0 0.0
    %6503 = vmatpush1.xpose.msra.mxu0 0.0
    %6504 = vmatprep.subr.mxu0 0.0
    %6505 = vmatpush1.xpose.msra.mxu0 0.0
    %6506 = vmatprep.subr.mxu0 0.0
    %6507 = vmatpush1.xpose.msra.mxu0 0.0
    %6508 = vmatprep.mubr.f32.mxu0 0.0
    %6509 = vmatmul.mubr.f32.gmra.mrb[0].mxu0 %v6427
    %v6510 = vpop.f32.mrb[0].mxu0
    %v6511 = vadd.f32 %v144, %v6510
    %v6512 = vpop.f32.mrb[0].mxu0
    %6513 = vmatprep.mubr.f32.mxu0 0.0
    %6514 = vmatmul.mubr.f32.gmra.mrb[0].mxu0 %v6430
    %v6515 = vpop.f32.mrb[0].mxu0
    %v6516 = vadd.f32 %v145, %v6515
    %v6517 = vpop.f32.mrb[0].mxu0
    %6518 = vmatprep.mubr.f32.mxu0 0.0
    %6519 = vmatmul.mubr.f32.gmra.mrb[0].mxu0 %v6433
    %v6520 = vpop.f32.mrb[0].mxu0
    %v6521 = vadd.f32 %v146, %v6520
    %v6522 = vpop.f32.mrb[0].mxu0
    %6523 = vdwg.mxu0
    %v6524 = vsel %vm776, %v6413, -inf
    %6525 = vmax.xlane.f32.xlu0 %v6524
    %v6526 = vpop.xlane.xlu0 %6525
    %v6527 = vsel %vm776, %v6418, -inf
    %6528 = vmax.xlane.f32.xlu0 %v6527
    %v6529 = vpop.xlane.xlu0 %6528
    %v6530 = vsel %vm776, %v6423, -inf
    %6531 = vmax.xlane.f32.xlu0 %v6530
    %v6532 = vpop.xlane.xlu0 %6531
    %v6533 = vsel %vm776, %v6511, -inf
    %6534 = vmax.xlane.f32.xlu0 %v6533
    %v6535 = vpop.xlane.xlu0 %6534
    %v6536 = vsel %vm776, %v6516, -inf
    %6537 = vmax.xlane.f32.xlu0 %v6536
    %v6538 = vpop.xlane.xlu0 %6537
    %v6539 = vsel %vm776, %v6521, -inf
    %6540 = vmax.xlane.f32.xlu0 %v6539
    %v6541 = vpop.xlane.xlu0 %6540
    %v6542 = vsub.f32 %v6413, %v6526
    %v6543 = vsub.f32 %v6418, %v6529
    %v6544 = vsub.f32 %v6423, %v6532
    %v6545 = vsub.f32 %v6511, %v6535
    %v6546 = vsub.f32 %v6516, %v6538
    %v6547 = vsub.f32 %v6521, %v6541
    %v6548 = vmul.f32 %v6542, 1.442695
    %v6549 = vpow.pop %v6548
    %v6550 = vmul.f32 %v6543, 1.442695
    %v6551 = vpow.pop %v6550
    %v6552 = vmul.f32 %v6544, 1.442695
    %v6553 = vpow.pop %v6552
    %v6554 = vmul.f32 %v6545, 1.442695
    %v6555 = vpow.pop %v6554
    %v6556 = vmul.f32 %v6546, 1.442695
    %v6557 = vpow.pop %v6556
    %v6558 = vmul.f32 %v6547, 1.442695
    %v6559 = vpow.pop %v6558
    %v6560 = vsel %vm776, %v6549, 0.0
    %6561 = vadd.xlane.f32.xlu0 %v6560
    %v6562 = vpop.xlane.xlu0 %6561
    %v6563 = vsel %vm776, %v6551, 0.0
    %6564 = vadd.xlane.f32.xlu0 %v6563
    %v6565 = vpop.xlane.xlu0 %6564
    %v6566 = vsel %vm776, %v6553, 0.0
    %6567 = vadd.xlane.f32.xlu0 %v6566
    %v6568 = vpop.xlane.xlu0 %6567
    %v6569 = vsel %vm776, %v6555, 0.0
    %6570 = vadd.xlane.f32.xlu0 %v6569
    %v6571 = vpop.xlane.xlu0 %6570
    %v6572 = vsel %vm776, %v6557, 0.0
    %6573 = vadd.xlane.f32.xlu0 %v6572
    %v6574 = vpop.xlane.xlu0 %6573
    %v6575 = vsel %vm776, %v6559, 0.0
    %6576 = vadd.xlane.f32.xlu0 %v6575
    %v6577 = vpop.xlane.xlu0 %6576
    %v6578 = vrcp.pop %v6562
    %v6579 = vrcp.pop %v6565
    %v6580 = vrcp.pop %v6568
    %v6581 = vrcp.pop %v6571
    %v6582 = vrcp.pop %v6574
    %v6583 = vrcp.pop %v6577
    %v6584 = vmul.f32 %v6549, %v6578
    %v6585 = vmul.f32 %v6551, %v6579
    %v6586 = vmul.f32 %v6553, %v6580
    %v6587 = vmul.f32 %v6555, %v6581
    %v6588 = vmul.f32 %v6557, %v6582
    %v6589 = vmul.f32 %v6559, %v6583
    %v6591 = vsel %vm776, %v6584, 0
    %v6594 = vsel %vm776, %v6585, 0
    %v6597 = vsel %vm776, %v6586, 0
    %6599 = vmatprep.subr.mxu0 0.0
    %6600 = vmatpush1.msra.mxu0 %v6300
    %6601 = vmatprep.subr.mxu0 0.0
    %6602 = vmatpush1.msra.mxu0 %v6305
    %6603 = vmatprep.subr.mxu0 0.0
    %6604 = vmatpush1.msra.mxu0 %v6310
    %6605 = vmatprep.subr.mxu0 0.0
    %6606 = vmatpush1.msra.mxu0 0.0
    %6607 = vmatprep.subr.mxu0 0.0
    %6608 = vmatpush1.msra.mxu0 0.0
    %6609 = vmatprep.subr.mxu0 0.0
    %6610 = vmatpush1.msra.mxu0 0.0
    %6611 = vmatprep.subr.mxu0 0.0
    %6612 = vmatpush1.msra.mxu0 0.0
    %6613 = vmatprep.subr.mxu0 0.0
    %6614 = vmatpush1.msra.mxu0 0.0
    %6615 = vmatprep.subr.mxu0 0.0
    %6616 = vmatpush1.msra.mxu0 0.0
    %6617 = vmatprep.subr.mxu0 0.0
    %6618 = vmatpush1.msra.mxu0 0.0
    %6619 = vmatprep.subr.mxu0 0.0
    %6620 = vmatpush1.msra.mxu0 0.0
    %6621 = vmatprep.subr.mxu0 0.0
    %6622 = vmatpush1.msra.mxu0 0.0
    %6623 = vmatprep.subr.mxu0 0.0
    %6624 = vmatpush1.msra.mxu0 0.0
    %6625 = vmatprep.subr.mxu0 0.0
    %6626 = vmatpush1.msra.mxu0 0.0
    %6627 = vmatprep.subr.mxu0 0.0
    %6628 = vmatpush1.msra.mxu0 0.0
    %6629 = vmatprep.subr.mxu0 0.0
    %6630 = vmatpush1.msra.mxu0 0.0
    %6631 = vmatprep.subr.mxu0 0.0
    %6632 = vmatpush1.msra.mxu0 0.0
    %6633 = vmatprep.subr.mxu0 0.0
    %6634 = vmatpush1.msra.mxu0 0.0
    %6635 = vmatprep.subr.mxu0 0.0
    %6636 = vmatpush1.msra.mxu0 0.0
    %6637 = vmatprep.subr.mxu0 0.0
    %6638 = vmatpush1.msra.mxu0 0.0
    %6639 = vmatprep.subr.mxu0 0.0
    %6640 = vmatpush1.msra.mxu0 0.0
    %6641 = vmatprep.subr.mxu0 0.0
    %6642 = vmatpush1.msra.mxu0 0.0
    %6643 = vmatprep.subr.mxu0 0.0
    %6644 = vmatpush1.msra.mxu0 0.0
    %6645 = vmatprep.subr.mxu0 0.0
    %6646 = vmatpush1.msra.mxu0 0.0
    %6647 = vmatprep.subr.mxu0 0.0
    %6648 = vmatpush1.msra.mxu0 0.0
    %6649 = vmatprep.subr.mxu0 0.0
    %6650 = vmatpush1.msra.mxu0 0.0
    %6651 = vmatprep.subr.mxu0 0.0
    %6652 = vmatpush1.msra.mxu0 0.0
    %6653 = vmatprep.subr.mxu0 0.0
    %6654 = vmatpush1.msra.mxu0 0.0
    %6655 = vmatprep.subr.mxu0 0.0
    %6656 = vmatpush1.msra.mxu0 0.0
    %6657 = vmatprep.subr.mxu0 0.0
    %6658 = vmatpush1.msra.mxu0 0.0
    %6659 = vmatprep.subr.mxu0 0.0
    %6660 = vmatpush1.msra.mxu0 0.0
    %6661 = vmatprep.subr.mxu0 0.0
    %6662 = vmatpush1.msra.mxu0 0.0
    %6663 = vmatprep.mubr.f32.mxu0 0.0
    %6664 = vmatmul.mubr.f32.gmra.mrb[0].mxu0 %v6591
    %v6665 = vpop.f32.mrb[0].mxu0
    %v6666 = vadd.f32 0.0, %v6665
    %v6667 = vpop.f32.mrb[0].mxu0
    %6668 = vmatprep.mubr.f32.mxu0 0.0
    %6669 = vmatmul.mubr.f32.gmra.mrb[0].mxu0 %v6594
    %v6670 = vpop.f32.mrb[0].mxu0
    %v6671 = vadd.f32 0.0, %v6670
    %v6672 = vpop.f32.mrb[0].mxu0
    %6673 = vmatprep.mubr.f32.mxu0 0.0
    %6674 = vmatmul.mubr.f32.gmra.mrb[0].mxu0 %v6597
    %v6675 = vpop.f32.mrb[0].mxu0
    %v6676 = vadd.f32 0.0, %v6675
    %v6677 = vpop.f32.mrb[0].mxu0
    %6678 = vdwg.mxu0
    %v6680 = vsel %vm776, %v6587, 0
    %v6683 = vsel %vm776, %v6588, 0
    %v6686 = vsel %vm776, %v6589, 0
    %6688 = vmatprep.subr.mxu0 0.0
    %6689 = vmatpush1.msra.mxu0 %v6315
    %6690 = vmatprep.subr.mxu0 0.0
    %6691 = vmatpush1.msra.mxu0 %v6320
    %6692 = vmatprep.subr.mxu0 0.0
    %6693 = vmatpush1.msra.mxu0 %v6325
    %6694 = vmatprep.subr.mxu0 0.0
    %6695 = vmatpush1.msra.mxu0 0.0
    %6696 = vmatprep.subr.mxu0 0.0
    %6697 = vmatpush1.msra.mxu0 0.0
    %6698 = vmatprep.subr.mxu0 0.0
    %6699 = vmatpush1.msra.mxu0 0.0
    %6700 = vmatprep.subr.mxu0 0.0
    %6701 = vmatpush1.msra.mxu0 0.0
    %6702 = vmatprep.subr.mxu0 0.0
    %6703 = vmatpush1.msra.mxu0 0.0
    %6704 = vmatprep.subr.mxu0 0.0
    %6705 = vmatpush1.msra.mxu0 0.0
    %6706 = vmatprep.subr.mxu0 0.0
    %6707 = vmatpush1.msra.mxu0 0.0
    %6708 = vmatprep.subr.mxu0 0.0
    %6709 = vmatpush1.msra.mxu0 0.0
    %6710 = vmatprep.subr.mxu0 0.0
    %6711 = vmatpush1.msra.mxu0 0.0
    %6712 = vmatprep.subr.mxu0 0.0
    %6713 = vmatpush1.msra.mxu0 0.0
    %6714 = vmatprep.subr.mxu0 0.0
    %6715 = vmatpush1.msra.mxu0 0.0
    %6716 = vmatprep.subr.mxu0 0.0
    %6717 = vmatpush1.msra.mxu0 0.0
    %6718 = vmatprep.subr.mxu0 0.0
    %6719 = vmatpush1.msra.mxu0 0.0
    %6720 = vmatprep.subr.mxu0 0.0
    %6721 = vmatpush1.msra.mxu0 0.0
    %6722 = vmatprep.subr.mxu0 0.0
    %6723 = vmatpush1.msra.mxu0 0.0
    %6724 = vmatprep.subr.mxu0 0.0
    %6725 = vmatpush1.msra.mxu0 0.0
    %6726 = vmatprep.subr.mxu0 0.0
    %6727 = vmatpush1.msra.mxu0 0.0
    %6728 = vmatprep.subr.mxu0 0.0
    %6729 = vmatpush1.msra.mxu0 0.0
    %6730 = vmatprep.subr.mxu0 0.0
    %6731 = vmatpush1.msra.mxu0 0.0
    %6732 = vmatprep.subr.mxu0 0.0
    %6733 = vmatpush1.msra.mxu0 0.0
    %6734 = vmatprep.subr.mxu0 0.0
    %6735 = vmatpush1.msra.mxu0 0.0
    %6736 = vmatprep.subr.mxu0 0.0
    %6737 = vmatpush1.msra.mxu0 0.0
    %6738 = vmatprep.subr.mxu0 0.0
    %6739 = vmatpush1.msra.mxu0 0.0
    %6740 = vmatprep.subr.mxu0 0.0
    %6741 = vmatpush1.msra.mxu0 0.0
    %6742 = vmatprep.subr.mxu0 0.0
    %6743 = vmatpush1.msra.mxu0 0.0
    %6744 = vmatprep.subr.mxu0 0.0
    %6745 = vmatpush1.msra.mxu0 0.0
    %6746 = vmatprep.subr.mxu0 0.0
    %6747 = vmatpush1.msra.mxu0 0.0
    %6748 = vmatprep.subr.mxu0 0.0
    %6749 = vmatpush1.msra.mxu0 0.0
    %6750 = vmatprep.subr.mxu0 0.0
    %6751 = vmatpush1.msra.mxu0 0.0
    %6752 = vmatprep.mubr.f32.mxu0 0.0
    %6753 = vmatmul.mubr.f32.gmra.mrb[0].mxu0 %v6680
    %v6754 = vpop.f32.mrb[0].mxu0
    %v6755 = vadd.f32 0.0, %v6754
    %v6756 = vpop.f32.mrb[0].mxu0
    %6757 = vmatprep.mubr.f32.mxu0 0.0
    %6758 = vmatmul.mubr.f32.gmra.mrb[0].mxu0 %v6683
    %v6759 = vpop.f32.mrb[0].mxu0
    %v6760 = vadd.f32 0.0, %v6759
    %v6761 = vpop.f32.mrb[0].mxu0
    %6762 = vmatprep.mubr.f32.mxu0 0.0
    %6763 = vmatmul.mubr.f32.gmra.mrb[0].mxu0 %v6686
    %v6764 = vpop.f32.mrb[0].mxu0
    %v6765 = vadd.f32 0.0, %v6764
    %v6766 = vpop.f32.mrb[0].mxu0
    %6767 = vdwg.mxu0
    %v6768 = vld [vmem:[%s1 + $0x4c0] sm:$0xff]
    %v6770 = vsel %vm579, %v6666, 0
    %v6773 = vsel %vm579, %v6671, 0
    %v6776 = vsel %vm579, %v6676, 0
    %v6779 = vsel %vm579, %v6755, 0
    %v6782 = vsel %vm579, %v6760, 0
    %v6785 = vsel %vm579, %v6765, 0
    %6787 = vmatprep.subr.mxu0 0.0
    %6788 = vmatpush1.msra.mxu0 %v6768
    %6789 = vmatprep.subr.mxu0 0.0
    %6790 = vmatpush1.msra.mxu0 0.0
    %6791 = vmatprep.subr.mxu0 0.0
    %6792 = vmatpush1.msra.mxu0 0.0
    %6793 = vmatprep.subr.mxu0 0.0
    %6794 = vmatpush1.msra.mxu0 0.0
    %6795 = vmatprep.subr.mxu0 0.0
    %6796 = vmatpush1.msra.mxu0 0.0
    %6797 = vmatprep.subr.mxu0 0.0
    %6798 = vmatpush1.msra.mxu0 0.0
    %6799 = vmatprep.subr.mxu0 0.0
    %6800 = vmatpush1.msra.mxu0 0.0
    %6801 = vmatprep.subr.mxu0 0.0
    %6802 = vmatpush1.msra.mxu0 0.0
    %6803 = vmatprep.subr.mxu0 0.0
    %6804 = vmatpush1.msra.mxu0 0.0
    %6805 = vmatprep.subr.mxu0 0.0
    %6806 = vmatpush1.msra.mxu0 0.0
    %6807 = vmatprep.subr.mxu0 0.0
    %6808 = vmatpush1.msra.mxu0 0.0
    %6809 = vmatprep.subr.mxu0 0.0
    %6810 = vmatpush1.msra.mxu0 0.0
    %6811 = vmatprep.subr.mxu0 0.0
    %6812 = vmatpush1.msra.mxu0 0.0
    %6813 = vmatprep.subr.mxu0 0.0
    %6814 = vmatpush1.msra.mxu0 0.0
    %6815 = vmatprep.subr.mxu0 0.0
    %6816 = vmatpush1.msra.mxu0 0.0
    %6817 = vmatprep.subr.mxu0 0.0
    %6818 = vmatpush1.msra.mxu0 0.0
    %6819 = vmatprep.subr.mxu0 0.0
    %6820 = vmatpush1.msra.mxu0 0.0
    %6821 = vmatprep.subr.mxu0 0.0
    %6822 = vmatpush1.msra.mxu0 0.0
    %6823 = vmatprep.subr.mxu0 0.0
    %6824 = vmatpush1.msra.mxu0 0.0
    %6825 = vmatprep.subr.mxu0 0.0
    %6826 = vmatpush1.msra.mxu0 0.0
    %6827 = vmatprep.subr.mxu0 0.0
    %6828 = vmatpush1.msra.mxu0 0.0
    %6829 = vmatprep.subr.mxu0 0.0
    %6830 = vmatpush1.msra.mxu0 0.0
    %6831 = vmatprep.subr.mxu0 0.0
    %6832 = vmatpush1.msra.mxu0 0.0
    %6833 = vmatprep.subr.mxu0 0.0
    %6834 = vmatpush1.msra.mxu0 0.0
    %6835 = vmatprep.subr.mxu0 0.0
    %6836 = vmatpush1.msra.mxu0 0.0
    %6837 = vmatprep.subr.mxu0 0.0
    %6838 = vmatpush1.msra.mxu0 0.0
    %6839 = vmatprep.subr.mxu0 0.0
    %6840 = vmatpush1.msra.mxu0 0.0
    %6841 = vmatprep.subr.mxu0 0.0
    %6842 = vmatpush1.msra.mxu0 0.0
    %6843 = vmatprep.subr.mxu0 0.0
    %6844 = vmatpush1.msra.mxu0 0.0
    %6845 = vmatprep.subr.mxu0 0.0
    %6846 = vmatpush1.msra.mxu0 0.0
    %6847 = vmatprep.subr.mxu0 0.0
    %6848 = vmatpush1.msra.mxu0 0.0
    %6849 = vmatprep.subr.mxu0 0.0
    %6850 = vmatpush1.msra.mxu0 0.0
    %6851 = vmatprep.mubr.f32.mxu0 0.0
    %6852 = vmatmul.mubr.f32.gmra.mrb[0].mxu0 %v6770
    %v6853 = vpop.f32.mrb[0].mxu0
    %v6854 = vadd.f32 0.0, %v6853
    %v6855 = vpop.f32.mrb[0].mxu0
    %6856 = vmatprep.mubr.f32.mxu0 0.0
    %6857 = vmatmul.mubr.f32.gmra.mrb[0].mxu0 %v6773
    %v6858 = vpop.f32.mrb[0].mxu0
    %v6859 = vadd.f32 0.0, %v6858
    %v6860 = vpop.f32.mrb[0].mxu0
    %6861 = vmatprep.mubr.f32.mxu0 0.0
    %6862 = vmatmul.mubr.f32.gmra.mrb[0].mxu0 %v6776
    %v6863 = vpop.f32.mrb[0].mxu0
    %v6864 = vadd.f32 0.0, %v6863
    %v6865 = vpop.f32.mrb[0].mxu0
    %6866 = vmatprep.mubr.f32.mxu0 0.0
    %6867 = vmatmul.mubr.f32.gmra.mrb[0].mxu0 %v6779
    %v6868 = vpop.f32.mrb[0].mxu0
    %v6869 = vadd.f32 0.0, %v6868
    %v6870 = vpop.f32.mrb[0].mxu0
    %6871 = vmatprep.mubr.f32.mxu0 0.0
    %6872 = vmatmul.mubr.f32.gmra.mrb[0].mxu0 %v6782
    %v6873 = vpop.f32.mrb[0].mxu0
    %v6874 = vadd.f32 0.0, %v6873
    %v6875 = vpop.f32.mrb[0].mxu0
    %6876 = vmatprep.mubr.f32.mxu0 0.0
    %6877 = vmatmul.mubr.f32.gmra.mrb[0].mxu0 %v6785
    %v6878 = vpop.f32.mrb[0].mxu0
    %v6879 = vadd.f32 0.0, %v6878
    %v6880 = vpop.f32.mrb[0].mxu0
    %6881 = vdwg.mxu0
    %v6882 = vadd.f32 %v5988, %v6854
    %v6883 = vadd.f32 %v5993, %v6859
    %v6884 = vadd.f32 %v5998, %v6864
    %v6885 = vadd.f32 %v6003, %v6869
    %v6886 = vadd.f32 %v6008, %v6874
    %v6887 = vadd.f32 %v6013, %v6879
    %v6888 = vld [vmem:[%s1 + $0x4e0] sm:$0xff]
    %v6889 = vld [vmem:[%s1 + $0x4e8] sm:$0xff]
    %v6890 = vld [vmem:[%s1 + $0x4f0] sm:$0xff]
    %v6891 = vld [vmem:[%s1 + $0x4f8] sm:$0xff]
    %v6892 = vld [vmem:[%s1 + $0x548] sm:$0x1]
    %v6893 = vlaneseq
    %v6894 = vshrl.u32 %v6893, 7
    %v6895 = vsub.s32 0, %v6894
    %v6896 = vrot.slane %v6892, %v6895
    %6897 = vmatprep.subr.mxu0 0.0
    %6898 = vmatpush1.msra.mxu0 %v6888
    %6899 = vmatprep.subr.mxu0 0.0
    %6900 = vmatpush1.msra.mxu0 %v6889
    %6901 = vmatprep.subr.mxu0 0.0
    %6902 = vmatpush1.msra.mxu0 %v6890
    %6903 = vmatprep.subr.mxu0 0.0
    %6904 = vmatpush1.msra.mxu0 %v6891
    %6905 = vmatprep.subr.mxu0 0.0
    %6906 = vmatpush1.msra.mxu0 0.0
    %6907 = vmatprep.subr.mxu0 0.0
    %6908 = vmatpush1.msra.mxu0 0.0
    %6909 = vmatprep.subr.mxu0 0.0
    %6910 = vmatpush1.msra.mxu0 0.0
    %6911 = vmatprep.subr.mxu0 0.0
    %6912 = vmatpush1.msra.mxu0 0.0
    %6913 = vmatprep.subr.mxu0 0.0
    %6914 = vmatpush1.msra.mxu0 0.0
    %6915 = vmatprep.subr.mxu0 0.0
    %6916 = vmatpush1.msra.mxu0 0.0
    %6917 = vmatprep.subr.mxu0 0.0
    %6918 = vmatpush1.msra.mxu0 0.0
    %6919 = vmatprep.subr.mxu0 0.0
    %6920 = vmatpush1.msra.mxu0 0.0
    %6921 = vmatprep.subr.mxu0 0.0
    %6922 = vmatpush1.msra.mxu0 0.0
    %6923 = vmatprep.subr.mxu0 0.0
    %6924 = vmatpush1.msra.mxu0 0.0
    %6925 = vmatprep.subr.mxu0 0.0
    %6926 = vmatpush1.msra.mxu0 0.0
    %6927 = vmatprep.subr.mxu0 0.0
    %6928 = vmatpush1.msra.mxu0 0.0
    %6929 = vmatprep.subr.mxu0 0.0
    %6930 = vmatpush1.msra.mxu0 0.0
    %6931 = vmatprep.subr.mxu0 0.0
    %6932 = vmatpush1.msra.mxu0 0.0
    %6933 = vmatprep.subr.mxu0 0.0
    %6934 = vmatpush1.msra.mxu0 0.0
    %6935 = vmatprep.subr.mxu0 0.0
    %6936 = vmatpush1.msra.mxu0 0.0
    %6937 = vmatprep.subr.mxu0 0.0
    %6938 = vmatpush1.msra.mxu0 0.0
    %6939 = vmatprep.subr.mxu0 0.0
    %6940 = vmatpush1.msra.mxu0 0.0
    %6941 = vmatprep.subr.mxu0 0.0
    %6942 = vmatpush1.msra.mxu0 0.0
    %6943 = vmatprep.subr.mxu0 0.0
    %6944 = vmatpush1.msra.mxu0 0.0
    %6945 = vmatprep.subr.mxu0 0.0
    %6946 = vmatpush1.msra.mxu0 0.0
    %6947 = vmatprep.subr.mxu0 0.0
    %6948 = vmatpush1.msra.mxu0 0.0
    %6949 = vmatprep.subr.mxu0 0.0
    %6950 = vmatpush1.msra.mxu0 0.0
    %6951 = vmatprep.subr.mxu0 0.0
    %6952 = vmatpush1.msra.mxu0 0.0
    %6953 = vmatprep.subr.mxu0 0.0
    %6954 = vmatpush1.msra.mxu0 0.0
    %6955 = vmatprep.subr.mxu0 0.0
    %6956 = vmatpush1.msra.mxu0 0.0
    %6957 = vmatprep.subr.mxu0 0.0
    %6958 = vmatpush1.msra.mxu0 0.0
    %6959 = vmatprep.subr.mxu0 0.0
    %6960 = vmatpush1.msra.mxu0 0.0
    %6961 = vmatprep.mubr.f32.mxu0 0.0
    %6962 = vmatmul.mubr.f32.gmra.mrb[0].mxu0 %v4276
    %v6963 = vpop.f32.mrb[0].mxu0
    %v6964 = vadd.f32 %v6896, %v6963
    %v6965 = vpop.f32.mrb[0].mxu0
    %6966 = vmatprep.mubr.f32.mxu0 0.0
    %6967 = vmatmul.mubr.f32.gmra.mrb[0].mxu0 %v4279
    %v6968 = vpop.f32.mrb[0].mxu0
    %v6969 = vadd.f32 %v6896, %v6968
    %v6970 = vpop.f32.mrb[0].mxu0
    %6971 = vmatprep.mubr.f32.mxu0 0.0
    %6972 = vmatmul.mubr.f32.gmra.mrb[0].mxu0 %v4282
    %v6973 = vpop.f32.mrb[0].mxu0
    %v6974 = vadd.f32 %v6896, %v6973
    %v6975 = vpop.f32.mrb[0].mxu0
    %6976 = vmatprep.mubr.f32.mxu0 0.0
    %6977 = vmatmul.mubr.f32.gmra.mrb[0].mxu0 %v4285
    %v6978 = vpop.f32.mrb[0].mxu0
    %v6979 = vadd.f32 %v6896, %v6978
    %v6980 = vpop.f32.mrb[0].mxu0
    %6981 = vmatprep.mubr.f32.mxu0 0.0
    %6982 = vmatmul.mubr.f32.gmra.mrb[0].mxu0 %v4288
    %v6983 = vpop.f32.mrb[0].mxu0
    %v6984 = vadd.f32 %v6896, %v6983
    %v6985 = vpop.f32.mrb[0].mxu0
    %6986 = vmatprep.mubr.f32.mxu0 0.0
    %6987 = vmatmul.mubr.f32.gmra.mrb[0].mxu0 %v4291
    %v6988 = vpop.f32.mrb[0].mxu0
    %v6989 = vadd.f32 %v6896, %v6988
    %v6990 = vpop.f32.mrb[0].mxu0
    %6991 = vdwg.mxu0
    %v6992 = vld [vmem:[%s1 + $0x500] sm:$0xff]
    %v6993 = vld [vmem:[%s1 + $0x508] sm:$0xff]
    %v6994 = vld [vmem:[%s1 + $0x510] sm:$0xff]
    %v6995 = vld [vmem:[%s1 + $0x518] sm:$0xff]
    %v6996 = vld [vmem:[%s1 + $0x550] sm:$0x1]
    %v6997 = vlaneseq
    %v6998 = vshrl.u32 %v6997, 7
    %v6999 = vsub.s32 0, %v6998
    %v7000 = vrot.slane %v6996, %v6999
    %7001 = vmatprep.subr.mxu0 0.0
    %7002 = vmatpush1.msra.mxu0 %v6992
    %7003 = vmatprep.subr.mxu0 0.0
    %7004 = vmatpush1.msra.mxu0 %v6993
    %7005 = vmatprep.subr.mxu0 0.0
    %7006 = vmatpush1.msra.mxu0 %v6994
    %7007 = vmatprep.subr.mxu0 0.0
    %7008 = vmatpush1.msra.mxu0 %v6995
    %7009 = vmatprep.subr.mxu0 0.0
    %7010 = vmatpush1.msra.mxu0 0.0
    %7011 = vmatprep.subr.mxu0 0.0
    %7012 = vmatpush1.msra.mxu0 0.0
    %7013 = vmatprep.subr.mxu0 0.0
    %7014 = vmatpush1.msra.mxu0 0.0
    %7015 = vmatprep.subr.mxu0 0.0
    %7016 = vmatpush1.msra.mxu0 0.0
    %7017 = vmatprep.subr.mxu0 0.0
    %7018 = vmatpush1.msra.mxu0 0.0
    %7019 = vmatprep.subr.mxu0 0.0
    %7020 = vmatpush1.msra.mxu0 0.0
    %7021 = vmatprep.subr.mxu0 0.0
    %7022 = vmatpush1.msra.mxu0 0.0
    %7023 = vmatprep.subr.mxu0 0.0
    %7024 = vmatpush1.msra.mxu0 0.0
    %7025 = vmatprep.subr.mxu0 0.0
    %7026 = vmatpush1.msra.mxu0 0.0
    %7027 = vmatprep.subr.mxu0 0.0
    %7028 = vmatpush1.msra.mxu0 0.0
    %7029 = vmatprep.subr.mxu0 0.0
    %7030 = vmatpush1.msra.mxu0 0.0
    %7031 = vmatprep.subr.mxu0 0.0
    %7032 = vmatpush1.msra.mxu0 0.0
    %7033 = vmatprep.subr.mxu0 0.0
    %7034 = vmatpush1.msra.mxu0 0.0
    %7035 = vmatprep.subr.mxu0 0.0
    %7036 = vmatpush1.msra.mxu0 0.0
    %7037 = vmatprep.subr.mxu0 0.0
    %7038 = vmatpush1.msra.mxu0 0.0
    %7039 = vmatprep.subr.mxu0 0.0
    %7040 = vmatpush1.msra.mxu0 0.0
    %7041 = vmatprep.subr.mxu0 0.0
    %7042 = vmatpush1.msra.mxu0 0.0
    %7043 = vmatprep.subr.mxu0 0.0
    %7044 = vmatpush1.msra.mxu0 0.0
    %7045 = vmatprep.subr.mxu0 0.0
    %7046 = vmatpush1.msra.mxu0 0.0
    %7047 = vmatprep.subr.mxu0 0.0
    %7048 = vmatpush1.msra.mxu0 0.0
    %7049 = vmatprep.subr.mxu0 0.0
    %7050 = vmatpush1.msra.mxu0 0.0
    %7051 = vmatprep.subr.mxu0 0.0
    %7052 = vmatpush1.msra.mxu0 0.0
    %7053 = vmatprep.subr.mxu0 0.0
    %7054 = vmatpush1.msra.mxu0 0.0
    %7055 = vmatprep.subr.mxu0 0.0
    %7056 = vmatpush1.msra.mxu0 0.0
    %7057 = vmatprep.subr.mxu0 0.0
    %7058 = vmatpush1.msra.mxu0 0.0
    %7059 = vmatprep.subr.mxu0 0.0
    %7060 = vmatpush1.msra.mxu0 0.0
    %7061 = vmatprep.subr.mxu0 0.0
    %7062 = vmatpush1.msra.mxu0 0.0
    %7063 = vmatprep.subr.mxu0 0.0
    %7064 = vmatpush1.msra.mxu0 0.0
    %7065 = vmatprep.mubr.f32.mxu0 0.0
    %7066 = vmatmul.mubr.f32.gmra.mrb[0].mxu0 %v4276
    %v7067 = vpop.f32.mrb[0].mxu0
    %v7068 = vadd.f32 %v7000, %v7067
    %v7069 = vpop.f32.mrb[0].mxu0
    %7070 = vmatprep.mubr.f32.mxu0 0.0
    %7071 = vmatmul.mubr.f32.gmra.mrb[0].mxu0 %v4279
    %v7072 = vpop.f32.mrb[0].mxu0
    %v7073 = vadd.f32 %v7000, %v7072
    %v7074 = vpop.f32.mrb[0].mxu0
    %7075 = vmatprep.mubr.f32.mxu0 0.0
    %7076 = vmatmul.mubr.f32.gmra.mrb[0].mxu0 %v4282
    %v7077 = vpop.f32.mrb[0].mxu0
    %v7078 = vadd.f32 %v7000, %v7077
    %v7079 = vpop.f32.mrb[0].mxu0
    %7080 = vmatprep.mubr.f32.mxu0 0.0
    %7081 = vmatmul.mubr.f32.gmra.mrb[0].mxu0 %v4285
    %v7082 = vpop.f32.mrb[0].mxu0
    %v7083 = vadd.f32 %v7000, %v7082
    %v7084 = vpop.f32.mrb[0].mxu0
    %7085 = vmatprep.mubr.f32.mxu0 0.0
    %7086 = vmatmul.mubr.f32.gmra.mrb[0].mxu0 %v4288
    %v7087 = vpop.f32.mrb[0].mxu0
    %v7088 = vadd.f32 %v7000, %v7087
    %v7089 = vpop.f32.mrb[0].mxu0
    %7090 = vmatprep.mubr.f32.mxu0 0.0
    %7091 = vmatmul.mubr.f32.gmra.mrb[0].mxu0 %v4291
    %v7092 = vpop.f32.mrb[0].mxu0
    %v7093 = vadd.f32 %v7000, %v7092
    %v7094 = vpop.f32.mrb[0].mxu0
    %7095 = vdwg.mxu0
    %v7096 = vld [vmem:[%s1 + $0x520] sm:$0xff]
    %v7097 = vld [vmem:[%s1 + $0x528] sm:$0xff]
    %v7098 = vld [vmem:[%s1 + $0x530] sm:$0xff]
    %v7099 = vld [vmem:[%s1 + $0x538] sm:$0xff]
    %v7100 = vld [vmem:[%s1 + $0x558] sm:$0x1]
    %v7101 = vlaneseq
    %v7102 = vshrl.u32 %v7101, 7
    %v7103 = vsub.s32 0, %v7102
    %v7104 = vrot.slane %v7100, %v7103
    %7105 = vmatprep.subr.mxu0 0.0
    %7106 = vmatpush1.msra.mxu0 %v7096
    %7107 = vmatprep.subr.mxu0 0.0
    %7108 = vmatpush1.msra.mxu0 %v7097
    %7109 = vmatprep.subr.mxu0 0.0
    %7110 = vmatpush1.msra.mxu0 %v7098
    %7111 = vmatprep.subr.mxu0 0.0
    %7112 = vmatpush1.msra.mxu0 %v7099
    %7113 = vmatprep.subr.mxu0 0.0
    %7114 = vmatpush1.msra.mxu0 0.0
    %7115 = vmatprep.subr.mxu0 0.0
    %7116 = vmatpush1.msra.mxu0 0.0
    %7117 = vmatprep.subr.mxu0 0.0
    %7118 = vmatpush1.msra.mxu0 0.0
    %7119 = vmatprep.subr.mxu0 0.0
    %7120 = vmatpush1.msra.mxu0 0.0
    %7121 = vmatprep.subr.mxu0 0.0
    %7122 = vmatpush1.msra.mxu0 0.0
    %7123 = vmatprep.subr.mxu0 0.0
    %7124 = vmatpush1.msra.mxu0 0.0
    %7125 = vmatprep.subr.mxu0 0.0
    %7126 = vmatpush1.msra.mxu0 0.0
    %7127 = vmatprep.subr.mxu0 0.0
    %7128 = vmatpush1.msra.mxu0 0.0
    %7129 = vmatprep.subr.mxu0 0.0
    %7130 = vmatpush1.msra.mxu0 0.0
    %7131 = vmatprep.subr.mxu0 0.0
    %7132 = vmatpush1.msra.mxu0 0.0
    %7133 = vmatprep.subr.mxu0 0.0
    %7134 = vmatpush1.msra.mxu0 0.0
    %7135 = vmatprep.subr.mxu0 0.0
    %7136 = vmatpush1.msra.mxu0 0.0
    %7137 = vmatprep.subr.mxu0 0.0
    %7138 = vmatpush1.msra.mxu0 0.0
    %7139 = vmatprep.subr.mxu0 0.0
    %7140 = vmatpush1.msra.mxu0 0.0
    %7141 = vmatprep.subr.mxu0 0.0
    %7142 = vmatpush1.msra.mxu0 0.0
    %7143 = vmatprep.subr.mxu0 0.0
    %7144 = vmatpush1.msra.mxu0 0.0
    %7145 = vmatprep.subr.mxu0 0.0
    %7146 = vmatpush1.msra.mxu0 0.0
    %7147 = vmatprep.subr.mxu0 0.0
    %7148 = vmatpush1.msra.mxu0 0.0
    %7149 = vmatprep.subr.mxu0 0.0
    %7150 = vmatpush1.msra.mxu0 0.0
    %7151 = vmatprep.subr.mxu0 0.0
    %7152 = vmatpush1.msra.mxu0 0.0
    %7153 = vmatprep.subr.mxu0 0.0
    %7154 = vmatpush1.msra.mxu0 0.0
    %7155 = vmatprep.subr.mxu0 0.0
    %7156 = vmatpush1.msra.mxu0 0.0
    %7157 = vmatprep.subr.mxu0 0.0
    %7158 = vmatpush1.msra.mxu0 0.0
    %7159 = vmatprep.subr.mxu0 0.0
    %7160 = vmatpush1.msra.mxu0 0.0
    %7161 = vmatprep.subr.mxu0 0.0
    %7162 = vmatpush1.msra.mxu0 0.0
    %7163 = vmatprep.subr.mxu0 0.0
    %7164 = vmatpush1.msra.mxu0 0.0
    %7165 = vmatprep.subr.mxu0 0.0
    %7166 = vmatpush1.msra.mxu0 0.0
    %7167 = vmatprep.subr.mxu0 0.0
    %7168 = vmatpush1.msra.mxu0 0.0
    %7169 = vmatprep.mubr.f32.mxu0 0.0
    %7170 = vmatmul.mubr.f32.gmra.mrb[0].mxu0 %v4276
    %v7171 = vpop.f32.mrb[0].mxu0
    %v7172 = vadd.f32 %v7104, %v7171
    %v7173 = vpop.f32.mrb[0].mxu0
    %7174 = vmatprep.mubr.f32.mxu0 0.0
    %7175 = vmatmul.mubr.f32.gmra.mrb[0].mxu0 %v4279
    %v7176 = vpop.f32.mrb[0].mxu0
    %v7177 = vadd.f32 %v7104, %v7176
    %v7178 = vpop.f32.mrb[0].mxu0
    %7179 = vmatprep.mubr.f32.mxu0 0.0
    %7180 = vmatmul.mubr.f32.gmra.mrb[0].mxu0 %v4282
    %v7181 = vpop.f32.mrb[0].mxu0
    %v7182 = vadd.f32 %v7104, %v7181
    %v7183 = vpop.f32.mrb[0].mxu0
    %7184 = vmatprep.mubr.f32.mxu0 0.0
    %7185 = vmatmul.mubr.f32.gmra.mrb[0].mxu0 %v4285
    %v7186 = vpop.f32.mrb[0].mxu0
    %v7187 = vadd.f32 %v7104, %v7186
    %v7188 = vpop.f32.mrb[0].mxu0
    %7189 = vmatprep.mubr.f32.mxu0 0.0
    %7190 = vmatmul.mubr.f32.gmra.mrb[0].mxu0 %v4288
    %v7191 = vpop.f32.mrb[0].mxu0
    %v7192 = vadd.f32 %v7104, %v7191
    %v7193 = vpop.f32.mrb[0].mxu0
    %7194 = vmatprep.mubr.f32.mxu0 0.0
    %7195 = vmatmul.mubr.f32.gmra.mrb[0].mxu0 %v4291
    %v7196 = vpop.f32.mrb[0].mxu0
    %v7197 = vadd.f32 %v7104, %v7196
    %v7198 = vpop.f32.mrb[0].mxu0
    %7199 = vdwg.mxu0
    %v7201 = vsel %vm579, %v6964, 0
    %v7204 = vsel %vm579, %v6969, 0
    %v7207 = vsel %vm579, %v6974, 0
    %v7210 = vsel %vm579, %v7068, 0
    %v7213 = vsel %vm579, %v7073, 0
    %v7216 = vsel %vm579, %v7078, 0
    %7218 = vmatprep.subr.mxu0 0.0
    %7219 = vmatpush1.xpose.msra.mxu0 %v7210
    %7220 = vmatprep.subr.mxu0 0.0
    %7221 = vmatpush1.xpose.msra.mxu0 %v7213
    %7222 = vmatprep.subr.mxu0 0.0
    %7223 = vmatpush1.xpose.msra.mxu0 %v7216
    %7224 = vmatprep.subr.mxu0 0.0
    %7225 = vmatpush1.xpose.msra.mxu0 0.0
    %7226 = vmatprep.subr.mxu0 0.0
    %7227 = vmatpush1.xpose.msra.mxu0 0.0
    %7228 = vmatprep.subr.mxu0 0.0
    %7229 = vmatpush1.xpose.msra.mxu0 0.0
    %7230 = vmatprep.subr.mxu0 0.0
    %7231 = vmatpush1.xpose.msra.mxu0 0.0
    %7232 = vmatprep.subr.mxu0 0.0
    %7233 = vmatpush1.xpose.msra.mxu0 0.0
    %7234 = vmatprep.subr.mxu0 0.0
    %7235 = vmatpush1.xpose.msra.mxu0 0.0
    %7236 = vmatprep.subr.mxu0 0.0
    %7237 = vmatpush1.xpose.msra.mxu0 0.0
    %7238 = vmatprep.subr.mxu0 0.0
    %7239 = vmatpush1.xpose.msra.mxu0 0.0
    %7240 = vmatprep.subr.mxu0 0.0
    %7241 = vmatpush1.xpose.msra.mxu0 0.0
    %7242 = vmatprep.subr.mxu0 0.0
    %7243 = vmatpush1.xpose.msra.mxu0 0.0
    %7244 = vmatprep.subr.mxu0 0.0
    %7245 = vmatpush1.xpose.msra.mxu0 0.0
    %7246 = vmatprep.subr.mxu0 0.0
    %7247 = vmatpush1.xpose.msra.mxu0 0.0
    %7248 = vmatprep.subr.mxu0 0.0
    %7249 = vmatpush1.xpose.msra.mxu0 0.0
    %7250 = vmatprep.subr.mxu0 0.0
    %7251 = vmatpush1.xpose.msra.mxu0 0.0
    %7252 = vmatprep.subr.mxu0 0.0
    %7253 = vmatpush1.xpose.msra.mxu0 0.0
    %7254 = vmatprep.subr.mxu0 0.0
    %7255 = vmatpush1.xpose.msra.mxu0 0.0
    %7256 = vmatprep.subr.mxu0 0.0
    %7257 = vmatpush1.xpose.msra.mxu0 0.0
    %7258 = vmatprep.subr.mxu0 0.0
    %7259 = vmatpush1.xpose.msra.mxu0 0.0
    %7260 = vmatprep.subr.mxu0 0.0
    %7261 = vmatpush1.xpose.msra.mxu0 0.0
    %7262 = vmatprep.subr.mxu0 0.0
    %7263 = vmatpush1.xpose.msra.mxu0 0.0
    %7264 = vmatprep.subr.mxu0 0.0
    %7265 = vmatpush1.xpose.msra.mxu0 0.0
    %7266 = vmatprep.subr.mxu0 0.0
    %7267 = vmatpush1.xpose.msra.mxu0 0.0
    %7268 = vmatprep.subr.mxu0 0.0
    %7269 = vmatpush1.xpose.msra.mxu0 0.0
    %7270 = vmatprep.subr.mxu0 0.0
    %7271 = vmatpush1.xpose.msra.mxu0 0.0
    %7272 = vmatprep.subr.mxu0 0.0
    %7273 = vmatpush1.xpose.msra.mxu0 0.0
    %7274 = vmatprep.subr.mxu0 0.0
    %7275 = vmatpush1.xpose.msra.mxu0 0.0
    %7276 = vmatprep.subr.mxu0 0.0
    %7277 = vmatpush1.xpose.msra.mxu0 0.0
    %7278 = vmatprep.subr.mxu0 0.0
    %7279 = vmatpush1.xpose.msra.mxu0 0.0
    %7280 = vmatprep.subr.mxu0 0.0
    %7281 = vmatpush1.xpose.msra.mxu0 0.0
    %7282 = vmatprep.mubr.f32.mxu0 0.0
    %7283 = vmatmul.mubr.f32.gmra.mrb[0].mxu0 %v7201
    %v7284 = vpop.f32.mrb[0].mxu0
    %v7285 = vadd.f32 %v144, %v7284
    %v7286 = vpop.f32.mrb[0].mxu0
    %7287 = vmatprep.mubr.f32.mxu0 0.0
    %7288 = vmatmul.mubr.f32.gmra.mrb[0].mxu0 %v7204
    %v7289 = vpop.f32.mrb[0].mxu0
    %v7290 = vadd.f32 %v145, %v7289
    %v7291 = vpop.f32.mrb[0].mxu0
    %7292 = vmatprep.mubr.f32.mxu0 0.0
    %7293 = vmatmul.mubr.f32.gmra.mrb[0].mxu0 %v7207
    %v7294 = vpop.f32.mrb[0].mxu0
    %v7295 = vadd.f32 %v146, %v7294
    %v7296 = vpop.f32.mrb[0].mxu0
    %7297 = vdwg.mxu0
    %v7299 = vsel %vm579, %v6979, 0
    %v7302 = vsel %vm579, %v6984, 0
    %v7305 = vsel %vm579, %v6989, 0
    %v7308 = vsel %vm579, %v7083, 0
    %v7311 = vsel %vm579, %v7088, 0
    %v7314 = vsel %vm579, %v7093, 0
    %7316 = vmatprep.subr.mxu0 0.0
    %7317 = vmatpush1.xpose.msra.mxu0 %v7308
    %7318 = vmatprep.subr.mxu0 0.0
    %7319 = vmatpush1.xpose.msra.mxu0 %v7311
    %7320 = vmatprep.subr.mxu0 0.0
    %7321 = vmatpush1.xpose.msra.mxu0 %v7314
    %7322 = vmatprep.subr.mxu0 0.0
    %7323 = vmatpush1.xpose.msra.mxu0 0.0
    %7324 = vmatprep.subr.mxu0 0.0
    %7325 = vmatpush1.xpose.msra.mxu0 0.0
    %7326 = vmatprep.subr.mxu0 0.0
    %7327 = vmatpush1.xpose.msra.mxu0 0.0
    %7328 = vmatprep.subr.mxu0 0.0
    %7329 = vmatpush1.xpose.msra.mxu0 0.0
    %7330 = vmatprep.subr.mxu0 0.0
    %7331 = vmatpush1.xpose.msra.mxu0 0.0
    %7332 = vmatprep.subr.mxu0 0.0
    %7333 = vmatpush1.xpose.msra.mxu0 0.0
    %7334 = vmatprep.subr.mxu0 0.0
    %7335 = vmatpush1.xpose.msra.mxu0 0.0
    %7336 = vmatprep.subr.mxu0 0.0
    %7337 = vmatpush1.xpose.msra.mxu0 0.0
    %7338 = vmatprep.subr.mxu0 0.0
    %7339 = vmatpush1.xpose.msra.mxu0 0.0
    %7340 = vmatprep.subr.mxu0 0.0
    %7341 = vmatpush1.xpose.msra.mxu0 0.0
    %7342 = vmatprep.subr.mxu0 0.0
    %7343 = vmatpush1.xpose.msra.mxu0 0.0
    %7344 = vmatprep.subr.mxu0 0.0
    %7345 = vmatpush1.xpose.msra.mxu0 0.0
    %7346 = vmatprep.subr.mxu0 0.0
    %7347 = vmatpush1.xpose.msra.mxu0 0.0
    %7348 = vmatprep.subr.mxu0 0.0
    %7349 = vmatpush1.xpose.msra.mxu0 0.0
    %7350 = vmatprep.subr.mxu0 0.0
    %7351 = vmatpush1.xpose.msra.mxu0 0.0
    %7352 = vmatprep.subr.mxu0 0.0
    %7353 = vmatpush1.xpose.msra.mxu0 0.0
    %7354 = vmatprep.subr.mxu0 0.0
    %7355 = vmatpush1.xpose.msra.mxu0 0.0
    %7356 = vmatprep.subr.mxu0 0.0
    %7357 = vmatpush1.xpose.msra.mxu0 0.0
    %7358 = vmatprep.subr.mxu0 0.0
    %7359 = vmatpush1.xpose.msra.mxu0 0.0
    %7360 = vmatprep.subr.mxu0 0.0
    %7361 = vmatpush1.xpose.msra.mxu0 0.0
    %7362 = vmatprep.subr.mxu0 0.0
    %7363 = vmatpush1.xpose.msra.mxu0 0.0
    %7364 = vmatprep.subr.mxu0 0.0
    %7365 = vmatpush1.xpose.msra.mxu0 0.0
    %7366 = vmatprep.subr.mxu0 0.0
    %7367 = vmatpush1.xpose.msra.mxu0 0.0
    %7368 = vmatprep.subr.mxu0 0.0
    %7369 = vmatpush1.xpose.msra.mxu0 0.0
    %7370 = vmatprep.subr.mxu0 0.0
    %7371 = vmatpush1.xpose.msra.mxu0 0.0
    %7372 = vmatprep.subr.mxu0 0.0
    %7373 = vmatpush1.xpose.msra.mxu0 0.0
    %7374 = vmatprep.subr.mxu0 0.0
    %7375 = vmatpush1.xpose.msra.mxu0 0.0
    %7376 = vmatprep.subr.mxu0 0.0
    %7377 = vmatpush1.xpose.msra.mxu0 0.0
    %7378 = vmatprep.subr.mxu0 0.0
    %7379 = vmatpush1.xpose.msra.mxu0 0.0
    %7380 = vmatprep.mubr.f32.mxu0 0.0
    %7381 = vmatmul.mubr.f32.gmra.mrb[0].mxu0 %v7299
    %v7382 = vpop.f32.mrb[0].mxu0
    %v7383 = vadd.f32 %v144, %v7382
    %v7384 = vpop.f32.mrb[0].mxu0
    %7385 = vmatprep.mubr.f32.mxu0 0.0
    %7386 = vmatmul.mubr.f32.gmra.mrb[0].mxu0 %v7302
    %v7387 = vpop.f32.mrb[0].mxu0
    %v7388 = vadd.f32 %v145, %v7387
    %v7389 = vpop.f32.mrb[0].mxu0
    %7390 = vmatprep.mubr.f32.mxu0 0.0
    %7391 = vmatmul.mubr.f32.gmra.mrb[0].mxu0 %v7305
    %v7392 = vpop.f32.mrb[0].mxu0
    %v7393 = vadd.f32 %v146, %v7392
    %v7394 = vpop.f32.mrb[0].mxu0
    %7395 = vdwg.mxu0
    %v7396 = vsel %vm776, %v7285, -inf
    %7397 = vmax.xlane.f32.xlu0 %v7396
    %v7398 = vpop.xlane.xlu0 %7397
    %v7399 = vsel %vm776, %v7290, -inf
    %7400 = vmax.xlane.f32.xlu0 %v7399
    %v7401 = vpop.xlane.xlu0 %7400
    %v7402 = vsel %vm776, %v7295, -inf
    %7403 = vmax.xlane.f32.xlu0 %v7402
    %v7404 = vpop.xlane.xlu0 %7403
    %v7405 = vsel %vm776, %v7383, -inf
    %7406 = vmax.xlane.f32.xlu0 %v7405
    %v7407 = vpop.xlane.xlu0 %7406
    %v7408 = vsel %vm776, %v7388, -inf
    %7409 = vmax.xlane.f32.xlu0 %v7408
    %v7410 = vpop.xlane.xlu0 %7409
    %v7411 = vsel %vm776, %v7393, -inf
    %7412 = vmax.xlane.f32.xlu0 %v7411
    %v7413 = vpop.xlane.xlu0 %7412
    %v7414 = vsub.f32 %v7285, %v7398
    %v7415 = vsub.f32 %v7290, %v7401
    %v7416 = vsub.f32 %v7295, %v7404
    %v7417 = vsub.f32 %v7383, %v7407
    %v7418 = vsub.f32 %v7388, %v7410
    %v7419 = vsub.f32 %v7393, %v7413
    %v7420 = vmul.f32 %v7414, 1.442695
    %v7421 = vpow.pop %v7420
    %v7422 = vmul.f32 %v7415, 1.442695
    %v7423 = vpow.pop %v7422
    %v7424 = vmul.f32 %v7416, 1.442695
    %v7425 = vpow.pop %v7424
    %v7426 = vmul.f32 %v7417, 1.442695
    %v7427 = vpow.pop %v7426
    %v7428 = vmul.f32 %v7418, 1.442695
    %v7429 = vpow.pop %v7428
    %v7430 = vmul.f32 %v7419, 1.442695
    %v7431 = vpow.pop %v7430
    %v7432 = vsel %vm776, %v7421, 0.0
    %7433 = vadd.xlane.f32.xlu0 %v7432
    %v7434 = vpop.xlane.xlu0 %7433
    %v7435 = vsel %vm776, %v7423, 0.0
    %7436 = vadd.xlane.f32.xlu0 %v7435
    %v7437 = vpop.xlane.xlu0 %7436
    %v7438 = vsel %vm776, %v7425, 0.0
    %7439 = vadd.xlane.f32.xlu0 %v7438
    %v7440 = vpop.xlane.xlu0 %7439
    %v7441 = vsel %vm776, %v7427, 0.0
    %7442 = vadd.xlane.f32.xlu0 %v7441
    %v7443 = vpop.xlane.xlu0 %7442
    %v7444 = vsel %vm776, %v7429, 0.0
    %7445 = vadd.xlane.f32.xlu0 %v7444
    %v7446 = vpop.xlane.xlu0 %7445
    %v7447 = vsel %vm776, %v7431, 0.0
    %7448 = vadd.xlane.f32.xlu0 %v7447
    %v7449 = vpop.xlane.xlu0 %7448
    %v7450 = vrcp.pop %v7434
    %v7451 = vrcp.pop %v7437
    %v7452 = vrcp.pop %v7440
    %v7453 = vrcp.pop %v7443
    %v7454 = vrcp.pop %v7446
    %v7455 = vrcp.pop %v7449
    %v7456 = vmul.f32 %v7421, %v7450
    %v7457 = vmul.f32 %v7423, %v7451
    %v7458 = vmul.f32 %v7425, %v7452
    %v7459 = vmul.f32 %v7427, %v7453
    %v7460 = vmul.f32 %v7429, %v7454
    %v7461 = vmul.f32 %v7431, %v7455
    %v7463 = vsel %vm776, %v7456, 0
    %v7466 = vsel %vm776, %v7457, 0
    %v7469 = vsel %vm776, %v7458, 0
    %7471 = vmatprep.subr.mxu0 0.0
    %7472 = vmatpush1.msra.mxu0 %v7172
    %7473 = vmatprep.subr.mxu0 0.0
    %7474 = vmatpush1.msra.mxu0 %v7177
    %7475 = vmatprep.subr.mxu0 0.0
    %7476 = vmatpush1.msra.mxu0 %v7182
    %7477 = vmatprep.subr.mxu0 0.0
    %7478 = vmatpush1.msra.mxu0 0.0
    %7479 = vmatprep.subr.mxu0 0.0
    %7480 = vmatpush1.msra.mxu0 0.0
    %7481 = vmatprep.subr.mxu0 0.0
    %7482 = vmatpush1.msra.mxu0 0.0
    %7483 = vmatprep.subr.mxu0 0.0
    %7484 = vmatpush1.msra.mxu0 0.0
    %7485 = vmatprep.subr.mxu0 0.0
    %7486 = vmatpush1.msra.mxu0 0.0
    %7487 = vmatprep.subr.mxu0 0.0
    %7488 = vmatpush1.msra.mxu0 0.0
    %7489 = vmatprep.subr.mxu0 0.0
    %7490 = vmatpush1.msra.mxu0 0.0
    %7491 = vmatprep.subr.mxu0 0.0
    %7492 = vmatpush1.msra.mxu0 0.0
    %7493 = vmatprep.subr.mxu0 0.0
    %7494 = vmatpush1.msra.mxu0 0.0
    %7495 = vmatprep.subr.mxu0 0.0
    %7496 = vmatpush1.msra.mxu0 0.0
    %7497 = vmatprep.subr.mxu0 0.0
    %7498 = vmatpush1.msra.mxu0 0.0
    %7499 = vmatprep.subr.mxu0 0.0
    %7500 = vmatpush1.msra.mxu0 0.0
    %7501 = vmatprep.subr.mxu0 0.0
    %7502 = vmatpush1.msra.mxu0 0.0
    %7503 = vmatprep.subr.mxu0 0.0
    %7504 = vmatpush1.msra.mxu0 0.0
    %7505 = vmatprep.subr.mxu0 0.0
    %7506 = vmatpush1.msra.mxu0 0.0
    %7507 = vmatprep.subr.mxu0 0.0
    %7508 = vmatpush1.msra.mxu0 0.0
    %7509 = vmatprep.subr.mxu0 0.0
    %7510 = vmatpush1.msra.mxu0 0.0
    %7511 = vmatprep.subr.mxu0 0.0
    %7512 = vmatpush1.msra.mxu0 0.0
    %7513 = vmatprep.subr.mxu0 0.0
    %7514 = vmatpush1.msra.mxu0 0.0
    %7515 = vmatprep.subr.mxu0 0.0
    %7516 = vmatpush1.msra.mxu0 0.0
    %7517 = vmatprep.subr.mxu0 0.0
    %7518 = vmatpush1.msra.mxu0 0.0
    %7519 = vmatprep.subr.mxu0 0.0
    %7520 = vmatpush1.msra.mxu0 0.0
    %7521 = vmatprep.subr.mxu0 0.0
    %7522 = vmatpush1.msra.mxu0 0.0
    %7523 = vmatprep.subr.mxu0 0.0
    %7524 = vmatpush1.msra.mxu0 0.0
    %7525 = vmatprep.subr.mxu0 0.0
    %7526 = vmatpush1.msra.mxu0 0.0
    %7527 = vmatprep.subr.mxu0 0.0
    %7528 = vmatpush1.msra.mxu0 0.0
    %7529 = vmatprep.subr.mxu0 0.0
    %7530 = vmatpush1.msra.mxu0 0.0
    %7531 = vmatprep.subr.mxu0 0.0
    %7532 = vmatpush1.msra.mxu0 0.0
    %7533 = vmatprep.subr.mxu0 0.0
    %7534 = vmatpush1.msra.mxu0 0.0
    %7535 = vmatprep.mubr.f32.mxu0 0.0
    %7536 = vmatmul.mubr.f32.gmra.mrb[0].mxu0 %v7463
    %v7537 = vpop.f32.mrb[0].mxu0
    %v7538 = vadd.f32 0.0, %v7537
    %v7539 = vpop.f32.mrb[0].mxu0
    %7540 = vmatprep.mubr.f32.mxu0 0.0
    %7541 = vmatmul.mubr.f32.gmra.mrb[0].mxu0 %v7466
    %v7542 = vpop.f32.mrb[0].mxu0
    %v7543 = vadd.f32 0.0, %v7542
    %v7544 = vpop.f32.mrb[0].mxu0
    %7545 = vmatprep.mubr.f32.mxu0 0.0
    %7546 = vmatmul.mubr.f32.gmra.mrb[0].mxu0 %v7469
    %v7547 = vpop.f32.mrb[0].mxu0
    %v7548 = vadd.f32 0.0, %v7547
    %v7549 = vpop.f32.mrb[0].mxu0
    %7550 = vdwg.mxu0
    %v7552 = vsel %vm776, %v7459, 0
    %v7555 = vsel %vm776, %v7460, 0
    %v7558 = vsel %vm776, %v7461, 0
    %7560 = vmatprep.subr.mxu0 0.0
    %7561 = vmatpush1.msra.mxu0 %v7187
    %7562 = vmatprep.subr.mxu0 0.0
    %7563 = vmatpush1.msra.mxu0 %v7192
    %7564 = vmatprep.subr.mxu0 0.0
    %7565 = vmatpush1.msra.mxu0 %v7197
    %7566 = vmatprep.subr.mxu0 0.0
    %7567 = vmatpush1.msra.mxu0 0.0
    %7568 = vmatprep.subr.mxu0 0.0
    %7569 = vmatpush1.msra.mxu0 0.0
    %7570 = vmatprep.subr.mxu0 0.0
    %7571 = vmatpush1.msra.mxu0 0.0
    %7572 = vmatprep.subr.mxu0 0.0
    %7573 = vmatpush1.msra.mxu0 0.0
    %7574 = vmatprep.subr.mxu0 0.0
    %7575 = vmatpush1.msra.mxu0 0.0
    %7576 = vmatprep.subr.mxu0 0.0
    %7577 = vmatpush1.msra.mxu0 0.0
    %7578 = vmatprep.subr.mxu0 0.0
    %7579 = vmatpush1.msra.mxu0 0.0
    %7580 = vmatprep.subr.mxu0 0.0
    %7581 = vmatpush1.msra.mxu0 0.0
    %7582 = vmatprep.subr.mxu0 0.0
    %7583 = vmatpush1.msra.mxu0 0.0
    %7584 = vmatprep.subr.mxu0 0.0
    %7585 = vmatpush1.msra.mxu0 0.0
    %7586 = vmatprep.subr.mxu0 0.0
    %7587 = vmatpush1.msra.mxu0 0.0
    %7588 = vmatprep.subr.mxu0 0.0
    %7589 = vmatpush1.msra.mxu0 0.0
    %7590 = vmatprep.subr.mxu0 0.0
    %7591 = vmatpush1.msra.mxu0 0.0
    %7592 = vmatprep.subr.mxu0 0.0
    %7593 = vmatpush1.msra.mxu0 0.0
    %7594 = vmatprep.subr.mxu0 0.0
    %7595 = vmatpush1.msra.mxu0 0.0
    %7596 = vmatprep.subr.mxu0 0.0
    %7597 = vmatpush1.msra.mxu0 0.0
    %7598 = vmatprep.subr.mxu0 0.0
    %7599 = vmatpush1.msra.mxu0 0.0
    %7600 = vmatprep.subr.mxu0 0.0
    %7601 = vmatpush1.msra.mxu0 0.0
    %7602 = vmatprep.subr.mxu0 0.0
    %7603 = vmatpush1.msra.mxu0 0.0
    %7604 = vmatprep.subr.mxu0 0.0
    %7605 = vmatpush1.msra.mxu0 0.0
    %7606 = vmatprep.subr.mxu0 0.0
    %7607 = vmatpush1.msra.mxu0 0.0
    %7608 = vmatprep.subr.mxu0 0.0
    %7609 = vmatpush1.msra.mxu0 0.0
    %7610 = vmatprep.subr.mxu0 0.0
    %7611 = vmatpush1.msra.mxu0 0.0
    %7612 = vmatprep.subr.mxu0 0.0
    %7613 = vmatpush1.msra.mxu0 0.0
    %7614 = vmatprep.subr.mxu0 0.0
    %7615 = vmatpush1.msra.mxu0 0.0
    %7616 = vmatprep.subr.mxu0 0.0
    %7617 = vmatpush1.msra.mxu0 0.0
    %7618 = vmatprep.subr.mxu0 0.0
    %7619 = vmatpush1.msra.mxu0 0.0
    %7620 = vmatprep.subr.mxu0 0.0
    %7621 = vmatpush1.msra.mxu0 0.0
    %7622 = vmatprep.subr.mxu0 0.0
    %7623 = vmatpush1.msra.mxu0 0.0
    %7624 = vmatprep.mubr.f32.mxu0 0.0
    %7625 = vmatmul.mubr.f32.gmra.mrb[0].mxu0 %v7552
    %v7626 = vpop.f32.mrb[0].mxu0
    %v7627 = vadd.f32 0.0, %v7626
    %v7628 = vpop.f32.mrb[0].mxu0
    %7629 = vmatprep.mubr.f32.mxu0 0.0
    %7630 = vmatmul.mubr.f32.gmra.mrb[0].mxu0 %v7555
    %v7631 = vpop.f32.mrb[0].mxu0
    %v7632 = vadd.f32 0.0, %v7631
    %v7633 = vpop.f32.mrb[0].mxu0
    %7634 = vmatprep.mubr.f32.mxu0 0.0
    %7635 = vmatmul.mubr.f32.gmra.mrb[0].mxu0 %v7558
    %v7636 = vpop.f32.mrb[0].mxu0
    %v7637 = vadd.f32 0.0, %v7636
    %v7638 = vpop.f32.mrb[0].mxu0
    %7639 = vdwg.mxu0
    %v7640 = vld [vmem:[%s1 + $0x540] sm:$0xff]
    %v7642 = vsel %vm579, %v7538, 0
    %v7645 = vsel %vm579, %v7543, 0
    %v7648 = vsel %vm579, %v7548, 0
    %v7651 = vsel %vm579, %v7627, 0
    %v7654 = vsel %vm579, %v7632, 0
    %v7657 = vsel %vm579, %v7637, 0
    %7659 = vmatprep.subr.mxu0 0.0
    %7660 = vmatpush1.msra.mxu0 %v7640
    %7661 = vmatprep.subr.mxu0 0.0
    %7662 = vmatpush1.msra.mxu0 0.0
    %7663 = vmatprep.subr.mxu0 0.0
    %7664 = vmatpush1.msra.mxu0 0.0
    %7665 = vmatprep.subr.mxu0 0.0
    %7666 = vmatpush1.msra.mxu0 0.0
    %7667 = vmatprep.subr.mxu0 0.0
    %7668 = vmatpush1.msra.mxu0 0.0
    %7669 = vmatprep.subr.mxu0 0.0
    %7670 = vmatpush1.msra.mxu0 0.0
    %7671 = vmatprep.subr.mxu0 0.0
    %7672 = vmatpush1.msra.mxu0 0.0
    %7673 = vmatprep.subr.mxu0 0.0
    %7674 = vmatpush1.msra.mxu0 0.0
    %7675 = vmatprep.subr.mxu0 0.0
    %7676 = vmatpush1.msra.mxu0 0.0
    %7677 = vmatprep.subr.mxu0 0.0
    %7678 = vmatpush1.msra.mxu0 0.0
    %7679 = vmatprep.subr.mxu0 0.0
    %7680 = vmatpush1.msra.mxu0 0.0
    %7681 = vmatprep.subr.mxu0 0.0
    %7682 = vmatpush1.msra.mxu0 0.0
    %7683 = vmatprep.subr.mxu0 0.0
    %7684 = vmatpush1.msra.mxu0 0.0
    %7685 = vmatprep.subr.mxu0 0.0
    %7686 = vmatpush1.msra.mxu0 0.0
    %7687 = vmatprep.subr.mxu0 0.0
    %7688 = vmatpush1.msra.mxu0 0.0
    %7689 = vmatprep.subr.mxu0 0.0
    %7690 = vmatpush1.msra.mxu0 0.0
    %7691 = vmatprep.subr.mxu0 0.0
    %7692 = vmatpush1.msra.mxu0 0.0
    %7693 = vmatprep.subr.mxu0 0.0
    %7694 = vmatpush1.msra.mxu0 0.0
    %7695 = vmatprep.subr.mxu0 0.0
    %7696 = vmatpush1.msra.mxu0 0.0
    %7697 = vmatprep.subr.mxu0 0.0
    %7698 = vmatpush1.msra.mxu0 0.0
    %7699 = vmatprep.subr.mxu0 0.0
    %7700 = vmatpush1.msra.mxu0 0.0
    %7701 = vmatprep.subr.mxu0 0.0
    %7702 = vmatpush1.msra.mxu0 0.0
    %7703 = vmatprep.subr.mxu0 0.0
    %7704 = vmatpush1.msra.mxu0 0.0
    %7705 = vmatprep.subr.mxu0 0.0
    %7706 = vmatpush1.msra.mxu0 0.0
    %7707 = vmatprep.subr.mxu0 0.0
    %7708 = vmatpush1.msra.mxu0 0.0
    %7709 = vmatprep.subr.mxu0 0.0
    %7710 = vmatpush1.msra.mxu0 0.0
    %7711 = vmatprep.subr.mxu0 0.0
    %7712 = vmatpush1.msra.mxu0 0.0
    %7713 = vmatprep.subr.mxu0 0.0
    %7714 = vmatpush1.msra.mxu0 0.0
    %7715 = vmatprep.subr.mxu0 0.0
    %7716 = vmatpush1.msra.mxu0 0.0
    %7717 = vmatprep.subr.mxu0 0.0
    %7718 = vmatpush1.msra.mxu0 0.0
    %7719 = vmatprep.subr.mxu0 0.0
    %7720 = vmatpush1.msra.mxu0 0.0
    %7721 = vmatprep.subr.mxu0 0.0
    %7722 = vmatpush1.msra.mxu0 0.0
    %7723 = vmatprep.mubr.f32.mxu0 0.0
    %7724 = vmatmul.mubr.f32.gmra.mrb[0].mxu0 %v7642
    %v7725 = vpop.f32.mrb[0].mxu0
    %v7726 = vadd.f32 0.0, %v7725
    %v7727 = vpop.f32.mrb[0].mxu0
    %7728 = vmatprep.mubr.f32.mxu0 0.0
    %7729 = vmatmul.mubr.f32.gmra.mrb[0].mxu0 %v7645
    %v7730 = vpop.f32.mrb[0].mxu0
    %v7731 = vadd.f32 0.0, %v7730
    %v7732 = vpop.f32.mrb[0].mxu0
    %7733 = vmatprep.mubr.f32.mxu0 0.0
    %7734 = vmatmul.mubr.f32.gmra.mrb[0].mxu0 %v7648
    %v7735 = vpop.f32.mrb[0].mxu0
    %v7736 = vadd.f32 0.0, %v7735
    %v7737 = vpop.f32.mrb[0].mxu0
    %7738 = vmatprep.mubr.f32.mxu0 0.0
    %7739 = vmatmul.mubr.f32.gmra.mrb[0].mxu0 %v7651
    %v7740 = vpop.f32.mrb[0].mxu0
    %v7741 = vadd.f32 0.0, %v7740
    %v7742 = vpop.f32.mrb[0].mxu0
    %7743 = vmatprep.mubr.f32.mxu0 0.0
    %7744 = vmatmul.mubr.f32.gmra.mrb[0].mxu0 %v7654
    %v7745 = vpop.f32.mrb[0].mxu0
    %v7746 = vadd.f32 0.0, %v7745
    %v7747 = vpop.f32.mrb[0].mxu0
    %7748 = vmatprep.mubr.f32.mxu0 0.0
    %7749 = vmatmul.mubr.f32.gmra.mrb[0].mxu0 %v7657
    %v7750 = vpop.f32.mrb[0].mxu0
    %v7751 = vadd.f32 0.0, %v7750
    %v7752 = vpop.f32.mrb[0].mxu0
    %7753 = vdwg.mxu0
    %v7754 = vadd.f32 %v6882, %v7726
    %v7755 = vadd.f32 %v6883, %v7731
    %v7756 = vadd.f32 %v6884, %v7736
    %v7757 = vadd.f32 %v6885, %v7741
    %v7758 = vadd.f32 %v6886, %v7746
    %v7759 = vadd.f32 %v6887, %v7751
    %v7760 = vadd.f32 %v4160, %v7754
    %v7761 = vadd.f32 %v4161, %v7755
    %v7762 = vadd.f32 %v4162, %v7756
    %v7763 = vadd.f32 %v4163, %v7757
    %v7764 = vadd.f32 %v4164, %v7758
    %v7765 = vadd.f32 %v4165, %v7759
    %v7766 = vld [vmem:[%s1 + $0x560] sm:$0x1]
    %v7767 = vlaneseq
    %v7768 = vshrl.u32 %v7767, 7
    %v7769 = vsub.s32 0, %v7768
    %v7770 = vrot.slane %v7766, %v7769
    %v7771 = vadd.f32 %v7760, %v7770
    %v7772 = vadd.f32 %v7761, %v7770
    %v7773 = vadd.f32 %v7762, %v7770
    %v7774 = vadd.f32 %v7763, %v7770
    %v7775 = vadd.f32 %v7764, %v7770
    %v7776 = vadd.f32 %v7765, %v7770
    %v7777 = vld [vmem:[%s1 + $0x568] sm:$0x1]
    %v7778 = vld [vmem:[%s1 + $0x570] sm:$0x1]
    %v7779 = vsel %vm149, %v7771, 0.0
    %7780 = vadd.xlane.f32.xlu0 %v7779
    %v7781 = vpop.xlane.xlu0 %7780
    %v7782 = vsel %vm149, %v7772, 0.0
    %7783 = vadd.xlane.f32.xlu0 %v7782
    %v7784 = vpop.xlane.xlu0 %7783
    %v7785 = vsel %vm149, %v7773, 0.0
    %7786 = vadd.xlane.f32.xlu0 %v7785
    %v7787 = vpop.xlane.xlu0 %7786
    %v7788 = vsel %vm149, %v7774, 0.0
    %7789 = vadd.xlane.f32.xlu0 %v7788
    %v7790 = vpop.xlane.xlu0 %7789
    %v7791 = vsel %vm149, %v7775, 0.0
    %7792 = vadd.xlane.f32.xlu0 %v7791
    %v7793 = vpop.xlane.xlu0 %7792
    %v7794 = vsel %vm149, %v7776, 0.0
    %7795 = vadd.xlane.f32.xlu0 %v7794
    %v7796 = vpop.xlane.xlu0 %7795
    %v7797 = vmul.f32 %v7781, %v168
    %v7798 = vmul.f32 %v7784, %v168
    %v7799 = vmul.f32 %v7787, %v168
    %v7800 = vmul.f32 %v7790, %v168
    %v7801 = vmul.f32 %v7793, %v168
    %v7802 = vmul.f32 %v7796, %v168
    %v7803 = vsub.f32 %v7771, %v7797
    %v7804 = vsub.f32 %v7772, %v7798
    %v7805 = vsub.f32 %v7773, %v7799
    %v7806 = vsub.f32 %v7774, %v7800
    %v7807 = vsub.f32 %v7775, %v7801
    %v7808 = vsub.f32 %v7776, %v7802
    %v7809 = vmul.f32 %v7803, %v7803
    %v7810 = vmul.f32 %v7804, %v7804
    %v7811 = vmul.f32 %v7805, %v7805
    %v7812 = vmul.f32 %v7806, %v7806
    %v7813 = vmul.f32 %v7807, %v7807
    %v7814 = vmul.f32 %v7808, %v7808
    %v7815 = vsel %vm149, %v7809, 0.0
    %7816 = vadd.xlane.f32.xlu0 %v7815
    %v7817 = vpop.xlane.xlu0 %7816
    %v7818 = vsel %vm149, %v7810, 0.0
    %7819 = vadd.xlane.f32.xlu0 %v7818
    %v7820 = vpop.xlane.xlu0 %7819
    %v7821 = vsel %vm149, %v7811, 0.0
    %7822 = vadd.xlane.f32.xlu0 %v7821
    %v7823 = vpop.xlane.xlu0 %7822
    %v7824 = vsel %vm149, %v7812, 0.0
    %7825 = vadd.xlane.f32.xlu0 %v7824
    %v7826 = vpop.xlane.xlu0 %7825
    %v7827 = vsel %vm149, %v7813, 0.0
    %7828 = vadd.xlane.f32.xlu0 %v7827
    %v7829 = vpop.xlane.xlu0 %7828
    %v7830 = vsel %vm149, %v7814, 0.0
    %7831 = vadd.xlane.f32.xlu0 %v7830
    %v7832 = vpop.xlane.xlu0 %7831
    %v7833 = vmul.f32 %v7817, %v168
    %v7834 = vmul.f32 %v7820, %v168
    %v7835 = vmul.f32 %v7823, %v168
    %v7836 = vmul.f32 %v7826, %v168
    %v7837 = vmul.f32 %v7829, %v168
    %v7838 = vmul.f32 %v7832, %v168
    %v7839 = vadd.f32 %v7833, 1e-06
    %v7840 = vadd.f32 %v7834, 1e-06
    %v7841 = vadd.f32 %v7835, 1e-06
    %v7842 = vadd.f32 %v7836, 1e-06
    %v7843 = vadd.f32 %v7837, 1e-06
    %v7844 = vadd.f32 %v7838, 1e-06
    %v7845 = vrsqrt.pop %v7839
    %v7846 = vrsqrt.pop %v7840
    %v7847 = vrsqrt.pop %v7841
    %v7848 = vrsqrt.pop %v7842
    %v7849 = vrsqrt.pop %v7843
    %v7850 = vrsqrt.pop %v7844
    %v7851 = vmul.f32 %v7803, %v7845
    %v7852 = vmul.f32 %v7804, %v7846
    %v7853 = vmul.f32 %v7805, %v7847
    %v7854 = vmul.f32 %v7806, %v7848
    %v7855 = vmul.f32 %v7807, %v7849
    %v7856 = vmul.f32 %v7808, %v7850
    %v7857 = vlaneseq
    %v7858 = vshrl.u32 %v7857, 7
    %v7859 = vsub.s32 0, %v7858
    %v7860 = vrot.slane %v7777, %v7859
    %v7861 = vmul.f32 %v7851, %v7860
    %v7862 = vmul.f32 %v7852, %v7860
    %v7863 = vmul.f32 %v7853, %v7860
    %v7864 = vmul.f32 %v7854, %v7860
    %v7865 = vmul.f32 %v7855, %v7860
    %v7866 = vmul.f32 %v7856, %v7860
    %v7867 = vlaneseq
    %v7868 = vshrl.u32 %v7867, 7
    %v7869 = vsub.s32 0, %v7868
    %v7870 = vrot.slane %v7778, %v7869
    %v7871 = vadd.f32 %v7861, %v7870
    %v7872 = vadd.f32 %v7862, %v7870
    %v7873 = vadd.f32 %v7863, %v7870
    %v7874 = vadd.f32 %v7864, %v7870
    %v7875 = vadd.f32 %v7865, %v7870
    %v7876 = vadd.f32 %v7866, %v7870
    %v7877 = vld [vmem:[%s1 + $0x578] sm:$0xff]
    %v7878 = vld [vmem:[%s1 + $0x580] sm:$0xff]
    %v7879 = vld [vmem:[%s1 + $0x588] sm:$0xff]
    %v7880 = vld [vmem:[%s1 + $0x590] sm:$0xff]
    %v7881 = vld [vmem:[%s1 + $0x598] sm:$0x1]
    %v7882 = vlaneseq
    %v7883 = vshrl.u32 %v7882, 7
    %v7884 = vsub.s32 0, %v7883
    %v7885 = vrot.slane %v7881, %v7884
    %v7887 = vsel %vm149, %v7871, 0
    %v7890 = vsel %vm149, %v7872, 0
    %v7893 = vsel %vm149, %v7873, 0
    %v7896 = vsel %vm149, %v7874, 0
    %v7899 = vsel %vm149, %v7875, 0
    %v7902 = vsel %vm149, %v7876, 0
    %7904 = vmatprep.subr.mxu0 0.0
    %7905 = vmatpush1.msra.mxu0 %v7877
    %7906 = vmatprep.subr.mxu0 0.0
    %7907 = vmatpush1.msra.mxu0 %v7878
    %7908 = vmatprep.subr.mxu0 0.0
    %7909 = vmatpush1.msra.mxu0 %v7879
    %7910 = vmatprep.subr.mxu0 0.0
    %7911 = vmatpush1.msra.mxu0 %v7880
    %7912 = vmatprep.subr.mxu0 0.0
    %7913 = vmatpush1.msra.mxu0 0.0
    %7914 = vmatprep.subr.mxu0 0.0
    %7915 = vmatpush1.msra.mxu0 0.0
    %7916 = vmatprep.subr.mxu0 0.0
    %7917 = vmatpush1.msra.mxu0 0.0
    %7918 = vmatprep.subr.mxu0 0.0
    %7919 = vmatpush1.msra.mxu0 0.0
    %7920 = vmatprep.subr.mxu0 0.0
    %7921 = vmatpush1.msra.mxu0 0.0
    %7922 = vmatprep.subr.mxu0 0.0
    %7923 = vmatpush1.msra.mxu0 0.0
    %7924 = vmatprep.subr.mxu0 0.0
    %7925 = vmatpush1.msra.mxu0 0.0
    %7926 = vmatprep.subr.mxu0 0.0
    %7927 = vmatpush1.msra.mxu0 0.0
    %7928 = vmatprep.subr.mxu0 0.0
    %7929 = vmatpush1.msra.mxu0 0.0
    %7930 = vmatprep.subr.mxu0 0.0
    %7931 = vmatpush1.msra.mxu0 0.0
    %7932 = vmatprep.subr.mxu0 0.0
    %7933 = vmatpush1.msra.mxu0 0.0
    %7934 = vmatprep.subr.mxu0 0.0
    %7935 = vmatpush1.msra.mxu0 0.0
    %7936 = vmatprep.subr.mxu0 0.0
    %7937 = vmatpush1.msra.mxu0 0.0
    %7938 = vmatprep.subr.mxu0 0.0
    %7939 = vmatpush1.msra.mxu0 0.0
    %7940 = vmatprep.subr.mxu0 0.0
    %7941 = vmatpush1.msra.mxu0 0.0
    %7942 = vmatprep.subr.mxu0 0.0
    %7943 = vmatpush1.msra.mxu0 0.0
    %7944 = vmatprep.subr.mxu0 0.0
    %7945 = vmatpush1.msra.mxu0 0.0
    %7946 = vmatprep.subr.mxu0 0.0
    %7947 = vmatpush1.msra.mxu0 0.0
    %7948 = vmatprep.subr.mxu0 0.0
    %7949 = vmatpush1.msra.mxu0 0.0
    %7950 = vmatprep.subr.mxu0 0.0
    %7951 = vmatpush1.msra.mxu0 0.0
    %7952 = vmatprep.subr.mxu0 0.0
    %7953 = vmatpush1.msra.mxu0 0.0
    %7954 = vmatprep.subr.mxu0 0.0
    %7955 = vmatpush1.msra.mxu0 0.0
    %7956 = vmatprep.subr.mxu0 0.0
    %7957 = vmatpush1.msra.mxu0 0.0
    %7958 = vmatprep.subr.mxu0 0.0
    %7959 = vmatpush1.msra.mxu0 0.0
    %7960 = vmatprep.subr.mxu0 0.0
    %7961 = vmatpush1.msra.mxu0 0.0
    %7962 = vmatprep.subr.mxu0 0.0
    %7963 = vmatpush1.msra.mxu0 0.0
    %7964 = vmatprep.subr.mxu0 0.0
    %7965 = vmatpush1.msra.mxu0 0.0
    %7966 = vmatprep.subr.mxu0 0.0
    %7967 = vmatpush1.msra.mxu0 0.0
    %7968 = vmatprep.mubr.f32.mxu0 0.0
    %7969 = vmatmul.mubr.f32.gmra.mrb[0].mxu0 %v7887
    %v7970 = vpop.f32.mrb[0].mxu0
    %v7971 = vadd.f32 %v7885, %v7970
    %v7972 = vpop.f32.mrb[0].mxu0
    %7973 = vmatprep.mubr.f32.mxu0 0.0
    %7974 = vmatmul.mubr.f32.gmra.mrb[0].mxu0 %v7890
    %v7975 = vpop.f32.mrb[0].mxu0
    %v7976 = vadd.f32 %v7885, %v7975
    %v7977 = vpop.f32.mrb[0].mxu0
    %7978 = vmatprep.mubr.f32.mxu0 0.0
    %7979 = vmatmul.mubr.f32.gmra.mrb[0].mxu0 %v7893
    %v7980 = vpop.f32.mrb[0].mxu0
    %v7981 = vadd.f32 %v7885, %v7980
    %v7982 = vpop.f32.mrb[0].mxu0
    %7983 = vmatprep.mubr.f32.mxu0 0.0
    %7984 = vmatmul.mubr.f32.gmra.mrb[0].mxu0 %v7896
    %v7985 = vpop.f32.mrb[0].mxu0
    %v7986 = vadd.f32 %v7885, %v7985
    %v7987 = vpop.f32.mrb[0].mxu0
    %7988 = vmatprep.mubr.f32.mxu0 0.0
    %7989 = vmatmul.mubr.f32.gmra.mrb[0].mxu0 %v7899
    %v7990 = vpop.f32.mrb[0].mxu0
    %v7991 = vadd.f32 %v7885, %v7990
    %v7992 = vpop.f32.mrb[0].mxu0
    %7993 = vmatprep.mubr.f32.mxu0 0.0
    %7994 = vmatmul.mubr.f32.gmra.mrb[0].mxu0 %v7902
    %v7995 = vpop.f32.mrb[0].mxu0
    %v7996 = vadd.f32 %v7885, %v7995
    %v7997 = vpop.f32.mrb[0].mxu0
    %7998 = vdwg.mxu0
    %v7999 = vmul.f32 %v7971, %v7971
    %v8000 = vmul.f32 %v7976, %v7976
    %v8001 = vmul.f32 %v7981, %v7981
    %v8002 = vmul.f32 %v7986, %v7986
    %v8003 = vmul.f32 %v7991, %v7991
    %v8004 = vmul.f32 %v7996, %v7996
    %v8005 = vmul.f32 %v7971, %v7999
    %v8006 = vmul.f32 %v7976, %v8000
    %v8007 = vmul.f32 %v7981, %v8001
    %v8008 = vmul.f32 %v7986, %v8002
    %v8009 = vmul.f32 %v7991, %v8003
    %v8010 = vmul.f32 %v7996, %v8004
    %v8011 = vmul.f32 %v8005, 0.044715
    %v8012 = vmul.f32 %v8006, 0.044715
    %v8013 = vmul.f32 %v8007, 0.044715
    %v8014 = vmul.f32 %v8008, 0.044715
    %v8015 = vmul.f32 %v8009, 0.044715
    %v8016 = vmul.f32 %v8010, 0.044715
    %v8017 = vadd.f32 %v7971, %v8011
    %v8018 = vadd.f32 %v7976, %v8012
    %v8019 = vadd.f32 %v7981, %v8013
    %v8020 = vadd.f32 %v7986, %v8014
    %v8021 = vadd.f32 %v7991, %v8015
    %v8022 = vadd.f32 %v7996, %v8016
    %v8023 = vmul.f32 %v8017, 0.7978846
    %v8024 = vmul.f32 %v8018, 0.7978846
    %v8025 = vmul.f32 %v8019, 0.7978846
    %v8026 = vmul.f32 %v8020, 0.7978846
    %v8027 = vmul.f32 %v8021, 0.7978846
    %v8028 = vmul.f32 %v8022, 0.7978846
    %v8029 = vtanh.pop %v8023
    %v8030 = vtanh.pop %v8024
    %v8031 = vtanh.pop %v8025
    %v8032 = vtanh.pop %v8026
    %v8033 = vtanh.pop %v8027
    %v8034 = vtanh.pop %v8028
    %v8035 = vadd.f32 %v8029, 1.0
    %v8036 = vadd.f32 %v8030, 1.0
    %v8037 = vadd.f32 %v8031, 1.0
    %v8038 = vadd.f32 %v8032, 1.0
    %v8039 = vadd.f32 %v8033, 1.0
    %v8040 = vadd.f32 %v8034, 1.0
    %v8041 = vmul.f32 %v8035, 0.5
    %v8042 = vmul.f32 %v8036, 0.5
    %v8043 = vmul.f32 %v8037, 0.5
    %v8044 = vmul.f32 %v8038, 0.5
    %v8045 = vmul.f32 %v8039, 0.5
    %v8046 = vmul.f32 %v8040, 0.5
    %v8047 = vmul.f32 %v7971, %v8041
    %v8048 = vmul.f32 %v7976, %v8042
    %v8049 = vmul.f32 %v7981, %v8043
    %v8050 = vmul.f32 %v7986, %v8044
    %v8051 = vmul.f32 %v7991, %v8045
    %v8052 = vmul.f32 %v7996, %v8046
    %v8053 = vld [vmem:[%s1 + $0x5a0] sm:$0xff]
    %v8054 = vld [vmem:[%s1 + $0x5a8] sm:$0xff]
    %v8055 = vld [vmem:[%s1 + $0x5b0] sm:$0xff]
    %v8056 = vld [vmem:[%s1 + $0x5b8] sm:$0xff]
    %v8057 = vld [vmem:[%s1 + $0x5c0] sm:$0xff]
    %v8058 = vld [vmem:[%s1 + $0x5c8] sm:$0xff]
    %v8059 = vld [vmem:[%s1 + $0x5d0] sm:$0xff]
    %v8060 = vld [vmem:[%s1 + $0x5d8] sm:$0xff]
    %v8061 = vld [vmem:[%s1 + $0x5e0] sm:$0xff]
    %v8062 = vld [vmem:[%s1 + $0x5e8] sm:$0xff]
    %v8063 = vld [vmem:[%s1 + $0x5f0] sm:$0xff]
    %v8064 = vld [vmem:[%s1 + $0x5f8] sm:$0xff]
    %v8065 = vld [vmem:[%s1 + $0x600] sm:$0xff]
    %v8066 = vld [vmem:[%s1 + $0x608] sm:$0xff]
    %v8067 = vld [vmem:[%s1 + $0x610] sm:$0xff]
    %v8068 = vld [vmem:[%s1 + $0x618] sm:$0xff]
    %8069 = vmatprep.subr.mxu0 0.0
    %8070 = vmatpush1.msra.mxu0 %v8053
    %8071 = vmatprep.subr.mxu0 0.0
    %8072 = vmatpush1.msra.mxu0 %v8054
    %8073 = vmatprep.subr.mxu0 0.0
    %8074 = vmatpush1.msra.mxu0 %v8055
    %8075 = vmatprep.subr.mxu0 0.0
    %8076 = vmatpush1.msra.mxu0 %v8056
    %8077 = vmatprep.subr.mxu0 0.0
    %8078 = vmatpush1.msra.mxu0 %v8057
    %8079 = vmatprep.subr.mxu0 0.0
    %8080 = vmatpush1.msra.mxu0 %v8058
    %8081 = vmatprep.subr.mxu0 0.0
    %8082 = vmatpush1.msra.mxu0 %v8059
    %8083 = vmatprep.subr.mxu0 0.0
    %8084 = vmatpush1.msra.mxu0 %v8060
    %8085 = vmatprep.subr.mxu0 0.0
    %8086 = vmatpush1.msra.mxu0 %v8061
    %8087 = vmatprep.subr.mxu0 0.0
    %8088 = vmatpush1.msra.mxu0 %v8062
    %8089 = vmatprep.subr.mxu0 0.0
    %8090 = vmatpush1.msra.mxu0 %v8063
    %8091 = vmatprep.subr.mxu0 0.0
    %8092 = vmatpush1.msra.mxu0 %v8064
    %8093 = vmatprep.subr.mxu0 0.0
    %8094 = vmatpush1.msra.mxu0 %v8065
    %8095 = vmatprep.subr.mxu0 0.0
    %8096 = vmatpush1.msra.mxu0 %v8066
    %8097 = vmatprep.subr.mxu0 0.0
    %8098 = vmatpush1.msra.mxu0 %v8067
    %8099 = vmatprep.subr.mxu0 0.0
    %8100 = vmatpush1.msra.mxu0 %v8068
    %8101 = vmatprep.subr.mxu0 0.0
    %8102 = vmatpush1.msra.mxu0 0.0
    %8103 = vmatprep.subr.mxu0 0.0
    %8104 = vmatpush1.msra.mxu0 0.0
    %8105 = vmatprep.subr.mxu0 0.0
    %8106 = vmatpush1.msra.mxu0 0.0
    %8107 = vmatprep.subr.mxu0 0.0
    %8108 = vmatpush1.msra.mxu0 0.0
    %8109 = vmatprep.subr.mxu0 0.0
    %8110 = vmatpush1.msra.mxu0 0.0
    %8111 = vmatprep.subr.mxu0 0.0
    %8112 = vmatpush1.msra.mxu0 0.0
    %8113 = vmatprep.subr.mxu0 0.0
    %8114 = vmatpush1.msra.mxu0 0.0
    %8115 = vmatprep.subr.mxu0 0.0
    %8116 = vmatpush1.msra.mxu0 0.0
    %8117 = vmatprep.subr.mxu0 0.0
    %8118 = vmatpush1.msra.mxu0 0.0
    %8119 = vmatprep.subr.mxu0 0.0
    %8120 = vmatpush1.msra.mxu0 0.0
    %8121 = vmatprep.subr.mxu0 0.0
    %8122 = vmatpush1.msra.mxu0 0.0
    %8123 = vmatprep.subr.mxu0 0.0
    %8124 = vmatpush1.msra.mxu0 0.0
    %8125 = vmatprep.subr.mxu0 0.0
    %8126 = vmatpush1.msra.mxu0 0.0
    %8127 = vmatprep.subr.mxu0 0.0
    %8128 = vmatpush1.msra.mxu0 0.0
    %8129 = vmatprep.subr.mxu0 0.0
    %8130 = vmatpush1.msra.mxu0 0.0
    %8131 = vmatprep.subr.mxu0 0.0
    %8132 = vmatpush1.msra.mxu0 0.0
    %8133 = vmatprep.mubr.f32.mxu0 0.0
    %8134 = vmatmul.mubr.f32.gmra.mrb[0].mxu0 %v8047
    %v8135 = vpop.f32.mrb[0].mxu0
    %v8136 = vadd.f32 0.0, %v8135
    %v8137 = vpop.f32.mrb[0].mxu0
    %8138 = vmatprep.mubr.f32.mxu0 0.0
    %8139 = vmatmul.mubr.f32.gmra.mrb[0].mxu0 %v8048
    %v8140 = vpop.f32.mrb[0].mxu0
    %v8141 = vpop.f32.mrb[0].mxu0
    %8142 = vmatprep.mubr.f32.mxu0 0.0
    %8143 = vmatmul.mubr.f32.gmra.mrb[0].mxu0 %v8049
    %v8144 = vpop.f32.mrb[0].mxu0
    %v8145 = vpop.f32.mrb[0].mxu0
    %8146 = vmatprep.mubr.f32.mxu0 0.0
    %8147 = vmatmul.mubr.f32.gmra.mrb[0].mxu0 %v8050
    %v8148 = vpop.f32.mrb[0].mxu0
    %v8149 = vadd.f32 0.0, %v8148
    %v8150 = vpop.f32.mrb[0].mxu0
    %8151 = vmatprep.mubr.f32.mxu0 0.0
    %8152 = vmatmul.mubr.f32.gmra.mrb[0].mxu0 %v8051
    %v8153 = vpop.f32.mrb[0].mxu0
    %v8154 = vpop.f32.mrb[0].mxu0
    %8155 = vmatprep.mubr.f32.mxu0 0.0
    %8156 = vmatmul.mubr.f32.gmra.mrb[0].mxu0 %v8052
    %v8157 = vpop.f32.mrb[0].mxu0
    %v8158 = vpop.f32.mrb[0].mxu0
    %8159 = vdwg.mxu0
    %v8160 = vadd.f32 %v7771, %v8136
    %v8161 = vadd.f32 %v7774, %v8149
    %v8162 = vld [vmem:[%s1 + $0x620] sm:$0x1]
    %v8163 = vlaneseq
    %v8164 = vshrl.u32 %v8163, 7
    %v8165 = vsub.s32 0, %v8164
    %v8166 = vrot.slane %v8162, %v8165
    %v8167 = vadd.f32 %v8160, %v8166
    %v8168 = vadd.f32 %v8161, %v8166
    %v8170 = vrot.slane %v8168, 7
    %vm8172 = vcmask 1040384
    %v8173 = vsel %vm8172, %v8167, %v8170
    %v8174 = vld [vmem:[%s1 + $0x628] sm:$0x1]
    %v8175 = vld [vmem:[%s1 + $0x630] sm:$0x1]
    %vm8176 = vcmask 254976
    %v8177 = vsel %vm8176, %v8173, 0.0
    %8178 = vadd.xlane.f32.xlu0 %v8177
    %v8179 = vpop.xlane.xlu0 %8178
    %v8180 = vmul.f32 %v8179, %v168
    %v8181 = vsub.f32 %v8173, %v8180
    %v8182 = vmul.f32 %v8181, %v8181
    %v8183 = vsel %vm8176, %v8182, 0.0
    %8184 = vadd.xlane.f32.xlu0 %v8183
    %v8185 = vpop.xlane.xlu0 %8184
    %v8186 = vmul.f32 %v8185, %v168
    %v8187 = vadd.f32 %v8186, 1e-06
    %v8188 = vrsqrt.pop %v8187
    %v8189 = vmul.f32 %v8181, %v8188
    %v8190 = vlaneseq
    %v8191 = vshrl.u32 %v8190, 7
    %v8192 = vsub.s32 0, %v8191
    %v8193 = vrot.slane %v8174, %v8192
    %v8194 = vmul.f32 %v8189, %v8193
    %v8195 = vlaneseq
    %v8196 = vshrl.u32 %v8195, 7
    %v8197 = vsub.s32 0, %v8196
    %v8198 = vrot.slane %v8175, %v8197
    %v8199 = vadd.f32 %v8194, %v8198
    %v8200 = vld [vmem:[%s1 + $0x638] sm:$0xff]
    %v8201 = vld [vmem:[%s1 + $0x640] sm:$0xff]
    %v8202 = vld [vmem:[%s1 + $0x648] sm:$0xff]
    %v8203 = vld [vmem:[%s1 + $0x650] sm:$0xff]
    %v8204 = vld [vmem:[%s1 + $0x658] sm:$0x1]
    %v8205 = vlaneseq
    %v8206 = vshrl.u32 %v8205, 7
    %v8207 = vsub.s32 0, %v8206
    %v8208 = vrot.slane %v8204, %v8207
    %v8210 = vsel %vm149, %v8199, 0
    %8212 = vmatprep.subr.mxu0 0.0
    %8213 = vmatpush1.msra.mxu0 %v8200
    %8214 = vmatprep.subr.mxu0 0.0
    %8215 = vmatpush1.msra.mxu0 %v8201
    %8216 = vmatprep.subr.mxu0 0.0
    %8217 = vmatpush1.msra.mxu0 %v8202
    %8218 = vmatprep.subr.mxu0 0.0
    %8219 = vmatpush1.msra.mxu0 %v8203
    %8220 = vmatprep.subr.mxu0 0.0
    %8221 = vmatpush1.msra.mxu0 0.0
    %8222 = vmatprep.subr.mxu0 0.0
    %8223 = vmatpush1.msra.mxu0 0.0
    %8224 = vmatprep.subr.mxu0 0.0
    %8225 = vmatpush1.msra.mxu0 0.0
    %8226 = vmatprep.subr.mxu0 0.0
    %8227 = vmatpush1.msra.mxu0 0.0
    %8228 = vmatprep.subr.mxu0 0.0
    %8229 = vmatpush1.msra.mxu0 0.0
    %8230 = vmatprep.subr.mxu0 0.0
    %8231 = vmatpush1.msra.mxu0 0.0
    %8232 = vmatprep.subr.mxu0 0.0
    %8233 = vmatpush1.msra.mxu0 0.0
    %8234 = vmatprep.subr.mxu0 0.0
    %8235 = vmatpush1.msra.mxu0 0.0
    %8236 = vmatprep.subr.mxu0 0.0
    %8237 = vmatpush1.msra.mxu0 0.0
    %8238 = vmatprep.subr.mxu0 0.0
    %8239 = vmatpush1.msra.mxu0 0.0
    %8240 = vmatprep.subr.mxu0 0.0
    %8241 = vmatpush1.msra.mxu0 0.0
    %8242 = vmatprep.subr.mxu0 0.0
    %8243 = vmatpush1.msra.mxu0 0.0
    %8244 = vmatprep.subr.mxu0 0.0
    %8245 = vmatpush1.msra.mxu0 0.0
    %8246 = vmatprep.subr.mxu0 0.0
    %8247 = vmatpush1.msra.mxu0 0.0
    %8248 = vmatprep.subr.mxu0 0.0
    %8249 = vmatpush1.msra.mxu0 0.0
    %8250 = vmatprep.subr.mxu0 0.0
    %8251 = vmatpush1.msra.mxu0 0.0
    %8252 = vmatprep.subr.mxu0 0.0
    %8253 = vmatpush1.msra.mxu0 0.0
    %8254 = vmatprep.subr.mxu0 0.0
    %8255 = vmatpush1.msra.mxu0 0.0
    %8256 = vmatprep.subr.mxu0 0.0
    %8257 = vmatpush1.msra.mxu0 0.0
    %8258 = vmatprep.subr.mxu0 0.0
    %8259 = vmatpush1.msra.mxu0 0.0
    %8260 = vmatprep.subr.mxu0 0.0
    %8261 = vmatpush1.msra.mxu0 0.0
    %8262 = vmatprep.subr.mxu0 0.0
    %8263 = vmatpush1.msra.mxu0 0.0
    %8264 = vmatprep.subr.mxu0 0.0
    %8265 = vmatpush1.msra.mxu0 0.0
    %8266 = vmatprep.subr.mxu0 0.0
    %8267 = vmatpush1.msra.mxu0 0.0
    %8268 = vmatprep.subr.mxu0 0.0
    %8269 = vmatpush1.msra.mxu0 0.0
    %8270 = vmatprep.subr.mxu0 0.0
    %8271 = vmatpush1.msra.mxu0 0.0
    %8272 = vmatprep.subr.mxu0 0.0
    %8273 = vmatpush1.msra.mxu0 0.0
    %8274 = vmatprep.subr.mxu0 0.0
    %8275 = vmatpush1.msra.mxu0 0.0
    %8276 = vmatprep.mubr.f32.mxu0 0.0
    %8277 = vmatmul.mubr.f32.gmra.mrb[0].mxu0 %v8210
    %v8278 = vpop.f32.mrb[0].mxu0
    %v8279 = vadd.f32 %v8208, %v8278
    %v8280 = vpop.f32.mrb[0].mxu0
    %8281 = vdwg.mxu0
    %vm8282 = vcmask 17408
    %8283 = vst.msk [vmem:[#allocation2] sm:$0x3] %vm8282, %v8279
    // Predicated region
    $region10: #{tf_model_forward.1} parent=1 // pred_check
      _
    $region11: #{tf_model_forward.1} parent=1 // pred_check_branch
      %8285 = sbr.rel (0) target = $region13
    $region12: #{tf_model_forward.1} parent=1 // pred_region
      %s8287 = ssub.s32 32, 32
      %8288 = vsyncadd [#allocation3], %s8287
      %s8290 = sshll.u32 [#allocation2], 4
      %s8291 = int_to_ptr.vmem [resolvable:$true] %s8290
      %8293 = dma.vmem_to_hbm [thread:$0]  %s8291, 32, %s2, [#allocation3]
    $region13: #{tf_model_forward.1} parent=1 // pred_fallthru
      _
    // Predicated region
    $region14: #{tf_model_forward.1} parent=1 // pred_check
      _
    $region15: #{tf_model_forward.1} parent=1 // pred_check_branch
      %8295 = sbr.rel (0) target = $region17
    $region16: #{tf_model_forward.1} parent=1 // pred_region
      %8296 = dma.done [#allocation3], 32
    $region17: #{tf_model_forward.1} parent=1 // pred_fallthru
      _
    %8297 = vsyncpa [#allocation3], 1

</llo_original>
